<compile_context>
chip_gen: v6e
topology: v6e:2x2x1
jax: 0.10.0
libtpu: 0.0.40
codegen_flags: <defaults>
</compile_context>

<pallas_src>
import functools

import jax
import jax.numpy as jnp
from jax.experimental import pallas as pl
from jax.experimental.pallas import tpu as pltpu


# ---------------------------------------------------------------------------
# Exact-erf GELU (PyTorch F.gelu default).  Implemented with an
# Abramowitz-Stegun 7.1.26 polynomial (|erf error| < 1.5e-7, i.e. f32-accurate)
# so it lowers inside Mosaic with only mul/add/div/exp/where.
# ---------------------------------------------------------------------------
def gelu_erf(x):
    z = x * 0.7071067811865476
    a = jnp.abs(z)
    t = 1.0 / (1.0 + 0.3275911 * a)
    poly = t * (0.254829592 + t * (-0.284496736 + t * (1.421413741
               + t * (-1.453152027 + t * 1.061405429))))
    erf_abs = 1.0 - poly * jnp.exp(-a * a)
    erf = jnp.where(z < 0, -erf_abs, erf_abs)
    return 0.5 * x * (1.0 + erf)


# ---------------------------------------------------------------------------
# Kernel 1: row-tiled matmul with fused bias (project_in / generic 1x1 conv)
# ---------------------------------------------------------------------------
def _matmul_bias_kernel(x_ref, w_ref, b_ref, o_ref):
    acc = jnp.dot(x_ref[...].astype(jnp.bfloat16), w_ref[...],
                  preferred_element_type=jnp.float32)
    o_ref[...] = (acc + b_ref[...]).astype(o_ref.dtype)


def pointwise_conv(x2d, w_bf16, b_f32, *, out_dtype=jnp.bfloat16, block_rows=256):
    """(M, K) @ (K, N) + b.  Grid over M row-blocks, marked "parallel"."""
    M, K = x2d.shape
    N = w_bf16.shape[1]
    tm = min(block_rows, M)
    pad = (-M) % tm
    if pad:
        x2d = jnp.pad(x2d, ((0, pad), (0, 0)))
    mp = M + pad

    out = pl.pallas_call(
        _matmul_bias_kernel,
        grid=(mp // tm,),
        in_specs=[
            pl.BlockSpec((tm, K), lambda i: (i, 0)),
            pl.BlockSpec((K, N), lambda i: (0, 0)),   # weights stay resident
            pl.BlockSpec((1, N), lambda i: (0, 0)),
        ],
        out_specs=pl.BlockSpec((tm, N), lambda i: (i, 0)),
        out_shape=jax.ShapeDtypeStruct((mp, N), out_dtype),
        compiler_params=pltpu.CompilerParams(
            dimension_semantics=("parallel",)),
    )(x2d, w_bf16, b_f32.reshape(1, N))
    return out[:M] if pad else out


# ---------------------------------------------------------------------------
# Kernel 2: depthwise 3x3 conv + GELU gating + project_out, fully fused.
# ---------------------------------------------------------------------------
def _dwconv_gate_project_kernel(t_ref, wdw_ref, bdw_ref, wout_ref, bout_ref,
                                o_ref, tp_ref, *, H, W, C2, hidden, TH):
    # t_ref   : (1, H, W, C2)   bf16  project_in output for one image
    # wdw_ref : (9, C2)         f32   depthwise taps, row-major kh*3+kw
    # bdw_ref : (1, C2)         f32
    # wout_ref: (hidden, dim)   bf16
    # bout_ref: (1, dim)        f32
    # o_ref   : (1, H, W, dim)  f32
    # tp_ref  : (H+2, W+2, C2)  f32   zero-padded copy of t (the conv pads the
    #                                 *project_in output*, matching PyTorch)

    # Build the zero-padded scratch (cheap VMEM writes; per-row copies keep
    # register pressure low).
    tp_ref[...] = jnp.zeros(tp_ref.shape, jnp.float32)
    for h in range(H):
        tp_ref[h + 1, 1:W + 1, :] = t_ref[0, h].astype(jnp.float32)

    bdw = bdw_ref[...].reshape(1, 1, C2)
    wout = wout_ref[...]
    bout = bout_ref[...]

    for ti in range(H // TH):                 # short static loop -> unrolled
        h0 = ti * TH
        acc = jnp.zeros((TH, W, C2), jnp.float32)
        for kh in range(3):                   # kh shift on leading axis (free)
            for kw in range(3):               # kw shift: 3 static sublane offsets
                w_tap = wdw_ref[kh * 3 + kw].reshape(1, 1, C2)
                acc = acc + tp_ref[h0 + kh:h0 + kh + TH, kw:kw + W, :] * w_tap
        acc = acc + bdw

        # chunk(2, channel) + gating in f32 (lane-tile aligned split).
        x1 = acc[:, :, :hidden]
        x2 = acc[:, :, hidden:]
        g = gelu_erf(x1) * x2

        # project_out for this tile: (TH*W, hidden) @ (hidden, dim) + bias.
        g2 = g.reshape(TH * W, hidden).astype(jnp.bfloat16)
        out = jnp.dot(g2, wout, preferred_element_type=jnp.float32) + bout
        o_ref[0, h0:h0 + TH, :, :] = out.reshape(TH, W, -1)


def dwconv_gate_project(t, wdw9, bdw, wout_bf16, bout, *, hidden, tile_h=8):
    B, H, W, C2 = t.shape
    dim = wout_bf16.shape[1]
    TH = tile_h if H % tile_h == 0 else H
    kern = functools.partial(_dwconv_gate_project_kernel,
                             H=H, W=W, C2=C2, hidden=hidden, TH=TH)
    return pl.pallas_call(
        kern,
        grid=(B,),
        in_specs=[
            pl.BlockSpec((1, H, W, C2), lambda b: (b, 0, 0, 0)),
            pl.BlockSpec((9, C2), lambda b: (0, 0)),
            pl.BlockSpec((1, C2), lambda b: (0, 0)),
            pl.BlockSpec((hidden, dim), lambda b: (0, 0)),
            pl.BlockSpec((1, dim), lambda b: (0, 0)),
        ],
        out_specs=pl.BlockSpec((1, H, W, dim), lambda b: (b, 0, 0, 0)),
        out_shape=jax.ShapeDtypeStruct((B, H, W, dim), jnp.float32),
        scratch_shapes=[pltpu.VMEM((H + 2, W + 2, C2), jnp.float32)],
        compiler_params=pltpu.CompilerParams(
            dimension_semantics=("parallel",)),
    )(t, wdw9, bdw.reshape(1, C2), wout_bf16, bout.reshape(1, dim))


# ---------------------------------------------------------------------------
# FeedForward forward pass (public interface matches the PyTorch module: NCHW)
# ---------------------------------------------------------------------------
def feed_forward(params, x_nchw):
    """x: (B, dim, H, W) float32 -> (B, dim, H, W) float32."""
    B, dim, H, W = x_nchw.shape
    hidden = params["w_out"].shape[0]
    c2 = 2 * hidden

    x_nhwc = jnp.transpose(x_nchw, (0, 2, 3, 1)).astype(jnp.float32)

    # bf16 MXU operands (f32 masters kept in params), per perf review.
    w_in = params["w_in"].astype(jnp.bfloat16)      # (dim, 2*hidden)
    w_out = params["w_out"].astype(jnp.bfloat16)    # (hidden, dim)
    wdw9 = params["w_dw"].reshape(9, c2)            # (3,3,C2) -> (9, C2)

    # Launch 1: project_in (1x1 conv) as a row-tiled matmul, bf16 activations.
    t = pointwise_conv(x_nhwc.reshape(B * H * W, dim), w_in, params["b_in"],
                       out_dtype=jnp.bfloat16)
    t = t.reshape(B, H, W, c2)

    # Launch 2: depthwise 3x3 + gelu(x1)*x2 + project_out, one fused kernel.
    out = dwconv_gate_project(t, wdw9, params["b_dw"], w_out, params["b_out"],
                              hidden=hidden)
    return jnp.transpose(out, (0, 3, 1, 2))


# ---------------------------------------------------------------------------
# Pure-JAX reference (mirrors the intentional bf16 casts of the kernels so the
# comparison checks kernel logic; the bf16 quantization itself is a deliberate
# perf choice from the review).
# ---------------------------------------------------------------------------
def feed_forward_reference(params, x_nchw):
    B, dim, H, W = x_nchw.shape
    hidden = params["w_out"].shape[0]
    c2 = 2 * hidden
    x = jnp.transpose(x_nchw, (0, 2, 3, 1)).astype(jnp.float32)

    w_in = params["w_in"].astype(jnp.bfloat16)
    w_out = params["w_out"].astype(jnp.bfloat16)

    t = jnp.dot(x.reshape(B * H * W, dim).astype(jnp.bfloat16), w_in,
                preferred_element_type=jnp.float32) + params["b_in"]
    t = t.astype(jnp.bfloat16).astype(jnp.float32).reshape(B, H, W, c2)

    wdw = params["w_dw"].reshape(3, 3, 1, c2)       # HWIO, I = C2/groups = 1
    conv = jax.lax.conv_general_dilated(
        t, wdw, window_strides=(1, 1), padding=((1, 1), (1, 1)),
        dimension_numbers=("NHWC", "HWIO", "NHWC"), feature_group_count=c2)
    conv = conv + params["b_dw"]

    x1, x2 = conv[..., :hidden], conv[..., hidden:]
    g = (gelu_erf(x1) * x2).astype(jnp.bfloat16)
    out = jnp.dot(g.reshape(B * H * W, hidden), w_out,
                  preferred_element_type=jnp.float32) + params["b_out"]
    return jnp.transpose(out.reshape(B, H, W, dim), (0, 3, 1, 2))


# ---------------------------------------------------------------------------
# Deterministic parameter init (Conv2d weights expressed as (Cin, Cout) /
# (KH, KW, C) matrices for the NHWC kernels).
# ---------------------------------------------------------------------------
def init_feed_forward(key, dim, ffn_expansion_factor=2.0):
    hidden = int(dim * ffn_expansion_factor)
    c2 = 2 * hidden
    ks = jax.random.split(key, 6)
    return {
        "w_in": jax.random.normal(ks[0], (dim, c2), jnp.float32) / (float(dim) ** 0.5),
        "b_in": 0.3 * jax.random.normal(ks[1], (c2,), jnp.float32),
        "w_dw": jax.random.normal(ks[2], (3, 3, c2), jnp.float32) / 3.0,
        "b_dw": 0.3 * jax.random.normal(ks[3], (c2,), jnp.float32),
        "w_out": jax.random.normal(ks[4], (hidden, dim), jnp.float32) / (float(hidden) ** 0.5),
        "b_out": 0.3 * jax.random.normal(ks[5], (dim,), jnp.float32),
    }


# ---------------------------------------------------------------------------
# Main
# ---------------------------------------------------------------------------
if __name__ == "__main__":
    # dim=64, expansion=2.0 -> hidden=128, dwconv width=256 (lane-dense).
    # (AFENet uses ffn_expansion_factor=2.66; the kernels handle any hidden,
    #  but the demo picks a 128-multiple hidden width for dense vregs.)
    DIM, FFN_FACTOR = 64, 2.0
    B, H, W = 2, 16, 16

    key = jax.random.PRNGKey(0)
    pkey, xkey = jax.random.split(key)
    params = init_feed_forward(pkey, DIM, FFN_FACTOR)
    x = jax.random.normal(xkey, (B, DIM, H, W), dtype=jnp.float32)

    fwd = jax.jit(feed_forward)
    out = jax.block_until_ready(fwd(params, x))

    assert out.shape == (B, DIM, H, W), out.shape
    assert bool(jnp.all(jnp.isfinite(out)))

    ref = feed_forward_reference(params, x)
    err = float(jnp.max(jnp.abs(out - ref)))
    assert err < 2e-2, f"max |pallas - ref| = {err}"

    print("KERNEL_OK")
</pallas_src>

<mosaic_0001>
module attributes {stable_mosaic.version = 11 : i64} {
  func.func @_matmul_bias_kernel(%arg0: i32, %arg1: memref<256x64xf32, #tpu.memory_space<vmem>>, %arg2: memref<64x256xbf16, #tpu.memory_space<vmem>>, %arg3: memref<1x256xf32, #tpu.memory_space<vmem>>, %arg4: memref<256x256xbf16, #tpu.memory_space<vmem>>) attributes {dimension_semantics = [#tpu.dimension_semantics<parallel>], iteration_bounds = array<i64: 2>, scalar_prefetch = 0 : i64, scratch_operands = 0 : i64, tpu.core_type = #tpu.core_type<tc>, window_params = [{transform_indices = @transform_0, window_bounds = array<i64: 256, 64>}, {pipeline_mode = #tpu.pipeline_mode<synchronous>, transform_indices = @transform_1, window_bounds = array<i64: 64, 256>}, {pipeline_mode = #tpu.pipeline_mode<synchronous>, transform_indices = @transform_2, window_bounds = array<i64: 1, 256>}, {transform_indices = @transform_3, window_bounds = array<i64: 256, 256>}]} {
    %c0 = arith.constant 0 : index
    %c0_0 = arith.constant 0 : index
    %0 = vector.load %arg1[%c0, %c0_0] : memref<256x64xf32, #tpu.memory_space<vmem>>, vector<256x64xf32>
    %1 = arith.truncf %0 : vector<256x64xf32> to vector<256x64xbf16>
    %c0_1 = arith.constant 0 : index
    %c0_2 = arith.constant 0 : index
    %2 = vector.load %arg2[%c0_1, %c0_2] : memref<64x256xbf16, #tpu.memory_space<vmem>>, vector<64x256xbf16>
    %cst = arith.constant dense<0.000000e+00> : vector<256x256xf32>
    %3 = tpu.matmul %1, %2, %cst {dimension_numbers = #tpu.dot_dimension_numbers<[1], [0], [0], [1], [0, 0, 1, 1], [], []>} : vector<256x64xbf16>, vector<64x256xbf16>, vector<256x256xf32> -> vector<256x256xf32>
    %c0_3 = arith.constant 0 : index
    %c0_4 = arith.constant 0 : index
    %4 = vector.load %arg3[%c0_3, %c0_4] : memref<1x256xf32, #tpu.memory_space<vmem>>, vector<1x256xf32>
    %5 = vector.broadcast %4 : vector<1x256xf32> to vector<256x256xf32>
    %6 = arith.addf %3, %5 : vector<256x256xf32>
    %7 = arith.truncf %6 : vector<256x256xf32> to vector<256x256xbf16>
    %c0_5 = arith.constant 0 : index
    %c0_6 = arith.constant 0 : index
    %8 = vector.load %arg4[%c0_5, %c0_6] : memref<256x256xbf16, #tpu.memory_space<vmem>>, vector<256x256xbf16>
    tpu.vector_store %arg4[%c0_5, %c0_6], %7 {strides = array<i32>} : memref<256x256xbf16, #tpu.memory_space<vmem>>, vector<256x256xbf16>,
    return
  }
  func.func @transform_0(%arg0: i32) -> (i32, i32) {
    %c0_i32 = arith.constant 0 : i32
    %c0_i32_0 = arith.constant 0 : i32
    return %arg0, %c0_i32 : i32, i32
  }
  func.func @transform_1(%arg0: i32) -> (i32, i32) {
    %c0_i32 = arith.constant 0 : i32
    %c0_i32_0 = arith.constant 0 : i32
    %c0_i32_1 = arith.constant 0 : i32
    return %c0_i32, %c0_i32_0 : i32, i32
  }
  func.func @transform_2(%arg0: i32) -> (i32, i32) {
    %c0_i32 = arith.constant 0 : i32
    %c0_i32_0 = arith.constant 0 : i32
    %c0_i32_1 = arith.constant 0 : i32
    return %c0_i32, %c0_i32_0 : i32, i32
  }
  func.func @transform_3(%arg0: i32) -> (i32, i32) {
    %c0_i32 = arith.constant 0 : i32
    %c0_i32_0 = arith.constant 0 : i32
    return %arg0, %c0_i32 : i32, i32
  }
}

module attributes {stable_mosaic.version = 11 : i64} {
  func.func @_dwconv_gate_project_kernel(%arg0: i32, %arg1: memref<1x16x16x256xbf16, #tpu.memory_space<vmem>>, %arg2: memref<9x256xf32, #tpu.memory_space<vmem>>, %arg3: memref<1x256xf32, #tpu.memory_space<vmem>>, %arg4: memref<128x64xbf16, #tpu.memory_space<vmem>>, %arg5: memref<1x64xf32, #tpu.memory_space<vmem>>, %arg6: memref<1x16x16x64xf32, #tpu.memory_space<vmem>>, %arg7: memref<18x18x256xf32, #tpu.memory_space<vmem>>) attributes {dimension_semantics = [#tpu.dimension_semantics<parallel>], iteration_bounds = array<i64: 2>, scalar_prefetch = 0 : i64, scratch_operands = 1 : i64, tpu.core_type = #tpu.core_type<tc>, window_params = [{transform_indices = @transform_0, window_bounds = array<i64: 1, 16, 16, 256>}, {pipeline_mode = #tpu.pipeline_mode<synchronous>, transform_indices = @transform_1, window_bounds = array<i64: 9, 256>}, {pipeline_mode = #tpu.pipeline_mode<synchronous>, transform_indices = @transform_2, window_bounds = array<i64: 1, 256>}, {pipeline_mode = #tpu.pipeline_mode<synchronous>, transform_indices = @transform_3, window_bounds = array<i64: 128, 64>}, {pipeline_mode = #tpu.pipeline_mode<synchronous>, transform_indices = @transform_4, window_bounds = array<i64: 1, 64>}, {transform_indices = @transform_5, window_bounds = array<i64: 1, 16, 16, 64>}]} {
    %cst = arith.constant 0.000000e+00 : f32
    %0 = vector.broadcast %cst : f32 to vector<18x18x256xf32>
    %c0 = arith.constant 0 : index
    %c0_0 = arith.constant 0 : index
    %c0_1 = arith.constant 0 : index
    %1 = vector.load %arg7[%c0, %c0_0, %c0_1] : memref<18x18x256xf32, #tpu.memory_space<vmem>>, vector<18x18x256xf32>
    tpu.vector_store %arg7[%c0, %c0_0, %c0_1], %0 {strides = array<i32>} : memref<18x18x256xf32, #tpu.memory_space<vmem>>, vector<18x18x256xf32>,
    %c0_2 = arith.constant 0 : index
    %c0_3 = arith.constant 0 : index
    %c0_4 = arith.constant 0 : index
    %c0_5 = arith.constant 0 : index
    %2 = vector.load %arg1[%c0_2, %c0_3, %c0_4, %c0_5] : memref<1x16x16x256xbf16, #tpu.memory_space<vmem>>, vector<1x1x16x256xbf16>
    %3 = vector.shape_cast %2 : vector<1x1x16x256xbf16> to vector<16x256xbf16>
    %4 = arith.extf %3 : vector<16x256xbf16> to vector<16x256xf32>
    %c1 = arith.constant 1 : index
    %c1_6 = arith.constant 1 : index
    %c0_7 = arith.constant 0 : index
    %5 = vector.load %arg7[%c1, %c1_6, %c0_7] : memref<18x18x256xf32, #tpu.memory_space<vmem>>, vector<1x16x256xf32>
    %6 = vector.shape_cast %5 : vector<1x16x256xf32> to vector<16x256xf32>
    %7 = vector.shape_cast %4 : vector<16x256xf32> to vector<1x16x256xf32>
    tpu.vector_store %arg7[%c1, %c1_6, %c0_7], %7 {strides = array<i32>} : memref<18x18x256xf32, #tpu.memory_space<vmem>>, vector<1x16x256xf32>,
    %c0_8 = arith.constant 0 : index
    %c1_9 = arith.constant 1 : index
    %c0_10 = arith.constant 0 : index
    %c0_11 = arith.constant 0 : index
    %8 = vector.load %arg1[%c0_8, %c1_9, %c0_10, %c0_11] : memref<1x16x16x256xbf16, #tpu.memory_space<vmem>>, vector<1x1x16x256xbf16>
    %9 = vector.shape_cast %8 : vector<1x1x16x256xbf16> to vector<16x256xbf16>
    %10 = arith.extf %9 : vector<16x256xbf16> to vector<16x256xf32>
    %c2 = arith.constant 2 : index
    %c1_12 = arith.constant 1 : index
    %c0_13 = arith.constant 0 : index
    %11 = vector.load %arg7[%c2, %c1_12, %c0_13] : memref<18x18x256xf32, #tpu.memory_space<vmem>>, vector<1x16x256xf32>
    %12 = vector.shape_cast %11 : vector<1x16x256xf32> to vector<16x256xf32>
    %13 = vector.shape_cast %10 : vector<16x256xf32> to vector<1x16x256xf32>
    tpu.vector_store %arg7[%c2, %c1_12, %c0_13], %13 {strides = array<i32>} : memref<18x18x256xf32, #tpu.memory_space<vmem>>, vector<1x16x256xf32>,
    %c0_14 = arith.constant 0 : index
    %c2_15 = arith.constant 2 : index
    %c0_16 = arith.constant 0 : index
    %c0_17 = arith.constant 0 : index
    %14 = vector.load %arg1[%c0_14, %c2_15, %c0_16, %c0_17] : memref<1x16x16x256xbf16, #tpu.memory_space<vmem>>, vector<1x1x16x256xbf16>
    %15 = vector.shape_cast %14 : vector<1x1x16x256xbf16> to vector<16x256xbf16>
    %16 = arith.extf %15 : vector<16x256xbf16> to vector<16x256xf32>
    %c3 = arith.constant 3 : index
    %c1_18 = arith.constant 1 : index
    %c0_19 = arith.constant 0 : index
    %17 = vector.load %arg7[%c3, %c1_18, %c0_19] : memref<18x18x256xf32, #tpu.memory_space<vmem>>, vector<1x16x256xf32>
    %18 = vector.shape_cast %17 : vector<1x16x256xf32> to vector<16x256xf32>
    %19 = vector.shape_cast %16 : vector<16x256xf32> to vector<1x16x256xf32>
    tpu.vector_store %arg7[%c3, %c1_18, %c0_19], %19 {strides = array<i32>} : memref<18x18x256xf32, #tpu.memory_space<vmem>>, vector<1x16x256xf32>,
    %c0_20 = arith.constant 0 : index
    %c3_21 = arith.constant 3 : index
    %c0_22 = arith.constant 0 : index
    %c0_23 = arith.constant 0 : index
    %20 = vector.load %arg1[%c0_20, %c3_21, %c0_22, %c0_23] : memref<1x16x16x256xbf16, #tpu.memory_space<vmem>>, vector<1x1x16x256xbf16>
    %21 = vector.shape_cast %20 : vector<1x1x16x256xbf16> to vector<16x256xbf16>
    %22 = arith.extf %21 : vector<16x256xbf16> to vector<16x256xf32>
    %c4 = arith.constant 4 : index
    %c1_24 = arith.constant 1 : index
    %c0_25 = arith.constant 0 : index
    %23 = vector.load %arg7[%c4, %c1_24, %c0_25] : memref<18x18x256xf32, #tpu.memory_space<vmem>>, vector<1x16x256xf32>
    %24 = vector.shape_cast %23 : vector<1x16x256xf32> to vector<16x256xf32>
    %25 = vector.shape_cast %22 : vector<16x256xf32> to vector<1x16x256xf32>
    tpu.vector_store %arg7[%c4, %c1_24, %c0_25], %25 {strides = array<i32>} : memref<18x18x256xf32, #tpu.memory_space<vmem>>, vector<1x16x256xf32>,
    %c0_26 = arith.constant 0 : index
    %c4_27 = arith.constant 4 : index
    %c0_28 = arith.constant 0 : index
    %c0_29 = arith.constant 0 : index
    %26 = vector.load %arg1[%c0_26, %c4_27, %c0_28, %c0_29] : memref<1x16x16x256xbf16, #tpu.memory_space<vmem>>, vector<1x1x16x256xbf16>
    %27 = vector.shape_cast %26 : vector<1x1x16x256xbf16> to vector<16x256xbf16>
    %28 = arith.extf %27 : vector<16x256xbf16> to vector<16x256xf32>
    %c5 = arith.constant 5 : index
    %c1_30 = arith.constant 1 : index
    %c0_31 = arith.constant 0 : index
    %29 = vector.load %arg7[%c5, %c1_30, %c0_31] : memref<18x18x256xf32, #tpu.memory_space<vmem>>, vector<1x16x256xf32>
    %30 = vector.shape_cast %29 : vector<1x16x256xf32> to vector<16x256xf32>
    %31 = vector.shape_cast %28 : vector<16x256xf32> to vector<1x16x256xf32>
    tpu.vector_store %arg7[%c5, %c1_30, %c0_31], %31 {strides = array<i32>} : memref<18x18x256xf32, #tpu.memory_space<vmem>>, vector<1x16x256xf32>,
    %c0_32 = arith.constant 0 : index
    %c5_33 = arith.constant 5 : index
    %c0_34 = arith.constant 0 : index
    %c0_35 = arith.constant 0 : index
    %32 = vector.load %arg1[%c0_32, %c5_33, %c0_34, %c0_35] : memref<1x16x16x256xbf16, #tpu.memory_space<vmem>>, vector<1x1x16x256xbf16>
    %33 = vector.shape_cast %32 : vector<1x1x16x256xbf16> to vector<16x256xbf16>
    %34 = arith.extf %33 : vector<16x256xbf16> to vector<16x256xf32>
    %c6 = arith.constant 6 : index
    %c1_36 = arith.constant 1 : index
    %c0_37 = arith.constant 0 : index
    %35 = vector.load %arg7[%c6, %c1_36, %c0_37] : memref<18x18x256xf32, #tpu.memory_space<vmem>>, vector<1x16x256xf32>
    %36 = vector.shape_cast %35 : vector<1x16x256xf32> to vector<16x256xf32>
    %37 = vector.shape_cast %34 : vector<16x256xf32> to vector<1x16x256xf32>
    tpu.vector_store %arg7[%c6, %c1_36, %c0_37], %37 {strides = array<i32>} : memref<18x18x256xf32, #tpu.memory_space<vmem>>, vector<1x16x256xf32>,
    %c0_38 = arith.constant 0 : index
    %c6_39 = arith.constant 6 : index
    %c0_40 = arith.constant 0 : index
    %c0_41 = arith.constant 0 : index
    %38 = vector.load %arg1[%c0_38, %c6_39, %c0_40, %c0_41] : memref<1x16x16x256xbf16, #tpu.memory_space<vmem>>, vector<1x1x16x256xbf16>
    %39 = vector.shape_cast %38 : vector<1x1x16x256xbf16> to vector<16x256xbf16>
    %40 = arith.extf %39 : vector<16x256xbf16> to vector<16x256xf32>
    %c7 = arith.constant 7 : index
    %c1_42 = arith.constant 1 : index
    %c0_43 = arith.constant 0 : index
    %41 = vector.load %arg7[%c7, %c1_42, %c0_43] : memref<18x18x256xf32, #tpu.memory_space<vmem>>, vector<1x16x256xf32>
    %42 = vector.shape_cast %41 : vector<1x16x256xf32> to vector<16x256xf32>
    %43 = vector.shape_cast %40 : vector<16x256xf32> to vector<1x16x256xf32>
    tpu.vector_store %arg7[%c7, %c1_42, %c0_43], %43 {strides = array<i32>} : memref<18x18x256xf32, #tpu.memory_space<vmem>>, vector<1x16x256xf32>,
    %c0_44 = arith.constant 0 : index
    %c7_45 = arith.constant 7 : index
    %c0_46 = arith.constant 0 : index
    %c0_47 = arith.constant 0 : index
    %44 = vector.load %arg1[%c0_44, %c7_45, %c0_46, %c0_47] : memref<1x16x16x256xbf16, #tpu.memory_space<vmem>>, vector<1x1x16x256xbf16>
    %45 = vector.shape_cast %44 : vector<1x1x16x256xbf16> to vector<16x256xbf16>
    %46 = arith.extf %45 : vector<16x256xbf16> to vector<16x256xf32>
    %c8 = arith.constant 8 : index
    %c1_48 = arith.constant 1 : index
    %c0_49 = arith.constant 0 : index
    %47 = vector.load %arg7[%c8, %c1_48, %c0_49] : memref<18x18x256xf32, #tpu.memory_space<vmem>>, vector<1x16x256xf32>
    %48 = vector.shape_cast %47 : vector<1x16x256xf32> to vector<16x256xf32>
    %49 = vector.shape_cast %46 : vector<16x256xf32> to vector<1x16x256xf32>
    tpu.vector_store %arg7[%c8, %c1_48, %c0_49], %49 {strides = array<i32>} : memref<18x18x256xf32, #tpu.memory_space<vmem>>, vector<1x16x256xf32>,
    %c0_50 = arith.constant 0 : index
    %c8_51 = arith.constant 8 : index
    %c0_52 = arith.constant 0 : index
    %c0_53 = arith.constant 0 : index
    %50 = vector.load %arg1[%c0_50, %c8_51, %c0_52, %c0_53] : memref<1x16x16x256xbf16, #tpu.memory_space<vmem>>, vector<1x1x16x256xbf16>
    %51 = vector.shape_cast %50 : vector<1x1x16x256xbf16> to vector<16x256xbf16>
    %52 = arith.extf %51 : vector<16x256xbf16> to vector<16x256xf32>
    %c9 = arith.constant 9 : index
    %c1_54 = arith.constant 1 : index
    %c0_55 = arith.constant 0 : index
    %53 = vector.load %arg7[%c9, %c1_54, %c0_55] : memref<18x18x256xf32, #tpu.memory_space<vmem>>, vector<1x16x256xf32>
    %54 = vector.shape_cast %53 : vector<1x16x256xf32> to vector<16x256xf32>
    %55 = vector.shape_cast %52 : vector<16x256xf32> to vector<1x16x256xf32>
    tpu.vector_store %arg7[%c9, %c1_54, %c0_55], %55 {strides = array<i32>} : memref<18x18x256xf32, #tpu.memory_space<vmem>>, vector<1x16x256xf32>,
    %c0_56 = arith.constant 0 : index
    %c9_57 = arith.constant 9 : index
    %c0_58 = arith.constant 0 : index
    %c0_59 = arith.constant 0 : index
    %56 = vector.load %arg1[%c0_56, %c9_57, %c0_58, %c0_59] : memref<1x16x16x256xbf16, #tpu.memory_space<vmem>>, vector<1x1x16x256xbf16>
    %57 = vector.shape_cast %56 : vector<1x1x16x256xbf16> to vector<16x256xbf16>
    %58 = arith.extf %57 : vector<16x256xbf16> to vector<16x256xf32>
    %c10 = arith.constant 10 : index
    %c1_60 = arith.constant 1 : index
    %c0_61 = arith.constant 0 : index
    %59 = vector.load %arg7[%c10, %c1_60, %c0_61] : memref<18x18x256xf32, #tpu.memory_space<vmem>>, vector<1x16x256xf32>
    %60 = vector.shape_cast %59 : vector<1x16x256xf32> to vector<16x256xf32>
    %61 = vector.shape_cast %58 : vector<16x256xf32> to vector<1x16x256xf32>
    tpu.vector_store %arg7[%c10, %c1_60, %c0_61], %61 {strides = array<i32>} : memref<18x18x256xf32, #tpu.memory_space<vmem>>, vector<1x16x256xf32>,
    %c0_62 = arith.constant 0 : index
    %c10_63 = arith.constant 10 : index
    %c0_64 = arith.constant 0 : index
    %c0_65 = arith.constant 0 : index
    %62 = vector.load %arg1[%c0_62, %c10_63, %c0_64, %c0_65] : memref<1x16x16x256xbf16, #tpu.memory_space<vmem>>, vector<1x1x16x256xbf16>
    %63 = vector.shape_cast %62 : vector<1x1x16x256xbf16> to vector<16x256xbf16>
    %64 = arith.extf %63 : vector<16x256xbf16> to vector<16x256xf32>
    %c11 = arith.constant 11 : index
    %c1_66 = arith.constant 1 : index
    %c0_67 = arith.constant 0 : index
    %65 = vector.load %arg7[%c11, %c1_66, %c0_67] : memref<18x18x256xf32, #tpu.memory_space<vmem>>, vector<1x16x256xf32>
    %66 = vector.shape_cast %65 : vector<1x16x256xf32> to vector<16x256xf32>
    %67 = vector.shape_cast %64 : vector<16x256xf32> to vector<1x16x256xf32>
    tpu.vector_store %arg7[%c11, %c1_66, %c0_67], %67 {strides = array<i32>} : memref<18x18x256xf32, #tpu.memory_space<vmem>>, vector<1x16x256xf32>,
    %c0_68 = arith.constant 0 : index
    %c11_69 = arith.constant 11 : index
    %c0_70 = arith.constant 0 : index
    %c0_71 = arith.constant 0 : index
    %68 = vector.load %arg1[%c0_68, %c11_69, %c0_70, %c0_71] : memref<1x16x16x256xbf16, #tpu.memory_space<vmem>>, vector<1x1x16x256xbf16>
    %69 = vector.shape_cast %68 : vector<1x1x16x256xbf16> to vector<16x256xbf16>
    %70 = arith.extf %69 : vector<16x256xbf16> to vector<16x256xf32>
    %c12 = arith.constant 12 : index
    %c1_72 = arith.constant 1 : index
    %c0_73 = arith.constant 0 : index
    %71 = vector.load %arg7[%c12, %c1_72, %c0_73] : memref<18x18x256xf32, #tpu.memory_space<vmem>>, vector<1x16x256xf32>
    %72 = vector.shape_cast %71 : vector<1x16x256xf32> to vector<16x256xf32>
    %73 = vector.shape_cast %70 : vector<16x256xf32> to vector<1x16x256xf32>
    tpu.vector_store %arg7[%c12, %c1_72, %c0_73], %73 {strides = array<i32>} : memref<18x18x256xf32, #tpu.memory_space<vmem>>, vector<1x16x256xf32>,
    %c0_74 = arith.constant 0 : index
    %c12_75 = arith.constant 12 : index
    %c0_76 = arith.constant 0 : index
    %c0_77 = arith.constant 0 : index
    %74 = vector.load %arg1[%c0_74, %c12_75, %c0_76, %c0_77] : memref<1x16x16x256xbf16, #tpu.memory_space<vmem>>, vector<1x1x16x256xbf16>
    %75 = vector.shape_cast %74 : vector<1x1x16x256xbf16> to vector<16x256xbf16>
    %76 = arith.extf %75 : vector<16x256xbf16> to vector<16x256xf32>
    %c13 = arith.constant 13 : index
    %c1_78 = arith.constant 1 : index
    %c0_79 = arith.constant 0 : index
    %77 = vector.load %arg7[%c13, %c1_78, %c0_79] : memref<18x18x256xf32, #tpu.memory_space<vmem>>, vector<1x16x256xf32>
    %78 = vector.shape_cast %77 : vector<1x16x256xf32> to vector<16x256xf32>
    %79 = vector.shape_cast %76 : vector<16x256xf32> to vector<1x16x256xf32>
    tpu.vector_store %arg7[%c13, %c1_78, %c0_79], %79 {strides = array<i32>} : memref<18x18x256xf32, #tpu.memory_space<vmem>>, vector<1x16x256xf32>,
    %c0_80 = arith.constant 0 : index
    %c13_81 = arith.constant 13 : index
    %c0_82 = arith.constant 0 : index
    %c0_83 = arith.constant 0 : index
    %80 = vector.load %arg1[%c0_80, %c13_81, %c0_82, %c0_83] : memref<1x16x16x256xbf16, #tpu.memory_space<vmem>>, vector<1x1x16x256xbf16>
    %81 = vector.shape_cast %80 : vector<1x1x16x256xbf16> to vector<16x256xbf16>
    %82 = arith.extf %81 : vector<16x256xbf16> to vector<16x256xf32>
    %c14 = arith.constant 14 : index
    %c1_84 = arith.constant 1 : index
    %c0_85 = arith.constant 0 : index
    %83 = vector.load %arg7[%c14, %c1_84, %c0_85] : memref<18x18x256xf32, #tpu.memory_space<vmem>>, vector<1x16x256xf32>
    %84 = vector.shape_cast %83 : vector<1x16x256xf32> to vector<16x256xf32>
    %85 = vector.shape_cast %82 : vector<16x256xf32> to vector<1x16x256xf32>
    tpu.vector_store %arg7[%c14, %c1_84, %c0_85], %85 {strides = array<i32>} : memref<18x18x256xf32, #tpu.memory_space<vmem>>, vector<1x16x256xf32>,
    %c0_86 = arith.constant 0 : index
    %c14_87 = arith.constant 14 : index
    %c0_88 = arith.constant 0 : index
    %c0_89 = arith.constant 0 : index
    %86 = vector.load %arg1[%c0_86, %c14_87, %c0_88, %c0_89] : memref<1x16x16x256xbf16, #tpu.memory_space<vmem>>, vector<1x1x16x256xbf16>
    %87 = vector.shape_cast %86 : vector<1x1x16x256xbf16> to vector<16x256xbf16>
    %88 = arith.extf %87 : vector<16x256xbf16> to vector<16x256xf32>
    %c15 = arith.constant 15 : index
    %c1_90 = arith.constant 1 : index
    %c0_91 = arith.constant 0 : index
    %89 = vector.load %arg7[%c15, %c1_90, %c0_91] : memref<18x18x256xf32, #tpu.memory_space<vmem>>, vector<1x16x256xf32>
    %90 = vector.shape_cast %89 : vector<1x16x256xf32> to vector<16x256xf32>
    %91 = vector.shape_cast %88 : vector<16x256xf32> to vector<1x16x256xf32>
    tpu.vector_store %arg7[%c15, %c1_90, %c0_91], %91 {strides = array<i32>} : memref<18x18x256xf32, #tpu.memory_space<vmem>>, vector<1x16x256xf32>,
    %c0_92 = arith.constant 0 : index
    %c15_93 = arith.constant 15 : index
    %c0_94 = arith.constant 0 : index
    %c0_95 = arith.constant 0 : index
    %92 = vector.load %arg1[%c0_92, %c15_93, %c0_94, %c0_95] : memref<1x16x16x256xbf16, #tpu.memory_space<vmem>>, vector<1x1x16x256xbf16>
    %93 = vector.shape_cast %92 : vector<1x1x16x256xbf16> to vector<16x256xbf16>
    %94 = arith.extf %93 : vector<16x256xbf16> to vector<16x256xf32>
    %c16 = arith.constant 16 : index
    %c1_96 = arith.constant 1 : index
    %c0_97 = arith.constant 0 : index
    %95 = vector.load %arg7[%c16, %c1_96, %c0_97] : memref<18x18x256xf32, #tpu.memory_space<vmem>>, vector<1x16x256xf32>
    %96 = vector.shape_cast %95 : vector<1x16x256xf32> to vector<16x256xf32>
    %97 = vector.shape_cast %94 : vector<16x256xf32> to vector<1x16x256xf32>
    tpu.vector_store %arg7[%c16, %c1_96, %c0_97], %97 {strides = array<i32>} : memref<18x18x256xf32, #tpu.memory_space<vmem>>, vector<1x16x256xf32>,
    %c0_98 = arith.constant 0 : index
    %c0_99 = arith.constant 0 : index
    %98 = vector.load %arg3[%c0_98, %c0_99] : memref<1x256xf32, #tpu.memory_space<vmem>>, vector<1x256xf32>
    %99 = vector.shape_cast %98 : vector<1x256xf32> to vector<1x1x256xf32>
    %c0_100 = arith.constant 0 : index
    %c0_101 = arith.constant 0 : index
    %100 = vector.load %arg4[%c0_100, %c0_101] : memref<128x64xbf16, #tpu.memory_space<vmem>>, vector<128x64xbf16>
    %c0_102 = arith.constant 0 : index
    %c0_103 = arith.constant 0 : index
    %101 = vector.load %arg5[%c0_102, %c0_103] : memref<1x64xf32, #tpu.memory_space<vmem>>, vector<1x64xf32>
    %cst_104 = arith.constant 0.000000e+00 : f32
    %102 = vector.broadcast %cst_104 : f32 to vector<8x16x256xf32>
    %c0_105 = arith.constant 0 : index
    %c0_106 = arith.constant 0 : index
    %103 = vector.load %arg2[%c0_105, %c0_106] : memref<9x256xf32, #tpu.memory_space<vmem>>, vector<1x256xf32>
    %104 = vector.shape_cast %103 : vector<1x256xf32> to vector<256xf32>
    %105 = vector.shape_cast %104 : vector<256xf32> to vector<1x1x256xf32>
    %c0_107 = arith.constant 0 : index
    %c0_108 = arith.constant 0 : index
    %c0_109 = arith.constant 0 : index
    %106 = vector.load %arg7[%c0_107, %c0_108, %c0_109] : memref<18x18x256xf32, #tpu.memory_space<vmem>>, vector<8x16x256xf32>
    %107 = vector.broadcast %105 : vector<1x1x256xf32> to vector<8x16x256xf32>
    %108 = arith.mulf %106, %107 : vector<8x16x256xf32>
    %109 = arith.addf %102, %108 : vector<8x16x256xf32>
    %c1_110 = arith.constant 1 : index
    %c0_111 = arith.constant 0 : index
    %110 = vector.load %arg2[%c1_110, %c0_111] : memref<9x256xf32, #tpu.memory_space<vmem>>, vector<1x256xf32>
    %111 = vector.shape_cast %110 : vector<1x256xf32> to vector<256xf32>
    %112 = vector.shape_cast %111 : vector<256xf32> to vector<1x1x256xf32>
    %c0_112 = arith.constant 0 : index
    %c1_113 = arith.constant 1 : index
    %c0_114 = arith.constant 0 : index
    %113 = vector.load %arg7[%c0_112, %c1_113, %c0_114] : memref<18x18x256xf32, #tpu.memory_space<vmem>>, vector<8x16x256xf32>
    %114 = vector.broadcast %112 : vector<1x1x256xf32> to vector<8x16x256xf32>
    %115 = arith.mulf %113, %114 : vector<8x16x256xf32>
    %116 = arith.addf %109, %115 : vector<8x16x256xf32>
    %c2_115 = arith.constant 2 : index
    %c0_116 = arith.constant 0 : index
    %117 = vector.load %arg2[%c2_115, %c0_116] : memref<9x256xf32, #tpu.memory_space<vmem>>, vector<1x256xf32>
    %118 = vector.shape_cast %117 : vector<1x256xf32> to vector<256xf32>
    %119 = vector.shape_cast %118 : vector<256xf32> to vector<1x1x256xf32>
    %c0_117 = arith.constant 0 : index
    %c2_118 = arith.constant 2 : index
    %c0_119 = arith.constant 0 : index
    %120 = vector.load %arg7[%c0_117, %c2_118, %c0_119] : memref<18x18x256xf32, #tpu.memory_space<vmem>>, vector<8x16x256xf32>
    %121 = vector.broadcast %119 : vector<1x1x256xf32> to vector<8x16x256xf32>
    %122 = arith.mulf %120, %121 : vector<8x16x256xf32>
    %123 = arith.addf %116, %122 : vector<8x16x256xf32>
    %c3_120 = arith.constant 3 : index
    %c0_121 = arith.constant 0 : index
    %124 = vector.load %arg2[%c3_120, %c0_121] : memref<9x256xf32, #tpu.memory_space<vmem>>, vector<1x256xf32>
    %125 = vector.shape_cast %124 : vector<1x256xf32> to vector<256xf32>
    %126 = vector.shape_cast %125 : vector<256xf32> to vector<1x1x256xf32>
    %c1_122 = arith.constant 1 : index
    %c0_123 = arith.constant 0 : index
    %c0_124 = arith.constant 0 : index
    %127 = vector.load %arg7[%c1_122, %c0_123, %c0_124] : memref<18x18x256xf32, #tpu.memory_space<vmem>>, vector<8x16x256xf32>
    %128 = vector.broadcast %126 : vector<1x1x256xf32> to vector<8x16x256xf32>
    %129 = arith.mulf %127, %128 : vector<8x16x256xf32>
    %130 = arith.addf %123, %129 : vector<8x16x256xf32>
    %c4_125 = arith.constant 4 : index
    %c0_126 = arith.constant 0 : index
    %131 = vector.load %arg2[%c4_125, %c0_126] : memref<9x256xf32, #tpu.memory_space<vmem>>, vector<1x256xf32>
    %132 = vector.shape_cast %131 : vector<1x256xf32> to vector<256xf32>
    %133 = vector.shape_cast %132 : vector<256xf32> to vector<1x1x256xf32>
    %c1_127 = arith.constant 1 : index
    %c1_128 = arith.constant 1 : index
    %c0_129 = arith.constant 0 : index
    %134 = vector.load %arg7[%c1_127, %c1_128, %c0_129] : memref<18x18x256xf32, #tpu.memory_space<vmem>>, vector<8x16x256xf32>
    %135 = vector.broadcast %133 : vector<1x1x256xf32> to vector<8x16x256xf32>
    %136 = arith.mulf %134, %135 : vector<8x16x256xf32>
    %137 = arith.addf %130, %136 : vector<8x16x256xf32>
    %c5_130 = arith.constant 5 : index
    %c0_131 = arith.constant 0 : index
    %138 = vector.load %arg2[%c5_130, %c0_131] : memref<9x256xf32, #tpu.memory_space<vmem>>, vector<1x256xf32>
    %139 = vector.shape_cast %138 : vector<1x256xf32> to vector<256xf32>
    %140 = vector.shape_cast %139 : vector<256xf32> to vector<1x1x256xf32>
    %c1_132 = arith.constant 1 : index
    %c2_133 = arith.constant 2 : index
    %c0_134 = arith.constant 0 : index
    %141 = vector.load %arg7[%c1_132, %c2_133, %c0_134] : memref<18x18x256xf32, #tpu.memory_space<vmem>>, vector<8x16x256xf32>
    %142 = vector.broadcast %140 : vector<1x1x256xf32> to vector<8x16x256xf32>
    %143 = arith.mulf %141, %142 : vector<8x16x256xf32>
    %144 = arith.addf %137, %143 : vector<8x16x256xf32>
    %c6_135 = arith.constant 6 : index
    %c0_136 = arith.constant 0 : index
    %145 = vector.load %arg2[%c6_135, %c0_136] : memref<9x256xf32, #tpu.memory_space<vmem>>, vector<1x256xf32>
    %146 = vector.shape_cast %145 : vector<1x256xf32> to vector<256xf32>
    %147 = vector.shape_cast %146 : vector<256xf32> to vector<1x1x256xf32>
    %c2_137 = arith.constant 2 : index
    %c0_138 = arith.constant 0 : index
    %c0_139 = arith.constant 0 : index
    %148 = vector.load %arg7[%c2_137, %c0_138, %c0_139] : memref<18x18x256xf32, #tpu.memory_space<vmem>>, vector<8x16x256xf32>
    %149 = vector.broadcast %147 : vector<1x1x256xf32> to vector<8x16x256xf32>
    %150 = arith.mulf %148, %149 : vector<8x16x256xf32>
    %151 = arith.addf %144, %150 : vector<8x16x256xf32>
    %c7_140 = arith.constant 7 : index
    %c0_141 = arith.constant 0 : index
    %152 = vector.load %arg2[%c7_140, %c0_141] : memref<9x256xf32, #tpu.memory_space<vmem>>, vector<1x256xf32>
    %153 = vector.shape_cast %152 : vector<1x256xf32> to vector<256xf32>
    %154 = vector.shape_cast %153 : vector<256xf32> to vector<1x1x256xf32>
    %c2_142 = arith.constant 2 : index
    %c1_143 = arith.constant 1 : index
    %c0_144 = arith.constant 0 : index
    %155 = vector.load %arg7[%c2_142, %c1_143, %c0_144] : memref<18x18x256xf32, #tpu.memory_space<vmem>>, vector<8x16x256xf32>
    %156 = vector.broadcast %154 : vector<1x1x256xf32> to vector<8x16x256xf32>
    %157 = arith.mulf %155, %156 : vector<8x16x256xf32>
    %158 = arith.addf %151, %157 : vector<8x16x256xf32>
    %c8_145 = arith.constant 8 : index
    %c0_146 = arith.constant 0 : index
    %159 = vector.load %arg2[%c8_145, %c0_146] : memref<9x256xf32, #tpu.memory_space<vmem>>, vector<1x256xf32>
    %160 = vector.shape_cast %159 : vector<1x256xf32> to vector<256xf32>
    %161 = vector.shape_cast %160 : vector<256xf32> to vector<1x1x256xf32>
    %c2_147 = arith.constant 2 : index
    %c2_148 = arith.constant 2 : index
    %c0_149 = arith.constant 0 : index
    %162 = vector.load %arg7[%c2_147, %c2_148, %c0_149] : memref<18x18x256xf32, #tpu.memory_space<vmem>>, vector<8x16x256xf32>
    %163 = vector.broadcast %161 : vector<1x1x256xf32> to vector<8x16x256xf32>
    %164 = arith.mulf %162, %163 : vector<8x16x256xf32>
    %165 = arith.addf %158, %164 : vector<8x16x256xf32>
    %166 = vector.broadcast %99 : vector<1x1x256xf32> to vector<8x16x256xf32>
    %167 = arith.addf %165, %166 : vector<8x16x256xf32>
    %168 = vector.extract_strided_slice %167 {offsets = [0, 0, 0], sizes = [8, 16, 128], strides = [1, 1, 1]} : vector<8x16x256xf32> to vector<8x16x128xf32>
    %169 = vector.extract_strided_slice %167 {offsets = [0, 0, 128], sizes = [8, 16, 128], strides = [1, 1, 1]} : vector<8x16x256xf32> to vector<8x16x128xf32>
    %cst_150 = arith.constant 0.707106769 : f32
    %170 = vector.broadcast %cst_150 : f32 to vector<8x16x128xf32>
    %171 = arith.mulf %168, %170 : vector<8x16x128xf32>
    %172 = math.absf %171 : vector<8x16x128xf32>
    %cst_151 = arith.constant 0.327591091 : f32
    %173 = vector.broadcast %cst_151 : f32 to vector<8x16x128xf32>
    %174 = arith.mulf %173, %172 : vector<8x16x128xf32>
    %cst_152 = arith.constant 1.000000e+00 : f32
    %175 = vector.broadcast %cst_152 : f32 to vector<8x16x128xf32>
    %176 = arith.addf %175, %174 : vector<8x16x128xf32>
    %cst_153 = arith.constant 1.000000e+00 : f32
    %177 = vector.broadcast %cst_153 : f32 to vector<8x16x128xf32>
    %178 = arith.divf %177, %176 : vector<8x16x128xf32>
    %cst_154 = arith.constant 1.06140542 : f32
    %179 = vector.broadcast %cst_154 : f32 to vector<8x16x128xf32>
    %180 = arith.mulf %178, %179 : vector<8x16x128xf32>
    %cst_155 = arith.constant -1.45315206 : f32
    %181 = vector.broadcast %cst_155 : f32 to vector<8x16x128xf32>
    %182 = arith.addf %181, %180 : vector<8x16x128xf32>
    %183 = arith.mulf %178, %182 : vector<8x16x128xf32>
    %cst_156 = arith.constant 1.42141378 : f32
    %184 = vector.broadcast %cst_156 : f32 to vector<8x16x128xf32>
    %185 = arith.addf %184, %183 : vector<8x16x128xf32>
    %186 = arith.mulf %178, %185 : vector<8x16x128xf32>
    %cst_157 = arith.constant -0.284496725 : f32
    %187 = vector.broadcast %cst_157 : f32 to vector<8x16x128xf32>
    %188 = arith.addf %187, %186 : vector<8x16x128xf32>
    %189 = arith.mulf %178, %188 : vector<8x16x128xf32>
    %cst_158 = arith.constant 0.254829586 : f32
    %190 = vector.broadcast %cst_158 : f32 to vector<8x16x128xf32>
    %191 = arith.addf %190, %189 : vector<8x16x128xf32>
    %192 = arith.mulf %178, %191 : vector<8x16x128xf32>
    %cst_159 = arith.constant 0.000000e+00 : f32
    %193 = vector.broadcast %cst_159 : f32 to vector<8x16x128xf32>
    %194 = arith.subf %193, %172 : vector<8x16x128xf32>
    %195 = arith.mulf %194, %172 : vector<8x16x128xf32>
    %196 = math.exp %195 : vector<8x16x128xf32>
    %197 = arith.mulf %192, %196 : vector<8x16x128xf32>
    %cst_160 = arith.constant 1.000000e+00 : f32
    %198 = vector.broadcast %cst_160 : f32 to vector<8x16x128xf32>
    %199 = arith.subf %198, %197 : vector<8x16x128xf32>
    %cst_161 = arith.constant 0.000000e+00 : f32
    %200 = vector.broadcast %cst_161 : f32 to vector<8x16x128xf32>
    %201 = arith.cmpf olt, %171, %200 : vector<8x16x128xf32>
    %cst_162 = arith.constant 0.000000e+00 : f32
    %202 = vector.broadcast %cst_162 : f32 to vector<8x16x128xf32>
    %203 = arith.subf %202, %199 : vector<8x16x128xf32>
    %204 = arith.select %201, %203, %199 : vector<8x16x128xi1>, vector<8x16x128xf32>
    %cst_163 = arith.constant 5.000000e-01 : f32
    %205 = vector.broadcast %cst_163 : f32 to vector<8x16x128xf32>
    %206 = arith.mulf %205, %168 : vector<8x16x128xf32>
    %cst_164 = arith.constant 1.000000e+00 : f32
    %207 = vector.broadcast %cst_164 : f32 to vector<8x16x128xf32>
    %208 = arith.addf %207, %204 : vector<8x16x128xf32>
    %209 = arith.mulf %206, %208 : vector<8x16x128xf32>
    %210 = arith.mulf %209, %169 : vector<8x16x128xf32>
    %211 = vector.shape_cast %210 : vector<8x16x128xf32> to vector<128x128xf32>
    %212 = arith.truncf %211 : vector<128x128xf32> to vector<128x128xbf16>
    %cst_165 = arith.constant dense<0.000000e+00> : vector<128x64xf32>
    %213 = tpu.matmul %212, %100, %cst_165 {dimension_numbers = #tpu.dot_dimension_numbers<[1], [0], [0], [1], [0, 0, 1, 1], [], []>} : vector<128x128xbf16>, vector<128x64xbf16>, vector<128x64xf32> -> vector<128x64xf32>
    %214 = vector.broadcast %101 : vector<1x64xf32> to vector<128x64xf32>
    %215 = arith.addf %213, %214 : vector<128x64xf32>
    %216 = vector.shape_cast %215 : vector<128x64xf32> to vector<8x16x64xf32>
    %c0_166 = arith.constant 0 : index
    %c0_167 = arith.constant 0 : index
    %c0_168 = arith.constant 0 : index
    %c0_169 = arith.constant 0 : index
    %217 = vector.load %arg6[%c0_166, %c0_167, %c0_168, %c0_169] : memref<1x16x16x64xf32, #tpu.memory_space<vmem>>, vector<1x8x16x64xf32>
    %218 = vector.shape_cast %217 : vector<1x8x16x64xf32> to vector<8x16x64xf32>
    %219 = vector.shape_cast %216 : vector<8x16x64xf32> to vector<1x8x16x64xf32>
    tpu.vector_store %arg6[%c0_166, %c0_167, %c0_168, %c0_169], %219 {strides = array<i32>} : memref<1x16x16x64xf32, #tpu.memory_space<vmem>>, vector<1x8x16x64xf32>,
    %cst_170 = arith.constant 0.000000e+00 : f32
    %220 = vector.broadcast %cst_170 : f32 to vector<8x16x256xf32>
    %c0_171 = arith.constant 0 : index
    %c0_172 = arith.constant 0 : index
    %221 = vector.load %arg2[%c0_171, %c0_172] : memref<9x256xf32, #tpu.memory_space<vmem>>, vector<1x256xf32>
    %222 = vector.shape_cast %221 : vector<1x256xf32> to vector<256xf32>
    %223 = vector.shape_cast %222 : vector<256xf32> to vector<1x1x256xf32>
    %c8_173 = arith.constant 8 : index
    %c0_174 = arith.constant 0 : index
    %c0_175 = arith.constant 0 : index
    %224 = vector.load %arg7[%c8_173, %c0_174, %c0_175] : memref<18x18x256xf32, #tpu.memory_space<vmem>>, vector<8x16x256xf32>
    %225 = vector.broadcast %223 : vector<1x1x256xf32> to vector<8x16x256xf32>
    %226 = arith.mulf %224, %225 : vector<8x16x256xf32>
    %227 = arith.addf %220, %226 : vector<8x16x256xf32>
    %c1_176 = arith.constant 1 : index
    %c0_177 = arith.constant 0 : index
    %228 = vector.load %arg2[%c1_176, %c0_177] : memref<9x256xf32, #tpu.memory_space<vmem>>, vector<1x256xf32>
    %229 = vector.shape_cast %228 : vector<1x256xf32> to vector<256xf32>
    %230 = vector.shape_cast %229 : vector<256xf32> to vector<1x1x256xf32>
    %c8_178 = arith.constant 8 : index
    %c1_179 = arith.constant 1 : index
    %c0_180 = arith.constant 0 : index
    %231 = vector.load %arg7[%c8_178, %c1_179, %c0_180] : memref<18x18x256xf32, #tpu.memory_space<vmem>>, vector<8x16x256xf32>
    %232 = vector.broadcast %230 : vector<1x1x256xf32> to vector<8x16x256xf32>
    %233 = arith.mulf %231, %232 : vector<8x16x256xf32>
    %234 = arith.addf %227, %233 : vector<8x16x256xf32>
    %c2_181 = arith.constant 2 : index
    %c0_182 = arith.constant 0 : index
    %235 = vector.load %arg2[%c2_181, %c0_182] : memref<9x256xf32, #tpu.memory_space<vmem>>, vector<1x256xf32>
    %236 = vector.shape_cast %235 : vector<1x256xf32> to vector<256xf32>
    %237 = vector.shape_cast %236 : vector<256xf32> to vector<1x1x256xf32>
    %c8_183 = arith.constant 8 : index
    %c2_184 = arith.constant 2 : index
    %c0_185 = arith.constant 0 : index
    %238 = vector.load %arg7[%c8_183, %c2_184, %c0_185] : memref<18x18x256xf32, #tpu.memory_space<vmem>>, vector<8x16x256xf32>
    %239 = vector.broadcast %237 : vector<1x1x256xf32> to vector<8x16x256xf32>
    %240 = arith.mulf %238, %239 : vector<8x16x256xf32>
    %241 = arith.addf %234, %240 : vector<8x16x256xf32>
    %c3_186 = arith.constant 3 : index
    %c0_187 = arith.constant 0 : index
    %242 = vector.load %arg2[%c3_186, %c0_187] : memref<9x256xf32, #tpu.memory_space<vmem>>, vector<1x256xf32>
    %243 = vector.shape_cast %242 : vector<1x256xf32> to vector<256xf32>
    %244 = vector.shape_cast %243 : vector<256xf32> to vector<1x1x256xf32>
    %c9_188 = arith.constant 9 : index
    %c0_189 = arith.constant 0 : index
    %c0_190 = arith.constant 0 : index
    %245 = vector.load %arg7[%c9_188, %c0_189, %c0_190] : memref<18x18x256xf32, #tpu.memory_space<vmem>>, vector<8x16x256xf32>
    %246 = vector.broadcast %244 : vector<1x1x256xf32> to vector<8x16x256xf32>
    %247 = arith.mulf %245, %246 : vector<8x16x256xf32>
    %248 = arith.addf %241, %247 : vector<8x16x256xf32>
    %c4_191 = arith.constant 4 : index
    %c0_192 = arith.constant 0 : index
    %249 = vector.load %arg2[%c4_191, %c0_192] : memref<9x256xf32, #tpu.memory_space<vmem>>, vector<1x256xf32>
    %250 = vector.shape_cast %249 : vector<1x256xf32> to vector<256xf32>
    %251 = vector.shape_cast %250 : vector<256xf32> to vector<1x1x256xf32>
    %c9_193 = arith.constant 9 : index
    %c1_194 = arith.constant 1 : index
    %c0_195 = arith.constant 0 : index
    %252 = vector.load %arg7[%c9_193, %c1_194, %c0_195] : memref<18x18x256xf32, #tpu.memory_space<vmem>>, vector<8x16x256xf32>
    %253 = vector.broadcast %251 : vector<1x1x256xf32> to vector<8x16x256xf32>
    %254 = arith.mulf %252, %253 : vector<8x16x256xf32>
    %255 = arith.addf %248, %254 : vector<8x16x256xf32>
    %c5_196 = arith.constant 5 : index
    %c0_197 = arith.constant 0 : index
    %256 = vector.load %arg2[%c5_196, %c0_197] : memref<9x256xf32, #tpu.memory_space<vmem>>, vector<1x256xf32>
    %257 = vector.shape_cast %256 : vector<1x256xf32> to vector<256xf32>
    %258 = vector.shape_cast %257 : vector<256xf32> to vector<1x1x256xf32>
    %c9_198 = arith.constant 9 : index
    %c2_199 = arith.constant 2 : index
    %c0_200 = arith.constant 0 : index
    %259 = vector.load %arg7[%c9_198, %c2_199, %c0_200] : memref<18x18x256xf32, #tpu.memory_space<vmem>>, vector<8x16x256xf32>
    %260 = vector.broadcast %258 : vector<1x1x256xf32> to vector<8x16x256xf32>
    %261 = arith.mulf %259, %260 : vector<8x16x256xf32>
    %262 = arith.addf %255, %261 : vector<8x16x256xf32>
    %c6_201 = arith.constant 6 : index
    %c0_202 = arith.constant 0 : index
    %263 = vector.load %arg2[%c6_201, %c0_202] : memref<9x256xf32, #tpu.memory_space<vmem>>, vector<1x256xf32>
    %264 = vector.shape_cast %263 : vector<1x256xf32> to vector<256xf32>
    %265 = vector.shape_cast %264 : vector<256xf32> to vector<1x1x256xf32>
    %c10_203 = arith.constant 10 : index
    %c0_204 = arith.constant 0 : index
    %c0_205 = arith.constant 0 : index
    %266 = vector.load %arg7[%c10_203, %c0_204, %c0_205] : memref<18x18x256xf32, #tpu.memory_space<vmem>>, vector<8x16x256xf32>
    %267 = vector.broadcast %265 : vector<1x1x256xf32> to vector<8x16x256xf32>
    %268 = arith.mulf %266, %267 : vector<8x16x256xf32>
    %269 = arith.addf %262, %268 : vector<8x16x256xf32>
    %c7_206 = arith.constant 7 : index
    %c0_207 = arith.constant 0 : index
    %270 = vector.load %arg2[%c7_206, %c0_207] : memref<9x256xf32, #tpu.memory_space<vmem>>, vector<1x256xf32>
    %271 = vector.shape_cast %270 : vector<1x256xf32> to vector<256xf32>
    %272 = vector.shape_cast %271 : vector<256xf32> to vector<1x1x256xf32>
    %c10_208 = arith.constant 10 : index
    %c1_209 = arith.constant 1 : index
    %c0_210 = arith.constant 0 : index
    %273 = vector.load %arg7[%c10_208, %c1_209, %c0_210] : memref<18x18x256xf32, #tpu.memory_space<vmem>>, vector<8x16x256xf32>
    %274 = vector.broadcast %272 : vector<1x1x256xf32> to vector<8x16x256xf32>
    %275 = arith.mulf %273, %274 : vector<8x16x256xf32>
    %276 = arith.addf %269, %275 : vector<8x16x256xf32>
    %c8_211 = arith.constant 8 : index
    %c0_212 = arith.constant 0 : index
    %277 = vector.load %arg2[%c8_211, %c0_212] : memref<9x256xf32, #tpu.memory_space<vmem>>, vector<1x256xf32>
    %278 = vector.shape_cast %277 : vector<1x256xf32> to vector<256xf32>
    %279 = vector.shape_cast %278 : vector<256xf32> to vector<1x1x256xf32>
    %c10_213 = arith.constant 10 : index
    %c2_214 = arith.constant 2 : index
    %c0_215 = arith.constant 0 : index
    %280 = vector.load %arg7[%c10_213, %c2_214, %c0_215] : memref<18x18x256xf32, #tpu.memory_space<vmem>>, vector<8x16x256xf32>
    %281 = vector.broadcast %279 : vector<1x1x256xf32> to vector<8x16x256xf32>
    %282 = arith.mulf %280, %281 : vector<8x16x256xf32>
    %283 = arith.addf %276, %282 : vector<8x16x256xf32>
    %284 = vector.broadcast %99 : vector<1x1x256xf32> to vector<8x16x256xf32>
    %285 = arith.addf %283, %284 : vector<8x16x256xf32>
    %286 = vector.extract_strided_slice %285 {offsets = [0, 0, 0], sizes = [8, 16, 128], strides = [1, 1, 1]} : vector<8x16x256xf32> to vector<8x16x128xf32>
    %287 = vector.extract_strided_slice %285 {offsets = [0, 0, 128], sizes = [8, 16, 128], strides = [1, 1, 1]} : vector<8x16x256xf32> to vector<8x16x128xf32>
    %cst_216 = arith.constant 0.707106769 : f32
    %288 = vector.broadcast %cst_216 : f32 to vector<8x16x128xf32>
    %289 = arith.mulf %286, %288 : vector<8x16x128xf32>
    %290 = math.absf %289 : vector<8x16x128xf32>
    %cst_217 = arith.constant 0.327591091 : f32
    %291 = vector.broadcast %cst_217 : f32 to vector<8x16x128xf32>
    %292 = arith.mulf %291, %290 : vector<8x16x128xf32>
    %cst_218 = arith.constant 1.000000e+00 : f32
    %293 = vector.broadcast %cst_218 : f32 to vector<8x16x128xf32>
    %294 = arith.addf %293, %292 : vector<8x16x128xf32>
    %cst_219 = arith.constant 1.000000e+00 : f32
    %295 = vector.broadcast %cst_219 : f32 to vector<8x16x128xf32>
    %296 = arith.divf %295, %294 : vector<8x16x128xf32>
    %cst_220 = arith.constant 1.06140542 : f32
    %297 = vector.broadcast %cst_220 : f32 to vector<8x16x128xf32>
    %298 = arith.mulf %296, %297 : vector<8x16x128xf32>
    %cst_221 = arith.constant -1.45315206 : f32
    %299 = vector.broadcast %cst_221 : f32 to vector<8x16x128xf32>
    %300 = arith.addf %299, %298 : vector<8x16x128xf32>
    %301 = arith.mulf %296, %300 : vector<8x16x128xf32>
    %cst_222 = arith.constant 1.42141378 : f32
    %302 = vector.broadcast %cst_222 : f32 to vector<8x16x128xf32>
    %303 = arith.addf %302, %301 : vector<8x16x128xf32>
    %304 = arith.mulf %296, %303 : vector<8x16x128xf32>
    %cst_223 = arith.constant -0.284496725 : f32
    %305 = vector.broadcast %cst_223 : f32 to vector<8x16x128xf32>
    %306 = arith.addf %305, %304 : vector<8x16x128xf32>
    %307 = arith.mulf %296, %306 : vector<8x16x128xf32>
    %cst_224 = arith.constant 0.254829586 : f32
    %308 = vector.broadcast %cst_224 : f32 to vector<8x16x128xf32>
    %309 = arith.addf %308, %307 : vector<8x16x128xf32>
    %310 = arith.mulf %296, %309 : vector<8x16x128xf32>
    %cst_225 = arith.constant 0.000000e+00 : f32
    %311 = vector.broadcast %cst_225 : f32 to vector<8x16x128xf32>
    %312 = arith.subf %311, %290 : vector<8x16x128xf32>
    %313 = arith.mulf %312, %290 : vector<8x16x128xf32>
    %314 = math.exp %313 : vector<8x16x128xf32>
    %315 = arith.mulf %310, %314 : vector<8x16x128xf32>
    %cst_226 = arith.constant 1.000000e+00 : f32
    %316 = vector.broadcast %cst_226 : f32 to vector<8x16x128xf32>
    %317 = arith.subf %316, %315 : vector<8x16x128xf32>
    %cst_227 = arith.constant 0.000000e+00 : f32
    %318 = vector.broadcast %cst_227 : f32 to vector<8x16x128xf32>
    %319 = arith.cmpf olt, %289, %318 : vector<8x16x128xf32>
    %cst_228 = arith.constant 0.000000e+00 : f32
    %320 = vector.broadcast %cst_228 : f32 to vector<8x16x128xf32>
    %321 = arith.subf %320, %317 : vector<8x16x128xf32>
    %322 = arith.select %319, %321, %317 : vector<8x16x128xi1>, vector<8x16x128xf32>
    %cst_229 = arith.constant 5.000000e-01 : f32
    %323 = vector.broadcast %cst_229 : f32 to vector<8x16x128xf32>
    %324 = arith.mulf %323, %286 : vector<8x16x128xf32>
    %cst_230 = arith.constant 1.000000e+00 : f32
    %325 = vector.broadcast %cst_230 : f32 to vector<8x16x128xf32>
    %326 = arith.addf %325, %322 : vector<8x16x128xf32>
    %327 = arith.mulf %324, %326 : vector<8x16x128xf32>
    %328 = arith.mulf %327, %287 : vector<8x16x128xf32>
    %329 = vector.shape_cast %328 : vector<8x16x128xf32> to vector<128x128xf32>
    %330 = arith.truncf %329 : vector<128x128xf32> to vector<128x128xbf16>
    %cst_231 = arith.constant dense<0.000000e+00> : vector<128x64xf32>
    %331 = tpu.matmul %330, %100, %cst_231 {dimension_numbers = #tpu.dot_dimension_numbers<[1], [0], [0], [1], [0, 0, 1, 1], [], []>} : vector<128x128xbf16>, vector<128x64xbf16>, vector<128x64xf32> -> vector<128x64xf32>
    %332 = vector.broadcast %101 : vector<1x64xf32> to vector<128x64xf32>
    %333 = arith.addf %331, %332 : vector<128x64xf32>
    %334 = vector.shape_cast %333 : vector<128x64xf32> to vector<8x16x64xf32>
    %c0_232 = arith.constant 0 : index
    %c8_233 = arith.constant 8 : index
    %c0_234 = arith.constant 0 : index
    %c0_235 = arith.constant 0 : index
    %335 = vector.load %arg6[%c0_232, %c8_233, %c0_234, %c0_235] : memref<1x16x16x64xf32, #tpu.memory_space<vmem>>, vector<1x8x16x64xf32>
    %336 = vector.shape_cast %335 : vector<1x8x16x64xf32> to vector<8x16x64xf32>
    %337 = vector.shape_cast %334 : vector<8x16x64xf32> to vector<1x8x16x64xf32>
    tpu.vector_store %arg6[%c0_232, %c8_233, %c0_234, %c0_235], %337 {strides = array<i32>} : memref<1x16x16x64xf32, #tpu.memory_space<vmem>>, vector<1x8x16x64xf32>,
    return
  }
  func.func @transform_0(%arg0: i32) -> (i32, i32, i32, i32) {
    %c0_i32 = arith.constant 0 : i32
    %c0_i32_0 = arith.constant 0 : i32
    %c0_i32_1 = arith.constant 0 : i32
    %c0_i32_2 = arith.constant 0 : i32
    return %arg0, %c0_i32, %c0_i32_0, %c0_i32_1 : i32, i32, i32, i32
  }
  func.func @transform_1(%arg0: i32) -> (i32, i32) {
    %c0_i32 = arith.constant 0 : i32
    %c0_i32_0 = arith.constant 0 : i32
    %c0_i32_1 = arith.constant 0 : i32
    return %c0_i32, %c0_i32_0 : i32, i32
  }
  func.func @transform_2(%arg0: i32) -> (i32, i32) {
    %c0_i32 = arith.constant 0 : i32
    %c0_i32_0 = arith.constant 0 : i32
    %c0_i32_1 = arith.constant 0 : i32
    return %c0_i32, %c0_i32_0 : i32, i32
  }
  func.func @transform_3(%arg0: i32) -> (i32, i32) {
    %c0_i32 = arith.constant 0 : i32
    %c0_i32_0 = arith.constant 0 : i32
    %c0_i32_1 = arith.constant 0 : i32
    return %c0_i32, %c0_i32_0 : i32, i32
  }
  func.func @transform_4(%arg0: i32) -> (i32, i32) {
    %c0_i32 = arith.constant 0 : i32
    %c0_i32_0 = arith.constant 0 : i32
    %c0_i32_1 = arith.constant 0 : i32
    return %c0_i32, %c0_i32_0 : i32, i32
  }
  func.func @transform_5(%arg0: i32) -> (i32, i32, i32, i32) {
    %c0_i32 = arith.constant 0 : i32
    %c0_i32_0 = arith.constant 0 : i32
    %c0_i32_1 = arith.constant 0 : i32
    %c0_i32_2 = arith.constant 0 : i32
    return %arg0, %c0_i32, %c0_i32_0, %c0_i32_1 : i32, i32, i32, i32
  }
}

</mosaic_0001>

<llo_original>
// kernel: feed_forward.2
$region0: #{feed_forward.2}
  #allocation0 [shape = 'u32[]', space=smem, size = 0x4, offset = 0x4, fixed_abs, tag = 'smem constant byte address 0x4 - core index']
  #allocation1 [shape = 'u32[144,128]{1,0:T(1,128)}', space=vmem, size = 0x12000, scoped, tag = 'internal scratch']
  %s0 = inlined_call_operand.hbm [shape: f32[512,64], index: 0, kind: input, shape index: {}]
  %s1 = inlined_call_operand.vmem [shape: bf16[64,256], index: 1, kind: input, shape index: {}]
  %s2 = inlined_call_operand.vmem [shape: f32[1,256], index: 2, kind: input, shape index: {}]
  %s3 = inlined_call_operand.vmem [shape: bf16[512,256], index: 3, kind: output, shape index: {}]
  %s4 = sld [smem:[#allocation0]]
  $region49: #{feed_forward.2} parent=0
    _
  %s6 = ssub.s32 1, %s4
  %s7 = scalar_select 0, %s6, %s4
  $region1: #{feed_forward.2} parent=0
    #allocation2 [shape = 'u8[262144]{0}', space=vmem, size = 0x40000, scoped, tag = 'input window, operand 0']
    #allocation3 [shape = 's32[2]{0}', space=sflag, size = 0x8, scoped, tag = 'scoped memory for feed_forward.2']
    %8 = vsyncpa [#allocation3], 0
    %s9 = scalar_lea.sflag [#allocation3], 1
    %10 = vsyncpa %s9, 0
    loop: start=0, step=1, limit=4
    $region2: #{feed_forward.2} parent=1 // loop_pre_header
      _
    $region3: #{feed_forward.2} parent=1 // loop_header
      %s12 = sphi 0, %s16
      %p13 = scmp.ge.s32.totalorder %s12, 4
      %s22 = sphi 0, %s24
      %s25 = sphi 0, %s22
      %s26 = sphi 0, %s25
      %s42 = sphi 0, %s26
      %s46 = sphi 0, %s46
      %s48 = sphi 0, %s46
      %s49 = sphi 0, %s48
      %s63 = sphi 0, %s49
      %s67 = sphi 0, %s67
      %s69 = sphi 0, %s67
      %s70 = sphi 0, %s69
      %s84 = sphi 0, %s70
      %s90 = sphi 0, %s92
      %s93 = sphi 0, %s90
      %s94 = sphi 0, %s93
      %s110 = sphi 0, %s94
    $region4: #{feed_forward.2} parent=1 // loop_header_branch
      %15 = sbr.rel (%p13) target = $region8
    $region5: #{feed_forward.2} parent=1 // loop_body
      %s17 = ssub.s32 %s12, 1
      %s18 = ssub.s32 %s12, 2
      %s19 = sadd.s32 %s12, 1
      %s20 = ssub.s32 %s12, %s19
      %p21 = scmp.eq.s32.totalorder %s20, 0
      %s23 = sadd.s32 %s22, 1
      %s24 = scalar_select %p21, %s22, %s23
      %p27 = pneg %p21
      %p28 = scmp.eq.s32.totalorder %s12, 1
      %p29 = por %p27, %p28
      %p30 = scmp.ne.s32.totalorder %s22, %s25
      %p31 = scmp.eq.s32.totalorder %s12, 0
      %p32 = por %p30, %p31
      %p33 = scmp.ne.s32.totalorder %s22, %s25
      %p34 = scmp.eq.s32.totalorder %s17, 1
      %p35 = por %p33, %p34
      %p36 = scmp.ne.s32.totalorder %s25, %s26
      %p37 = scmp.eq.s32.totalorder %s17, 0
      %p38 = por %p36, %p37
      %p39 = scmp.ne.s32.totalorder %s25, %s26
      %p40 = scmp.eq.s32.totalorder %s18, 1
      %p41 = por %p39, %p40
      %p43 = scmp.ne.s32.totalorder %s26, %s42
      %p44 = scmp.eq.s32.totalorder %s18, 0
      %p45 = por %p43, %p44
      %s47 = sadd.s32 %s46, 1
      %p50 = scmp.eq.s32.totalorder %s12, 1
      %p51 = scmp.ne.s32.totalorder %s46, %s48
      %p52 = scmp.eq.s32.totalorder %s12, 0
      %p53 = por %p51, %p52
      %p54 = scmp.ne.s32.totalorder %s46, %s48
      %p55 = scmp.eq.s32.totalorder %s17, 1
      %p56 = por %p54, %p55
      %p57 = scmp.ne.s32.totalorder %s48, %s49
      %p58 = scmp.eq.s32.totalorder %s17, 0
      %p59 = por %p57, %p58
      %p60 = scmp.ne.s32.totalorder %s48, %s49
      %p61 = scmp.eq.s32.totalorder %s18, 1
      %p62 = por %p60, %p61
      %p64 = scmp.ne.s32.totalorder %s49, %s63
      %p65 = scmp.eq.s32.totalorder %s18, 0
      %p66 = por %p64, %p65
      %s68 = sadd.s32 %s67, 1
      %p71 = scmp.eq.s32.totalorder %s12, 1
      %p72 = scmp.ne.s32.totalorder %s67, %s69
      %p73 = scmp.eq.s32.totalorder %s12, 0
      %p74 = por %p72, %p73
      %p75 = scmp.ne.s32.totalorder %s67, %s69
      %p76 = scmp.eq.s32.totalorder %s17, 1
      %p77 = por %p75, %p76
      %p78 = scmp.ne.s32.totalorder %s69, %s70
      %p79 = scmp.eq.s32.totalorder %s17, 0
      %p80 = por %p78, %p79
      %p81 = scmp.ne.s32.totalorder %s69, %s70
      %p82 = scmp.eq.s32.totalorder %s18, 1
      %p83 = por %p81, %p82
      %p85 = scmp.ne.s32.totalorder %s70, %s84
      %p86 = scmp.eq.s32.totalorder %s18, 0
      %p87 = por %p85, %p86
      %s88 = ssub.s32 %s12, %s19
      %p89 = scmp.eq.s32.totalorder %s88, 0
      %s91 = sadd.s32 %s90, 1
      %s92 = scalar_select %p89, %s90, %s91
      %p95 = pneg %p89
      %p96 = scmp.eq.s32.totalorder %s12, 1
      %p97 = por %p95, %p96
      %p98 = scmp.ne.s32.totalorder %s90, %s93
      %p99 = scmp.eq.s32.totalorder %s12, 0
      %p100 = por %p98, %p99
      %p101 = scmp.ne.s32.totalorder %s90, %s93
      %p102 = scmp.eq.s32.totalorder %s17, 1
      %p103 = por %p101, %p102
      %p104 = scmp.ne.s32.totalorder %s93, %s94
      %p105 = scmp.eq.s32.totalorder %s17, 0
      %p106 = por %p104, %p105
      %p107 = scmp.ne.s32.totalorder %s93, %s94
      %p108 = scmp.eq.s32.totalorder %s18, 1
      %p109 = por %p107, %p108
      %p111 = scmp.ne.s32.totalorder %s94, %s110
      %p112 = scmp.eq.s32.totalorder %s18, 0
      %p113 = por %p111, %p112
      %p114 = scmp.le.s32.totalorder 1, %s12
      %p115 = scmp.lt.s32.totalorder %s12, 3
      %p116 = pnand %p114, %p115
      %p117 = pneg %p116
      // Predicated region
      $region9: #{feed_forward.2} parent=5 // pred_check
        _
      $region10: #{feed_forward.2} parent=5 // pred_check_branch
        %119 = sbr.rel (%p116) target = $region12
      $region11: #{feed_forward.2} parent=5 // pred_region
        %s120 = ssub.s32 %s12, 1
        // Predicated region
        $region13: #{feed_forward.2} parent=11 // pred_check
          %p121 = pneg %p59
        $region14: #{feed_forward.2} parent=11 // pred_check_branch
          %123 = sbr.rel (%p121) target = $region16
        $region15: #{feed_forward.2} parent=11 // pred_region
          _
        $region16: #{feed_forward.2} parent=11 // pred_fallthru
          _
        // Predicated region
        $region17: #{feed_forward.2} parent=11 // pred_check
          %p124 = pneg %p80
        $region18: #{feed_forward.2} parent=11 // pred_check_branch
          %126 = sbr.rel (%p124) target = $region20
        $region19: #{feed_forward.2} parent=11 // pred_region
          _
        $region20: #{feed_forward.2} parent=11 // pred_fallthru
          _
      $region12: #{feed_forward.2} parent=5 // pred_fallthru
        _
      %p127 = scmp.lt.s32.totalorder %s12, 2
      // Predicated region
      $region21: #{feed_forward.2} parent=5 // pred_check
        %p128 = pneg %p127
      $region22: #{feed_forward.2} parent=5 // pred_check_branch
        %130 = sbr.rel (%p128) target = $region24
      $region23: #{feed_forward.2} parent=5 // pred_region
        // Predicated region
        $region25: #{feed_forward.2} parent=23 // pred_check
          %p131 = pneg %p32
        $region26: #{feed_forward.2} parent=23 // pred_check_branch
          %133 = sbr.rel (%p131) target = $region28
        $region27: #{feed_forward.2} parent=23 // pred_region
          %s134 = sand.u32 %s22, 1
          %s135 = scalar_lea.sflag [#allocation3], %s134
          %s136 = sand.u32 %s22, 1
          %s137 = smul.addr %s136, 256
          %s138 = scalar_lea.vmem [#allocation2], %s137
          %s139 = smul.u32 32, %s12
          %s141 = ssub.s32 4096, 4096
          %142 = vsyncadd %s135, %s141
          %s143 = smul.addr %s139, 128
          %s144 = scalar_lea.hbm %s0, %s143
          %s145 = sshll.u32 %s138, 4
          %s146 = int_to_ptr.vmem [resolvable:$true] %s145
          %151 = dma.hbm_to_vmem [thread:$0]  %s144, 4096, %s146, %s135, 128, 128, 8
        $region28: #{feed_forward.2} parent=23 // pred_fallthru
          _
      $region24: #{feed_forward.2} parent=5 // pred_fallthru
        _
      %p152 = scmp.le.s32.totalorder 1, %s12
      %p153 = scmp.lt.s32.totalorder %s12, 3
      %p154 = pnand %p152, %p153
      %p155 = pneg %p154
      // Predicated region
      $region29: #{feed_forward.2} parent=5 // pred_check
        _
      $region30: #{feed_forward.2} parent=5 // pred_check_branch
        %157 = sbr.rel (%p154) target = $region32
      $region31: #{feed_forward.2} parent=5 // pred_region
        %s158 = ssub.s32 %s12, 1
        %s159 = sand.u32 %s25, 1
        %s160 = scalar_lea.sflag [#allocation3], %s159
        %s161 = sand.u32 %s25, 1
        %s162 = smul.addr %s161, 256
        %s163 = scalar_lea.vmem [#allocation2], %s162
        // Predicated region
        $region33: #{feed_forward.2} parent=31 // pred_check
          %p164 = pneg %p38
        $region34: #{feed_forward.2} parent=31 // pred_check_branch
          %166 = sbr.rel (%p164) target = $region36
        $region35: #{feed_forward.2} parent=31 // pred_region
          %167 = dma.done %s160, 4096
        $region36: #{feed_forward.2} parent=31 // pred_fallthru
          _
        %s168 = sand.u32 %s25, 1
        %s169 = scalar_lea.sflag [#allocation3], %s168
        %s170 = sand.u32 %s25, 1
        %s171 = smul.addr %s170, 256
        %s172 = scalar_lea.vmem [#allocation2], %s171
        %p173 = pneg %p38
        %p174 = pneg %p35
        %p175 = pneg %p59
        %p176 = pneg %p56
        %p177 = pneg %p80
        %p178 = pneg %p77
        %p179 = pneg %p106
        %p180 = pneg %p103
        %s181 = smul.u32 32, %s17
        %p182 = scmp.lt.s32.totalorder %s181, 63
        %s183 = scalar_select %p182, %s181, 63
        %s184 = smul.addr %s183, 2
        %s185 = smul.addr %s184, 4
        %s186 = scalar_lea.vmem %s3, %s185
        %s187 = smul.u32 32, %s17
        %s188 = smul.u32 32, %s17
        %p189 = scmp.lt.s32.totalorder %s188, 63
        %s190 = scalar_select %p189, %s188, 63
        %s191 = smul.addr %s190, 2
        %s192 = smul.addr %s191, 4
        %s193 = scalar_lea.vmem %s3, %s192
        %s194 = smul.u32 32, %s17
        %v196 = vld [vmem:[%s163] sm:$0xff]
        %v197 = vld [vmem:[%s163 + $0x8] sm:$0xff]
        %v198 = vld [vmem:[%s163 + $0x10] sm:$0xff]
        %v199 = vld [vmem:[%s163 + $0x18] sm:$0xff]
        %v200 = vld [vmem:[%s163 + $0x20] sm:$0xff]
        %v201 = vld [vmem:[%s163 + $0x28] sm:$0xff]
        %v202 = vld [vmem:[%s163 + $0x30] sm:$0xff]
        %v203 = vld [vmem:[%s163 + $0x38] sm:$0xff]
        %v204 = vld [vmem:[%s163 + $0x40] sm:$0xff]
        %v205 = vld [vmem:[%s163 + $0x48] sm:$0xff]
        %v206 = vld [vmem:[%s163 + $0x50] sm:$0xff]
        %v207 = vld [vmem:[%s163 + $0x58] sm:$0xff]
        %v208 = vld [vmem:[%s163 + $0x60] sm:$0xff]
        %v209 = vld [vmem:[%s163 + $0x68] sm:$0xff]
        %v210 = vld [vmem:[%s163 + $0x70] sm:$0xff]
        %v211 = vld [vmem:[%s163 + $0x78] sm:$0xff]
        %v212 = vld [vmem:[%s163 + $0x80] sm:$0xff]
        %v213 = vld [vmem:[%s163 + $0x88] sm:$0xff]
        %v214 = vld [vmem:[%s163 + $0x90] sm:$0xff]
        %v215 = vld [vmem:[%s163 + $0x98] sm:$0xff]
        %v216 = vld [vmem:[%s163 + $0xa0] sm:$0xff]
        %v217 = vld [vmem:[%s163 + $0xa8] sm:$0xff]
        %v218 = vld [vmem:[%s163 + $0xb0] sm:$0xff]
        %v219 = vld [vmem:[%s163 + $0xb8] sm:$0xff]
        %v220 = vld [vmem:[%s163 + $0xc0] sm:$0xff]
        %v221 = vld [vmem:[%s163 + $0xc8] sm:$0xff]
        %v222 = vld [vmem:[%s163 + $0xd0] sm:$0xff]
        %v223 = vld [vmem:[%s163 + $0xd8] sm:$0xff]
        %v224 = vld [vmem:[%s163 + $0xe0] sm:$0xff]
        %v225 = vld [vmem:[%s163 + $0xe8] sm:$0xff]
        %v226 = vld [vmem:[%s163 + $0xf0] sm:$0xff]
        %v227 = vld [vmem:[%s163 + $0xf8] sm:$0xff]
        %v228 = vpack.c.bf16 %v197, %v196
        %v229 = vpack.c.bf16 %v199, %v198
        %v230 = vpack.c.bf16 %v201, %v200
        %v231 = vpack.c.bf16 %v203, %v202
        %v232 = vpack.c.bf16 %v205, %v204
        %v233 = vpack.c.bf16 %v207, %v206
        %v234 = vpack.c.bf16 %v209, %v208
        %v235 = vpack.c.bf16 %v211, %v210
        %v236 = vpack.c.bf16 %v213, %v212
        %v237 = vpack.c.bf16 %v215, %v214
        %v238 = vpack.c.bf16 %v217, %v216
        %v239 = vpack.c.bf16 %v219, %v218
        %v240 = vpack.c.bf16 %v221, %v220
        %v241 = vpack.c.bf16 %v223, %v222
        %v242 = vpack.c.bf16 %v225, %v224
        %v243 = vpack.c.bf16 %v227, %v226
        %v244 = vld [vmem:[%s1] sm:$0xff]
        %v245 = vld [vmem:[%s1 + $0x8] sm:$0xff]
        %v246 = vld [vmem:[%s1 + $0x10] sm:$0xff]
        %v247 = vld [vmem:[%s1 + $0x18] sm:$0xff]
        %v248 = vld [vmem:[%s1 + $0x20] sm:$0xff]
        %v249 = vld [vmem:[%s1 + $0x28] sm:$0xff]
        %v250 = vld [vmem:[%s1 + $0x30] sm:$0xff]
        %v251 = vld [vmem:[%s1 + $0x38] sm:$0xff]
        %v252 = vld [vmem:[%s2] sm:$0x3]
        %v254 = vlaneseq
        %v255 = vshrl.u32 %v254, 7
        %v256 = vsub.s32 0, %v255
        %v257 = vrot.slane %v252, %v256
        %v258 = vlaneseq
        %v259 = vshrl.u32 %v258, 7
        %v260 = vsub.s32 1, %v259
        %v261 = vrot.slane %v252, %v260
        %v272 = vunpack.c.l.b16 %v244
        %v273 = vunpack.c.h.b16 %v244
        %v274 = vunpack.c.l.b16 %v245
        %v275 = vunpack.c.h.b16 %v245
        %v276 = vunpack.c.l.b16 %v246
        %v277 = vunpack.c.h.b16 %v246
        %v278 = vunpack.c.l.b16 %v247
        %v279 = vunpack.c.h.b16 %v247
        %v280 = vunpack.c.l.b16 %v248
        %v281 = vunpack.c.h.b16 %v248
        %v282 = vunpack.c.l.b16 %v249
        %v283 = vunpack.c.h.b16 %v249
        %v284 = vunpack.c.l.b16 %v250
        %v285 = vunpack.c.h.b16 %v250
        %v286 = vunpack.c.l.b16 %v251
        %v287 = vunpack.c.h.b16 %v251
        %v288 = vpack.c.b16 %v274, %v272
        %v289 = vpack.c.b16 %v275, %v273
        %v290 = vpack.c.b16 %v278, %v276
        %v291 = vpack.c.b16 %v279, %v277
        %v292 = vpack.c.b16 %v282, %v280
        %v293 = vpack.c.b16 %v283, %v281
        %v294 = vpack.c.b16 %v286, %v284
        %v295 = vpack.c.b16 %v287, %v285
        %vm304 = vcmask 523264
        %v306 = vsel %vm304, %v228, 0
        %v309 = vsel %vm304, %v229, 0
        %v312 = vsel %vm304, %v230, 0
        %v315 = vsel %vm304, %v231, 0
        %v318 = vsel %vm304, %v232, 0
        %v321 = vsel %vm304, %v233, 0
        %v324 = vsel %vm304, %v234, 0
        %v327 = vsel %vm304, %v235, 0
        %v330 = vsel %vm304, %v236, 0
        %v333 = vsel %vm304, %v237, 0
        %v336 = vsel %vm304, %v238, 0
        %v339 = vsel %vm304, %v239, 0
        %v342 = vsel %vm304, %v240, 0
        %v345 = vsel %vm304, %v241, 0
        %v348 = vsel %vm304, %v242, 0
        %v351 = vsel %vm304, %v243, 0
        %353 = vmatprep.subr.bf16.mxu0 0
        %354 = vmatpush1.bf16.msra.mxu0 0
        %355 = vmatprep.subr.bf16.mxu0 0
        %356 = vmatpush1.bf16.msra.mxu0 0
        %357 = vmatprep.subr.bf16.mxu0 0
        %358 = vmatpush1.bf16.msra.mxu0 0
        %359 = vmatprep.subr.bf16.mxu0 0
        %360 = vmatpush1.bf16.msra.mxu0 0
        %361 = vmatprep.subr.bf16.mxu0 %v295
        %362 = vmatpush1.bf16.msra.mxu0 %v294
        %363 = vmatprep.subr.bf16.mxu0 %v293
        %364 = vmatpush1.bf16.msra.mxu0 %v292
        %365 = vmatprep.subr.bf16.mxu0 %v291
        %366 = vmatpush1.bf16.msra.mxu0 %v290
        %367 = vmatprep.subr.bf16.mxu0 %v289
        %368 = vmatpush1.bf16.msra.mxu0 %v288
        %369 = vmatprep.subr.bf16.mxu0 0
        %370 = vmatpush2.bf16.msra.mxu0 0
        %371 = vmatprep.subr.bf16.mxu0 0
        %372 = vmatpush2.bf16.msra.mxu0 0
        %373 = vmatprep.subr.bf16.mxu0 0
        %374 = vmatpush2.bf16.msra.mxu0 0
        %375 = vmatprep.subr.bf16.mxu0 0
        %376 = vmatpush2.bf16.msra.mxu0 0
        %377 = vmatprep.subr.bf16.mxu0 0
        %378 = vmatpush2.bf16.msra.mxu0 0
        %379 = vmatprep.subr.bf16.mxu0 0
        %380 = vmatpush2.bf16.msra.mxu0 0
        %381 = vmatprep.subr.bf16.mxu0 0
        %382 = vmatpush2.bf16.msra.mxu0 0
        %383 = vmatprep.subr.bf16.mxu0 0
        %384 = vmatpush2.bf16.msra.mxu0 0
        %385 = vmatprep.mubr.bf16.mxu0 0
        %386 = vmatmul.mubr.bf16.gmra.mxu0 %v306
        %v387 = vpop.f32.mrf.mxu0
        %v388 = vadd.f32 %v257, %v387
        %v389 = vpop.f32.mrf.mxu0
        %v390 = vadd.f32 %v261, %v389
        %v391 = vpop.f32.mrf.mxu0
        %v392 = vadd.f32 %v257, %v391
        %v393 = vpop.f32.mrf.mxu0
        %v394 = vadd.f32 %v261, %v393
        %395 = vmatprep.mubr.bf16.mxu0 0
        %396 = vmatmul.mubr.bf16.gmra.mxu0 %v309
        %v397 = vpop.f32.mrf.mxu0
        %v398 = vadd.f32 %v257, %v397
        %v399 = vpop.f32.mrf.mxu0
        %v400 = vadd.f32 %v261, %v399
        %v401 = vpop.f32.mrf.mxu0
        %v402 = vadd.f32 %v257, %v401
        %v403 = vpop.f32.mrf.mxu0
        %v404 = vadd.f32 %v261, %v403
        %405 = vmatprep.mubr.bf16.mxu0 0
        %406 = vmatmul.mubr.bf16.gmra.mxu0 %v312
        %v407 = vpop.f32.mrf.mxu0
        %v408 = vadd.f32 %v257, %v407
        %v409 = vpop.f32.mrf.mxu0
        %v410 = vadd.f32 %v261, %v409
        %v411 = vpop.f32.mrf.mxu0
        %v412 = vadd.f32 %v257, %v411
        %v413 = vpop.f32.mrf.mxu0
        %v414 = vadd.f32 %v261, %v413
        %415 = vmatprep.mubr.bf16.mxu0 0
        %416 = vmatmul.mubr.bf16.gmra.mxu0 %v315
        %v417 = vpop.f32.mrf.mxu0
        %v418 = vadd.f32 %v257, %v417
        %v419 = vpop.f32.mrf.mxu0
        %v420 = vadd.f32 %v261, %v419
        %v421 = vpop.f32.mrf.mxu0
        %v422 = vadd.f32 %v257, %v421
        %v423 = vpop.f32.mrf.mxu0
        %v424 = vadd.f32 %v261, %v423
        %425 = vmatprep.mubr.bf16.mxu0 0
        %426 = vmatmul.mubr.bf16.gmra.mxu0 %v318
        %v427 = vpop.f32.mrf.mxu0
        %v428 = vadd.f32 %v257, %v427
        %v429 = vpop.f32.mrf.mxu0
        %v430 = vadd.f32 %v261, %v429
        %v431 = vpop.f32.mrf.mxu0
        %v432 = vadd.f32 %v257, %v431
        %v433 = vpop.f32.mrf.mxu0
        %v434 = vadd.f32 %v261, %v433
        %435 = vmatprep.mubr.bf16.mxu0 0
        %436 = vmatmul.mubr.bf16.gmra.mxu0 %v321
        %v437 = vpop.f32.mrf.mxu0
        %v438 = vadd.f32 %v257, %v437
        %v439 = vpop.f32.mrf.mxu0
        %v440 = vadd.f32 %v261, %v439
        %v441 = vpop.f32.mrf.mxu0
        %v442 = vadd.f32 %v257, %v441
        %v443 = vpop.f32.mrf.mxu0
        %v444 = vadd.f32 %v261, %v443
        %445 = vmatprep.mubr.bf16.mxu0 0
        %446 = vmatmul.mubr.bf16.gmra.mxu0 %v324
        %v447 = vpop.f32.mrf.mxu0
        %v448 = vadd.f32 %v257, %v447
        %v449 = vpop.f32.mrf.mxu0
        %v450 = vadd.f32 %v261, %v449
        %v451 = vpop.f32.mrf.mxu0
        %v452 = vadd.f32 %v257, %v451
        %v453 = vpop.f32.mrf.mxu0
        %v454 = vadd.f32 %v261, %v453
        %455 = vmatprep.mubr.bf16.mxu0 0
        %456 = vmatmul.mubr.bf16.gmra.mxu0 %v327
        %v457 = vpop.f32.mrf.mxu0
        %v458 = vadd.f32 %v257, %v457
        %v459 = vpop.f32.mrf.mxu0
        %v460 = vadd.f32 %v261, %v459
        %v461 = vpop.f32.mrf.mxu0
        %v462 = vadd.f32 %v257, %v461
        %v463 = vpop.f32.mrf.mxu0
        %v464 = vadd.f32 %v261, %v463
        %465 = vmatprep.mubr.bf16.mxu0 0
        %466 = vmatmul.mubr.bf16.gmra.mxu0 %v330
        %v467 = vpop.f32.mrf.mxu0
        %v468 = vadd.f32 %v257, %v467
        %v469 = vpop.f32.mrf.mxu0
        %v470 = vadd.f32 %v261, %v469
        %v471 = vpop.f32.mrf.mxu0
        %v472 = vadd.f32 %v257, %v471
        %v473 = vpop.f32.mrf.mxu0
        %v474 = vadd.f32 %v261, %v473
        %475 = vmatprep.mubr.bf16.mxu0 0
        %476 = vmatmul.mubr.bf16.gmra.mxu0 %v333
        %v477 = vpop.f32.mrf.mxu0
        %v478 = vadd.f32 %v257, %v477
        %v479 = vpop.f32.mrf.mxu0
        %v480 = vadd.f32 %v261, %v479
        %v481 = vpop.f32.mrf.mxu0
        %v482 = vadd.f32 %v257, %v481
        %v483 = vpop.f32.mrf.mxu0
        %v484 = vadd.f32 %v261, %v483
        %485 = vmatprep.mubr.bf16.mxu0 0
        %486 = vmatmul.mubr.bf16.gmra.mxu0 %v336
        %v487 = vpop.f32.mrf.mxu0
        %v488 = vadd.f32 %v257, %v487
        %v489 = vpop.f32.mrf.mxu0
        %v490 = vadd.f32 %v261, %v489
        %v491 = vpop.f32.mrf.mxu0
        %v492 = vadd.f32 %v257, %v491
        %v493 = vpop.f32.mrf.mxu0
        %v494 = vadd.f32 %v261, %v493
        %495 = vmatprep.mubr.bf16.mxu0 0
        %496 = vmatmul.mubr.bf16.gmra.mxu0 %v339
        %v497 = vpop.f32.mrf.mxu0
        %v498 = vadd.f32 %v257, %v497
        %v499 = vpop.f32.mrf.mxu0
        %v500 = vadd.f32 %v261, %v499
        %v501 = vpop.f32.mrf.mxu0
        %v502 = vadd.f32 %v257, %v501
        %v503 = vpop.f32.mrf.mxu0
        %v504 = vadd.f32 %v261, %v503
        %505 = vmatprep.mubr.bf16.mxu0 0
        %506 = vmatmul.mubr.bf16.gmra.mxu0 %v342
        %v507 = vpop.f32.mrf.mxu0
        %v508 = vadd.f32 %v257, %v507
        %v509 = vpop.f32.mrf.mxu0
        %v510 = vadd.f32 %v261, %v509
        %v511 = vpop.f32.mrf.mxu0
        %v512 = vadd.f32 %v257, %v511
        %v513 = vpop.f32.mrf.mxu0
        %v514 = vadd.f32 %v261, %v513
        %515 = vmatprep.mubr.bf16.mxu0 0
        %516 = vmatmul.mubr.bf16.gmra.mxu0 %v345
        %v517 = vpop.f32.mrf.mxu0
        %v518 = vadd.f32 %v257, %v517
        %v519 = vpop.f32.mrf.mxu0
        %v520 = vadd.f32 %v261, %v519
        %v521 = vpop.f32.mrf.mxu0
        %v522 = vadd.f32 %v257, %v521
        %v523 = vpop.f32.mrf.mxu0
        %v524 = vadd.f32 %v261, %v523
        %525 = vmatprep.mubr.bf16.mxu0 0
        %526 = vmatmul.mubr.bf16.gmra.mxu0 %v348
        %v527 = vpop.f32.mrf.mxu0
        %v528 = vadd.f32 %v257, %v527
        %v529 = vpop.f32.mrf.mxu0
        %v530 = vadd.f32 %v261, %v529
        %v531 = vpop.f32.mrf.mxu0
        %v532 = vadd.f32 %v257, %v531
        %v533 = vpop.f32.mrf.mxu0
        %v534 = vadd.f32 %v261, %v533
        %535 = vmatprep.mubr.bf16.mxu0 0
        %536 = vmatmul.mubr.bf16.gmra.mxu0 %v351
        %v537 = vpop.f32.mrf.mxu0
        %v538 = vadd.f32 %v257, %v537
        %v539 = vpop.f32.mrf.mxu0
        %v540 = vadd.f32 %v261, %v539
        %v541 = vpop.f32.mrf.mxu0
        %v542 = vadd.f32 %v257, %v541
        %v543 = vpop.f32.mrf.mxu0
        %v544 = vadd.f32 %v261, %v543
        %545 = vdwg.mxu0
        %v546 = vpack.c.bf16 %v392, %v388
        %v547 = vpack.c.bf16 %v394, %v390
        %v548 = vpack.c.bf16 %v402, %v398
        %v549 = vpack.c.bf16 %v404, %v400
        %v550 = vpack.c.bf16 %v412, %v408
        %v551 = vpack.c.bf16 %v414, %v410
        %v552 = vpack.c.bf16 %v422, %v418
        %v553 = vpack.c.bf16 %v424, %v420
        %v554 = vpack.c.bf16 %v432, %v428
        %v555 = vpack.c.bf16 %v434, %v430
        %v556 = vpack.c.bf16 %v442, %v438
        %v557 = vpack.c.bf16 %v444, %v440
        %v558 = vpack.c.bf16 %v452, %v448
        %v559 = vpack.c.bf16 %v454, %v450
        %v560 = vpack.c.bf16 %v462, %v458
        %v561 = vpack.c.bf16 %v464, %v460
        %v562 = vpack.c.bf16 %v472, %v468
        %v563 = vpack.c.bf16 %v474, %v470
        %v564 = vpack.c.bf16 %v482, %v478
        %v565 = vpack.c.bf16 %v484, %v480
        %v566 = vpack.c.bf16 %v492, %v488
        %v567 = vpack.c.bf16 %v494, %v490
        %v568 = vpack.c.bf16 %v502, %v498
        %v569 = vpack.c.bf16 %v504, %v500
        %v570 = vpack.c.bf16 %v512, %v508
        %v571 = vpack.c.bf16 %v514, %v510
        %v572 = vpack.c.bf16 %v522, %v518
        %v573 = vpack.c.bf16 %v524, %v520
        %v574 = vpack.c.bf16 %v532, %v528
        %v575 = vpack.c.bf16 %v534, %v530
        %v576 = vpack.c.bf16 %v542, %v538
        %v577 = vpack.c.bf16 %v544, %v540
        %v610 = vunpack.c.l.b16 %v546
        %v611 = vunpack.c.l.b16 %v547
        %v612 = vunpack.c.h.b16 %v546
        %v613 = vunpack.c.h.b16 %v547
        %v614 = vunpack.c.l.b16 %v548
        %v615 = vunpack.c.l.b16 %v549
        %v616 = vunpack.c.h.b16 %v548
        %v617 = vunpack.c.h.b16 %v549
        %v618 = vunpack.c.l.b16 %v550
        %v619 = vunpack.c.l.b16 %v551
        %v620 = vunpack.c.h.b16 %v550
        %v621 = vunpack.c.h.b16 %v551
        %v622 = vunpack.c.l.b16 %v552
        %v623 = vunpack.c.l.b16 %v553
        %v624 = vunpack.c.h.b16 %v552
        %v625 = vunpack.c.h.b16 %v553
        %v626 = vunpack.c.l.b16 %v554
        %v627 = vunpack.c.l.b16 %v555
        %v628 = vunpack.c.h.b16 %v554
        %v629 = vunpack.c.h.b16 %v555
        %v630 = vunpack.c.l.b16 %v556
        %v631 = vunpack.c.l.b16 %v557
        %v632 = vunpack.c.h.b16 %v556
        %v633 = vunpack.c.h.b16 %v557
        %v634 = vunpack.c.l.b16 %v558
        %v635 = vunpack.c.l.b16 %v559
        %v636 = vunpack.c.h.b16 %v558
        %v637 = vunpack.c.h.b16 %v559
        %v638 = vunpack.c.l.b16 %v560
        %v639 = vunpack.c.l.b16 %v561
        %v640 = vunpack.c.h.b16 %v560
        %v641 = vunpack.c.h.b16 %v561
        %v642 = vunpack.c.l.b16 %v562
        %v643 = vunpack.c.l.b16 %v563
        %v644 = vunpack.c.h.b16 %v562
        %v645 = vunpack.c.h.b16 %v563
        %v646 = vunpack.c.l.b16 %v564
        %v647 = vunpack.c.l.b16 %v565
        %v648 = vunpack.c.h.b16 %v564
        %v649 = vunpack.c.h.b16 %v565
        %v650 = vunpack.c.l.b16 %v566
        %v651 = vunpack.c.l.b16 %v567
        %v652 = vunpack.c.h.b16 %v566
        %v653 = vunpack.c.h.b16 %v567
        %v654 = vunpack.c.l.b16 %v568
        %v655 = vunpack.c.l.b16 %v569
        %v656 = vunpack.c.h.b16 %v568
        %v657 = vunpack.c.h.b16 %v569
        %v658 = vunpack.c.l.b16 %v570
        %v659 = vunpack.c.l.b16 %v571
        %v660 = vunpack.c.h.b16 %v570
        %v661 = vunpack.c.h.b16 %v571
        %v662 = vunpack.c.l.b16 %v572
        %v663 = vunpack.c.l.b16 %v573
        %v664 = vunpack.c.h.b16 %v572
        %v665 = vunpack.c.h.b16 %v573
        %v666 = vunpack.c.l.b16 %v574
        %v667 = vunpack.c.l.b16 %v575
        %v668 = vunpack.c.h.b16 %v574
        %v669 = vunpack.c.h.b16 %v575
        %v670 = vunpack.c.l.b16 %v576
        %v671 = vunpack.c.l.b16 %v577
        %v672 = vunpack.c.h.b16 %v576
        %v673 = vunpack.c.h.b16 %v577
        %v674 = vpack.c.b16 %v611, %v610
        %v675 = vpack.c.b16 %v613, %v612
        %v676 = vpack.c.b16 %v615, %v614
        %v677 = vpack.c.b16 %v617, %v616
        %v678 = vpack.c.b16 %v619, %v618
        %v679 = vpack.c.b16 %v621, %v620
        %v680 = vpack.c.b16 %v623, %v622
        %v681 = vpack.c.b16 %v625, %v624
        %v682 = vpack.c.b16 %v627, %v626
        %v683 = vpack.c.b16 %v629, %v628
        %v684 = vpack.c.b16 %v631, %v630
        %v685 = vpack.c.b16 %v633, %v632
        %v686 = vpack.c.b16 %v635, %v634
        %v687 = vpack.c.b16 %v637, %v636
        %v688 = vpack.c.b16 %v639, %v638
        %v689 = vpack.c.b16 %v641, %v640
        %v690 = vpack.c.b16 %v643, %v642
        %v691 = vpack.c.b16 %v645, %v644
        %v692 = vpack.c.b16 %v647, %v646
        %v693 = vpack.c.b16 %v649, %v648
        %v694 = vpack.c.b16 %v651, %v650
        %v695 = vpack.c.b16 %v653, %v652
        %v696 = vpack.c.b16 %v655, %v654
        %v697 = vpack.c.b16 %v657, %v656
        %v698 = vpack.c.b16 %v659, %v658
        %v699 = vpack.c.b16 %v661, %v660
        %v700 = vpack.c.b16 %v663, %v662
        %v701 = vpack.c.b16 %v665, %v664
        %v702 = vpack.c.b16 %v667, %v666
        %v703 = vpack.c.b16 %v669, %v668
        %v704 = vpack.c.b16 %v671, %v670
        %v705 = vpack.c.b16 %v673, %v672
        %738 = vst [vmem:[%s193] sm:$0xff] %v674
        %739 = vst [vmem:[%s193 + $0x8] sm:$0xff] %v675
        %740 = vst [vmem:[%s193 + $0x10] sm:$0xff] %v676
        %741 = vst [vmem:[%s193 + $0x18] sm:$0xff] %v677
        %742 = vst [vmem:[%s193 + $0x20] sm:$0xff] %v678
        %743 = vst [vmem:[%s193 + $0x28] sm:$0xff] %v679
        %744 = vst [vmem:[%s193 + $0x30] sm:$0xff] %v680
        %745 = vst [vmem:[%s193 + $0x38] sm:$0xff] %v681
        %746 = vst [vmem:[%s193 + $0x40] sm:$0xff] %v682
        %747 = vst [vmem:[%s193 + $0x48] sm:$0xff] %v683
        %748 = vst [vmem:[%s193 + $0x50] sm:$0xff] %v684
        %749 = vst [vmem:[%s193 + $0x58] sm:$0xff] %v685
        %750 = vst [vmem:[%s193 + $0x60] sm:$0xff] %v686
        %751 = vst [vmem:[%s193 + $0x68] sm:$0xff] %v687
        %752 = vst [vmem:[%s193 + $0x70] sm:$0xff] %v688
        %753 = vst [vmem:[%s193 + $0x78] sm:$0xff] %v689
        %754 = vst [vmem:[%s193 + $0x80] sm:$0xff] %v690
        %755 = vst [vmem:[%s193 + $0x88] sm:$0xff] %v691
        %756 = vst [vmem:[%s193 + $0x90] sm:$0xff] %v692
        %757 = vst [vmem:[%s193 + $0x98] sm:$0xff] %v693
        %758 = vst [vmem:[%s193 + $0xa0] sm:$0xff] %v694
        %759 = vst [vmem:[%s193 + $0xa8] sm:$0xff] %v695
        %760 = vst [vmem:[%s193 + $0xb0] sm:$0xff] %v696
        %761 = vst [vmem:[%s193 + $0xb8] sm:$0xff] %v697
        %762 = vst [vmem:[%s193 + $0xc0] sm:$0xff] %v698
        %763 = vst [vmem:[%s193 + $0xc8] sm:$0xff] %v699
        %764 = vst [vmem:[%s193 + $0xd0] sm:$0xff] %v700
        %765 = vst [vmem:[%s193 + $0xd8] sm:$0xff] %v701
        %766 = vst [vmem:[%s193 + $0xe0] sm:$0xff] %v702
        %767 = vst [vmem:[%s193 + $0xe8] sm:$0xff] %v703
        %768 = vst [vmem:[%s193 + $0xf0] sm:$0xff] %v704
        %769 = vst [vmem:[%s193 + $0xf8] sm:$0xff] %v705
        %s770 = smul.u32 32, %s17
        %p771 = scmp.lt.s32.totalorder %s770, 63
        %s772 = scalar_select %p771, %s770, 63
        %s773 = smul.addr %s772, 2
        %s774 = smul.addr %s773, 4
        %s775 = scalar_lea.vmem %s3, %s774
        // Predicated region
        $region37: #{feed_forward.2} parent=31 // pred_check
          %p776 = pneg %p103
        $region38: #{feed_forward.2} parent=31 // pred_check_branch
          %778 = sbr.rel (%p776) target = $region40
        $region39: #{feed_forward.2} parent=31 // pred_region
          %s779 = smul.u32 32, %s17
        $region40: #{feed_forward.2} parent=31 // pred_fallthru
          _
      $region32: #{feed_forward.2} parent=5 // pred_fallthru
        _
      %p780 = scmp.le.s32.totalorder 2, %s12
      // Predicated region
      $region41: #{feed_forward.2} parent=5 // pred_check
        %p781 = pneg %p780
      $region42: #{feed_forward.2} parent=5 // pred_check_branch
        %783 = sbr.rel (%p781) target = $region44
      $region43: #{feed_forward.2} parent=5 // pred_region
        %s784 = ssub.s32 %s12, 2
        // Predicated region
        $region45: #{feed_forward.2} parent=43 // pred_check
          %p785 = pneg %p109
        $region46: #{feed_forward.2} parent=43 // pred_check_branch
          %787 = sbr.rel (%p785) target = $region48
        $region47: #{feed_forward.2} parent=43 // pred_region
          %s788 = smul.u32 32, %s18
          %p789 = scmp.lt.s32.totalorder %s788, 63
          %s790 = scalar_select %p789, %s788, 63
          %s791 = smul.addr %s790, 2
          %s792 = smul.addr %s791, 4
          %s793 = scalar_lea.vmem %s3, %s792
        $region48: #{feed_forward.2} parent=43 // pred_fallthru
          _
      $region44: #{feed_forward.2} parent=5 // pred_fallthru
        _
    $region6: #{feed_forward.2} parent=1 // loop_footer
      %s16 = sadd.s32 1, %s12
    $region7: #{feed_forward.2} parent=1 // loop_footer_branch
      %11 = sbr.rel target = $region3
    $region8: #{feed_forward.2} parent=1 // loop_exit
      _
    %794 = vsyncpa [#allocation3], 1
    %s795 = scalar_lea.sflag [#allocation3], 1
    %796 = vsyncpa %s795, 1

// kernel: feed_forward.3
$region0: #{feed_forward.3}
  #allocation0 [shape = 'u32[]', space=smem, size = 0x4, offset = 0x4, fixed_abs, tag = 'smem constant byte address 0x4 - core index']
  #allocation1 [shape = 'u32[144,128]{1,0:T(1,128)}', space=vmem, size = 0x12000, scoped, tag = 'internal scratch']
  #allocation2 [shape = 'f32[18,18,256]{2,1,0:T(8,128)}', space=vmem, size = 0x6c000, scoped, tag = 'scratch operand']
  %s0 = inlined_call_operand.vmem [shape: bf16[2,16,16,256], index: 0, kind: input, shape index: {}]
  %s1 = inlined_call_operand.vmem [shape: f32[9,256], index: 1, kind: input, shape index: {}]
  %s2 = inlined_call_operand.vmem [shape: f32[1,256], index: 2, kind: input, shape index: {}]
  %s3 = inlined_call_operand.vmem [shape: bf16[128,64], index: 3, kind: input, shape index: {}]
  %s4 = inlined_call_operand.vmem [shape: f32[1,64], index: 4, kind: input, shape index: {}]
  %s5 = inlined_call_operand.hbm [shape: f32[2,16,16,64], index: 5, kind: output, shape index: {}]
  %s6 = sld [smem:[#allocation0]]
  $region53: #{feed_forward.3} parent=0
    _
  %s8 = ssub.s32 1, %s6
  %s9 = scalar_select 0, %s8, %s6
  $region1: #{feed_forward.3} parent=0
    #allocation3 [shape = 'u8[262144]{0}', space=vmem, size = 0x40000, scoped, tag = 'output window, operand 0']
    #allocation4 [shape = 's32[2]{0}', space=sflag, size = 0x8, scoped, tag = 'scoped memory for feed_forward.3']
    %10 = vsyncpa [#allocation4], 0
    %s11 = scalar_lea.sflag [#allocation4], 1
    %12 = vsyncpa %s11, 0
    loop: start=0, step=1, limit=4
    $region2: #{feed_forward.3} parent=1 // loop_pre_header
      _
    $region3: #{feed_forward.3} parent=1 // loop_header
      %s14 = sphi 0, %s18
      %p15 = scmp.ge.s32.totalorder %s14, 4
      %s24 = sphi 0, %s26
      %s27 = sphi 0, %s24
      %s28 = sphi 0, %s27
      %s44 = sphi 0, %s28
      %s48 = sphi 0, %s48
      %s50 = sphi 0, %s48
      %s51 = sphi 0, %s50
      %s65 = sphi 0, %s51
      %s69 = sphi 0, %s69
      %s71 = sphi 0, %s69
      %s72 = sphi 0, %s71
      %s86 = sphi 0, %s72
      %s90 = sphi 0, %s90
      %s92 = sphi 0, %s90
      %s93 = sphi 0, %s92
      %s107 = sphi 0, %s93
      %s111 = sphi 0, %s111
      %s113 = sphi 0, %s111
      %s114 = sphi 0, %s113
      %s128 = sphi 0, %s114
      %s134 = sphi 0, %s136
      %s137 = sphi 0, %s134
      %s138 = sphi 0, %s137
      %s154 = sphi 0, %s138
    $region4: #{feed_forward.3} parent=1 // loop_header_branch
      %17 = sbr.rel (%p15) target = $region8
    $region5: #{feed_forward.3} parent=1 // loop_body
      %s19 = ssub.s32 %s14, 1
      %s20 = ssub.s32 %s14, 2
      %s21 = sadd.s32 %s14, 1
      %s22 = ssub.s32 %s14, %s21
      %p23 = scmp.eq.s32.totalorder %s22, 0
      %s25 = sadd.s32 %s24, 1
      %s26 = scalar_select %p23, %s24, %s25
      %p29 = pneg %p23
      %p30 = scmp.eq.s32.totalorder %s14, 1
      %p31 = por %p29, %p30
      %p32 = scmp.ne.s32.totalorder %s24, %s27
      %p33 = scmp.eq.s32.totalorder %s14, 0
      %p34 = por %p32, %p33
      %p35 = scmp.ne.s32.totalorder %s24, %s27
      %p36 = scmp.eq.s32.totalorder %s19, 1
      %p37 = por %p35, %p36
      %p38 = scmp.ne.s32.totalorder %s27, %s28
      %p39 = scmp.eq.s32.totalorder %s19, 0
      %p40 = por %p38, %p39
      %p41 = scmp.ne.s32.totalorder %s27, %s28
      %p42 = scmp.eq.s32.totalorder %s20, 1
      %p43 = por %p41, %p42
      %p45 = scmp.ne.s32.totalorder %s28, %s44
      %p46 = scmp.eq.s32.totalorder %s20, 0
      %p47 = por %p45, %p46
      %s49 = sadd.s32 %s48, 1
      %p52 = scmp.eq.s32.totalorder %s14, 1
      %p53 = scmp.ne.s32.totalorder %s48, %s50
      %p54 = scmp.eq.s32.totalorder %s14, 0
      %p55 = por %p53, %p54
      %p56 = scmp.ne.s32.totalorder %s48, %s50
      %p57 = scmp.eq.s32.totalorder %s19, 1
      %p58 = por %p56, %p57
      %p59 = scmp.ne.s32.totalorder %s50, %s51
      %p60 = scmp.eq.s32.totalorder %s19, 0
      %p61 = por %p59, %p60
      %p62 = scmp.ne.s32.totalorder %s50, %s51
      %p63 = scmp.eq.s32.totalorder %s20, 1
      %p64 = por %p62, %p63
      %p66 = scmp.ne.s32.totalorder %s51, %s65
      %p67 = scmp.eq.s32.totalorder %s20, 0
      %p68 = por %p66, %p67
      %s70 = sadd.s32 %s69, 1
      %p73 = scmp.eq.s32.totalorder %s14, 1
      %p74 = scmp.ne.s32.totalorder %s69, %s71
      %p75 = scmp.eq.s32.totalorder %s14, 0
      %p76 = por %p74, %p75
      %p77 = scmp.ne.s32.totalorder %s69, %s71
      %p78 = scmp.eq.s32.totalorder %s19, 1
      %p79 = por %p77, %p78
      %p80 = scmp.ne.s32.totalorder %s71, %s72
      %p81 = scmp.eq.s32.totalorder %s19, 0
      %p82 = por %p80, %p81
      %p83 = scmp.ne.s32.totalorder %s71, %s72
      %p84 = scmp.eq.s32.totalorder %s20, 1
      %p85 = por %p83, %p84
      %p87 = scmp.ne.s32.totalorder %s72, %s86
      %p88 = scmp.eq.s32.totalorder %s20, 0
      %p89 = por %p87, %p88
      %s91 = sadd.s32 %s90, 1
      %p94 = scmp.eq.s32.totalorder %s14, 1
      %p95 = scmp.ne.s32.totalorder %s90, %s92
      %p96 = scmp.eq.s32.totalorder %s14, 0
      %p97 = por %p95, %p96
      %p98 = scmp.ne.s32.totalorder %s90, %s92
      %p99 = scmp.eq.s32.totalorder %s19, 1
      %p100 = por %p98, %p99
      %p101 = scmp.ne.s32.totalorder %s92, %s93
      %p102 = scmp.eq.s32.totalorder %s19, 0
      %p103 = por %p101, %p102
      %p104 = scmp.ne.s32.totalorder %s92, %s93
      %p105 = scmp.eq.s32.totalorder %s20, 1
      %p106 = por %p104, %p105
      %p108 = scmp.ne.s32.totalorder %s93, %s107
      %p109 = scmp.eq.s32.totalorder %s20, 0
      %p110 = por %p108, %p109
      %s112 = sadd.s32 %s111, 1
      %p115 = scmp.eq.s32.totalorder %s14, 1
      %p116 = scmp.ne.s32.totalorder %s111, %s113
      %p117 = scmp.eq.s32.totalorder %s14, 0
      %p118 = por %p116, %p117
      %p119 = scmp.ne.s32.totalorder %s111, %s113
      %p120 = scmp.eq.s32.totalorder %s19, 1
      %p121 = por %p119, %p120
      %p122 = scmp.ne.s32.totalorder %s113, %s114
      %p123 = scmp.eq.s32.totalorder %s19, 0
      %p124 = por %p122, %p123
      %p125 = scmp.ne.s32.totalorder %s113, %s114
      %p126 = scmp.eq.s32.totalorder %s20, 1
      %p127 = por %p125, %p126
      %p129 = scmp.ne.s32.totalorder %s114, %s128
      %p130 = scmp.eq.s32.totalorder %s20, 0
      %p131 = por %p129, %p130
      %s132 = ssub.s32 %s14, %s21
      %p133 = scmp.eq.s32.totalorder %s132, 0
      %s135 = sadd.s32 %s134, 1
      %s136 = scalar_select %p133, %s134, %s135
      %p139 = pneg %p133
      %p140 = scmp.eq.s32.totalorder %s14, 1
      %p141 = por %p139, %p140
      %p142 = scmp.ne.s32.totalorder %s134, %s137
      %p143 = scmp.eq.s32.totalorder %s14, 0
      %p144 = por %p142, %p143
      %p145 = scmp.ne.s32.totalorder %s134, %s137
      %p146 = scmp.eq.s32.totalorder %s19, 1
      %p147 = por %p145, %p146
      %p148 = scmp.ne.s32.totalorder %s137, %s138
      %p149 = scmp.eq.s32.totalorder %s19, 0
      %p150 = por %p148, %p149
      %p151 = scmp.ne.s32.totalorder %s137, %s138
      %p152 = scmp.eq.s32.totalorder %s20, 1
      %p153 = por %p151, %p152
      %p155 = scmp.ne.s32.totalorder %s138, %s154
      %p156 = scmp.eq.s32.totalorder %s20, 0
      %p157 = por %p155, %p156
      %p158 = scmp.le.s32.totalorder 1, %s14
      %p159 = scmp.lt.s32.totalorder %s14, 3
      %p160 = pnand %p158, %p159
      %p161 = pneg %p160
      // Predicated region
      $region9: #{feed_forward.3} parent=5 // pred_check
        _
      $region10: #{feed_forward.3} parent=5 // pred_check_branch
        %163 = sbr.rel (%p160) target = $region12
      $region11: #{feed_forward.3} parent=5 // pred_region
        %s164 = ssub.s32 %s14, 1
        // Predicated region
        $region13: #{feed_forward.3} parent=11 // pred_check
          %p165 = pneg %p61
        $region14: #{feed_forward.3} parent=11 // pred_check_branch
          %167 = sbr.rel (%p165) target = $region16
        $region15: #{feed_forward.3} parent=11 // pred_region
          _
        $region16: #{feed_forward.3} parent=11 // pred_fallthru
          _
        // Predicated region
        $region17: #{feed_forward.3} parent=11 // pred_check
          %p168 = pneg %p82
        $region18: #{feed_forward.3} parent=11 // pred_check_branch
          %170 = sbr.rel (%p168) target = $region20
        $region19: #{feed_forward.3} parent=11 // pred_region
          _
        $region20: #{feed_forward.3} parent=11 // pred_fallthru
          _
        // Predicated region
        $region21: #{feed_forward.3} parent=11 // pred_check
          %p171 = pneg %p103
        $region22: #{feed_forward.3} parent=11 // pred_check_branch
          %173 = sbr.rel (%p171) target = $region24
        $region23: #{feed_forward.3} parent=11 // pred_region
          _
        $region24: #{feed_forward.3} parent=11 // pred_fallthru
          _
        // Predicated region
        $region25: #{feed_forward.3} parent=11 // pred_check
          %p174 = pneg %p124
        $region26: #{feed_forward.3} parent=11 // pred_check_branch
          %176 = sbr.rel (%p174) target = $region28
        $region27: #{feed_forward.3} parent=11 // pred_region
          _
        $region28: #{feed_forward.3} parent=11 // pred_fallthru
          _
      $region12: #{feed_forward.3} parent=5 // pred_fallthru
        _
      %p177 = scmp.lt.s32.totalorder %s14, 2
      // Predicated region
      $region29: #{feed_forward.3} parent=5 // pred_check
        %p178 = pneg %p177
      $region30: #{feed_forward.3} parent=5 // pred_check_branch
        %180 = sbr.rel (%p178) target = $region32
      $region31: #{feed_forward.3} parent=5 // pred_region
        // Predicated region
        $region33: #{feed_forward.3} parent=31 // pred_check
          %p181 = pneg %p34
        $region34: #{feed_forward.3} parent=31 // pred_check_branch
          %183 = sbr.rel (%p181) target = $region36
        $region35: #{feed_forward.3} parent=31 // pred_region
          %p184 = scmp.lt.s32.totalorder %s14, 1
          %s185 = scalar_select %p184, %s14, 1
          %s186 = smul.addr %s185, 64
          %s187 = smul.addr %s186, 4
          %s188 = scalar_lea.vmem %s0, %s187
        $region36: #{feed_forward.3} parent=31 // pred_fallthru
          _
      $region32: #{feed_forward.3} parent=5 // pred_fallthru
        _
      %p189 = scmp.le.s32.totalorder 1, %s14
      %p190 = scmp.lt.s32.totalorder %s14, 3
      %p191 = pnand %p189, %p190
      %p192 = pneg %p191
      // Predicated region
      $region37: #{feed_forward.3} parent=5 // pred_check
        _
      $region38: #{feed_forward.3} parent=5 // pred_check_branch
        %194 = sbr.rel (%p191) target = $region40
      $region39: #{feed_forward.3} parent=5 // pred_region
        %s195 = ssub.s32 %s14, 1
        %p196 = scmp.lt.s32.totalorder %s19, 1
        %s197 = scalar_select %p196, %s19, 1
        %s198 = smul.addr %s197, 64
        %s199 = smul.addr %s198, 4
        %s200 = scalar_lea.vmem %s0, %s199
        %p201 = pneg %p40
        %p202 = pneg %p37
        %p203 = pneg %p61
        %p204 = pneg %p58
        %p205 = pneg %p82
        %p206 = pneg %p79
        %p207 = pneg %p103
        %p208 = pneg %p100
        %p209 = pneg %p124
        %p210 = pneg %p121
        %p211 = pneg %p150
        %p212 = pneg %p147
        %s213 = sand.u32 %s137, 1
        %s214 = scalar_lea.sflag [#allocation4], %s213
        %s215 = sand.u32 %s137, 1
        %s216 = smul.addr %s215, 256
        %s217 = scalar_lea.vmem [#allocation3], %s216
        %p218 = scmp.lt.s32.totalorder %s19, 1
        %s219 = scalar_select %p218, %s19, 1
        %s220 = smul.addr %s219, 64
        %s221 = smul.addr %s220, 4
        %s222 = scalar_lea.vmem %s0, %s221
        %224 = vst [vmem:[#allocation2] sm:$0xff] 0.0
        %225 = vst [vmem:[#allocation2 + $0x8] sm:$0xff] 0.0
        %226 = vst [vmem:[#allocation2 + $0x10] sm:$0xff] 0.0
        %227 = vst [vmem:[#allocation2 + $0x18] sm:$0xff] 0.0
        %228 = vst [vmem:[#allocation2 + $0x20] sm:$0x3] 0.0
        %229 = vst [vmem:[#allocation2 + $0x28] sm:$0x3] 0.0
        %230 = vst [vmem:[#allocation2 + $0x30] sm:$0xff] 0.0
        %231 = vst [vmem:[#allocation2 + $0x38] sm:$0xff] 0.0
        %232 = vst [vmem:[#allocation2 + $0x40] sm:$0xff] 0.0
        %233 = vst [vmem:[#allocation2 + $0x48] sm:$0xff] 0.0
        %234 = vst [vmem:[#allocation2 + $0x50] sm:$0x3] 0.0
        %235 = vst [vmem:[#allocation2 + $0x58] sm:$0x3] 0.0
        %236 = vst [vmem:[#allocation2 + $0x60] sm:$0xff] 0.0
        %237 = vst [vmem:[#allocation2 + $0x68] sm:$0xff] 0.0
        %238 = vst [vmem:[#allocation2 + $0x70] sm:$0xff] 0.0
        %239 = vst [vmem:[#allocation2 + $0x78] sm:$0xff] 0.0
        %240 = vst [vmem:[#allocation2 + $0x80] sm:$0x3] 0.0
        %241 = vst [vmem:[#allocation2 + $0x88] sm:$0x3] 0.0
        %242 = vst [vmem:[#allocation2 + $0x90] sm:$0xff] 0.0
        %243 = vst [vmem:[#allocation2 + $0x98] sm:$0xff] 0.0
        %244 = vst [vmem:[#allocation2 + $0xa0] sm:$0xff] 0.0
        %245 = vst [vmem:[#allocation2 + $0xa8] sm:$0xff] 0.0
        %246 = vst [vmem:[#allocation2 + $0xb0] sm:$0x3] 0.0
        %247 = vst [vmem:[#allocation2 + $0xb8] sm:$0x3] 0.0
        %248 = vst [vmem:[#allocation2 + $0xc0] sm:$0xff] 0.0
        %249 = vst [vmem:[#allocation2 + $0xc8] sm:$0xff] 0.0
        %250 = vst [vmem:[#allocation2 + $0xd0] sm:$0xff] 0.0
        %251 = vst [vmem:[#allocation2 + $0xd8] sm:$0xff] 0.0
        %252 = vst [vmem:[#allocation2 + $0xe0] sm:$0x3] 0.0
        %253 = vst [vmem:[#allocation2 + $0xe8] sm:$0x3] 0.0
        %254 = vst [vmem:[#allocation2 + $0xf0] sm:$0xff] 0.0
        %255 = vst [vmem:[#allocation2 + $0xf8] sm:$0xff] 0.0
        %256 = vst [vmem:[#allocation2 + $0x100] sm:$0xff] 0.0
        %257 = vst [vmem:[#allocation2 + $0x108] sm:$0xff] 0.0
        %258 = vst [vmem:[#allocation2 + $0x110] sm:$0x3] 0.0
        %259 = vst [vmem:[#allocation2 + $0x118] sm:$0x3] 0.0
        %260 = vst [vmem:[#allocation2 + $0x120] sm:$0xff] 0.0
        %261 = vst [vmem:[#allocation2 + $0x128] sm:$0xff] 0.0
        %262 = vst [vmem:[#allocation2 + $0x130] sm:$0xff] 0.0
        %263 = vst [vmem:[#allocation2 + $0x138] sm:$0xff] 0.0
        %264 = vst [vmem:[#allocation2 + $0x140] sm:$0x3] 0.0
        %265 = vst [vmem:[#allocation2 + $0x148] sm:$0x3] 0.0
        %266 = vst [vmem:[#allocation2 + $0x150] sm:$0xff] 0.0
        %267 = vst [vmem:[#allocation2 + $0x158] sm:$0xff] 0.0
        %268 = vst [vmem:[#allocation2 + $0x160] sm:$0xff] 0.0
        %269 = vst [vmem:[#allocation2 + $0x168] sm:$0xff] 0.0
        %270 = vst [vmem:[#allocation2 + $0x170] sm:$0x3] 0.0
        %271 = vst [vmem:[#allocation2 + $0x178] sm:$0x3] 0.0
        %272 = vst [vmem:[#allocation2 + $0x180] sm:$0xff] 0.0
        %273 = vst [vmem:[#allocation2 + $0x188] sm:$0xff] 0.0
        %274 = vst [vmem:[#allocation2 + $0x190] sm:$0xff] 0.0
        %275 = vst [vmem:[#allocation2 + $0x198] sm:$0xff] 0.0
        %276 = vst [vmem:[#allocation2 + $0x1a0] sm:$0x3] 0.0
        %277 = vst [vmem:[#allocation2 + $0x1a8] sm:$0x3] 0.0
        %278 = vst [vmem:[#allocation2 + $0x1b0] sm:$0xff] 0.0
        %279 = vst [vmem:[#allocation2 + $0x1b8] sm:$0xff] 0.0
        %280 = vst [vmem:[#allocation2 + $0x1c0] sm:$0xff] 0.0
        %281 = vst [vmem:[#allocation2 + $0x1c8] sm:$0xff] 0.0
        %282 = vst [vmem:[#allocation2 + $0x1d0] sm:$0x3] 0.0
        %283 = vst [vmem:[#allocation2 + $0x1d8] sm:$0x3] 0.0
        %284 = vst [vmem:[#allocation2 + $0x1e0] sm:$0xff] 0.0
        %285 = vst [vmem:[#allocation2 + $0x1e8] sm:$0xff] 0.0
        %286 = vst [vmem:[#allocation2 + $0x1f0] sm:$0xff] 0.0
        %287 = vst [vmem:[#allocation2 + $0x1f8] sm:$0xff] 0.0
        %288 = vst [vmem:[#allocation2 + $0x200] sm:$0x3] 0.0
        %289 = vst [vmem:[#allocation2 + $0x208] sm:$0x3] 0.0
        %290 = vst [vmem:[#allocation2 + $0x210] sm:$0xff] 0.0
        %291 = vst [vmem:[#allocation2 + $0x218] sm:$0xff] 0.0
        %292 = vst [vmem:[#allocation2 + $0x220] sm:$0xff] 0.0
        %293 = vst [vmem:[#allocation2 + $0x228] sm:$0xff] 0.0
        %294 = vst [vmem:[#allocation2 + $0x230] sm:$0x3] 0.0
        %295 = vst [vmem:[#allocation2 + $0x238] sm:$0x3] 0.0
        %296 = vst [vmem:[#allocation2 + $0x240] sm:$0xff] 0.0
        %297 = vst [vmem:[#allocation2 + $0x248] sm:$0xff] 0.0
        %298 = vst [vmem:[#allocation2 + $0x250] sm:$0xff] 0.0
        %299 = vst [vmem:[#allocation2 + $0x258] sm:$0xff] 0.0
        %300 = vst [vmem:[#allocation2 + $0x260] sm:$0x3] 0.0
        %301 = vst [vmem:[#allocation2 + $0x268] sm:$0x3] 0.0
        %302 = vst [vmem:[#allocation2 + $0x270] sm:$0xff] 0.0
        %303 = vst [vmem:[#allocation2 + $0x278] sm:$0xff] 0.0
        %304 = vst [vmem:[#allocation2 + $0x280] sm:$0xff] 0.0
        %305 = vst [vmem:[#allocation2 + $0x288] sm:$0xff] 0.0
        %306 = vst [vmem:[#allocation2 + $0x290] sm:$0x3] 0.0
        %307 = vst [vmem:[#allocation2 + $0x298] sm:$0x3] 0.0
        %308 = vst [vmem:[#allocation2 + $0x2a0] sm:$0xff] 0.0
        %309 = vst [vmem:[#allocation2 + $0x2a8] sm:$0xff] 0.0
        %310 = vst [vmem:[#allocation2 + $0x2b0] sm:$0xff] 0.0
        %311 = vst [vmem:[#allocation2 + $0x2b8] sm:$0xff] 0.0
        %312 = vst [vmem:[#allocation2 + $0x2c0] sm:$0x3] 0.0
        %313 = vst [vmem:[#allocation2 + $0x2c8] sm:$0x3] 0.0
        %314 = vst [vmem:[#allocation2 + $0x2d0] sm:$0xff] 0.0
        %315 = vst [vmem:[#allocation2 + $0x2d8] sm:$0xff] 0.0
        %316 = vst [vmem:[#allocation2 + $0x2e0] sm:$0xff] 0.0
        %317 = vst [vmem:[#allocation2 + $0x2e8] sm:$0xff] 0.0
        %318 = vst [vmem:[#allocation2 + $0x2f0] sm:$0x3] 0.0
        %319 = vst [vmem:[#allocation2 + $0x2f8] sm:$0x3] 0.0
        %320 = vst [vmem:[#allocation2 + $0x300] sm:$0xff] 0.0
        %321 = vst [vmem:[#allocation2 + $0x308] sm:$0xff] 0.0
        %322 = vst [vmem:[#allocation2 + $0x310] sm:$0xff] 0.0
        %323 = vst [vmem:[#allocation2 + $0x318] sm:$0xff] 0.0
        %324 = vst [vmem:[#allocation2 + $0x320] sm:$0x3] 0.0
        %325 = vst [vmem:[#allocation2 + $0x328] sm:$0x3] 0.0
        %326 = vst [vmem:[#allocation2 + $0x330] sm:$0xff] 0.0
        %327 = vst [vmem:[#allocation2 + $0x338] sm:$0xff] 0.0
        %328 = vst [vmem:[#allocation2 + $0x340] sm:$0xff] 0.0
        %329 = vst [vmem:[#allocation2 + $0x348] sm:$0xff] 0.0
        %330 = vst [vmem:[#allocation2 + $0x350] sm:$0x3] 0.0
        %331 = vst [vmem:[#allocation2 + $0x358] sm:$0x3] 0.0
        %v332 = vld [vmem:[%s222] sm:$0xff]
        %v333 = vld [vmem:[%s222 + $0x8] sm:$0xff]
        %v334 = vunpack.c.l.bf16 %v332
        %v335 = vunpack.c.h.bf16 %v332
        %v336 = vunpack.c.l.bf16 %v333
        %v337 = vunpack.c.h.bf16 %v333
        %vm342 = vcmask 1040384
        %v343 = vrot.slane %v334, 7
        %v344 = vrot.slane %v335, 7
        %v345 = vrot.slane %v336, 7
        %v346 = vsel %vm342, %v343, %v345
        %v347 = vrot.slane %v337, 7
        %v348 = vsel %vm342, %v344, %v347
        %s355 = scalar_lea.vmem [#allocation2], 48
        %356 = vst [vmem:[%s355] sm:$0xfe] %v343
        %357 = vst [vmem:[%s355 + $0x8] sm:$0xfe] %v344
        %358 = vst [vmem:[%s355 + $0x10] sm:$0xff] %v346
        %359 = vst [vmem:[%s355 + $0x18] sm:$0xff] %v348
        %360 = vst [vmem:[%s355 + $0x20] sm:$0x1] %v345
        %361 = vst [vmem:[%s355 + $0x28] sm:$0x1] %v347
        %s362 = scalar_lea.vmem %s222, 16
        %v363 = vld [vmem:[%s362] sm:$0xff]
        %v364 = vld [vmem:[%s362 + $0x8] sm:$0xff]
        %v365 = vunpack.c.l.bf16 %v363
        %v366 = vunpack.c.h.bf16 %v363
        %v367 = vunpack.c.l.bf16 %v364
        %v368 = vunpack.c.h.bf16 %v364
        %v373 = vrot.slane %v365, 7
        %v374 = vrot.slane %v366, 7
        %v375 = vrot.slane %v367, 7
        %v376 = vsel %vm342, %v373, %v375
        %v377 = vrot.slane %v368, 7
        %v378 = vsel %vm342, %v374, %v377
        %s385 = scalar_lea.vmem [#allocation2], 96
        %386 = vst [vmem:[%s385] sm:$0xfe] %v373
        %387 = vst [vmem:[%s385 + $0x8] sm:$0xfe] %v374
        %388 = vst [vmem:[%s385 + $0x10] sm:$0xff] %v376
        %389 = vst [vmem:[%s385 + $0x18] sm:$0xff] %v378
        %390 = vst [vmem:[%s385 + $0x20] sm:$0x1] %v375
        %391 = vst [vmem:[%s385 + $0x28] sm:$0x1] %v377
        %s392 = scalar_lea.vmem %s222, 32
        %v393 = vld [vmem:[%s392] sm:$0xff]
        %v394 = vld [vmem:[%s392 + $0x8] sm:$0xff]
        %v395 = vunpack.c.l.bf16 %v393
        %v396 = vunpack.c.h.bf16 %v393
        %v397 = vunpack.c.l.bf16 %v394
        %v398 = vunpack.c.h.bf16 %v394
        %v403 = vrot.slane %v395, 7
        %v404 = vrot.slane %v396, 7
        %v405 = vrot.slane %v397, 7
        %v406 = vsel %vm342, %v403, %v405
        %v407 = vrot.slane %v398, 7
        %v408 = vsel %vm342, %v404, %v407
        %s415 = scalar_lea.vmem [#allocation2], 144
        %416 = vst [vmem:[%s415] sm:$0xfe] %v403
        %417 = vst [vmem:[%s415 + $0x8] sm:$0xfe] %v404
        %418 = vst [vmem:[%s415 + $0x10] sm:$0xff] %v406
        %419 = vst [vmem:[%s415 + $0x18] sm:$0xff] %v408
        %420 = vst [vmem:[%s415 + $0x20] sm:$0x1] %v405
        %421 = vst [vmem:[%s415 + $0x28] sm:$0x1] %v407
        %s422 = scalar_lea.vmem %s222, 48
        %v423 = vld [vmem:[%s422] sm:$0xff]
        %v424 = vld [vmem:[%s422 + $0x8] sm:$0xff]
        %v425 = vunpack.c.l.bf16 %v423
        %v426 = vunpack.c.h.bf16 %v423
        %v427 = vunpack.c.l.bf16 %v424
        %v428 = vunpack.c.h.bf16 %v424
        %v433 = vrot.slane %v425, 7
        %v434 = vrot.slane %v426, 7
        %v435 = vrot.slane %v427, 7
        %v436 = vsel %vm342, %v433, %v435
        %v437 = vrot.slane %v428, 7
        %v438 = vsel %vm342, %v434, %v437
        %s445 = scalar_lea.vmem [#allocation2], 192
        %446 = vst [vmem:[%s445] sm:$0xfe] %v433
        %447 = vst [vmem:[%s445 + $0x8] sm:$0xfe] %v434
        %448 = vst [vmem:[%s445 + $0x10] sm:$0xff] %v436
        %449 = vst [vmem:[%s445 + $0x18] sm:$0xff] %v438
        %450 = vst [vmem:[%s445 + $0x20] sm:$0x1] %v435
        %451 = vst [vmem:[%s445 + $0x28] sm:$0x1] %v437
        %s452 = scalar_lea.vmem %s222, 64
        %v453 = vld [vmem:[%s452] sm:$0xff]
        %v454 = vld [vmem:[%s452 + $0x8] sm:$0xff]
        %v455 = vunpack.c.l.bf16 %v453
        %v456 = vunpack.c.h.bf16 %v453
        %v457 = vunpack.c.l.bf16 %v454
        %v458 = vunpack.c.h.bf16 %v454
        %v463 = vrot.slane %v455, 7
        %v464 = vrot.slane %v456, 7
        %v465 = vrot.slane %v457, 7
        %v466 = vsel %vm342, %v463, %v465
        %v467 = vrot.slane %v458, 7
        %v468 = vsel %vm342, %v464, %v467
        %s475 = scalar_lea.vmem [#allocation2], 240
        %476 = vst [vmem:[%s475] sm:$0xfe] %v463
        %477 = vst [vmem:[%s475 + $0x8] sm:$0xfe] %v464
        %478 = vst [vmem:[%s475 + $0x10] sm:$0xff] %v466
        %479 = vst [vmem:[%s475 + $0x18] sm:$0xff] %v468
        %480 = vst [vmem:[%s475 + $0x20] sm:$0x1] %v465
        %481 = vst [vmem:[%s475 + $0x28] sm:$0x1] %v467
        %s482 = scalar_lea.vmem %s222, 80
        %v483 = vld [vmem:[%s482] sm:$0xff]
        %v484 = vld [vmem:[%s482 + $0x8] sm:$0xff]
        %v485 = vunpack.c.l.bf16 %v483
        %v486 = vunpack.c.h.bf16 %v483
        %v487 = vunpack.c.l.bf16 %v484
        %v488 = vunpack.c.h.bf16 %v484
        %v493 = vrot.slane %v485, 7
        %v494 = vrot.slane %v486, 7
        %v495 = vrot.slane %v487, 7
        %v496 = vsel %vm342, %v493, %v495
        %v497 = vrot.slane %v488, 7
        %v498 = vsel %vm342, %v494, %v497
        %s505 = scalar_lea.vmem [#allocation2], 288
        %506 = vst [vmem:[%s505] sm:$0xfe] %v493
        %507 = vst [vmem:[%s505 + $0x8] sm:$0xfe] %v494
        %508 = vst [vmem:[%s505 + $0x10] sm:$0xff] %v496
        %509 = vst [vmem:[%s505 + $0x18] sm:$0xff] %v498
        %510 = vst [vmem:[%s505 + $0x20] sm:$0x1] %v495
        %511 = vst [vmem:[%s505 + $0x28] sm:$0x1] %v497
        %s512 = scalar_lea.vmem %s222, 96
        %v513 = vld [vmem:[%s512] sm:$0xff]
        %v514 = vld [vmem:[%s512 + $0x8] sm:$0xff]
        %v515 = vunpack.c.l.bf16 %v513
        %v516 = vunpack.c.h.bf16 %v513
        %v517 = vunpack.c.l.bf16 %v514
        %v518 = vunpack.c.h.bf16 %v514
        %v523 = vrot.slane %v515, 7
        %v524 = vrot.slane %v516, 7
        %v525 = vrot.slane %v517, 7
        %v526 = vsel %vm342, %v523, %v525
        %v527 = vrot.slane %v518, 7
        %v528 = vsel %vm342, %v524, %v527
        %s535 = scalar_lea.vmem [#allocation2], 336
        %536 = vst [vmem:[%s535] sm:$0xfe] %v523
        %537 = vst [vmem:[%s535 + $0x8] sm:$0xfe] %v524
        %538 = vst [vmem:[%s535 + $0x10] sm:$0xff] %v526
        %539 = vst [vmem:[%s535 + $0x18] sm:$0xff] %v528
        %540 = vst [vmem:[%s535 + $0x20] sm:$0x1] %v525
        %541 = vst [vmem:[%s535 + $0x28] sm:$0x1] %v527
        %s542 = scalar_lea.vmem %s222, 112
        %v543 = vld [vmem:[%s542] sm:$0xff]
        %v544 = vld [vmem:[%s542 + $0x8] sm:$0xff]
        %v545 = vunpack.c.l.bf16 %v543
        %v546 = vunpack.c.h.bf16 %v543
        %v547 = vunpack.c.l.bf16 %v544
        %v548 = vunpack.c.h.bf16 %v544
        %v553 = vrot.slane %v545, 7
        %v554 = vrot.slane %v546, 7
        %v555 = vrot.slane %v547, 7
        %v556 = vsel %vm342, %v553, %v555
        %v557 = vrot.slane %v548, 7
        %v558 = vsel %vm342, %v554, %v557
        %s565 = scalar_lea.vmem [#allocation2], 384
        %566 = vst [vmem:[%s565] sm:$0xfe] %v553
        %567 = vst [vmem:[%s565 + $0x8] sm:$0xfe] %v554
        %568 = vst [vmem:[%s565 + $0x10] sm:$0xff] %v556
        %569 = vst [vmem:[%s565 + $0x18] sm:$0xff] %v558
        %570 = vst [vmem:[%s565 + $0x20] sm:$0x1] %v555
        %571 = vst [vmem:[%s565 + $0x28] sm:$0x1] %v557
        %s572 = scalar_lea.vmem %s222, 128
        %v573 = vld [vmem:[%s572] sm:$0xff]
        %v574 = vld [vmem:[%s572 + $0x8] sm:$0xff]
        %v575 = vunpack.c.l.bf16 %v573
        %v576 = vunpack.c.h.bf16 %v573
        %v577 = vunpack.c.l.bf16 %v574
        %v578 = vunpack.c.h.bf16 %v574
        %v583 = vrot.slane %v575, 7
        %v584 = vrot.slane %v576, 7
        %v585 = vrot.slane %v577, 7
        %v586 = vsel %vm342, %v583, %v585
        %v587 = vrot.slane %v578, 7
        %v588 = vsel %vm342, %v584, %v587
        %s595 = scalar_lea.vmem [#allocation2], 432
        %596 = vst [vmem:[%s595] sm:$0xfe] %v583
        %597 = vst [vmem:[%s595 + $0x8] sm:$0xfe] %v584
        %598 = vst [vmem:[%s595 + $0x10] sm:$0xff] %v586
        %599 = vst [vmem:[%s595 + $0x18] sm:$0xff] %v588
        %600 = vst [vmem:[%s595 + $0x20] sm:$0x1] %v585
        %601 = vst [vmem:[%s595 + $0x28] sm:$0x1] %v587
        %s602 = scalar_lea.vmem %s222, 144
        %v603 = vld [vmem:[%s602] sm:$0xff]
        %v604 = vld [vmem:[%s602 + $0x8] sm:$0xff]
        %v605 = vunpack.c.l.bf16 %v603
        %v606 = vunpack.c.h.bf16 %v603
        %v607 = vunpack.c.l.bf16 %v604
        %v608 = vunpack.c.h.bf16 %v604
        %v613 = vrot.slane %v605, 7
        %v614 = vrot.slane %v606, 7
        %v615 = vrot.slane %v607, 7
        %v616 = vsel %vm342, %v613, %v615
        %v617 = vrot.slane %v608, 7
        %v618 = vsel %vm342, %v614, %v617
        %s625 = scalar_lea.vmem [#allocation2], 480
        %626 = vst [vmem:[%s625] sm:$0xfe] %v613
        %627 = vst [vmem:[%s625 + $0x8] sm:$0xfe] %v614
        %628 = vst [vmem:[%s625 + $0x10] sm:$0xff] %v616
        %629 = vst [vmem:[%s625 + $0x18] sm:$0xff] %v618
        %630 = vst [vmem:[%s625 + $0x20] sm:$0x1] %v615
        %631 = vst [vmem:[%s625 + $0x28] sm:$0x1] %v617
        %s632 = scalar_lea.vmem %s222, 160
        %v633 = vld [vmem:[%s632] sm:$0xff]
        %v634 = vld [vmem:[%s632 + $0x8] sm:$0xff]
        %v635 = vunpack.c.l.bf16 %v633
        %v636 = vunpack.c.h.bf16 %v633
        %v637 = vunpack.c.l.bf16 %v634
        %v638 = vunpack.c.h.bf16 %v634
        %v643 = vrot.slane %v635, 7
        %v644 = vrot.slane %v636, 7
        %v645 = vrot.slane %v637, 7
        %v646 = vsel %vm342, %v643, %v645
        %v647 = vrot.slane %v638, 7
        %v648 = vsel %vm342, %v644, %v647
        %s655 = scalar_lea.vmem [#allocation2], 528
        %656 = vst [vmem:[%s655] sm:$0xfe] %v643
        %657 = vst [vmem:[%s655 + $0x8] sm:$0xfe] %v644
        %658 = vst [vmem:[%s655 + $0x10] sm:$0xff] %v646
        %659 = vst [vmem:[%s655 + $0x18] sm:$0xff] %v648
        %660 = vst [vmem:[%s655 + $0x20] sm:$0x1] %v645
        %661 = vst [vmem:[%s655 + $0x28] sm:$0x1] %v647
        %s662 = scalar_lea.vmem %s222, 176
        %v663 = vld [vmem:[%s662] sm:$0xff]
        %v664 = vld [vmem:[%s662 + $0x8] sm:$0xff]
        %v665 = vunpack.c.l.bf16 %v663
        %v666 = vunpack.c.h.bf16 %v663
        %v667 = vunpack.c.l.bf16 %v664
        %v668 = vunpack.c.h.bf16 %v664
        %v673 = vrot.slane %v665, 7
        %v674 = vrot.slane %v666, 7
        %v675 = vrot.slane %v667, 7
        %v676 = vsel %vm342, %v673, %v675
        %v677 = vrot.slane %v668, 7
        %v678 = vsel %vm342, %v674, %v677
        %s685 = scalar_lea.vmem [#allocation2], 576
        %686 = vst [vmem:[%s685] sm:$0xfe] %v673
        %687 = vst [vmem:[%s685 + $0x8] sm:$0xfe] %v674
        %688 = vst [vmem:[%s685 + $0x10] sm:$0xff] %v676
        %689 = vst [vmem:[%s685 + $0x18] sm:$0xff] %v678
        %690 = vst [vmem:[%s685 + $0x20] sm:$0x1] %v675
        %691 = vst [vmem:[%s685 + $0x28] sm:$0x1] %v677
        %s692 = scalar_lea.vmem %s222, 192
        %v693 = vld [vmem:[%s692] sm:$0xff]
        %v694 = vld [vmem:[%s692 + $0x8] sm:$0xff]
        %v695 = vunpack.c.l.bf16 %v693
        %v696 = vunpack.c.h.bf16 %v693
        %v697 = vunpack.c.l.bf16 %v694
        %v698 = vunpack.c.h.bf16 %v694
        %v703 = vrot.slane %v695, 7
        %v704 = vrot.slane %v696, 7
        %v705 = vrot.slane %v697, 7
        %v706 = vsel %vm342, %v703, %v705
        %v707 = vrot.slane %v698, 7
        %v708 = vsel %vm342, %v704, %v707
        %s715 = scalar_lea.vmem [#allocation2], 624
        %716 = vst [vmem:[%s715] sm:$0xfe] %v703
        %717 = vst [vmem:[%s715 + $0x8] sm:$0xfe] %v704
        %718 = vst [vmem:[%s715 + $0x10] sm:$0xff] %v706
        %719 = vst [vmem:[%s715 + $0x18] sm:$0xff] %v708
        %720 = vst [vmem:[%s715 + $0x20] sm:$0x1] %v705
        %721 = vst [vmem:[%s715 + $0x28] sm:$0x1] %v707
        %s722 = scalar_lea.vmem %s222, 208
        %v723 = vld [vmem:[%s722] sm:$0xff]
        %v724 = vld [vmem:[%s722 + $0x8] sm:$0xff]
        %v725 = vunpack.c.l.bf16 %v723
        %v726 = vunpack.c.h.bf16 %v723
        %v727 = vunpack.c.l.bf16 %v724
        %v728 = vunpack.c.h.bf16 %v724
        %v733 = vrot.slane %v725, 7
        %v734 = vrot.slane %v726, 7
        %v735 = vrot.slane %v727, 7
        %v736 = vsel %vm342, %v733, %v735
        %v737 = vrot.slane %v728, 7
        %v738 = vsel %vm342, %v734, %v737
        %s745 = scalar_lea.vmem [#allocation2], 672
        %746 = vst [vmem:[%s745] sm:$0xfe] %v733
        %747 = vst [vmem:[%s745 + $0x8] sm:$0xfe] %v734
        %748 = vst [vmem:[%s745 + $0x10] sm:$0xff] %v736
        %749 = vst [vmem:[%s745 + $0x18] sm:$0xff] %v738
        %750 = vst [vmem:[%s745 + $0x20] sm:$0x1] %v735
        %751 = vst [vmem:[%s745 + $0x28] sm:$0x1] %v737
        %s752 = scalar_lea.vmem %s222, 224
        %v753 = vld [vmem:[%s752] sm:$0xff]
        %v754 = vld [vmem:[%s752 + $0x8] sm:$0xff]
        %v755 = vunpack.c.l.bf16 %v753
        %v756 = vunpack.c.h.bf16 %v753
        %v757 = vunpack.c.l.bf16 %v754
        %v758 = vunpack.c.h.bf16 %v754
        %v763 = vrot.slane %v755, 7
        %v764 = vrot.slane %v756, 7
        %v765 = vrot.slane %v757, 7
        %v766 = vsel %vm342, %v763, %v765
        %v767 = vrot.slane %v758, 7
        %v768 = vsel %vm342, %v764, %v767
        %s775 = scalar_lea.vmem [#allocation2], 720
        %776 = vst [vmem:[%s775] sm:$0xfe] %v763
        %777 = vst [vmem:[%s775 + $0x8] sm:$0xfe] %v764
        %778 = vst [vmem:[%s775 + $0x10] sm:$0xff] %v766
        %779 = vst [vmem:[%s775 + $0x18] sm:$0xff] %v768
        %780 = vst [vmem:[%s775 + $0x20] sm:$0x1] %v765
        %781 = vst [vmem:[%s775 + $0x28] sm:$0x1] %v767
        %s782 = scalar_lea.vmem %s222, 240
        %v783 = vld [vmem:[%s782] sm:$0xff]
        %v784 = vld [vmem:[%s782 + $0x8] sm:$0xff]
        %v785 = vunpack.c.l.bf16 %v783
        %v786 = vunpack.c.h.bf16 %v783
        %v787 = vunpack.c.l.bf16 %v784
        %v788 = vunpack.c.h.bf16 %v784
        %v793 = vrot.slane %v785, 7
        %v794 = vrot.slane %v786, 7
        %v795 = vrot.slane %v787, 7
        %v796 = vsel %vm342, %v793, %v795
        %v797 = vrot.slane %v788, 7
        %v798 = vsel %vm342, %v794, %v797
        %s805 = scalar_lea.vmem [#allocation2], 768
        %806 = vst [vmem:[%s805] sm:$0xfe] %v793
        %807 = vst [vmem:[%s805 + $0x8] sm:$0xfe] %v794
        %808 = vst [vmem:[%s805 + $0x10] sm:$0xff] %v796
        %809 = vst [vmem:[%s805 + $0x18] sm:$0xff] %v798
        %810 = vst [vmem:[%s805 + $0x20] sm:$0x1] %v795
        %811 = vst [vmem:[%s805 + $0x28] sm:$0x1] %v797
        %v812 = vld [vmem:[%s2] sm:$0x3]
        %v813 = vld [vmem:[%s3] sm:$0xf]
        %v814 = vld [vmem:[%s3 + $0x4] sm:$0xf]
        %v815 = vld [vmem:[%s3 + $0x8] sm:$0xf]
        %v816 = vld [vmem:[%s3 + $0xc] sm:$0xf]
        %v817 = vld [vmem:[%s3 + $0x10] sm:$0xf]
        %v818 = vld [vmem:[%s3 + $0x14] sm:$0xf]
        %v819 = vld [vmem:[%s3 + $0x18] sm:$0xf]
        %v820 = vld [vmem:[%s3 + $0x1c] sm:$0xf]
        %v821 = vld [vmem:[%s3 + $0x20] sm:$0xf]
        %v822 = vld [vmem:[%s3 + $0x24] sm:$0xf]
        %v823 = vld [vmem:[%s3 + $0x28] sm:$0xf]
        %v824 = vld [vmem:[%s3 + $0x2c] sm:$0xf]
        %v825 = vld [vmem:[%s3 + $0x30] sm:$0xf]
        %v826 = vld [vmem:[%s3 + $0x34] sm:$0xf]
        %v827 = vld [vmem:[%s3 + $0x38] sm:$0xf]
        %v828 = vld [vmem:[%s3 + $0x3c] sm:$0xf]
        %v829 = vld [vmem:[%s4] sm:$0x1]
        %v830 = vld [vmem:[%s1] ss:$8 sm:$0x3]
        %v831 = vld [vmem:[#allocation2] sm:$0xff]
        %v832 = vld [vmem:[#allocation2 + $0x8] sm:$0xff]
        %v833 = vld [vmem:[#allocation2 + $0x10] sm:$0xff]
        %v834 = vld [vmem:[#allocation2 + $0x18] sm:$0xff]
        %v835 = vld [vmem:[#allocation2 + $0x30] sm:$0xff]
        %v836 = vld [vmem:[#allocation2 + $0x38] sm:$0xff]
        %v837 = vld [vmem:[#allocation2 + $0x40] sm:$0xff]
        %v838 = vld [vmem:[#allocation2 + $0x48] sm:$0xff]
        %v839 = vld [vmem:[#allocation2 + $0x60] sm:$0xff]
        %v840 = vld [vmem:[#allocation2 + $0x68] sm:$0xff]
        %v841 = vld [vmem:[#allocation2 + $0x70] sm:$0xff]
        %v842 = vld [vmem:[#allocation2 + $0x78] sm:$0xff]
        %v843 = vld [vmem:[#allocation2 + $0x90] sm:$0xff]
        %v844 = vld [vmem:[#allocation2 + $0x98] sm:$0xff]
        %v845 = vld [vmem:[#allocation2 + $0xa0] sm:$0xff]
        %v846 = vld [vmem:[#allocation2 + $0xa8] sm:$0xff]
        %v847 = vld [vmem:[#allocation2 + $0xc0] sm:$0xff]
        %v848 = vld [vmem:[#allocation2 + $0xc8] sm:$0xff]
        %v849 = vld [vmem:[#allocation2 + $0xd0] sm:$0xff]
        %v850 = vld [vmem:[#allocation2 + $0xd8] sm:$0xff]
        %v851 = vld [vmem:[#allocation2 + $0xf0] sm:$0xff]
        %v852 = vld [vmem:[#allocation2 + $0xf8] sm:$0xff]
        %v853 = vld [vmem:[#allocation2 + $0x100] sm:$0xff]
        %v854 = vld [vmem:[#allocation2 + $0x108] sm:$0xff]
        %v855 = vld [vmem:[#allocation2 + $0x120] sm:$0xff]
        %v856 = vld [vmem:[#allocation2 + $0x128] sm:$0xff]
        %v857 = vld [vmem:[#allocation2 + $0x130] sm:$0xff]
        %v858 = vld [vmem:[#allocation2 + $0x138] sm:$0xff]
        %v859 = vld [vmem:[#allocation2 + $0x150] sm:$0xff]
        %v860 = vld [vmem:[#allocation2 + $0x158] sm:$0xff]
        %v861 = vld [vmem:[#allocation2 + $0x160] sm:$0xff]
        %v862 = vld [vmem:[#allocation2 + $0x168] sm:$0xff]
        %v864 = vlaneseq
        %v865 = vshrl.u32 %v864, 7
        %v866 = vsub.s32 0, %v865
        %v867 = vrot.slane %v830, %v866
        %v868 = vlaneseq
        %v869 = vshrl.u32 %v868, 7
        %v870 = vsub.s32 1, %v869
        %v871 = vrot.slane %v830, %v870
        %v874 = vmul.f32 %v831, %v867
        %v875 = vmul.f32 %v832, %v871
        %v876 = vmul.f32 %v833, %v867
        %v877 = vmul.f32 %v834, %v871
        %v878 = vmul.f32 %v835, %v867
        %v879 = vmul.f32 %v836, %v871
        %v880 = vmul.f32 %v837, %v867
        %v881 = vmul.f32 %v838, %v871
        %v882 = vmul.f32 %v839, %v867
        %v883 = vmul.f32 %v840, %v871
        %v884 = vmul.f32 %v841, %v867
        %v885 = vmul.f32 %v842, %v871
        %v886 = vmul.f32 %v843, %v867
        %v887 = vmul.f32 %v844, %v871
        %v888 = vmul.f32 %v845, %v867
        %v889 = vmul.f32 %v846, %v871
        %v890 = vmul.f32 %v847, %v867
        %v891 = vmul.f32 %v848, %v871
        %v892 = vmul.f32 %v849, %v867
        %v893 = vmul.f32 %v850, %v871
        %v894 = vmul.f32 %v851, %v867
        %v895 = vmul.f32 %v852, %v871
        %v896 = vmul.f32 %v853, %v867
        %v897 = vmul.f32 %v854, %v871
        %v898 = vmul.f32 %v855, %v867
        %v899 = vmul.f32 %v856, %v871
        %v900 = vmul.f32 %v857, %v867
        %v901 = vmul.f32 %v858, %v871
        %v902 = vmul.f32 %v859, %v867
        %v903 = vmul.f32 %v860, %v871
        %v904 = vmul.f32 %v861, %v867
        %v905 = vmul.f32 %v862, %v871
        %v906 = vadd.f32 %v874, 0.0
        %v907 = vadd.f32 %v875, 0.0
        %v908 = vadd.f32 %v876, 0.0
        %v909 = vadd.f32 %v877, 0.0
        %v910 = vadd.f32 %v878, 0.0
        %v911 = vadd.f32 %v879, 0.0
        %v912 = vadd.f32 %v880, 0.0
        %v913 = vadd.f32 %v881, 0.0
        %v914 = vadd.f32 %v882, 0.0
        %v915 = vadd.f32 %v883, 0.0
        %v916 = vadd.f32 %v884, 0.0
        %v917 = vadd.f32 %v885, 0.0
        %v918 = vadd.f32 %v886, 0.0
        %v919 = vadd.f32 %v887, 0.0
        %v920 = vadd.f32 %v888, 0.0
        %v921 = vadd.f32 %v889, 0.0
        %v922 = vadd.f32 %v890, 0.0
        %v923 = vadd.f32 %v891, 0.0
        %v924 = vadd.f32 %v892, 0.0
        %v925 = vadd.f32 %v893, 0.0
        %v926 = vadd.f32 %v894, 0.0
        %v927 = vadd.f32 %v895, 0.0
        %v928 = vadd.f32 %v896, 0.0
        %v929 = vadd.f32 %v897, 0.0
        %v930 = vadd.f32 %v898, 0.0
        %v931 = vadd.f32 %v899, 0.0
        %v932 = vadd.f32 %v900, 0.0
        %v933 = vadd.f32 %v901, 0.0
        %v934 = vadd.f32 %v902, 0.0
        %v935 = vadd.f32 %v903, 0.0
        %v936 = vadd.f32 %v904, 0.0
        %v937 = vadd.f32 %v905, 0.0
        %s938 = scalar_lea.vmem %s1, 1
        %v939 = vld [vmem:[%s938] ss:$8 sm:$0x3]
        %v940 = vld [vmem:[#allocation2] sm:$0xfe]
        %v941 = vld [vmem:[#allocation2 + $0x8] sm:$0xfe]
        %v942 = vld [vmem:[#allocation2 + $0x20] sm:$0x1]
        %v943 = vld [vmem:[#allocation2 + $0x28] sm:$0x1]
        %v944 = vld [vmem:[#allocation2 + $0x30] sm:$0xfe]
        %v945 = vld [vmem:[#allocation2 + $0x38] sm:$0xfe]
        %v946 = vld [vmem:[#allocation2 + $0x50] sm:$0x1]
        %v947 = vld [vmem:[#allocation2 + $0x58] sm:$0x1]
        %v948 = vld [vmem:[#allocation2 + $0x60] sm:$0xfe]
        %v949 = vld [vmem:[#allocation2 + $0x68] sm:$0xfe]
        %v950 = vld [vmem:[#allocation2 + $0x80] sm:$0x1]
        %v951 = vld [vmem:[#allocation2 + $0x88] sm:$0x1]
        %v952 = vld [vmem:[#allocation2 + $0x90] sm:$0xfe]
        %v953 = vld [vmem:[#allocation2 + $0x98] sm:$0xfe]
        %v954 = vld [vmem:[#allocation2 + $0xb0] sm:$0x1]
        %v955 = vld [vmem:[#allocation2 + $0xb8] sm:$0x1]
        %v956 = vld [vmem:[#allocation2 + $0xc0] sm:$0xfe]
        %v957 = vld [vmem:[#allocation2 + $0xc8] sm:$0xfe]
        %v958 = vld [vmem:[#allocation2 + $0xe0] sm:$0x1]
        %v959 = vld [vmem:[#allocation2 + $0xe8] sm:$0x1]
        %v960 = vld [vmem:[#allocation2 + $0xf0] sm:$0xfe]
        %v961 = vld [vmem:[#allocation2 + $0xf8] sm:$0xfe]
        %v962 = vld [vmem:[#allocation2 + $0x110] sm:$0x1]
        %v963 = vld [vmem:[#allocation2 + $0x118] sm:$0x1]
        %v964 = vld [vmem:[#allocation2 + $0x120] sm:$0xfe]
        %v965 = vld [vmem:[#allocation2 + $0x128] sm:$0xfe]
        %v966 = vld [vmem:[#allocation2 + $0x140] sm:$0x1]
        %v967 = vld [vmem:[#allocation2 + $0x148] sm:$0x1]
        %v968 = vld [vmem:[#allocation2 + $0x150] sm:$0xfe]
        %v969 = vld [vmem:[#allocation2 + $0x158] sm:$0xfe]
        %v970 = vld [vmem:[#allocation2 + $0x170] sm:$0x1]
        %v971 = vld [vmem:[#allocation2 + $0x178] sm:$0x1]
        %v973 = vlaneseq
        %v974 = vshrl.u32 %v973, 7
        %v975 = vsub.s32 0, %v974
        %v976 = vrot.slane %v939, %v975
        %v977 = vlaneseq
        %v978 = vshrl.u32 %v977, 7
        %v979 = vsub.s32 1, %v978
        %v980 = vrot.slane %v939, %v979
        %v983 = vmul.f32 %v940, %v976
        %v984 = vmul.f32 %v941, %v980
        %v985 = vmul.f32 %v833, %v976
        %v986 = vmul.f32 %v834, %v980
        %v987 = vmul.f32 %v942, %v976
        %v988 = vmul.f32 %v943, %v980
        %v989 = vmul.f32 %v944, %v976
        %v990 = vmul.f32 %v945, %v980
        %v991 = vmul.f32 %v837, %v976
        %v992 = vmul.f32 %v838, %v980
        %v993 = vmul.f32 %v946, %v976
        %v994 = vmul.f32 %v947, %v980
        %v995 = vmul.f32 %v948, %v976
        %v996 = vmul.f32 %v949, %v980
        %v997 = vmul.f32 %v841, %v976
        %v998 = vmul.f32 %v842, %v980
        %v999 = vmul.f32 %v950, %v976
        %v1000 = vmul.f32 %v951, %v980
        %v1001 = vmul.f32 %v952, %v976
        %v1002 = vmul.f32 %v953, %v980
        %v1003 = vmul.f32 %v845, %v976
        %v1004 = vmul.f32 %v846, %v980
        %v1005 = vmul.f32 %v954, %v976
        %v1006 = vmul.f32 %v955, %v980
        %v1007 = vmul.f32 %v956, %v976
        %v1008 = vmul.f32 %v957, %v980
        %v1009 = vmul.f32 %v849, %v976
        %v1010 = vmul.f32 %v850, %v980
        %v1011 = vmul.f32 %v958, %v976
        %v1012 = vmul.f32 %v959, %v980
        %v1013 = vmul.f32 %v960, %v976
        %v1014 = vmul.f32 %v961, %v980
        %v1015 = vmul.f32 %v853, %v976
        %v1016 = vmul.f32 %v854, %v980
        %v1017 = vmul.f32 %v962, %v976
        %v1018 = vmul.f32 %v963, %v980
        %v1019 = vmul.f32 %v964, %v976
        %v1020 = vmul.f32 %v965, %v980
        %v1021 = vmul.f32 %v857, %v976
        %v1022 = vmul.f32 %v858, %v980
        %v1023 = vmul.f32 %v966, %v976
        %v1024 = vmul.f32 %v967, %v980
        %v1025 = vmul.f32 %v968, %v976
        %v1026 = vmul.f32 %v969, %v980
        %v1027 = vmul.f32 %v861, %v976
        %v1028 = vmul.f32 %v862, %v980
        %v1029 = vmul.f32 %v970, %v976
        %v1030 = vmul.f32 %v971, %v980
        %vm1079 = vcmask 1046528
        %v1080 = vrot.slane %v983, 1
        %v1081 = vrot.slane %v985, 1
        %v1082 = vsel %vm1079, %v1080, %v1081
        %v1083 = vrot.slane %v984, 1
        %v1084 = vrot.slane %v986, 1
        %v1085 = vsel %vm1079, %v1083, %v1084
        %v1086 = vrot.slane %v987, 1
        %v1087 = vsel %vm1079, %v1081, %v1086
        %v1088 = vrot.slane %v988, 1
        %v1089 = vsel %vm1079, %v1084, %v1088
        %v1090 = vrot.slane %v989, 1
        %v1091 = vrot.slane %v991, 1
        %v1092 = vsel %vm1079, %v1090, %v1091
        %v1093 = vrot.slane %v990, 1
        %v1094 = vrot.slane %v992, 1
        %v1095 = vsel %vm1079, %v1093, %v1094
        %v1096 = vrot.slane %v993, 1
        %v1097 = vsel %vm1079, %v1091, %v1096
        %v1098 = vrot.slane %v994, 1
        %v1099 = vsel %vm1079, %v1094, %v1098
        %v1100 = vrot.slane %v995, 1
        %v1101 = vrot.slane %v997, 1
        %v1102 = vsel %vm1079, %v1100, %v1101
        %v1103 = vrot.slane %v996, 1
        %v1104 = vrot.slane %v998, 1
        %v1105 = vsel %vm1079, %v1103, %v1104
        %v1106 = vrot.slane %v999, 1
        %v1107 = vsel %vm1079, %v1101, %v1106
        %v1108 = vrot.slane %v1000, 1
        %v1109 = vsel %vm1079, %v1104, %v1108
        %v1110 = vrot.slane %v1001, 1
        %v1111 = vrot.slane %v1003, 1
        %v1112 = vsel %vm1079, %v1110, %v1111
        %v1113 = vrot.slane %v1002, 1
        %v1114 = vrot.slane %v1004, 1
        %v1115 = vsel %vm1079, %v1113, %v1114
        %v1116 = vrot.slane %v1005, 1
        %v1117 = vsel %vm1079, %v1111, %v1116
        %v1118 = vrot.slane %v1006, 1
        %v1119 = vsel %vm1079, %v1114, %v1118
        %v1120 = vrot.slane %v1007, 1
        %v1121 = vrot.slane %v1009, 1
        %v1122 = vsel %vm1079, %v1120, %v1121
        %v1123 = vrot.slane %v1008, 1
        %v1124 = vrot.slane %v1010, 1
        %v1125 = vsel %vm1079, %v1123, %v1124
        %v1126 = vrot.slane %v1011, 1
        %v1127 = vsel %vm1079, %v1121, %v1126
        %v1128 = vrot.slane %v1012, 1
        %v1129 = vsel %vm1079, %v1124, %v1128
        %v1130 = vrot.slane %v1013, 1
        %v1131 = vrot.slane %v1015, 1
        %v1132 = vsel %vm1079, %v1130, %v1131
        %v1133 = vrot.slane %v1014, 1
        %v1134 = vrot.slane %v1016, 1
        %v1135 = vsel %vm1079, %v1133, %v1134
        %v1136 = vrot.slane %v1017, 1
        %v1137 = vsel %vm1079, %v1131, %v1136
        %v1138 = vrot.slane %v1018, 1
        %v1139 = vsel %vm1079, %v1134, %v1138
        %v1140 = vrot.slane %v1019, 1
        %v1141 = vrot.slane %v1021, 1
        %v1142 = vsel %vm1079, %v1140, %v1141
        %v1143 = vrot.slane %v1020, 1
        %v1144 = vrot.slane %v1022, 1
        %v1145 = vsel %vm1079, %v1143, %v1144
        %v1146 = vrot.slane %v1023, 1
        %v1147 = vsel %vm1079, %v1141, %v1146
        %v1148 = vrot.slane %v1024, 1
        %v1149 = vsel %vm1079, %v1144, %v1148
        %v1150 = vrot.slane %v1025, 1
        %v1151 = vrot.slane %v1027, 1
        %v1152 = vsel %vm1079, %v1150, %v1151
        %v1153 = vrot.slane %v1026, 1
        %v1154 = vrot.slane %v1028, 1
        %v1155 = vsel %vm1079, %v1153, %v1154
        %v1156 = vrot.slane %v1029, 1
        %v1157 = vsel %vm1079, %v1151, %v1156
        %v1158 = vrot.slane %v1030, 1
        %v1159 = vsel %vm1079, %v1154, %v1158
        %v1192 = vadd.f32 %v906, %v1082
        %v1193 = vadd.f32 %v907, %v1085
        %v1194 = vadd.f32 %v908, %v1087
        %v1195 = vadd.f32 %v909, %v1089
        %v1196 = vadd.f32 %v910, %v1092
        %v1197 = vadd.f32 %v911, %v1095
        %v1198 = vadd.f32 %v912, %v1097
        %v1199 = vadd.f32 %v913, %v1099
        %v1200 = vadd.f32 %v914, %v1102
        %v1201 = vadd.f32 %v915, %v1105
        %v1202 = vadd.f32 %v916, %v1107
        %v1203 = vadd.f32 %v917, %v1109
        %v1204 = vadd.f32 %v918, %v1112
        %v1205 = vadd.f32 %v919, %v1115
        %v1206 = vadd.f32 %v920, %v1117
        %v1207 = vadd.f32 %v921, %v1119
        %v1208 = vadd.f32 %v922, %v1122
        %v1209 = vadd.f32 %v923, %v1125
        %v1210 = vadd.f32 %v924, %v1127
        %v1211 = vadd.f32 %v925, %v1129
        %v1212 = vadd.f32 %v926, %v1132
        %v1213 = vadd.f32 %v927, %v1135
        %v1214 = vadd.f32 %v928, %v1137
        %v1215 = vadd.f32 %v929, %v1139
        %v1216 = vadd.f32 %v930, %v1142
        %v1217 = vadd.f32 %v931, %v1145
        %v1218 = vadd.f32 %v932, %v1147
        %v1219 = vadd.f32 %v933, %v1149
        %v1220 = vadd.f32 %v934, %v1152
        %v1221 = vadd.f32 %v935, %v1155
        %v1222 = vadd.f32 %v936, %v1157
        %v1223 = vadd.f32 %v937, %v1159
        %s1224 = scalar_lea.vmem %s1, 2
        %v1225 = vld [vmem:[%s1224] ss:$8 sm:$0x3]
        %v1226 = vld [vmem:[#allocation2] sm:$0xfc]
        %v1227 = vld [vmem:[#allocation2 + $0x8] sm:$0xfc]
        %v1228 = vld [vmem:[#allocation2 + $0x20] sm:$0x3]
        %v1229 = vld [vmem:[#allocation2 + $0x28] sm:$0x3]
        %v1230 = vld [vmem:[#allocation2 + $0x30] sm:$0xfc]
        %v1231 = vld [vmem:[#allocation2 + $0x38] sm:$0xfc]
        %v1232 = vld [vmem:[#allocation2 + $0x50] sm:$0x3]
        %v1233 = vld [vmem:[#allocation2 + $0x58] sm:$0x3]
        %v1234 = vld [vmem:[#allocation2 + $0x60] sm:$0xfc]
        %v1235 = vld [vmem:[#allocation2 + $0x68] sm:$0xfc]
        %v1236 = vld [vmem:[#allocation2 + $0x80] sm:$0x3]
        %v1237 = vld [vmem:[#allocation2 + $0x88] sm:$0x3]
        %v1238 = vld [vmem:[#allocation2 + $0x90] sm:$0xfc]
        %v1239 = vld [vmem:[#allocation2 + $0x98] sm:$0xfc]
        %v1240 = vld [vmem:[#allocation2 + $0xb0] sm:$0x3]
        %v1241 = vld [vmem:[#allocation2 + $0xb8] sm:$0x3]
        %v1242 = vld [vmem:[#allocation2 + $0xc0] sm:$0xfc]
        %v1243 = vld [vmem:[#allocation2 + $0xc8] sm:$0xfc]
        %v1244 = vld [vmem:[#allocation2 + $0xe0] sm:$0x3]
        %v1245 = vld [vmem:[#allocation2 + $0xe8] sm:$0x3]
        %v1246 = vld [vmem:[#allocation2 + $0xf0] sm:$0xfc]
        %v1247 = vld [vmem:[#allocation2 + $0xf8] sm:$0xfc]
        %v1248 = vld [vmem:[#allocation2 + $0x110] sm:$0x3]
        %v1249 = vld [vmem:[#allocation2 + $0x118] sm:$0x3]
        %v1250 = vld [vmem:[#allocation2 + $0x120] sm:$0xfc]
        %v1251 = vld [vmem:[#allocation2 + $0x128] sm:$0xfc]
        %v1252 = vld [vmem:[#allocation2 + $0x140] sm:$0x3]
        %v1253 = vld [vmem:[#allocation2 + $0x148] sm:$0x3]
        %v1254 = vld [vmem:[#allocation2 + $0x150] sm:$0xfc]
        %v1255 = vld [vmem:[#allocation2 + $0x158] sm:$0xfc]
        %v1256 = vld [vmem:[#allocation2 + $0x170] sm:$0x3]
        %v1257 = vld [vmem:[#allocation2 + $0x178] sm:$0x3]
        %v1259 = vlaneseq
        %v1260 = vshrl.u32 %v1259, 7
        %v1261 = vsub.s32 0, %v1260
        %v1262 = vrot.slane %v1225, %v1261
        %v1263 = vlaneseq
        %v1264 = vshrl.u32 %v1263, 7
        %v1265 = vsub.s32 1, %v1264
        %v1266 = vrot.slane %v1225, %v1265
        %v1269 = vmul.f32 %v1226, %v1262
        %v1270 = vmul.f32 %v1227, %v1266
        %v1271 = vmul.f32 %v833, %v1262
        %v1272 = vmul.f32 %v834, %v1266
        %v1273 = vmul.f32 %v1228, %v1262
        %v1274 = vmul.f32 %v1229, %v1266
        %v1275 = vmul.f32 %v1230, %v1262
        %v1276 = vmul.f32 %v1231, %v1266
        %v1277 = vmul.f32 %v837, %v1262
        %v1278 = vmul.f32 %v838, %v1266
        %v1279 = vmul.f32 %v1232, %v1262
        %v1280 = vmul.f32 %v1233, %v1266
        %v1281 = vmul.f32 %v1234, %v1262
        %v1282 = vmul.f32 %v1235, %v1266
        %v1283 = vmul.f32 %v841, %v1262
        %v1284 = vmul.f32 %v842, %v1266
        %v1285 = vmul.f32 %v1236, %v1262
        %v1286 = vmul.f32 %v1237, %v1266
        %v1287 = vmul.f32 %v1238, %v1262
        %v1288 = vmul.f32 %v1239, %v1266
        %v1289 = vmul.f32 %v845, %v1262
        %v1290 = vmul.f32 %v846, %v1266
        %v1291 = vmul.f32 %v1240, %v1262
        %v1292 = vmul.f32 %v1241, %v1266
        %v1293 = vmul.f32 %v1242, %v1262
        %v1294 = vmul.f32 %v1243, %v1266
        %v1295 = vmul.f32 %v849, %v1262
        %v1296 = vmul.f32 %v850, %v1266
        %v1297 = vmul.f32 %v1244, %v1262
        %v1298 = vmul.f32 %v1245, %v1266
        %v1299 = vmul.f32 %v1246, %v1262
        %v1300 = vmul.f32 %v1247, %v1266
        %v1301 = vmul.f32 %v853, %v1262
        %v1302 = vmul.f32 %v854, %v1266
        %v1303 = vmul.f32 %v1248, %v1262
        %v1304 = vmul.f32 %v1249, %v1266
        %v1305 = vmul.f32 %v1250, %v1262
        %v1306 = vmul.f32 %v1251, %v1266
        %v1307 = vmul.f32 %v857, %v1262
        %v1308 = vmul.f32 %v858, %v1266
        %v1309 = vmul.f32 %v1252, %v1262
        %v1310 = vmul.f32 %v1253, %v1266
        %v1311 = vmul.f32 %v1254, %v1262
        %v1312 = vmul.f32 %v1255, %v1266
        %v1313 = vmul.f32 %v861, %v1262
        %v1314 = vmul.f32 %v862, %v1266
        %v1315 = vmul.f32 %v1256, %v1262
        %v1316 = vmul.f32 %v1257, %v1266
        %vm1365 = vcmask 1045504
        %v1366 = vrot.slane %v1269, 2
        %v1367 = vrot.slane %v1271, 2
        %v1368 = vsel %vm1365, %v1366, %v1367
        %v1369 = vrot.slane %v1270, 2
        %v1370 = vrot.slane %v1272, 2
        %v1371 = vsel %vm1365, %v1369, %v1370
        %v1372 = vrot.slane %v1273, 2
        %v1373 = vsel %vm1365, %v1367, %v1372
        %v1374 = vrot.slane %v1274, 2
        %v1375 = vsel %vm1365, %v1370, %v1374
        %v1376 = vrot.slane %v1275, 2
        %v1377 = vrot.slane %v1277, 2
        %v1378 = vsel %vm1365, %v1376, %v1377
        %v1379 = vrot.slane %v1276, 2
        %v1380 = vrot.slane %v1278, 2
        %v1381 = vsel %vm1365, %v1379, %v1380
        %v1382 = vrot.slane %v1279, 2
        %v1383 = vsel %vm1365, %v1377, %v1382
        %v1384 = vrot.slane %v1280, 2
        %v1385 = vsel %vm1365, %v1380, %v1384
        %v1386 = vrot.slane %v1281, 2
        %v1387 = vrot.slane %v1283, 2
        %v1388 = vsel %vm1365, %v1386, %v1387
        %v1389 = vrot.slane %v1282, 2
        %v1390 = vrot.slane %v1284, 2
        %v1391 = vsel %vm1365, %v1389, %v1390
        %v1392 = vrot.slane %v1285, 2
        %v1393 = vsel %vm1365, %v1387, %v1392
        %v1394 = vrot.slane %v1286, 2
        %v1395 = vsel %vm1365, %v1390, %v1394
        %v1396 = vrot.slane %v1287, 2
        %v1397 = vrot.slane %v1289, 2
        %v1398 = vsel %vm1365, %v1396, %v1397
        %v1399 = vrot.slane %v1288, 2
        %v1400 = vrot.slane %v1290, 2
        %v1401 = vsel %vm1365, %v1399, %v1400
        %v1402 = vrot.slane %v1291, 2
        %v1403 = vsel %vm1365, %v1397, %v1402
        %v1404 = vrot.slane %v1292, 2
        %v1405 = vsel %vm1365, %v1400, %v1404
        %v1406 = vrot.slane %v1293, 2
        %v1407 = vrot.slane %v1295, 2
        %v1408 = vsel %vm1365, %v1406, %v1407
        %v1409 = vrot.slane %v1294, 2
        %v1410 = vrot.slane %v1296, 2
        %v1411 = vsel %vm1365, %v1409, %v1410
        %v1412 = vrot.slane %v1297, 2
        %v1413 = vsel %vm1365, %v1407, %v1412
        %v1414 = vrot.slane %v1298, 2
        %v1415 = vsel %vm1365, %v1410, %v1414
        %v1416 = vrot.slane %v1299, 2
        %v1417 = vrot.slane %v1301, 2
        %v1418 = vsel %vm1365, %v1416, %v1417
        %v1419 = vrot.slane %v1300, 2
        %v1420 = vrot.slane %v1302, 2
        %v1421 = vsel %vm1365, %v1419, %v1420
        %v1422 = vrot.slane %v1303, 2
        %v1423 = vsel %vm1365, %v1417, %v1422
        %v1424 = vrot.slane %v1304, 2
        %v1425 = vsel %vm1365, %v1420, %v1424
        %v1426 = vrot.slane %v1305, 2
        %v1427 = vrot.slane %v1307, 2
        %v1428 = vsel %vm1365, %v1426, %v1427
        %v1429 = vrot.slane %v1306, 2
        %v1430 = vrot.slane %v1308, 2
        %v1431 = vsel %vm1365, %v1429, %v1430
        %v1432 = vrot.slane %v1309, 2
        %v1433 = vsel %vm1365, %v1427, %v1432
        %v1434 = vrot.slane %v1310, 2
        %v1435 = vsel %vm1365, %v1430, %v1434
        %v1436 = vrot.slane %v1311, 2
        %v1437 = vrot.slane %v1313, 2
        %v1438 = vsel %vm1365, %v1436, %v1437
        %v1439 = vrot.slane %v1312, 2
        %v1440 = vrot.slane %v1314, 2
        %v1441 = vsel %vm1365, %v1439, %v1440
        %v1442 = vrot.slane %v1315, 2
        %v1443 = vsel %vm1365, %v1437, %v1442
        %v1444 = vrot.slane %v1316, 2
        %v1445 = vsel %vm1365, %v1440, %v1444
        %v1478 = vadd.f32 %v1192, %v1368
        %v1479 = vadd.f32 %v1193, %v1371
        %v1480 = vadd.f32 %v1194, %v1373
        %v1481 = vadd.f32 %v1195, %v1375
        %v1482 = vadd.f32 %v1196, %v1378
        %v1483 = vadd.f32 %v1197, %v1381
        %v1484 = vadd.f32 %v1198, %v1383
        %v1485 = vadd.f32 %v1199, %v1385
        %v1486 = vadd.f32 %v1200, %v1388
        %v1487 = vadd.f32 %v1201, %v1391
        %v1488 = vadd.f32 %v1202, %v1393
        %v1489 = vadd.f32 %v1203, %v1395
        %v1490 = vadd.f32 %v1204, %v1398
        %v1491 = vadd.f32 %v1205, %v1401
        %v1492 = vadd.f32 %v1206, %v1403
        %v1493 = vadd.f32 %v1207, %v1405
        %v1494 = vadd.f32 %v1208, %v1408
        %v1495 = vadd.f32 %v1209, %v1411
        %v1496 = vadd.f32 %v1210, %v1413
        %v1497 = vadd.f32 %v1211, %v1415
        %v1498 = vadd.f32 %v1212, %v1418
        %v1499 = vadd.f32 %v1213, %v1421
        %v1500 = vadd.f32 %v1214, %v1423
        %v1501 = vadd.f32 %v1215, %v1425
        %v1502 = vadd.f32 %v1216, %v1428
        %v1503 = vadd.f32 %v1217, %v1431
        %v1504 = vadd.f32 %v1218, %v1433
        %v1505 = vadd.f32 %v1219, %v1435
        %v1506 = vadd.f32 %v1220, %v1438
        %v1507 = vadd.f32 %v1221, %v1441
        %v1508 = vadd.f32 %v1222, %v1443
        %v1509 = vadd.f32 %v1223, %v1445
        %s1510 = scalar_lea.vmem %s1, 3
        %v1511 = vld [vmem:[%s1510] ss:$8 sm:$0x3]
        %v1512 = vld [vmem:[%s355] sm:$0xff]
        %v1513 = vld [vmem:[%s355 + $0x8] sm:$0xff]
        %v1514 = vld [vmem:[%s355 + $0x10] sm:$0xff]
        %v1515 = vld [vmem:[%s355 + $0x18] sm:$0xff]
        %v1516 = vld [vmem:[%s355 + $0x30] sm:$0xff]
        %v1517 = vld [vmem:[%s355 + $0x38] sm:$0xff]
        %v1518 = vld [vmem:[%s355 + $0x40] sm:$0xff]
        %v1519 = vld [vmem:[%s355 + $0x48] sm:$0xff]
        %v1520 = vld [vmem:[%s355 + $0x60] sm:$0xff]
        %v1521 = vld [vmem:[%s355 + $0x68] sm:$0xff]
        %v1522 = vld [vmem:[%s355 + $0x70] sm:$0xff]
        %v1523 = vld [vmem:[%s355 + $0x78] sm:$0xff]
        %v1524 = vld [vmem:[%s355 + $0x90] sm:$0xff]
        %v1525 = vld [vmem:[%s355 + $0x98] sm:$0xff]
        %v1526 = vld [vmem:[%s355 + $0xa0] sm:$0xff]
        %v1527 = vld [vmem:[%s355 + $0xa8] sm:$0xff]
        %v1528 = vld [vmem:[%s355 + $0xc0] sm:$0xff]
        %v1529 = vld [vmem:[%s355 + $0xc8] sm:$0xff]
        %v1530 = vld [vmem:[%s355 + $0xd0] sm:$0xff]
        %v1531 = vld [vmem:[%s355 + $0xd8] sm:$0xff]
        %v1532 = vld [vmem:[%s355 + $0xf0] sm:$0xff]
        %v1533 = vld [vmem:[%s355 + $0xf8] sm:$0xff]
        %v1534 = vld [vmem:[%s355 + $0x100] sm:$0xff]
        %v1535 = vld [vmem:[%s355 + $0x108] sm:$0xff]
        %v1536 = vld [vmem:[%s355 + $0x120] sm:$0xff]
        %v1537 = vld [vmem:[%s355 + $0x128] sm:$0xff]
        %v1538 = vld [vmem:[%s355 + $0x130] sm:$0xff]
        %v1539 = vld [vmem:[%s355 + $0x138] sm:$0xff]
        %v1540 = vld [vmem:[%s355 + $0x150] sm:$0xff]
        %v1541 = vld [vmem:[%s355 + $0x158] sm:$0xff]
        %v1542 = vld [vmem:[%s355 + $0x160] sm:$0xff]
        %v1543 = vld [vmem:[%s355 + $0x168] sm:$0xff]
        %v1545 = vlaneseq
        %v1546 = vshrl.u32 %v1545, 7
        %v1547 = vsub.s32 0, %v1546
        %v1548 = vrot.slane %v1511, %v1547
        %v1549 = vlaneseq
        %v1550 = vshrl.u32 %v1549, 7
        %v1551 = vsub.s32 1, %v1550
        %v1552 = vrot.slane %v1511, %v1551
        %v1555 = vmul.f32 %v1512, %v1548
        %v1556 = vmul.f32 %v1513, %v1552
        %v1557 = vmul.f32 %v1514, %v1548
        %v1558 = vmul.f32 %v1515, %v1552
        %v1559 = vmul.f32 %v1516, %v1548
        %v1560 = vmul.f32 %v1517, %v1552
        %v1561 = vmul.f32 %v1518, %v1548
        %v1562 = vmul.f32 %v1519, %v1552
        %v1563 = vmul.f32 %v1520, %v1548
        %v1564 = vmul.f32 %v1521, %v1552
        %v1565 = vmul.f32 %v1522, %v1548
        %v1566 = vmul.f32 %v1523, %v1552
        %v1567 = vmul.f32 %v1524, %v1548
        %v1568 = vmul.f32 %v1525, %v1552
        %v1569 = vmul.f32 %v1526, %v1548
        %v1570 = vmul.f32 %v1527, %v1552
        %v1571 = vmul.f32 %v1528, %v1548
        %v1572 = vmul.f32 %v1529, %v1552
        %v1573 = vmul.f32 %v1530, %v1548
        %v1574 = vmul.f32 %v1531, %v1552
        %v1575 = vmul.f32 %v1532, %v1548
        %v1576 = vmul.f32 %v1533, %v1552
        %v1577 = vmul.f32 %v1534, %v1548
        %v1578 = vmul.f32 %v1535, %v1552
        %v1579 = vmul.f32 %v1536, %v1548
        %v1580 = vmul.f32 %v1537, %v1552
        %v1581 = vmul.f32 %v1538, %v1548
        %v1582 = vmul.f32 %v1539, %v1552
        %v1583 = vmul.f32 %v1540, %v1548
        %v1584 = vmul.f32 %v1541, %v1552
        %v1585 = vmul.f32 %v1542, %v1548
        %v1586 = vmul.f32 %v1543, %v1552
        %v1587 = vadd.f32 %v1478, %v1555
        %v1588 = vadd.f32 %v1479, %v1556
        %v1589 = vadd.f32 %v1480, %v1557
        %v1590 = vadd.f32 %v1481, %v1558
        %v1591 = vadd.f32 %v1482, %v1559
        %v1592 = vadd.f32 %v1483, %v1560
        %v1593 = vadd.f32 %v1484, %v1561
        %v1594 = vadd.f32 %v1485, %v1562
        %v1595 = vadd.f32 %v1486, %v1563
        %v1596 = vadd.f32 %v1487, %v1564
        %v1597 = vadd.f32 %v1488, %v1565
        %v1598 = vadd.f32 %v1489, %v1566
        %v1599 = vadd.f32 %v1490, %v1567
        %v1600 = vadd.f32 %v1491, %v1568
        %v1601 = vadd.f32 %v1492, %v1569
        %v1602 = vadd.f32 %v1493, %v1570
        %v1603 = vadd.f32 %v1494, %v1571
        %v1604 = vadd.f32 %v1495, %v1572
        %v1605 = vadd.f32 %v1496, %v1573
        %v1606 = vadd.f32 %v1497, %v1574
        %v1607 = vadd.f32 %v1498, %v1575
        %v1608 = vadd.f32 %v1499, %v1576
        %v1609 = vadd.f32 %v1500, %v1577
        %v1610 = vadd.f32 %v1501, %v1578
        %v1611 = vadd.f32 %v1502, %v1579
        %v1612 = vadd.f32 %v1503, %v1580
        %v1613 = vadd.f32 %v1504, %v1581
        %v1614 = vadd.f32 %v1505, %v1582
        %v1615 = vadd.f32 %v1506, %v1583
        %v1616 = vadd.f32 %v1507, %v1584
        %v1617 = vadd.f32 %v1508, %v1585
        %v1618 = vadd.f32 %v1509, %v1586
        %s1619 = scalar_lea.vmem %s1, 4
        %v1620 = vld [vmem:[%s1619] ss:$8 sm:$0x3]
        %v1621 = vld [vmem:[%s355] sm:$0xfe]
        %v1622 = vld [vmem:[%s355 + $0x8] sm:$0xfe]
        %v1623 = vld [vmem:[%s355 + $0x20] sm:$0x1]
        %v1624 = vld [vmem:[%s355 + $0x28] sm:$0x1]
        %v1625 = vld [vmem:[%s355 + $0x30] sm:$0xfe]
        %v1626 = vld [vmem:[%s355 + $0x38] sm:$0xfe]
        %v1627 = vld [vmem:[%s355 + $0x50] sm:$0x1]
        %v1628 = vld [vmem:[%s355 + $0x58] sm:$0x1]
        %v1629 = vld [vmem:[%s355 + $0x60] sm:$0xfe]
        %v1630 = vld [vmem:[%s355 + $0x68] sm:$0xfe]
        %v1631 = vld [vmem:[%s355 + $0x80] sm:$0x1]
        %v1632 = vld [vmem:[%s355 + $0x88] sm:$0x1]
        %v1633 = vld [vmem:[%s355 + $0x90] sm:$0xfe]
        %v1634 = vld [vmem:[%s355 + $0x98] sm:$0xfe]
        %v1635 = vld [vmem:[%s355 + $0xb0] sm:$0x1]
        %v1636 = vld [vmem:[%s355 + $0xb8] sm:$0x1]
        %v1637 = vld [vmem:[%s355 + $0xc0] sm:$0xfe]
        %v1638 = vld [vmem:[%s355 + $0xc8] sm:$0xfe]
        %v1639 = vld [vmem:[%s355 + $0xe0] sm:$0x1]
        %v1640 = vld [vmem:[%s355 + $0xe8] sm:$0x1]
        %v1641 = vld [vmem:[%s355 + $0xf0] sm:$0xfe]
        %v1642 = vld [vmem:[%s355 + $0xf8] sm:$0xfe]
        %v1643 = vld [vmem:[%s355 + $0x110] sm:$0x1]
        %v1644 = vld [vmem:[%s355 + $0x118] sm:$0x1]
        %v1645 = vld [vmem:[%s355 + $0x120] sm:$0xfe]
        %v1646 = vld [vmem:[%s355 + $0x128] sm:$0xfe]
        %v1647 = vld [vmem:[%s355 + $0x140] sm:$0x1]
        %v1648 = vld [vmem:[%s355 + $0x148] sm:$0x1]
        %v1649 = vld [vmem:[%s355 + $0x150] sm:$0xfe]
        %v1650 = vld [vmem:[%s355 + $0x158] sm:$0xfe]
        %v1651 = vld [vmem:[%s355 + $0x170] sm:$0x1]
        %v1652 = vld [vmem:[%s355 + $0x178] sm:$0x1]
        %v1654 = vlaneseq
        %v1655 = vshrl.u32 %v1654, 7
        %v1656 = vsub.s32 0, %v1655
        %v1657 = vrot.slane %v1620, %v1656
        %v1658 = vlaneseq
        %v1659 = vshrl.u32 %v1658, 7
        %v1660 = vsub.s32 1, %v1659
        %v1661 = vrot.slane %v1620, %v1660
        %v1664 = vmul.f32 %v1621, %v1657
        %v1665 = vmul.f32 %v1622, %v1661
        %v1666 = vmul.f32 %v1514, %v1657
        %v1667 = vmul.f32 %v1515, %v1661
        %v1668 = vmul.f32 %v1623, %v1657
        %v1669 = vmul.f32 %v1624, %v1661
        %v1670 = vmul.f32 %v1625, %v1657
        %v1671 = vmul.f32 %v1626, %v1661
        %v1672 = vmul.f32 %v1518, %v1657
        %v1673 = vmul.f32 %v1519, %v1661
        %v1674 = vmul.f32 %v1627, %v1657
        %v1675 = vmul.f32 %v1628, %v1661
        %v1676 = vmul.f32 %v1629, %v1657
        %v1677 = vmul.f32 %v1630, %v1661
        %v1678 = vmul.f32 %v1522, %v1657
        %v1679 = vmul.f32 %v1523, %v1661
        %v1680 = vmul.f32 %v1631, %v1657
        %v1681 = vmul.f32 %v1632, %v1661
        %v1682 = vmul.f32 %v1633, %v1657
        %v1683 = vmul.f32 %v1634, %v1661
        %v1684 = vmul.f32 %v1526, %v1657
        %v1685 = vmul.f32 %v1527, %v1661
        %v1686 = vmul.f32 %v1635, %v1657
        %v1687 = vmul.f32 %v1636, %v1661
        %v1688 = vmul.f32 %v1637, %v1657
        %v1689 = vmul.f32 %v1638, %v1661
        %v1690 = vmul.f32 %v1530, %v1657
        %v1691 = vmul.f32 %v1531, %v1661
        %v1692 = vmul.f32 %v1639, %v1657
        %v1693 = vmul.f32 %v1640, %v1661
        %v1694 = vmul.f32 %v1641, %v1657
        %v1695 = vmul.f32 %v1642, %v1661
        %v1696 = vmul.f32 %v1534, %v1657
        %v1697 = vmul.f32 %v1535, %v1661
        %v1698 = vmul.f32 %v1643, %v1657
        %v1699 = vmul.f32 %v1644, %v1661
        %v1700 = vmul.f32 %v1645, %v1657
        %v1701 = vmul.f32 %v1646, %v1661
        %v1702 = vmul.f32 %v1538, %v1657
        %v1703 = vmul.f32 %v1539, %v1661
        %v1704 = vmul.f32 %v1647, %v1657
        %v1705 = vmul.f32 %v1648, %v1661
        %v1706 = vmul.f32 %v1649, %v1657
        %v1707 = vmul.f32 %v1650, %v1661
        %v1708 = vmul.f32 %v1542, %v1657
        %v1709 = vmul.f32 %v1543, %v1661
        %v1710 = vmul.f32 %v1651, %v1657
        %v1711 = vmul.f32 %v1652, %v1661
        %v1760 = vrot.slane %v1664, 1
        %v1761 = vrot.slane %v1666, 1
        %v1762 = vsel %vm1079, %v1760, %v1761
        %v1763 = vrot.slane %v1665, 1
        %v1764 = vrot.slane %v1667, 1
        %v1765 = vsel %vm1079, %v1763, %v1764
        %v1766 = vrot.slane %v1668, 1
        %v1767 = vsel %vm1079, %v1761, %v1766
        %v1768 = vrot.slane %v1669, 1
        %v1769 = vsel %vm1079, %v1764, %v1768
        %v1770 = vrot.slane %v1670, 1
        %v1771 = vrot.slane %v1672, 1
        %v1772 = vsel %vm1079, %v1770, %v1771
        %v1773 = vrot.slane %v1671, 1
        %v1774 = vrot.slane %v1673, 1
        %v1775 = vsel %vm1079, %v1773, %v1774
        %v1776 = vrot.slane %v1674, 1
        %v1777 = vsel %vm1079, %v1771, %v1776
        %v1778 = vrot.slane %v1675, 1
        %v1779 = vsel %vm1079, %v1774, %v1778
        %v1780 = vrot.slane %v1676, 1
        %v1781 = vrot.slane %v1678, 1
        %v1782 = vsel %vm1079, %v1780, %v1781
        %v1783 = vrot.slane %v1677, 1
        %v1784 = vrot.slane %v1679, 1
        %v1785 = vsel %vm1079, %v1783, %v1784
        %v1786 = vrot.slane %v1680, 1
        %v1787 = vsel %vm1079, %v1781, %v1786
        %v1788 = vrot.slane %v1681, 1
        %v1789 = vsel %vm1079, %v1784, %v1788
        %v1790 = vrot.slane %v1682, 1
        %v1791 = vrot.slane %v1684, 1
        %v1792 = vsel %vm1079, %v1790, %v1791
        %v1793 = vrot.slane %v1683, 1
        %v1794 = vrot.slane %v1685, 1
        %v1795 = vsel %vm1079, %v1793, %v1794
        %v1796 = vrot.slane %v1686, 1
        %v1797 = vsel %vm1079, %v1791, %v1796
        %v1798 = vrot.slane %v1687, 1
        %v1799 = vsel %vm1079, %v1794, %v1798
        %v1800 = vrot.slane %v1688, 1
        %v1801 = vrot.slane %v1690, 1
        %v1802 = vsel %vm1079, %v1800, %v1801
        %v1803 = vrot.slane %v1689, 1
        %v1804 = vrot.slane %v1691, 1
        %v1805 = vsel %vm1079, %v1803, %v1804
        %v1806 = vrot.slane %v1692, 1
        %v1807 = vsel %vm1079, %v1801, %v1806
        %v1808 = vrot.slane %v1693, 1
        %v1809 = vsel %vm1079, %v1804, %v1808
        %v1810 = vrot.slane %v1694, 1
        %v1811 = vrot.slane %v1696, 1
        %v1812 = vsel %vm1079, %v1810, %v1811
        %v1813 = vrot.slane %v1695, 1
        %v1814 = vrot.slane %v1697, 1
        %v1815 = vsel %vm1079, %v1813, %v1814
        %v1816 = vrot.slane %v1698, 1
        %v1817 = vsel %vm1079, %v1811, %v1816
        %v1818 = vrot.slane %v1699, 1
        %v1819 = vsel %vm1079, %v1814, %v1818
        %v1820 = vrot.slane %v1700, 1
        %v1821 = vrot.slane %v1702, 1
        %v1822 = vsel %vm1079, %v1820, %v1821
        %v1823 = vrot.slane %v1701, 1
        %v1824 = vrot.slane %v1703, 1
        %v1825 = vsel %vm1079, %v1823, %v1824
        %v1826 = vrot.slane %v1704, 1
        %v1827 = vsel %vm1079, %v1821, %v1826
        %v1828 = vrot.slane %v1705, 1
        %v1829 = vsel %vm1079, %v1824, %v1828
        %v1830 = vrot.slane %v1706, 1
        %v1831 = vrot.slane %v1708, 1
        %v1832 = vsel %vm1079, %v1830, %v1831
        %v1833 = vrot.slane %v1707, 1
        %v1834 = vrot.slane %v1709, 1
        %v1835 = vsel %vm1079, %v1833, %v1834
        %v1836 = vrot.slane %v1710, 1
        %v1837 = vsel %vm1079, %v1831, %v1836
        %v1838 = vrot.slane %v1711, 1
        %v1839 = vsel %vm1079, %v1834, %v1838
        %v1872 = vadd.f32 %v1587, %v1762
        %v1873 = vadd.f32 %v1588, %v1765
        %v1874 = vadd.f32 %v1589, %v1767
        %v1875 = vadd.f32 %v1590, %v1769
        %v1876 = vadd.f32 %v1591, %v1772
        %v1877 = vadd.f32 %v1592, %v1775
        %v1878 = vadd.f32 %v1593, %v1777
        %v1879 = vadd.f32 %v1594, %v1779
        %v1880 = vadd.f32 %v1595, %v1782
        %v1881 = vadd.f32 %v1596, %v1785
        %v1882 = vadd.f32 %v1597, %v1787
        %v1883 = vadd.f32 %v1598, %v1789
        %v1884 = vadd.f32 %v1599, %v1792
        %v1885 = vadd.f32 %v1600, %v1795
        %v1886 = vadd.f32 %v1601, %v1797
        %v1887 = vadd.f32 %v1602, %v1799
        %v1888 = vadd.f32 %v1603, %v1802
        %v1889 = vadd.f32 %v1604, %v1805
        %v1890 = vadd.f32 %v1605, %v1807
        %v1891 = vadd.f32 %v1606, %v1809
        %v1892 = vadd.f32 %v1607, %v1812
        %v1893 = vadd.f32 %v1608, %v1815
        %v1894 = vadd.f32 %v1609, %v1817
        %v1895 = vadd.f32 %v1610, %v1819
        %v1896 = vadd.f32 %v1611, %v1822
        %v1897 = vadd.f32 %v1612, %v1825
        %v1898 = vadd.f32 %v1613, %v1827
        %v1899 = vadd.f32 %v1614, %v1829
        %v1900 = vadd.f32 %v1615, %v1832
        %v1901 = vadd.f32 %v1616, %v1835
        %v1902 = vadd.f32 %v1617, %v1837
        %v1903 = vadd.f32 %v1618, %v1839
        %s1904 = scalar_lea.vmem %s1, 5
        %v1905 = vld [vmem:[%s1904] ss:$8 sm:$0x3]
        %v1906 = vld [vmem:[%s355] sm:$0xfc]
        %v1907 = vld [vmem:[%s355 + $0x8] sm:$0xfc]
        %v1908 = vld [vmem:[%s355 + $0x20] sm:$0x3]
        %v1909 = vld [vmem:[%s355 + $0x28] sm:$0x3]
        %v1910 = vld [vmem:[%s355 + $0x30] sm:$0xfc]
        %v1911 = vld [vmem:[%s355 + $0x38] sm:$0xfc]
        %v1912 = vld [vmem:[%s355 + $0x50] sm:$0x3]
        %v1913 = vld [vmem:[%s355 + $0x58] sm:$0x3]
        %v1914 = vld [vmem:[%s355 + $0x60] sm:$0xfc]
        %v1915 = vld [vmem:[%s355 + $0x68] sm:$0xfc]
        %v1916 = vld [vmem:[%s355 + $0x80] sm:$0x3]
        %v1917 = vld [vmem:[%s355 + $0x88] sm:$0x3]
        %v1918 = vld [vmem:[%s355 + $0x90] sm:$0xfc]
        %v1919 = vld [vmem:[%s355 + $0x98] sm:$0xfc]
        %v1920 = vld [vmem:[%s355 + $0xb0] sm:$0x3]
        %v1921 = vld [vmem:[%s355 + $0xb8] sm:$0x3]
        %v1922 = vld [vmem:[%s355 + $0xc0] sm:$0xfc]
        %v1923 = vld [vmem:[%s355 + $0xc8] sm:$0xfc]
        %v1924 = vld [vmem:[%s355 + $0xe0] sm:$0x3]
        %v1925 = vld [vmem:[%s355 + $0xe8] sm:$0x3]
        %v1926 = vld [vmem:[%s355 + $0xf0] sm:$0xfc]
        %v1927 = vld [vmem:[%s355 + $0xf8] sm:$0xfc]
        %v1928 = vld [vmem:[%s355 + $0x110] sm:$0x3]
        %v1929 = vld [vmem:[%s355 + $0x118] sm:$0x3]
        %v1930 = vld [vmem:[%s355 + $0x120] sm:$0xfc]
        %v1931 = vld [vmem:[%s355 + $0x128] sm:$0xfc]
        %v1932 = vld [vmem:[%s355 + $0x140] sm:$0x3]
        %v1933 = vld [vmem:[%s355 + $0x148] sm:$0x3]
        %v1934 = vld [vmem:[%s355 + $0x150] sm:$0xfc]
        %v1935 = vld [vmem:[%s355 + $0x158] sm:$0xfc]
        %v1936 = vld [vmem:[%s355 + $0x170] sm:$0x3]
        %v1937 = vld [vmem:[%s355 + $0x178] sm:$0x3]
        %v1939 = vlaneseq
        %v1940 = vshrl.u32 %v1939, 7
        %v1941 = vsub.s32 0, %v1940
        %v1942 = vrot.slane %v1905, %v1941
        %v1943 = vlaneseq
        %v1944 = vshrl.u32 %v1943, 7
        %v1945 = vsub.s32 1, %v1944
        %v1946 = vrot.slane %v1905, %v1945
        %v1949 = vmul.f32 %v1906, %v1942
        %v1950 = vmul.f32 %v1907, %v1946
        %v1951 = vmul.f32 %v1514, %v1942
        %v1952 = vmul.f32 %v1515, %v1946
        %v1953 = vmul.f32 %v1908, %v1942
        %v1954 = vmul.f32 %v1909, %v1946
        %v1955 = vmul.f32 %v1910, %v1942
        %v1956 = vmul.f32 %v1911, %v1946
        %v1957 = vmul.f32 %v1518, %v1942
        %v1958 = vmul.f32 %v1519, %v1946
        %v1959 = vmul.f32 %v1912, %v1942
        %v1960 = vmul.f32 %v1913, %v1946
        %v1961 = vmul.f32 %v1914, %v1942
        %v1962 = vmul.f32 %v1915, %v1946
        %v1963 = vmul.f32 %v1522, %v1942
        %v1964 = vmul.f32 %v1523, %v1946
        %v1965 = vmul.f32 %v1916, %v1942
        %v1966 = vmul.f32 %v1917, %v1946
        %v1967 = vmul.f32 %v1918, %v1942
        %v1968 = vmul.f32 %v1919, %v1946
        %v1969 = vmul.f32 %v1526, %v1942
        %v1970 = vmul.f32 %v1527, %v1946
        %v1971 = vmul.f32 %v1920, %v1942
        %v1972 = vmul.f32 %v1921, %v1946
        %v1973 = vmul.f32 %v1922, %v1942
        %v1974 = vmul.f32 %v1923, %v1946
        %v1975 = vmul.f32 %v1530, %v1942
        %v1976 = vmul.f32 %v1531, %v1946
        %v1977 = vmul.f32 %v1924, %v1942
        %v1978 = vmul.f32 %v1925, %v1946
        %v1979 = vmul.f32 %v1926, %v1942
        %v1980 = vmul.f32 %v1927, %v1946
        %v1981 = vmul.f32 %v1534, %v1942
        %v1982 = vmul.f32 %v1535, %v1946
        %v1983 = vmul.f32 %v1928, %v1942
        %v1984 = vmul.f32 %v1929, %v1946
        %v1985 = vmul.f32 %v1930, %v1942
        %v1986 = vmul.f32 %v1931, %v1946
        %v1987 = vmul.f32 %v1538, %v1942
        %v1988 = vmul.f32 %v1539, %v1946
        %v1989 = vmul.f32 %v1932, %v1942
        %v1990 = vmul.f32 %v1933, %v1946
        %v1991 = vmul.f32 %v1934, %v1942
        %v1992 = vmul.f32 %v1935, %v1946
        %v1993 = vmul.f32 %v1542, %v1942
        %v1994 = vmul.f32 %v1543, %v1946
        %v1995 = vmul.f32 %v1936, %v1942
        %v1996 = vmul.f32 %v1937, %v1946
        %v2045 = vrot.slane %v1949, 2
        %v2046 = vrot.slane %v1951, 2
        %v2047 = vsel %vm1365, %v2045, %v2046
        %v2048 = vrot.slane %v1950, 2
        %v2049 = vrot.slane %v1952, 2
        %v2050 = vsel %vm1365, %v2048, %v2049
        %v2051 = vrot.slane %v1953, 2
        %v2052 = vsel %vm1365, %v2046, %v2051
        %v2053 = vrot.slane %v1954, 2
        %v2054 = vsel %vm1365, %v2049, %v2053
        %v2055 = vrot.slane %v1955, 2
        %v2056 = vrot.slane %v1957, 2
        %v2057 = vsel %vm1365, %v2055, %v2056
        %v2058 = vrot.slane %v1956, 2
        %v2059 = vrot.slane %v1958, 2
        %v2060 = vsel %vm1365, %v2058, %v2059
        %v2061 = vrot.slane %v1959, 2
        %v2062 = vsel %vm1365, %v2056, %v2061
        %v2063 = vrot.slane %v1960, 2
        %v2064 = vsel %vm1365, %v2059, %v2063
        %v2065 = vrot.slane %v1961, 2
        %v2066 = vrot.slane %v1963, 2
        %v2067 = vsel %vm1365, %v2065, %v2066
        %v2068 = vrot.slane %v1962, 2
        %v2069 = vrot.slane %v1964, 2
        %v2070 = vsel %vm1365, %v2068, %v2069
        %v2071 = vrot.slane %v1965, 2
        %v2072 = vsel %vm1365, %v2066, %v2071
        %v2073 = vrot.slane %v1966, 2
        %v2074 = vsel %vm1365, %v2069, %v2073
        %v2075 = vrot.slane %v1967, 2
        %v2076 = vrot.slane %v1969, 2
        %v2077 = vsel %vm1365, %v2075, %v2076
        %v2078 = vrot.slane %v1968, 2
        %v2079 = vrot.slane %v1970, 2
        %v2080 = vsel %vm1365, %v2078, %v2079
        %v2081 = vrot.slane %v1971, 2
        %v2082 = vsel %vm1365, %v2076, %v2081
        %v2083 = vrot.slane %v1972, 2
        %v2084 = vsel %vm1365, %v2079, %v2083
        %v2085 = vrot.slane %v1973, 2
        %v2086 = vrot.slane %v1975, 2
        %v2087 = vsel %vm1365, %v2085, %v2086
        %v2088 = vrot.slane %v1974, 2
        %v2089 = vrot.slane %v1976, 2
        %v2090 = vsel %vm1365, %v2088, %v2089
        %v2091 = vrot.slane %v1977, 2
        %v2092 = vsel %vm1365, %v2086, %v2091
        %v2093 = vrot.slane %v1978, 2
        %v2094 = vsel %vm1365, %v2089, %v2093
        %v2095 = vrot.slane %v1979, 2
        %v2096 = vrot.slane %v1981, 2
        %v2097 = vsel %vm1365, %v2095, %v2096
        %v2098 = vrot.slane %v1980, 2
        %v2099 = vrot.slane %v1982, 2
        %v2100 = vsel %vm1365, %v2098, %v2099
        %v2101 = vrot.slane %v1983, 2
        %v2102 = vsel %vm1365, %v2096, %v2101
        %v2103 = vrot.slane %v1984, 2
        %v2104 = vsel %vm1365, %v2099, %v2103
        %v2105 = vrot.slane %v1985, 2
        %v2106 = vrot.slane %v1987, 2
        %v2107 = vsel %vm1365, %v2105, %v2106
        %v2108 = vrot.slane %v1986, 2
        %v2109 = vrot.slane %v1988, 2
        %v2110 = vsel %vm1365, %v2108, %v2109
        %v2111 = vrot.slane %v1989, 2
        %v2112 = vsel %vm1365, %v2106, %v2111
        %v2113 = vrot.slane %v1990, 2
        %v2114 = vsel %vm1365, %v2109, %v2113
        %v2115 = vrot.slane %v1991, 2
        %v2116 = vrot.slane %v1993, 2
        %v2117 = vsel %vm1365, %v2115, %v2116
        %v2118 = vrot.slane %v1992, 2
        %v2119 = vrot.slane %v1994, 2
        %v2120 = vsel %vm1365, %v2118, %v2119
        %v2121 = vrot.slane %v1995, 2
        %v2122 = vsel %vm1365, %v2116, %v2121
        %v2123 = vrot.slane %v1996, 2
        %v2124 = vsel %vm1365, %v2119, %v2123
        %v2157 = vadd.f32 %v1872, %v2047
        %v2158 = vadd.f32 %v1873, %v2050
        %v2159 = vadd.f32 %v1874, %v2052
        %v2160 = vadd.f32 %v1875, %v2054
        %v2161 = vadd.f32 %v1876, %v2057
        %v2162 = vadd.f32 %v1877, %v2060
        %v2163 = vadd.f32 %v1878, %v2062
        %v2164 = vadd.f32 %v1879, %v2064
        %v2165 = vadd.f32 %v1880, %v2067
        %v2166 = vadd.f32 %v1881, %v2070
        %v2167 = vadd.f32 %v1882, %v2072
        %v2168 = vadd.f32 %v1883, %v2074
        %v2169 = vadd.f32 %v1884, %v2077
        %v2170 = vadd.f32 %v1885, %v2080
        %v2171 = vadd.f32 %v1886, %v2082
        %v2172 = vadd.f32 %v1887, %v2084
        %v2173 = vadd.f32 %v1888, %v2087
        %v2174 = vadd.f32 %v1889, %v2090
        %v2175 = vadd.f32 %v1890, %v2092
        %v2176 = vadd.f32 %v1891, %v2094
        %v2177 = vadd.f32 %v1892, %v2097
        %v2178 = vadd.f32 %v1893, %v2100
        %v2179 = vadd.f32 %v1894, %v2102
        %v2180 = vadd.f32 %v1895, %v2104
        %v2181 = vadd.f32 %v1896, %v2107
        %v2182 = vadd.f32 %v1897, %v2110
        %v2183 = vadd.f32 %v1898, %v2112
        %v2184 = vadd.f32 %v1899, %v2114
        %v2185 = vadd.f32 %v1900, %v2117
        %v2186 = vadd.f32 %v1901, %v2120
        %v2187 = vadd.f32 %v1902, %v2122
        %v2188 = vadd.f32 %v1903, %v2124
        %s2189 = scalar_lea.vmem %s1, 6
        %v2190 = vld [vmem:[%s2189] ss:$8 sm:$0x3]
        %v2191 = vld [vmem:[%s385] sm:$0xff]
        %v2192 = vld [vmem:[%s385 + $0x8] sm:$0xff]
        %v2193 = vld [vmem:[%s385 + $0x10] sm:$0xff]
        %v2194 = vld [vmem:[%s385 + $0x18] sm:$0xff]
        %v2195 = vld [vmem:[%s385 + $0x30] sm:$0xff]
        %v2196 = vld [vmem:[%s385 + $0x38] sm:$0xff]
        %v2197 = vld [vmem:[%s385 + $0x40] sm:$0xff]
        %v2198 = vld [vmem:[%s385 + $0x48] sm:$0xff]
        %v2199 = vld [vmem:[%s385 + $0x60] sm:$0xff]
        %v2200 = vld [vmem:[%s385 + $0x68] sm:$0xff]
        %v2201 = vld [vmem:[%s385 + $0x70] sm:$0xff]
        %v2202 = vld [vmem:[%s385 + $0x78] sm:$0xff]
        %v2203 = vld [vmem:[%s385 + $0x90] sm:$0xff]
        %v2204 = vld [vmem:[%s385 + $0x98] sm:$0xff]
        %v2205 = vld [vmem:[%s385 + $0xa0] sm:$0xff]
        %v2206 = vld [vmem:[%s385 + $0xa8] sm:$0xff]
        %v2207 = vld [vmem:[%s385 + $0xc0] sm:$0xff]
        %v2208 = vld [vmem:[%s385 + $0xc8] sm:$0xff]
        %v2209 = vld [vmem:[%s385 + $0xd0] sm:$0xff]
        %v2210 = vld [vmem:[%s385 + $0xd8] sm:$0xff]
        %v2211 = vld [vmem:[%s385 + $0xf0] sm:$0xff]
        %v2212 = vld [vmem:[%s385 + $0xf8] sm:$0xff]
        %v2213 = vld [vmem:[%s385 + $0x100] sm:$0xff]
        %v2214 = vld [vmem:[%s385 + $0x108] sm:$0xff]
        %v2215 = vld [vmem:[%s385 + $0x120] sm:$0xff]
        %v2216 = vld [vmem:[%s385 + $0x128] sm:$0xff]
        %v2217 = vld [vmem:[%s385 + $0x130] sm:$0xff]
        %v2218 = vld [vmem:[%s385 + $0x138] sm:$0xff]
        %v2219 = vld [vmem:[%s385 + $0x150] sm:$0xff]
        %v2220 = vld [vmem:[%s385 + $0x158] sm:$0xff]
        %v2221 = vld [vmem:[%s385 + $0x160] sm:$0xff]
        %v2222 = vld [vmem:[%s385 + $0x168] sm:$0xff]
        %v2224 = vlaneseq
        %v2225 = vshrl.u32 %v2224, 7
        %v2226 = vsub.s32 0, %v2225
        %v2227 = vrot.slane %v2190, %v2226
        %v2228 = vlaneseq
        %v2229 = vshrl.u32 %v2228, 7
        %v2230 = vsub.s32 1, %v2229
        %v2231 = vrot.slane %v2190, %v2230
        %v2234 = vmul.f32 %v2191, %v2227
        %v2235 = vmul.f32 %v2192, %v2231
        %v2236 = vmul.f32 %v2193, %v2227
        %v2237 = vmul.f32 %v2194, %v2231
        %v2238 = vmul.f32 %v2195, %v2227
        %v2239 = vmul.f32 %v2196, %v2231
        %v2240 = vmul.f32 %v2197, %v2227
        %v2241 = vmul.f32 %v2198, %v2231
        %v2242 = vmul.f32 %v2199, %v2227
        %v2243 = vmul.f32 %v2200, %v2231
        %v2244 = vmul.f32 %v2201, %v2227
        %v2245 = vmul.f32 %v2202, %v2231
        %v2246 = vmul.f32 %v2203, %v2227
        %v2247 = vmul.f32 %v2204, %v2231
        %v2248 = vmul.f32 %v2205, %v2227
        %v2249 = vmul.f32 %v2206, %v2231
        %v2250 = vmul.f32 %v2207, %v2227
        %v2251 = vmul.f32 %v2208, %v2231
        %v2252 = vmul.f32 %v2209, %v2227
        %v2253 = vmul.f32 %v2210, %v2231
        %v2254 = vmul.f32 %v2211, %v2227
        %v2255 = vmul.f32 %v2212, %v2231
        %v2256 = vmul.f32 %v2213, %v2227
        %v2257 = vmul.f32 %v2214, %v2231
        %v2258 = vmul.f32 %v2215, %v2227
        %v2259 = vmul.f32 %v2216, %v2231
        %v2260 = vmul.f32 %v2217, %v2227
        %v2261 = vmul.f32 %v2218, %v2231
        %v2262 = vmul.f32 %v2219, %v2227
        %v2263 = vmul.f32 %v2220, %v2231
        %v2264 = vmul.f32 %v2221, %v2227
        %v2265 = vmul.f32 %v2222, %v2231
        %v2266 = vadd.f32 %v2157, %v2234
        %v2267 = vadd.f32 %v2158, %v2235
        %v2268 = vadd.f32 %v2159, %v2236
        %v2269 = vadd.f32 %v2160, %v2237
        %v2270 = vadd.f32 %v2161, %v2238
        %v2271 = vadd.f32 %v2162, %v2239
        %v2272 = vadd.f32 %v2163, %v2240
        %v2273 = vadd.f32 %v2164, %v2241
        %v2274 = vadd.f32 %v2165, %v2242
        %v2275 = vadd.f32 %v2166, %v2243
        %v2276 = vadd.f32 %v2167, %v2244
        %v2277 = vadd.f32 %v2168, %v2245
        %v2278 = vadd.f32 %v2169, %v2246
        %v2279 = vadd.f32 %v2170, %v2247
        %v2280 = vadd.f32 %v2171, %v2248
        %v2281 = vadd.f32 %v2172, %v2249
        %v2282 = vadd.f32 %v2173, %v2250
        %v2283 = vadd.f32 %v2174, %v2251
        %v2284 = vadd.f32 %v2175, %v2252
        %v2285 = vadd.f32 %v2176, %v2253
        %v2286 = vadd.f32 %v2177, %v2254
        %v2287 = vadd.f32 %v2178, %v2255
        %v2288 = vadd.f32 %v2179, %v2256
        %v2289 = vadd.f32 %v2180, %v2257
        %v2290 = vadd.f32 %v2181, %v2258
        %v2291 = vadd.f32 %v2182, %v2259
        %v2292 = vadd.f32 %v2183, %v2260
        %v2293 = vadd.f32 %v2184, %v2261
        %v2294 = vadd.f32 %v2185, %v2262
        %v2295 = vadd.f32 %v2186, %v2263
        %v2296 = vadd.f32 %v2187, %v2264
        %v2297 = vadd.f32 %v2188, %v2265
        %s2298 = scalar_lea.vmem %s1, 7
        %v2299 = vld [vmem:[%s2298] ss:$8 sm:$0x3]
        %v2300 = vld [vmem:[%s385] sm:$0xfe]
        %v2301 = vld [vmem:[%s385 + $0x8] sm:$0xfe]
        %v2302 = vld [vmem:[%s385 + $0x20] sm:$0x1]
        %v2303 = vld [vmem:[%s385 + $0x28] sm:$0x1]
        %v2304 = vld [vmem:[%s385 + $0x30] sm:$0xfe]
        %v2305 = vld [vmem:[%s385 + $0x38] sm:$0xfe]
        %v2306 = vld [vmem:[%s385 + $0x50] sm:$0x1]
        %v2307 = vld [vmem:[%s385 + $0x58] sm:$0x1]
        %v2308 = vld [vmem:[%s385 + $0x60] sm:$0xfe]
        %v2309 = vld [vmem:[%s385 + $0x68] sm:$0xfe]
        %v2310 = vld [vmem:[%s385 + $0x80] sm:$0x1]
        %v2311 = vld [vmem:[%s385 + $0x88] sm:$0x1]
        %v2312 = vld [vmem:[%s385 + $0x90] sm:$0xfe]
        %v2313 = vld [vmem:[%s385 + $0x98] sm:$0xfe]
        %v2314 = vld [vmem:[%s385 + $0xb0] sm:$0x1]
        %v2315 = vld [vmem:[%s385 + $0xb8] sm:$0x1]
        %v2316 = vld [vmem:[%s385 + $0xc0] sm:$0xfe]
        %v2317 = vld [vmem:[%s385 + $0xc8] sm:$0xfe]
        %v2318 = vld [vmem:[%s385 + $0xe0] sm:$0x1]
        %v2319 = vld [vmem:[%s385 + $0xe8] sm:$0x1]
        %v2320 = vld [vmem:[%s385 + $0xf0] sm:$0xfe]
        %v2321 = vld [vmem:[%s385 + $0xf8] sm:$0xfe]
        %v2322 = vld [vmem:[%s385 + $0x110] sm:$0x1]
        %v2323 = vld [vmem:[%s385 + $0x118] sm:$0x1]
        %v2324 = vld [vmem:[%s385 + $0x120] sm:$0xfe]
        %v2325 = vld [vmem:[%s385 + $0x128] sm:$0xfe]
        %v2326 = vld [vmem:[%s385 + $0x140] sm:$0x1]
        %v2327 = vld [vmem:[%s385 + $0x148] sm:$0x1]
        %v2328 = vld [vmem:[%s385 + $0x150] sm:$0xfe]
        %v2329 = vld [vmem:[%s385 + $0x158] sm:$0xfe]
        %v2330 = vld [vmem:[%s385 + $0x170] sm:$0x1]
        %v2331 = vld [vmem:[%s385 + $0x178] sm:$0x1]
        %v2333 = vlaneseq
        %v2334 = vshrl.u32 %v2333, 7
        %v2335 = vsub.s32 0, %v2334
        %v2336 = vrot.slane %v2299, %v2335
        %v2337 = vlaneseq
        %v2338 = vshrl.u32 %v2337, 7
        %v2339 = vsub.s32 1, %v2338
        %v2340 = vrot.slane %v2299, %v2339
        %v2343 = vmul.f32 %v2300, %v2336
        %v2344 = vmul.f32 %v2301, %v2340
        %v2345 = vmul.f32 %v2193, %v2336
        %v2346 = vmul.f32 %v2194, %v2340
        %v2347 = vmul.f32 %v2302, %v2336
        %v2348 = vmul.f32 %v2303, %v2340
        %v2349 = vmul.f32 %v2304, %v2336
        %v2350 = vmul.f32 %v2305, %v2340
        %v2351 = vmul.f32 %v2197, %v2336
        %v2352 = vmul.f32 %v2198, %v2340
        %v2353 = vmul.f32 %v2306, %v2336
        %v2354 = vmul.f32 %v2307, %v2340
        %v2355 = vmul.f32 %v2308, %v2336
        %v2356 = vmul.f32 %v2309, %v2340
        %v2357 = vmul.f32 %v2201, %v2336
        %v2358 = vmul.f32 %v2202, %v2340
        %v2359 = vmul.f32 %v2310, %v2336
        %v2360 = vmul.f32 %v2311, %v2340
        %v2361 = vmul.f32 %v2312, %v2336
        %v2362 = vmul.f32 %v2313, %v2340
        %v2363 = vmul.f32 %v2205, %v2336
        %v2364 = vmul.f32 %v2206, %v2340
        %v2365 = vmul.f32 %v2314, %v2336
        %v2366 = vmul.f32 %v2315, %v2340
        %v2367 = vmul.f32 %v2316, %v2336
        %v2368 = vmul.f32 %v2317, %v2340
        %v2369 = vmul.f32 %v2209, %v2336
        %v2370 = vmul.f32 %v2210, %v2340
        %v2371 = vmul.f32 %v2318, %v2336
        %v2372 = vmul.f32 %v2319, %v2340
        %v2373 = vmul.f32 %v2320, %v2336
        %v2374 = vmul.f32 %v2321, %v2340
        %v2375 = vmul.f32 %v2213, %v2336
        %v2376 = vmul.f32 %v2214, %v2340
        %v2377 = vmul.f32 %v2322, %v2336
        %v2378 = vmul.f32 %v2323, %v2340
        %v2379 = vmul.f32 %v2324, %v2336
        %v2380 = vmul.f32 %v2325, %v2340
        %v2381 = vmul.f32 %v2217, %v2336
        %v2382 = vmul.f32 %v2218, %v2340
        %v2383 = vmul.f32 %v2326, %v2336
        %v2384 = vmul.f32 %v2327, %v2340
        %v2385 = vmul.f32 %v2328, %v2336
        %v2386 = vmul.f32 %v2329, %v2340
        %v2387 = vmul.f32 %v2221, %v2336
        %v2388 = vmul.f32 %v2222, %v2340
        %v2389 = vmul.f32 %v2330, %v2336
        %v2390 = vmul.f32 %v2331, %v2340
        %v2439 = vrot.slane %v2343, 1
        %v2440 = vrot.slane %v2345, 1
        %v2441 = vsel %vm1079, %v2439, %v2440
        %v2442 = vrot.slane %v2344, 1
        %v2443 = vrot.slane %v2346, 1
        %v2444 = vsel %vm1079, %v2442, %v2443
        %v2445 = vrot.slane %v2347, 1
        %v2446 = vsel %vm1079, %v2440, %v2445
        %v2447 = vrot.slane %v2348, 1
        %v2448 = vsel %vm1079, %v2443, %v2447
        %v2449 = vrot.slane %v2349, 1
        %v2450 = vrot.slane %v2351, 1
        %v2451 = vsel %vm1079, %v2449, %v2450
        %v2452 = vrot.slane %v2350, 1
        %v2453 = vrot.slane %v2352, 1
        %v2454 = vsel %vm1079, %v2452, %v2453
        %v2455 = vrot.slane %v2353, 1
        %v2456 = vsel %vm1079, %v2450, %v2455
        %v2457 = vrot.slane %v2354, 1
        %v2458 = vsel %vm1079, %v2453, %v2457
        %v2459 = vrot.slane %v2355, 1
        %v2460 = vrot.slane %v2357, 1
        %v2461 = vsel %vm1079, %v2459, %v2460
        %v2462 = vrot.slane %v2356, 1
        %v2463 = vrot.slane %v2358, 1
        %v2464 = vsel %vm1079, %v2462, %v2463
        %v2465 = vrot.slane %v2359, 1
        %v2466 = vsel %vm1079, %v2460, %v2465
        %v2467 = vrot.slane %v2360, 1
        %v2468 = vsel %vm1079, %v2463, %v2467
        %v2469 = vrot.slane %v2361, 1
        %v2470 = vrot.slane %v2363, 1
        %v2471 = vsel %vm1079, %v2469, %v2470
        %v2472 = vrot.slane %v2362, 1
        %v2473 = vrot.slane %v2364, 1
        %v2474 = vsel %vm1079, %v2472, %v2473
        %v2475 = vrot.slane %v2365, 1
        %v2476 = vsel %vm1079, %v2470, %v2475
        %v2477 = vrot.slane %v2366, 1
        %v2478 = vsel %vm1079, %v2473, %v2477
        %v2479 = vrot.slane %v2367, 1
        %v2480 = vrot.slane %v2369, 1
        %v2481 = vsel %vm1079, %v2479, %v2480
        %v2482 = vrot.slane %v2368, 1
        %v2483 = vrot.slane %v2370, 1
        %v2484 = vsel %vm1079, %v2482, %v2483
        %v2485 = vrot.slane %v2371, 1
        %v2486 = vsel %vm1079, %v2480, %v2485
        %v2487 = vrot.slane %v2372, 1
        %v2488 = vsel %vm1079, %v2483, %v2487
        %v2489 = vrot.slane %v2373, 1
        %v2490 = vrot.slane %v2375, 1
        %v2491 = vsel %vm1079, %v2489, %v2490
        %v2492 = vrot.slane %v2374, 1
        %v2493 = vrot.slane %v2376, 1
        %v2494 = vsel %vm1079, %v2492, %v2493
        %v2495 = vrot.slane %v2377, 1
        %v2496 = vsel %vm1079, %v2490, %v2495
        %v2497 = vrot.slane %v2378, 1
        %v2498 = vsel %vm1079, %v2493, %v2497
        %v2499 = vrot.slane %v2379, 1
        %v2500 = vrot.slane %v2381, 1
        %v2501 = vsel %vm1079, %v2499, %v2500
        %v2502 = vrot.slane %v2380, 1
        %v2503 = vrot.slane %v2382, 1
        %v2504 = vsel %vm1079, %v2502, %v2503
        %v2505 = vrot.slane %v2383, 1
        %v2506 = vsel %vm1079, %v2500, %v2505
        %v2507 = vrot.slane %v2384, 1
        %v2508 = vsel %vm1079, %v2503, %v2507
        %v2509 = vrot.slane %v2385, 1
        %v2510 = vrot.slane %v2387, 1
        %v2511 = vsel %vm1079, %v2509, %v2510
        %v2512 = vrot.slane %v2386, 1
        %v2513 = vrot.slane %v2388, 1
        %v2514 = vsel %vm1079, %v2512, %v2513
        %v2515 = vrot.slane %v2389, 1
        %v2516 = vsel %vm1079, %v2510, %v2515
        %v2517 = vrot.slane %v2390, 1
        %v2518 = vsel %vm1079, %v2513, %v2517
        %v2551 = vadd.f32 %v2266, %v2441
        %v2552 = vadd.f32 %v2267, %v2444
        %v2553 = vadd.f32 %v2268, %v2446
        %v2554 = vadd.f32 %v2269, %v2448
        %v2555 = vadd.f32 %v2270, %v2451
        %v2556 = vadd.f32 %v2271, %v2454
        %v2557 = vadd.f32 %v2272, %v2456
        %v2558 = vadd.f32 %v2273, %v2458
        %v2559 = vadd.f32 %v2274, %v2461
        %v2560 = vadd.f32 %v2275, %v2464
        %v2561 = vadd.f32 %v2276, %v2466
        %v2562 = vadd.f32 %v2277, %v2468
        %v2563 = vadd.f32 %v2278, %v2471
        %v2564 = vadd.f32 %v2279, %v2474
        %v2565 = vadd.f32 %v2280, %v2476
        %v2566 = vadd.f32 %v2281, %v2478
        %v2567 = vadd.f32 %v2282, %v2481
        %v2568 = vadd.f32 %v2283, %v2484
        %v2569 = vadd.f32 %v2284, %v2486
        %v2570 = vadd.f32 %v2285, %v2488
        %v2571 = vadd.f32 %v2286, %v2491
        %v2572 = vadd.f32 %v2287, %v2494
        %v2573 = vadd.f32 %v2288, %v2496
        %v2574 = vadd.f32 %v2289, %v2498
        %v2575 = vadd.f32 %v2290, %v2501
        %v2576 = vadd.f32 %v2291, %v2504
        %v2577 = vadd.f32 %v2292, %v2506
        %v2578 = vadd.f32 %v2293, %v2508
        %v2579 = vadd.f32 %v2294, %v2511
        %v2580 = vadd.f32 %v2295, %v2514
        %v2581 = vadd.f32 %v2296, %v2516
        %v2582 = vadd.f32 %v2297, %v2518
        %s2583 = scalar_lea.vmem %s1, 16
        %v2584 = vld [vmem:[%s2583] ss:$8 sm:$0x3]
        %v2585 = vld [vmem:[%s385] sm:$0xfc]
        %v2586 = vld [vmem:[%s385 + $0x8] sm:$0xfc]
        %v2587 = vld [vmem:[%s385 + $0x20] sm:$0x3]
        %v2588 = vld [vmem:[%s385 + $0x28] sm:$0x3]
        %v2589 = vld [vmem:[%s385 + $0x30] sm:$0xfc]
        %v2590 = vld [vmem:[%s385 + $0x38] sm:$0xfc]
        %v2591 = vld [vmem:[%s385 + $0x50] sm:$0x3]
        %v2592 = vld [vmem:[%s385 + $0x58] sm:$0x3]
        %v2593 = vld [vmem:[%s385 + $0x60] sm:$0xfc]
        %v2594 = vld [vmem:[%s385 + $0x68] sm:$0xfc]
        %v2595 = vld [vmem:[%s385 + $0x80] sm:$0x3]
        %v2596 = vld [vmem:[%s385 + $0x88] sm:$0x3]
        %v2597 = vld [vmem:[%s385 + $0x90] sm:$0xfc]
        %v2598 = vld [vmem:[%s385 + $0x98] sm:$0xfc]
        %v2599 = vld [vmem:[%s385 + $0xb0] sm:$0x3]
        %v2600 = vld [vmem:[%s385 + $0xb8] sm:$0x3]
        %v2601 = vld [vmem:[%s385 + $0xc0] sm:$0xfc]
        %v2602 = vld [vmem:[%s385 + $0xc8] sm:$0xfc]
        %v2603 = vld [vmem:[%s385 + $0xe0] sm:$0x3]
        %v2604 = vld [vmem:[%s385 + $0xe8] sm:$0x3]
        %v2605 = vld [vmem:[%s385 + $0xf0] sm:$0xfc]
        %v2606 = vld [vmem:[%s385 + $0xf8] sm:$0xfc]
        %v2607 = vld [vmem:[%s385 + $0x110] sm:$0x3]
        %v2608 = vld [vmem:[%s385 + $0x118] sm:$0x3]
        %v2609 = vld [vmem:[%s385 + $0x120] sm:$0xfc]
        %v2610 = vld [vmem:[%s385 + $0x128] sm:$0xfc]
        %v2611 = vld [vmem:[%s385 + $0x140] sm:$0x3]
        %v2612 = vld [vmem:[%s385 + $0x148] sm:$0x3]
        %v2613 = vld [vmem:[%s385 + $0x150] sm:$0xfc]
        %v2614 = vld [vmem:[%s385 + $0x158] sm:$0xfc]
        %v2615 = vld [vmem:[%s385 + $0x170] sm:$0x3]
        %v2616 = vld [vmem:[%s385 + $0x178] sm:$0x3]
        %v2618 = vlaneseq
        %v2619 = vshrl.u32 %v2618, 7
        %v2620 = vsub.s32 0, %v2619
        %v2621 = vrot.slane %v2584, %v2620
        %v2622 = vlaneseq
        %v2623 = vshrl.u32 %v2622, 7
        %v2624 = vsub.s32 1, %v2623
        %v2625 = vrot.slane %v2584, %v2624
        %v2628 = vmul.f32 %v2585, %v2621
        %v2629 = vmul.f32 %v2586, %v2625
        %v2630 = vmul.f32 %v2193, %v2621
        %v2631 = vmul.f32 %v2194, %v2625
        %v2632 = vmul.f32 %v2587, %v2621
        %v2633 = vmul.f32 %v2588, %v2625
        %v2634 = vmul.f32 %v2589, %v2621
        %v2635 = vmul.f32 %v2590, %v2625
        %v2636 = vmul.f32 %v2197, %v2621
        %v2637 = vmul.f32 %v2198, %v2625
        %v2638 = vmul.f32 %v2591, %v2621
        %v2639 = vmul.f32 %v2592, %v2625
        %v2640 = vmul.f32 %v2593, %v2621
        %v2641 = vmul.f32 %v2594, %v2625
        %v2642 = vmul.f32 %v2201, %v2621
        %v2643 = vmul.f32 %v2202, %v2625
        %v2644 = vmul.f32 %v2595, %v2621
        %v2645 = vmul.f32 %v2596, %v2625
        %v2646 = vmul.f32 %v2597, %v2621
        %v2647 = vmul.f32 %v2598, %v2625
        %v2648 = vmul.f32 %v2205, %v2621
        %v2649 = vmul.f32 %v2206, %v2625
        %v2650 = vmul.f32 %v2599, %v2621
        %v2651 = vmul.f32 %v2600, %v2625
        %v2652 = vmul.f32 %v2601, %v2621
        %v2653 = vmul.f32 %v2602, %v2625
        %v2654 = vmul.f32 %v2209, %v2621
        %v2655 = vmul.f32 %v2210, %v2625
        %v2656 = vmul.f32 %v2603, %v2621
        %v2657 = vmul.f32 %v2604, %v2625
        %v2658 = vmul.f32 %v2605, %v2621
        %v2659 = vmul.f32 %v2606, %v2625
        %v2660 = vmul.f32 %v2213, %v2621
        %v2661 = vmul.f32 %v2214, %v2625
        %v2662 = vmul.f32 %v2607, %v2621
        %v2663 = vmul.f32 %v2608, %v2625
        %v2664 = vmul.f32 %v2609, %v2621
        %v2665 = vmul.f32 %v2610, %v2625
        %v2666 = vmul.f32 %v2217, %v2621
        %v2667 = vmul.f32 %v2218, %v2625
        %v2668 = vmul.f32 %v2611, %v2621
        %v2669 = vmul.f32 %v2612, %v2625
        %v2670 = vmul.f32 %v2613, %v2621
        %v2671 = vmul.f32 %v2614, %v2625
        %v2672 = vmul.f32 %v2221, %v2621
        %v2673 = vmul.f32 %v2222, %v2625
        %v2674 = vmul.f32 %v2615, %v2621
        %v2675 = vmul.f32 %v2616, %v2625
        %v2724 = vrot.slane %v2628, 2
        %v2725 = vrot.slane %v2630, 2
        %v2726 = vsel %vm1365, %v2724, %v2725
        %v2727 = vrot.slane %v2629, 2
        %v2728 = vrot.slane %v2631, 2
        %v2729 = vsel %vm1365, %v2727, %v2728
        %v2730 = vrot.slane %v2632, 2
        %v2731 = vsel %vm1365, %v2725, %v2730
        %v2732 = vrot.slane %v2633, 2
        %v2733 = vsel %vm1365, %v2728, %v2732
        %v2734 = vrot.slane %v2634, 2
        %v2735 = vrot.slane %v2636, 2
        %v2736 = vsel %vm1365, %v2734, %v2735
        %v2737 = vrot.slane %v2635, 2
        %v2738 = vrot.slane %v2637, 2
        %v2739 = vsel %vm1365, %v2737, %v2738
        %v2740 = vrot.slane %v2638, 2
        %v2741 = vsel %vm1365, %v2735, %v2740
        %v2742 = vrot.slane %v2639, 2
        %v2743 = vsel %vm1365, %v2738, %v2742
        %v2744 = vrot.slane %v2640, 2
        %v2745 = vrot.slane %v2642, 2
        %v2746 = vsel %vm1365, %v2744, %v2745
        %v2747 = vrot.slane %v2641, 2
        %v2748 = vrot.slane %v2643, 2
        %v2749 = vsel %vm1365, %v2747, %v2748
        %v2750 = vrot.slane %v2644, 2
        %v2751 = vsel %vm1365, %v2745, %v2750
        %v2752 = vrot.slane %v2645, 2
        %v2753 = vsel %vm1365, %v2748, %v2752
        %v2754 = vrot.slane %v2646, 2
        %v2755 = vrot.slane %v2648, 2
        %v2756 = vsel %vm1365, %v2754, %v2755
        %v2757 = vrot.slane %v2647, 2
        %v2758 = vrot.slane %v2649, 2
        %v2759 = vsel %vm1365, %v2757, %v2758
        %v2760 = vrot.slane %v2650, 2
        %v2761 = vsel %vm1365, %v2755, %v2760
        %v2762 = vrot.slane %v2651, 2
        %v2763 = vsel %vm1365, %v2758, %v2762
        %v2764 = vrot.slane %v2652, 2
        %v2765 = vrot.slane %v2654, 2
        %v2766 = vsel %vm1365, %v2764, %v2765
        %v2767 = vrot.slane %v2653, 2
        %v2768 = vrot.slane %v2655, 2
        %v2769 = vsel %vm1365, %v2767, %v2768
        %v2770 = vrot.slane %v2656, 2
        %v2771 = vsel %vm1365, %v2765, %v2770
        %v2772 = vrot.slane %v2657, 2
        %v2773 = vsel %vm1365, %v2768, %v2772
        %v2774 = vrot.slane %v2658, 2
        %v2775 = vrot.slane %v2660, 2
        %v2776 = vsel %vm1365, %v2774, %v2775
        %v2777 = vrot.slane %v2659, 2
        %v2778 = vrot.slane %v2661, 2
        %v2779 = vsel %vm1365, %v2777, %v2778
        %v2780 = vrot.slane %v2662, 2
        %v2781 = vsel %vm1365, %v2775, %v2780
        %v2782 = vrot.slane %v2663, 2
        %v2783 = vsel %vm1365, %v2778, %v2782
        %v2784 = vrot.slane %v2664, 2
        %v2785 = vrot.slane %v2666, 2
        %v2786 = vsel %vm1365, %v2784, %v2785
        %v2787 = vrot.slane %v2665, 2
        %v2788 = vrot.slane %v2667, 2
        %v2789 = vsel %vm1365, %v2787, %v2788
        %v2790 = vrot.slane %v2668, 2
        %v2791 = vsel %vm1365, %v2785, %v2790
        %v2792 = vrot.slane %v2669, 2
        %v2793 = vsel %vm1365, %v2788, %v2792
        %v2794 = vrot.slane %v2670, 2
        %v2795 = vrot.slane %v2672, 2
        %v2796 = vsel %vm1365, %v2794, %v2795
        %v2797 = vrot.slane %v2671, 2
        %v2798 = vrot.slane %v2673, 2
        %v2799 = vsel %vm1365, %v2797, %v2798
        %v2800 = vrot.slane %v2674, 2
        %v2801 = vsel %vm1365, %v2795, %v2800
        %v2802 = vrot.slane %v2675, 2
        %v2803 = vsel %vm1365, %v2798, %v2802
        %v2836 = vadd.f32 %v2551, %v2726
        %v2837 = vadd.f32 %v2552, %v2729
        %v2838 = vadd.f32 %v2553, %v2731
        %v2839 = vadd.f32 %v2554, %v2733
        %v2840 = vadd.f32 %v2555, %v2736
        %v2841 = vadd.f32 %v2556, %v2739
        %v2842 = vadd.f32 %v2557, %v2741
        %v2843 = vadd.f32 %v2558, %v2743
        %v2844 = vadd.f32 %v2559, %v2746
        %v2845 = vadd.f32 %v2560, %v2749
        %v2846 = vadd.f32 %v2561, %v2751
        %v2847 = vadd.f32 %v2562, %v2753
        %v2848 = vadd.f32 %v2563, %v2756
        %v2849 = vadd.f32 %v2564, %v2759
        %v2850 = vadd.f32 %v2565, %v2761
        %v2851 = vadd.f32 %v2566, %v2763
        %v2852 = vadd.f32 %v2567, %v2766
        %v2853 = vadd.f32 %v2568, %v2769
        %v2854 = vadd.f32 %v2569, %v2771
        %v2855 = vadd.f32 %v2570, %v2773
        %v2856 = vadd.f32 %v2571, %v2776
        %v2857 = vadd.f32 %v2572, %v2779
        %v2858 = vadd.f32 %v2573, %v2781
        %v2859 = vadd.f32 %v2574, %v2783
        %v2860 = vadd.f32 %v2575, %v2786
        %v2861 = vadd.f32 %v2576, %v2789
        %v2862 = vadd.f32 %v2577, %v2791
        %v2863 = vadd.f32 %v2578, %v2793
        %v2864 = vadd.f32 %v2579, %v2796
        %v2865 = vadd.f32 %v2580, %v2799
        %v2866 = vadd.f32 %v2581, %v2801
        %v2867 = vadd.f32 %v2582, %v2803
        %v2869 = vlaneseq
        %v2870 = vshrl.u32 %v2869, 7
        %v2871 = vsub.s32 0, %v2870
        %v2872 = vrot.slane %v812, %v2871
        %v2873 = vlaneseq
        %v2874 = vshrl.u32 %v2873, 7
        %v2875 = vsub.s32 1, %v2874
        %v2876 = vrot.slane %v812, %v2875
        %v2879 = vadd.f32 %v2836, %v2872
        %v2880 = vadd.f32 %v2837, %v2876
        %v2881 = vadd.f32 %v2838, %v2872
        %v2882 = vadd.f32 %v2839, %v2876
        %v2883 = vadd.f32 %v2840, %v2872
        %v2884 = vadd.f32 %v2841, %v2876
        %v2885 = vadd.f32 %v2842, %v2872
        %v2886 = vadd.f32 %v2843, %v2876
        %v2887 = vadd.f32 %v2844, %v2872
        %v2888 = vadd.f32 %v2845, %v2876
        %v2889 = vadd.f32 %v2846, %v2872
        %v2890 = vadd.f32 %v2847, %v2876
        %v2891 = vadd.f32 %v2848, %v2872
        %v2892 = vadd.f32 %v2849, %v2876
        %v2893 = vadd.f32 %v2850, %v2872
        %v2894 = vadd.f32 %v2851, %v2876
        %v2895 = vadd.f32 %v2852, %v2872
        %v2896 = vadd.f32 %v2853, %v2876
        %v2897 = vadd.f32 %v2854, %v2872
        %v2898 = vadd.f32 %v2855, %v2876
        %v2899 = vadd.f32 %v2856, %v2872
        %v2900 = vadd.f32 %v2857, %v2876
        %v2901 = vadd.f32 %v2858, %v2872
        %v2902 = vadd.f32 %v2859, %v2876
        %v2903 = vadd.f32 %v2860, %v2872
        %v2904 = vadd.f32 %v2861, %v2876
        %v2905 = vadd.f32 %v2862, %v2872
        %v2906 = vadd.f32 %v2863, %v2876
        %v2907 = vadd.f32 %v2864, %v2872
        %v2908 = vadd.f32 %v2865, %v2876
        %v2909 = vadd.f32 %v2866, %v2872
        %v2910 = vadd.f32 %v2867, %v2876
        %v2911 = vmul.f32 %v2879, 0.70710677
        %v2912 = vmul.f32 %v2881, 0.70710677
        %v2913 = vmul.f32 %v2883, 0.70710677
        %v2914 = vmul.f32 %v2885, 0.70710677
        %v2915 = vmul.f32 %v2887, 0.70710677
        %v2916 = vmul.f32 %v2889, 0.70710677
        %v2917 = vmul.f32 %v2891, 0.70710677
        %v2918 = vmul.f32 %v2893, 0.70710677
        %v2919 = vmul.f32 %v2895, 0.70710677
        %v2920 = vmul.f32 %v2897, 0.70710677
        %v2921 = vmul.f32 %v2899, 0.70710677
        %v2922 = vmul.f32 %v2901, 0.70710677
        %v2923 = vmul.f32 %v2903, 0.70710677
        %v2924 = vmul.f32 %v2905, 0.70710677
        %v2925 = vmul.f32 %v2907, 0.70710677
        %v2926 = vmul.f32 %v2909, 0.70710677
        %v2927 = vand.u32 2147483647, %v2911
        %v2928 = vand.u32 2147483647, %v2912
        %v2929 = vand.u32 2147483647, %v2913
        %v2930 = vand.u32 2147483647, %v2914
        %v2931 = vand.u32 2147483647, %v2915
        %v2932 = vand.u32 2147483647, %v2916
        %v2933 = vand.u32 2147483647, %v2917
        %v2934 = vand.u32 2147483647, %v2918
        %v2935 = vand.u32 2147483647, %v2919
        %v2936 = vand.u32 2147483647, %v2920
        %v2937 = vand.u32 2147483647, %v2921
        %v2938 = vand.u32 2147483647, %v2922
        %v2939 = vand.u32 2147483647, %v2923
        %v2940 = vand.u32 2147483647, %v2924
        %v2941 = vand.u32 2147483647, %v2925
        %v2942 = vand.u32 2147483647, %v2926
        %v2943 = vmul.f32 %v2927, 0.3275911
        %v2944 = vmul.f32 %v2928, 0.3275911
        %v2945 = vmul.f32 %v2929, 0.3275911
        %v2946 = vmul.f32 %v2930, 0.3275911
        %v2947 = vmul.f32 %v2931, 0.3275911
        %v2948 = vmul.f32 %v2932, 0.3275911
        %v2949 = vmul.f32 %v2933, 0.3275911
        %v2950 = vmul.f32 %v2934, 0.3275911
        %v2951 = vmul.f32 %v2935, 0.3275911
        %v2952 = vmul.f32 %v2936, 0.3275911
        %v2953 = vmul.f32 %v2937, 0.3275911
        %v2954 = vmul.f32 %v2938, 0.3275911
        %v2955 = vmul.f32 %v2939, 0.3275911
        %v2956 = vmul.f32 %v2940, 0.3275911
        %v2957 = vmul.f32 %v2941, 0.3275911
        %v2958 = vmul.f32 %v2942, 0.3275911
        %v2959 = vadd.f32 %v2943, 1.0
        %v2960 = vadd.f32 %v2944, 1.0
        %v2961 = vadd.f32 %v2945, 1.0
        %v2962 = vadd.f32 %v2946, 1.0
        %v2963 = vadd.f32 %v2947, 1.0
        %v2964 = vadd.f32 %v2948, 1.0
        %v2965 = vadd.f32 %v2949, 1.0
        %v2966 = vadd.f32 %v2950, 1.0
        %v2967 = vadd.f32 %v2951, 1.0
        %v2968 = vadd.f32 %v2952, 1.0
        %v2969 = vadd.f32 %v2953, 1.0
        %v2970 = vadd.f32 %v2954, 1.0
        %v2971 = vadd.f32 %v2955, 1.0
        %v2972 = vadd.f32 %v2956, 1.0
        %v2973 = vadd.f32 %v2957, 1.0
        %v2974 = vadd.f32 %v2958, 1.0
        %v2975 = vrcp.pop %v2959
        %v2976 = vmul.f32 1.0, %v2975
        %v2977 = vrcp.pop %v2960
        %v2978 = vmul.f32 1.0, %v2977
        %v2979 = vrcp.pop %v2961
        %v2980 = vmul.f32 1.0, %v2979
        %v2981 = vrcp.pop %v2962
        %v2982 = vmul.f32 1.0, %v2981
        %v2983 = vrcp.pop %v2963
        %v2984 = vmul.f32 1.0, %v2983
        %v2985 = vrcp.pop %v2964
        %v2986 = vmul.f32 1.0, %v2985
        %v2987 = vrcp.pop %v2965
        %v2988 = vmul.f32 1.0, %v2987
        %v2989 = vrcp.pop %v2966
        %v2990 = vmul.f32 1.0, %v2989
        %v2991 = vrcp.pop %v2967
        %v2992 = vmul.f32 1.0, %v2991
        %v2993 = vrcp.pop %v2968
        %v2994 = vmul.f32 1.0, %v2993
        %v2995 = vrcp.pop %v2969
        %v2996 = vmul.f32 1.0, %v2995
        %v2997 = vrcp.pop %v2970
        %v2998 = vmul.f32 1.0, %v2997
        %v2999 = vrcp.pop %v2971
        %v3000 = vmul.f32 1.0, %v2999
        %v3001 = vrcp.pop %v2972
        %v3002 = vmul.f32 1.0, %v3001
        %v3003 = vrcp.pop %v2973
        %v3004 = vmul.f32 1.0, %v3003
        %v3005 = vrcp.pop %v2974
        %v3006 = vmul.f32 1.0, %v3005
        %v3007 = vmul.f32 %v2976, 1.0614054
        %v3008 = vmul.f32 %v2978, 1.0614054
        %v3009 = vmul.f32 %v2980, 1.0614054
        %v3010 = vmul.f32 %v2982, 1.0614054
        %v3011 = vmul.f32 %v2984, 1.0614054
        %v3012 = vmul.f32 %v2986, 1.0614054
        %v3013 = vmul.f32 %v2988, 1.0614054
        %v3014 = vmul.f32 %v2990, 1.0614054
        %v3015 = vmul.f32 %v2992, 1.0614054
        %v3016 = vmul.f32 %v2994, 1.0614054
        %v3017 = vmul.f32 %v2996, 1.0614054
        %v3018 = vmul.f32 %v2998, 1.0614054
        %v3019 = vmul.f32 %v3000, 1.0614054
        %v3020 = vmul.f32 %v3002, 1.0614054
        %v3021 = vmul.f32 %v3004, 1.0614054
        %v3022 = vmul.f32 %v3006, 1.0614054
        %v3023 = vadd.f32 %v3007, -1.4531521
        %v3024 = vadd.f32 %v3008, -1.4531521
        %v3025 = vadd.f32 %v3009, -1.4531521
        %v3026 = vadd.f32 %v3010, -1.4531521
        %v3027 = vadd.f32 %v3011, -1.4531521
        %v3028 = vadd.f32 %v3012, -1.4531521
        %v3029 = vadd.f32 %v3013, -1.4531521
        %v3030 = vadd.f32 %v3014, -1.4531521
        %v3031 = vadd.f32 %v3015, -1.4531521
        %v3032 = vadd.f32 %v3016, -1.4531521
        %v3033 = vadd.f32 %v3017, -1.4531521
        %v3034 = vadd.f32 %v3018, -1.4531521
        %v3035 = vadd.f32 %v3019, -1.4531521
        %v3036 = vadd.f32 %v3020, -1.4531521
        %v3037 = vadd.f32 %v3021, -1.4531521
        %v3038 = vadd.f32 %v3022, -1.4531521
        %v3039 = vmul.f32 %v2976, %v3023
        %v3040 = vmul.f32 %v2978, %v3024
        %v3041 = vmul.f32 %v2980, %v3025
        %v3042 = vmul.f32 %v2982, %v3026
        %v3043 = vmul.f32 %v2984, %v3027
        %v3044 = vmul.f32 %v2986, %v3028
        %v3045 = vmul.f32 %v2988, %v3029
        %v3046 = vmul.f32 %v2990, %v3030
        %v3047 = vmul.f32 %v2992, %v3031
        %v3048 = vmul.f32 %v2994, %v3032
        %v3049 = vmul.f32 %v2996, %v3033
        %v3050 = vmul.f32 %v2998, %v3034
        %v3051 = vmul.f32 %v3000, %v3035
        %v3052 = vmul.f32 %v3002, %v3036
        %v3053 = vmul.f32 %v3004, %v3037
        %v3054 = vmul.f32 %v3006, %v3038
        %v3055 = vadd.f32 %v3039, 1.4214138
        %v3056 = vadd.f32 %v3040, 1.4214138
        %v3057 = vadd.f32 %v3041, 1.4214138
        %v3058 = vadd.f32 %v3042, 1.4214138
        %v3059 = vadd.f32 %v3043, 1.4214138
        %v3060 = vadd.f32 %v3044, 1.4214138
        %v3061 = vadd.f32 %v3045, 1.4214138
        %v3062 = vadd.f32 %v3046, 1.4214138
        %v3063 = vadd.f32 %v3047, 1.4214138
        %v3064 = vadd.f32 %v3048, 1.4214138
        %v3065 = vadd.f32 %v3049, 1.4214138
        %v3066 = vadd.f32 %v3050, 1.4214138
        %v3067 = vadd.f32 %v3051, 1.4214138
        %v3068 = vadd.f32 %v3052, 1.4214138
        %v3069 = vadd.f32 %v3053, 1.4214138
        %v3070 = vadd.f32 %v3054, 1.4214138
        %v3071 = vmul.f32 %v2976, %v3055
        %v3072 = vmul.f32 %v2978, %v3056
        %v3073 = vmul.f32 %v2980, %v3057
        %v3074 = vmul.f32 %v2982, %v3058
        %v3075 = vmul.f32 %v2984, %v3059
        %v3076 = vmul.f32 %v2986, %v3060
        %v3077 = vmul.f32 %v2988, %v3061
        %v3078 = vmul.f32 %v2990, %v3062
        %v3079 = vmul.f32 %v2992, %v3063
        %v3080 = vmul.f32 %v2994, %v3064
        %v3081 = vmul.f32 %v2996, %v3065
        %v3082 = vmul.f32 %v2998, %v3066
        %v3083 = vmul.f32 %v3000, %v3067
        %v3084 = vmul.f32 %v3002, %v3068
        %v3085 = vmul.f32 %v3004, %v3069
        %v3086 = vmul.f32 %v3006, %v3070
        %v3087 = vadd.f32 %v3071, -0.28449672
        %v3088 = vadd.f32 %v3072, -0.28449672
        %v3089 = vadd.f32 %v3073, -0.28449672
        %v3090 = vadd.f32 %v3074, -0.28449672
        %v3091 = vadd.f32 %v3075, -0.28449672
        %v3092 = vadd.f32 %v3076, -0.28449672
        %v3093 = vadd.f32 %v3077, -0.28449672
        %v3094 = vadd.f32 %v3078, -0.28449672
        %v3095 = vadd.f32 %v3079, -0.28449672
        %v3096 = vadd.f32 %v3080, -0.28449672
        %v3097 = vadd.f32 %v3081, -0.28449672
        %v3098 = vadd.f32 %v3082, -0.28449672
        %v3099 = vadd.f32 %v3083, -0.28449672
        %v3100 = vadd.f32 %v3084, -0.28449672
        %v3101 = vadd.f32 %v3085, -0.28449672
        %v3102 = vadd.f32 %v3086, -0.28449672
        %v3103 = vmul.f32 %v2976, %v3087
        %v3104 = vmul.f32 %v2978, %v3088
        %v3105 = vmul.f32 %v2980, %v3089
        %v3106 = vmul.f32 %v2982, %v3090
        %v3107 = vmul.f32 %v2984, %v3091
        %v3108 = vmul.f32 %v2986, %v3092
        %v3109 = vmul.f32 %v2988, %v3093
        %v3110 = vmul.f32 %v2990, %v3094
        %v3111 = vmul.f32 %v2992, %v3095
        %v3112 = vmul.f32 %v2994, %v3096
        %v3113 = vmul.f32 %v2996, %v3097
        %v3114 = vmul.f32 %v2998, %v3098
        %v3115 = vmul.f32 %v3000, %v3099
        %v3116 = vmul.f32 %v3002, %v3100
        %v3117 = vmul.f32 %v3004, %v3101
        %v3118 = vmul.f32 %v3006, %v3102
        %v3119 = vadd.f32 %v3103, 0.2548296
        %v3120 = vadd.f32 %v3104, 0.2548296
        %v3121 = vadd.f32 %v3105, 0.2548296
        %v3122 = vadd.f32 %v3106, 0.2548296
        %v3123 = vadd.f32 %v3107, 0.2548296
        %v3124 = vadd.f32 %v3108, 0.2548296
        %v3125 = vadd.f32 %v3109, 0.2548296
        %v3126 = vadd.f32 %v3110, 0.2548296
        %v3127 = vadd.f32 %v3111, 0.2548296
        %v3128 = vadd.f32 %v3112, 0.2548296
        %v3129 = vadd.f32 %v3113, 0.2548296
        %v3130 = vadd.f32 %v3114, 0.2548296
        %v3131 = vadd.f32 %v3115, 0.2548296
        %v3132 = vadd.f32 %v3116, 0.2548296
        %v3133 = vadd.f32 %v3117, 0.2548296
        %v3134 = vadd.f32 %v3118, 0.2548296
        %v3135 = vmul.f32 %v2976, %v3119
        %v3136 = vmul.f32 %v2978, %v3120
        %v3137 = vmul.f32 %v2980, %v3121
        %v3138 = vmul.f32 %v2982, %v3122
        %v3139 = vmul.f32 %v2984, %v3123
        %v3140 = vmul.f32 %v2986, %v3124
        %v3141 = vmul.f32 %v2988, %v3125
        %v3142 = vmul.f32 %v2990, %v3126
        %v3143 = vmul.f32 %v2992, %v3127
        %v3144 = vmul.f32 %v2994, %v3128
        %v3145 = vmul.f32 %v2996, %v3129
        %v3146 = vmul.f32 %v2998, %v3130
        %v3147 = vmul.f32 %v3000, %v3131
        %v3148 = vmul.f32 %v3002, %v3132
        %v3149 = vmul.f32 %v3004, %v3133
        %v3150 = vmul.f32 %v3006, %v3134
        %v3151 = vsub.f32 0.0, %v2927
        %v3152 = vsub.f32 0.0, %v2928
        %v3153 = vsub.f32 0.0, %v2929
        %v3154 = vsub.f32 0.0, %v2930
        %v3155 = vsub.f32 0.0, %v2931
        %v3156 = vsub.f32 0.0, %v2932
        %v3157 = vsub.f32 0.0, %v2933
        %v3158 = vsub.f32 0.0, %v2934
        %v3159 = vsub.f32 0.0, %v2935
        %v3160 = vsub.f32 0.0, %v2936
        %v3161 = vsub.f32 0.0, %v2937
        %v3162 = vsub.f32 0.0, %v2938
        %v3163 = vsub.f32 0.0, %v2939
        %v3164 = vsub.f32 0.0, %v2940
        %v3165 = vsub.f32 0.0, %v2941
        %v3166 = vsub.f32 0.0, %v2942
        %v3167 = vmul.f32 %v3151, %v2927
        %v3168 = vmul.f32 %v3152, %v2928
        %v3169 = vmul.f32 %v3153, %v2929
        %v3170 = vmul.f32 %v3154, %v2930
        %v3171 = vmul.f32 %v3155, %v2931
        %v3172 = vmul.f32 %v3156, %v2932
        %v3173 = vmul.f32 %v3157, %v2933
        %v3174 = vmul.f32 %v3158, %v2934
        %v3175 = vmul.f32 %v3159, %v2935
        %v3176 = vmul.f32 %v3160, %v2936
        %v3177 = vmul.f32 %v3161, %v2937
        %v3178 = vmul.f32 %v3162, %v2938
        %v3179 = vmul.f32 %v3163, %v2939
        %v3180 = vmul.f32 %v3164, %v2940
        %v3181 = vmul.f32 %v3165, %v2941
        %v3182 = vmul.f32 %v3166, %v2942
        %v3183 = vmul.f32 %v3167, 1.442695
        %v3184 = vpow.pop %v3183
        %v3185 = vmul.f32 %v3168, 1.442695
        %v3186 = vpow.pop %v3185
        %v3187 = vmul.f32 %v3169, 1.442695
        %v3188 = vpow.pop %v3187
        %v3189 = vmul.f32 %v3170, 1.442695
        %v3190 = vpow.pop %v3189
        %v3191 = vmul.f32 %v3171, 1.442695
        %v3192 = vpow.pop %v3191
        %v3193 = vmul.f32 %v3172, 1.442695
        %v3194 = vpow.pop %v3193
        %v3195 = vmul.f32 %v3173, 1.442695
        %v3196 = vpow.pop %v3195
        %v3197 = vmul.f32 %v3174, 1.442695
        %v3198 = vpow.pop %v3197
        %v3199 = vmul.f32 %v3175, 1.442695
        %v3200 = vpow.pop %v3199
        %v3201 = vmul.f32 %v3176, 1.442695
        %v3202 = vpow.pop %v3201
        %v3203 = vmul.f32 %v3177, 1.442695
        %v3204 = vpow.pop %v3203
        %v3205 = vmul.f32 %v3178, 1.442695
        %v3206 = vpow.pop %v3205
        %v3207 = vmul.f32 %v3179, 1.442695
        %v3208 = vpow.pop %v3207
        %v3209 = vmul.f32 %v3180, 1.442695
        %v3210 = vpow.pop %v3209
        %v3211 = vmul.f32 %v3181, 1.442695
        %v3212 = vpow.pop %v3211
        %v3213 = vmul.f32 %v3182, 1.442695
        %v3214 = vpow.pop %v3213
        %v3215 = vmul.f32 %v3135, %v3184
        %v3216 = vmul.f32 %v3136, %v3186
        %v3217 = vmul.f32 %v3137, %v3188
        %v3218 = vmul.f32 %v3138, %v3190
        %v3219 = vmul.f32 %v3139, %v3192
        %v3220 = vmul.f32 %v3140, %v3194
        %v3221 = vmul.f32 %v3141, %v3196
        %v3222 = vmul.f32 %v3142, %v3198
        %v3223 = vmul.f32 %v3143, %v3200
        %v3224 = vmul.f32 %v3144, %v3202
        %v3225 = vmul.f32 %v3145, %v3204
        %v3226 = vmul.f32 %v3146, %v3206
        %v3227 = vmul.f32 %v3147, %v3208
        %v3228 = vmul.f32 %v3148, %v3210
        %v3229 = vmul.f32 %v3149, %v3212
        %v3230 = vmul.f32 %v3150, %v3214
        %v3231 = vsub.f32 1.0, %v3215
        %v3232 = vsub.f32 1.0, %v3216
        %v3233 = vsub.f32 1.0, %v3217
        %v3234 = vsub.f32 1.0, %v3218
        %v3235 = vsub.f32 1.0, %v3219
        %v3236 = vsub.f32 1.0, %v3220
        %v3237 = vsub.f32 1.0, %v3221
        %v3238 = vsub.f32 1.0, %v3222
        %v3239 = vsub.f32 1.0, %v3223
        %v3240 = vsub.f32 1.0, %v3224
        %v3241 = vsub.f32 1.0, %v3225
        %v3242 = vsub.f32 1.0, %v3226
        %v3243 = vsub.f32 1.0, %v3227
        %v3244 = vsub.f32 1.0, %v3228
        %v3245 = vsub.f32 1.0, %v3229
        %v3246 = vsub.f32 1.0, %v3230
        %vm3247 = vcmp.lt.f32.partialorder %v2911, 0.0
        %vm3248 = vcmp.lt.f32.partialorder %v2912, 0.0
        %vm3249 = vcmp.lt.f32.partialorder %v2913, 0.0
        %vm3250 = vcmp.lt.f32.partialorder %v2914, 0.0
        %vm3251 = vcmp.lt.f32.partialorder %v2915, 0.0
        %vm3252 = vcmp.lt.f32.partialorder %v2916, 0.0
        %vm3253 = vcmp.lt.f32.partialorder %v2917, 0.0
        %vm3254 = vcmp.lt.f32.partialorder %v2918, 0.0
        %vm3255 = vcmp.lt.f32.partialorder %v2919, 0.0
        %vm3256 = vcmp.lt.f32.partialorder %v2920, 0.0
        %vm3257 = vcmp.lt.f32.partialorder %v2921, 0.0
        %vm3258 = vcmp.lt.f32.partialorder %v2922, 0.0
        %vm3259 = vcmp.lt.f32.partialorder %v2923, 0.0
        %vm3260 = vcmp.lt.f32.partialorder %v2924, 0.0
        %vm3261 = vcmp.lt.f32.partialorder %v2925, 0.0
        %vm3262 = vcmp.lt.f32.partialorder %v2926, 0.0
        %v3263 = vsub.f32 0.0, %v3231
        %v3264 = vsub.f32 0.0, %v3232
        %v3265 = vsub.f32 0.0, %v3233
        %v3266 = vsub.f32 0.0, %v3234
        %v3267 = vsub.f32 0.0, %v3235
        %v3268 = vsub.f32 0.0, %v3236
        %v3269 = vsub.f32 0.0, %v3237
        %v3270 = vsub.f32 0.0, %v3238
        %v3271 = vsub.f32 0.0, %v3239
        %v3272 = vsub.f32 0.0, %v3240
        %v3273 = vsub.f32 0.0, %v3241
        %v3274 = vsub.f32 0.0, %v3242
        %v3275 = vsub.f32 0.0, %v3243
        %v3276 = vsub.f32 0.0, %v3244
        %v3277 = vsub.f32 0.0, %v3245
        %v3278 = vsub.f32 0.0, %v3246
        %v3279 = vsel %vm3247, %v3263, %v3231
        %v3280 = vsel %vm3248, %v3264, %v3232
        %v3281 = vsel %vm3249, %v3265, %v3233
        %v3282 = vsel %vm3250, %v3266, %v3234
        %v3283 = vsel %vm3251, %v3267, %v3235
        %v3284 = vsel %vm3252, %v3268, %v3236
        %v3285 = vsel %vm3253, %v3269, %v3237
        %v3286 = vsel %vm3254, %v3270, %v3238
        %v3287 = vsel %vm3255, %v3271, %v3239
        %v3288 = vsel %vm3256, %v3272, %v3240
        %v3289 = vsel %vm3257, %v3273, %v3241
        %v3290 = vsel %vm3258, %v3274, %v3242
        %v3291 = vsel %vm3259, %v3275, %v3243
        %v3292 = vsel %vm3260, %v3276, %v3244
        %v3293 = vsel %vm3261, %v3277, %v3245
        %v3294 = vsel %vm3262, %v3278, %v3246
        %v3295 = vmul.f32 %v2879, 0.5
        %v3296 = vmul.f32 %v2881, 0.5
        %v3297 = vmul.f32 %v2883, 0.5
        %v3298 = vmul.f32 %v2885, 0.5
        %v3299 = vmul.f32 %v2887, 0.5
        %v3300 = vmul.f32 %v2889, 0.5
        %v3301 = vmul.f32 %v2891, 0.5
        %v3302 = vmul.f32 %v2893, 0.5
        %v3303 = vmul.f32 %v2895, 0.5
        %v3304 = vmul.f32 %v2897, 0.5
        %v3305 = vmul.f32 %v2899, 0.5
        %v3306 = vmul.f32 %v2901, 0.5
        %v3307 = vmul.f32 %v2903, 0.5
        %v3308 = vmul.f32 %v2905, 0.5
        %v3309 = vmul.f32 %v2907, 0.5
        %v3310 = vmul.f32 %v2909, 0.5
        %v3311 = vadd.f32 %v3279, 1.0
        %v3312 = vadd.f32 %v3280, 1.0
        %v3313 = vadd.f32 %v3281, 1.0
        %v3314 = vadd.f32 %v3282, 1.0
        %v3315 = vadd.f32 %v3283, 1.0
        %v3316 = vadd.f32 %v3284, 1.0
        %v3317 = vadd.f32 %v3285, 1.0
        %v3318 = vadd.f32 %v3286, 1.0
        %v3319 = vadd.f32 %v3287, 1.0
        %v3320 = vadd.f32 %v3288, 1.0
        %v3321 = vadd.f32 %v3289, 1.0
        %v3322 = vadd.f32 %v3290, 1.0
        %v3323 = vadd.f32 %v3291, 1.0
        %v3324 = vadd.f32 %v3292, 1.0
        %v3325 = vadd.f32 %v3293, 1.0
        %v3326 = vadd.f32 %v3294, 1.0
        %v3327 = vmul.f32 %v3295, %v3311
        %v3328 = vmul.f32 %v3296, %v3312
        %v3329 = vmul.f32 %v3297, %v3313
        %v3330 = vmul.f32 %v3298, %v3314
        %v3331 = vmul.f32 %v3299, %v3315
        %v3332 = vmul.f32 %v3300, %v3316
        %v3333 = vmul.f32 %v3301, %v3317
        %v3334 = vmul.f32 %v3302, %v3318
        %v3335 = vmul.f32 %v3303, %v3319
        %v3336 = vmul.f32 %v3304, %v3320
        %v3337 = vmul.f32 %v3305, %v3321
        %v3338 = vmul.f32 %v3306, %v3322
        %v3339 = vmul.f32 %v3307, %v3323
        %v3340 = vmul.f32 %v3308, %v3324
        %v3341 = vmul.f32 %v3309, %v3325
        %v3342 = vmul.f32 %v3310, %v3326
        %v3343 = vmul.f32 %v3327, %v2880
        %v3344 = vmul.f32 %v3328, %v2882
        %v3345 = vmul.f32 %v3329, %v2884
        %v3346 = vmul.f32 %v3330, %v2886
        %v3347 = vmul.f32 %v3331, %v2888
        %v3348 = vmul.f32 %v3332, %v2890
        %v3349 = vmul.f32 %v3333, %v2892
        %v3350 = vmul.f32 %v3334, %v2894
        %v3351 = vmul.f32 %v3335, %v2896
        %v3352 = vmul.f32 %v3336, %v2898
        %v3353 = vmul.f32 %v3337, %v2900
        %v3354 = vmul.f32 %v3338, %v2902
        %v3355 = vmul.f32 %v3339, %v2904
        %v3356 = vmul.f32 %v3340, %v2906
        %v3357 = vmul.f32 %v3341, %v2908
        %v3358 = vmul.f32 %v3342, %v2910
        %v3359 = vpack.c.bf16 %v3344, %v3343
        %v3360 = vpack.c.bf16 %v3346, %v3345
        %v3361 = vpack.c.bf16 %v3348, %v3347
        %v3362 = vpack.c.bf16 %v3350, %v3349
        %v3363 = vpack.c.bf16 %v3352, %v3351
        %v3364 = vpack.c.bf16 %v3354, %v3353
        %v3365 = vpack.c.bf16 %v3356, %v3355
        %v3366 = vpack.c.bf16 %v3358, %v3357
        %v3368 = vlaneseq
        %v3369 = vshrl.u32 %v3368, 7
        %v3370 = vsub.s32 0, %v3369
        %v3371 = vrot.slane %v829, %v3370
        %v3389 = vunpack.c.l.b16 %v813
        %v3390 = vunpack.c.l.b16 %v814
        %v3391 = vunpack.c.l.b16 %v815
        %v3392 = vunpack.c.l.b16 %v816
        %v3393 = vunpack.c.l.b16 %v817
        %v3394 = vunpack.c.l.b16 %v818
        %v3395 = vunpack.c.l.b16 %v819
        %v3396 = vunpack.c.l.b16 %v820
        %v3397 = vunpack.c.l.b16 %v821
        %v3398 = vunpack.c.l.b16 %v822
        %v3399 = vunpack.c.l.b16 %v823
        %v3400 = vunpack.c.l.b16 %v824
        %v3401 = vunpack.c.l.b16 %v825
        %v3402 = vunpack.c.l.b16 %v826
        %v3403 = vunpack.c.l.b16 %v827
        %v3404 = vunpack.c.l.b16 %v828
        %v3405 = vpack.c.b16 %v3390, %v3389
        %v3406 = vpack.c.b16 %v3392, %v3391
        %v3407 = vpack.c.b16 %v3394, %v3393
        %v3408 = vpack.c.b16 %v3396, %v3395
        %v3409 = vpack.c.b16 %v3398, %v3397
        %v3410 = vpack.c.b16 %v3400, %v3399
        %v3411 = vpack.c.b16 %v3402, %v3401
        %v3412 = vpack.c.b16 %v3404, %v3403
        %3421 = vmatprep.subr.bf16.mxu0 0
        %3422 = vmatpush1.bf16.msra.mxu0 %v3412
        %3423 = vmatprep.subr.bf16.mxu0 0
        %3424 = vmatpush1.bf16.msra.mxu0 %v3411
        %3425 = vmatprep.subr.bf16.mxu0 0
        %3426 = vmatpush1.bf16.msra.mxu0 %v3410
        %3427 = vmatprep.subr.bf16.mxu0 0
        %3428 = vmatpush1.bf16.msra.mxu0 %v3409
        %3429 = vmatprep.subr.bf16.mxu0 0
        %3430 = vmatpush1.bf16.msra.mxu0 %v3408
        %3431 = vmatprep.subr.bf16.mxu0 0
        %3432 = vmatpush1.bf16.msra.mxu0 %v3407
        %3433 = vmatprep.subr.bf16.mxu0 0
        %3434 = vmatpush1.bf16.msra.mxu0 %v3406
        %3435 = vmatprep.subr.bf16.mxu0 0
        %3436 = vmatpush1.bf16.msra.mxu0 %v3405
        %3437 = vmatprep.subr.bf16.mxu0 0
        %3438 = vmatpush2.bf16.msra.mxu0 0
        %3439 = vmatprep.subr.bf16.mxu0 0
        %3440 = vmatpush2.bf16.msra.mxu0 0
        %3441 = vmatprep.subr.bf16.mxu0 0
        %3442 = vmatpush2.bf16.msra.mxu0 0
        %3443 = vmatprep.subr.bf16.mxu0 0
        %3444 = vmatpush2.bf16.msra.mxu0 0
        %3445 = vmatprep.subr.bf16.mxu0 0
        %3446 = vmatpush2.bf16.msra.mxu0 0
        %3447 = vmatprep.subr.bf16.mxu0 0
        %3448 = vmatpush2.bf16.msra.mxu0 0
        %3449 = vmatprep.subr.bf16.mxu0 0
        %3450 = vmatpush2.bf16.msra.mxu0 0
        %3451 = vmatprep.subr.bf16.mxu0 0
        %3452 = vmatpush2.bf16.msra.mxu0 0
        %3453 = vmatprep.mubr.bf16.mxu0 0
        %3454 = vmatmul.mubr.bf16.gmra.mxu0 %v3359
        %v3455 = vpop.f32.mrf.mxu0
        %v3456 = vadd.f32 %v3371, %v3455
        %v3457 = vpop.f32.mrf.mxu0
        %v3458 = vpop.f32.mrf.mxu0
        %v3459 = vadd.f32 %v3371, %v3458
        %v3460 = vpop.f32.mrf.mxu0
        %3461 = vmatprep.mubr.bf16.mxu0 0
        %3462 = vmatmul.mubr.bf16.gmra.mxu0 %v3360
        %v3463 = vpop.f32.mrf.mxu0
        %v3464 = vadd.f32 %v3371, %v3463
        %v3465 = vpop.f32.mrf.mxu0
        %v3466 = vpop.f32.mrf.mxu0
        %v3467 = vadd.f32 %v3371, %v3466
        %v3468 = vpop.f32.mrf.mxu0
        %3469 = vmatprep.mubr.bf16.mxu0 0
        %3470 = vmatmul.mubr.bf16.gmra.mxu0 %v3361
        %v3471 = vpop.f32.mrf.mxu0
        %v3472 = vadd.f32 %v3371, %v3471
        %v3473 = vpop.f32.mrf.mxu0
        %v3474 = vpop.f32.mrf.mxu0
        %v3475 = vadd.f32 %v3371, %v3474
        %v3476 = vpop.f32.mrf.mxu0
        %3477 = vmatprep.mubr.bf16.mxu0 0
        %3478 = vmatmul.mubr.bf16.gmra.mxu0 %v3362
        %v3479 = vpop.f32.mrf.mxu0
        %v3480 = vadd.f32 %v3371, %v3479
        %v3481 = vpop.f32.mrf.mxu0
        %v3482 = vpop.f32.mrf.mxu0
        %v3483 = vadd.f32 %v3371, %v3482
        %v3484 = vpop.f32.mrf.mxu0
        %3485 = vmatprep.mubr.bf16.mxu0 0
        %3486 = vmatmul.mubr.bf16.gmra.mxu0 %v3363
        %v3487 = vpop.f32.mrf.mxu0
        %v3488 = vadd.f32 %v3371, %v3487
        %v3489 = vpop.f32.mrf.mxu0
        %v3490 = vpop.f32.mrf.mxu0
        %v3491 = vadd.f32 %v3371, %v3490
        %v3492 = vpop.f32.mrf.mxu0
        %3493 = vmatprep.mubr.bf16.mxu0 0
        %3494 = vmatmul.mubr.bf16.gmra.mxu0 %v3364
        %v3495 = vpop.f32.mrf.mxu0
        %v3496 = vadd.f32 %v3371, %v3495
        %v3497 = vpop.f32.mrf.mxu0
        %v3498 = vpop.f32.mrf.mxu0
        %v3499 = vadd.f32 %v3371, %v3498
        %v3500 = vpop.f32.mrf.mxu0
        %3501 = vmatprep.mubr.bf16.mxu0 0
        %3502 = vmatmul.mubr.bf16.gmra.mxu0 %v3365
        %v3503 = vpop.f32.mrf.mxu0
        %v3504 = vadd.f32 %v3371, %v3503
        %v3505 = vpop.f32.mrf.mxu0
        %v3506 = vpop.f32.mrf.mxu0
        %v3507 = vadd.f32 %v3371, %v3506
        %v3508 = vpop.f32.mrf.mxu0
        %3509 = vmatprep.mubr.bf16.mxu0 0
        %3510 = vmatmul.mubr.bf16.gmra.mxu0 %v3366
        %v3511 = vpop.f32.mrf.mxu0
        %v3512 = vadd.f32 %v3371, %v3511
        %v3513 = vpop.f32.mrf.mxu0
        %v3514 = vpop.f32.mrf.mxu0
        %v3515 = vadd.f32 %v3371, %v3514
        %v3516 = vpop.f32.mrf.mxu0
        %3517 = vdwg.mxu0
        %vm3518 = vcmask 523264
        %3519 = vst.msk [vmem:[%s217] sm:$0xff] %vm3518, %v3456
        %3520 = vst.msk [vmem:[%s217 + $0x8] sm:$0xff] %vm3518, %v3459
        %3521 = vst.msk [vmem:[%s217 + $0x10] sm:$0xff] %vm3518, %v3464
        %3522 = vst.msk [vmem:[%s217 + $0x18] sm:$0xff] %vm3518, %v3467
        %3523 = vst.msk [vmem:[%s217 + $0x20] sm:$0xff] %vm3518, %v3472
        %3524 = vst.msk [vmem:[%s217 + $0x28] sm:$0xff] %vm3518, %v3475
        %3525 = vst.msk [vmem:[%s217 + $0x30] sm:$0xff] %vm3518, %v3480
        %3526 = vst.msk [vmem:[%s217 + $0x38] sm:$0xff] %vm3518, %v3483
        %3527 = vst.msk [vmem:[%s217 + $0x40] sm:$0xff] %vm3518, %v3488
        %3528 = vst.msk [vmem:[%s217 + $0x48] sm:$0xff] %vm3518, %v3491
        %3529 = vst.msk [vmem:[%s217 + $0x50] sm:$0xff] %vm3518, %v3496
        %3530 = vst.msk [vmem:[%s217 + $0x58] sm:$0xff] %vm3518, %v3499
        %3531 = vst.msk [vmem:[%s217 + $0x60] sm:$0xff] %vm3518, %v3504
        %3532 = vst.msk [vmem:[%s217 + $0x68] sm:$0xff] %vm3518, %v3507
        %3533 = vst.msk [vmem:[%s217 + $0x70] sm:$0xff] %vm3518, %v3512
        %3534 = vst.msk [vmem:[%s217 + $0x78] sm:$0xff] %vm3518, %v3515
        %v3535 = vld [vmem:[%s1] ss:$8 sm:$0x3]
        %v3536 = vld [vmem:[%s565] sm:$0xff]
        %v3537 = vld [vmem:[%s565 + $0x8] sm:$0xff]
        %v3538 = vld [vmem:[%s565 + $0x10] sm:$0xff]
        %v3539 = vld [vmem:[%s565 + $0x18] sm:$0xff]
        %v3540 = vld [vmem:[%s565 + $0x30] sm:$0xff]
        %v3541 = vld [vmem:[%s565 + $0x38] sm:$0xff]
        %v3542 = vld [vmem:[%s565 + $0x40] sm:$0xff]
        %v3543 = vld [vmem:[%s565 + $0x48] sm:$0xff]
        %v3544 = vld [vmem:[%s565 + $0x60] sm:$0xff]
        %v3545 = vld [vmem:[%s565 + $0x68] sm:$0xff]
        %v3546 = vld [vmem:[%s565 + $0x70] sm:$0xff]
        %v3547 = vld [vmem:[%s565 + $0x78] sm:$0xff]
        %v3548 = vld [vmem:[%s565 + $0x90] sm:$0xff]
        %v3549 = vld [vmem:[%s565 + $0x98] sm:$0xff]
        %v3550 = vld [vmem:[%s565 + $0xa0] sm:$0xff]
        %v3551 = vld [vmem:[%s565 + $0xa8] sm:$0xff]
        %v3552 = vld [vmem:[%s565 + $0xc0] sm:$0xff]
        %v3553 = vld [vmem:[%s565 + $0xc8] sm:$0xff]
        %v3554 = vld [vmem:[%s565 + $0xd0] sm:$0xff]
        %v3555 = vld [vmem:[%s565 + $0xd8] sm:$0xff]
        %v3556 = vld [vmem:[%s565 + $0xf0] sm:$0xff]
        %v3557 = vld [vmem:[%s565 + $0xf8] sm:$0xff]
        %v3558 = vld [vmem:[%s565 + $0x100] sm:$0xff]
        %v3559 = vld [vmem:[%s565 + $0x108] sm:$0xff]
        %v3560 = vld [vmem:[%s565 + $0x120] sm:$0xff]
        %v3561 = vld [vmem:[%s565 + $0x128] sm:$0xff]
        %v3562 = vld [vmem:[%s565 + $0x130] sm:$0xff]
        %v3563 = vld [vmem:[%s565 + $0x138] sm:$0xff]
        %v3564 = vld [vmem:[%s565 + $0x150] sm:$0xff]
        %v3565 = vld [vmem:[%s565 + $0x158] sm:$0xff]
        %v3566 = vld [vmem:[%s565 + $0x160] sm:$0xff]
        %v3567 = vld [vmem:[%s565 + $0x168] sm:$0xff]
        %v3569 = vlaneseq
        %v3570 = vshrl.u32 %v3569, 7
        %v3571 = vsub.s32 0, %v3570
        %v3572 = vrot.slane %v3535, %v3571
        %v3573 = vlaneseq
        %v3574 = vshrl.u32 %v3573, 7
        %v3575 = vsub.s32 1, %v3574
        %v3576 = vrot.slane %v3535, %v3575
        %v3579 = vmul.f32 %v3536, %v3572
        %v3580 = vmul.f32 %v3537, %v3576
        %v3581 = vmul.f32 %v3538, %v3572
        %v3582 = vmul.f32 %v3539, %v3576
        %v3583 = vmul.f32 %v3540, %v3572
        %v3584 = vmul.f32 %v3541, %v3576
        %v3585 = vmul.f32 %v3542, %v3572
        %v3586 = vmul.f32 %v3543, %v3576
        %v3587 = vmul.f32 %v3544, %v3572
        %v3588 = vmul.f32 %v3545, %v3576
        %v3589 = vmul.f32 %v3546, %v3572
        %v3590 = vmul.f32 %v3547, %v3576
        %v3591 = vmul.f32 %v3548, %v3572
        %v3592 = vmul.f32 %v3549, %v3576
        %v3593 = vmul.f32 %v3550, %v3572
        %v3594 = vmul.f32 %v3551, %v3576
        %v3595 = vmul.f32 %v3552, %v3572
        %v3596 = vmul.f32 %v3553, %v3576
        %v3597 = vmul.f32 %v3554, %v3572
        %v3598 = vmul.f32 %v3555, %v3576
        %v3599 = vmul.f32 %v3556, %v3572
        %v3600 = vmul.f32 %v3557, %v3576
        %v3601 = vmul.f32 %v3558, %v3572
        %v3602 = vmul.f32 %v3559, %v3576
        %v3603 = vmul.f32 %v3560, %v3572
        %v3604 = vmul.f32 %v3561, %v3576
        %v3605 = vmul.f32 %v3562, %v3572
        %v3606 = vmul.f32 %v3563, %v3576
        %v3607 = vmul.f32 %v3564, %v3572
        %v3608 = vmul.f32 %v3565, %v3576
        %v3609 = vmul.f32 %v3566, %v3572
        %v3610 = vmul.f32 %v3567, %v3576
        %v3611 = vadd.f32 %v3579, 0.0
        %v3612 = vadd.f32 %v3580, 0.0
        %v3613 = vadd.f32 %v3581, 0.0
        %v3614 = vadd.f32 %v3582, 0.0
        %v3615 = vadd.f32 %v3583, 0.0
        %v3616 = vadd.f32 %v3584, 0.0
        %v3617 = vadd.f32 %v3585, 0.0
        %v3618 = vadd.f32 %v3586, 0.0
        %v3619 = vadd.f32 %v3587, 0.0
        %v3620 = vadd.f32 %v3588, 0.0
        %v3621 = vadd.f32 %v3589, 0.0
        %v3622 = vadd.f32 %v3590, 0.0
        %v3623 = vadd.f32 %v3591, 0.0
        %v3624 = vadd.f32 %v3592, 0.0
        %v3625 = vadd.f32 %v3593, 0.0
        %v3626 = vadd.f32 %v3594, 0.0
        %v3627 = vadd.f32 %v3595, 0.0
        %v3628 = vadd.f32 %v3596, 0.0
        %v3629 = vadd.f32 %v3597, 0.0
        %v3630 = vadd.f32 %v3598, 0.0
        %v3631 = vadd.f32 %v3599, 0.0
        %v3632 = vadd.f32 %v3600, 0.0
        %v3633 = vadd.f32 %v3601, 0.0
        %v3634 = vadd.f32 %v3602, 0.0
        %v3635 = vadd.f32 %v3603, 0.0
        %v3636 = vadd.f32 %v3604, 0.0
        %v3637 = vadd.f32 %v3605, 0.0
        %v3638 = vadd.f32 %v3606, 0.0
        %v3639 = vadd.f32 %v3607, 0.0
        %v3640 = vadd.f32 %v3608, 0.0
        %v3641 = vadd.f32 %v3609, 0.0
        %v3642 = vadd.f32 %v3610, 0.0
        %v3643 = vld [vmem:[%s938] ss:$8 sm:$0x3]
        %v3644 = vld [vmem:[%s565] sm:$0xfe]
        %v3645 = vld [vmem:[%s565 + $0x8] sm:$0xfe]
        %v3646 = vld [vmem:[%s565 + $0x20] sm:$0x1]
        %v3647 = vld [vmem:[%s565 + $0x28] sm:$0x1]
        %v3648 = vld [vmem:[%s565 + $0x30] sm:$0xfe]
        %v3649 = vld [vmem:[%s565 + $0x38] sm:$0xfe]
        %v3650 = vld [vmem:[%s565 + $0x50] sm:$0x1]
        %v3651 = vld [vmem:[%s565 + $0x58] sm:$0x1]
        %v3652 = vld [vmem:[%s565 + $0x60] sm:$0xfe]
        %v3653 = vld [vmem:[%s565 + $0x68] sm:$0xfe]
        %v3654 = vld [vmem:[%s565 + $0x80] sm:$0x1]
        %v3655 = vld [vmem:[%s565 + $0x88] sm:$0x1]
        %v3656 = vld [vmem:[%s565 + $0x90] sm:$0xfe]
        %v3657 = vld [vmem:[%s565 + $0x98] sm:$0xfe]
        %v3658 = vld [vmem:[%s565 + $0xb0] sm:$0x1]
        %v3659 = vld [vmem:[%s565 + $0xb8] sm:$0x1]
        %v3660 = vld [vmem:[%s565 + $0xc0] sm:$0xfe]
        %v3661 = vld [vmem:[%s565 + $0xc8] sm:$0xfe]
        %v3662 = vld [vmem:[%s565 + $0xe0] sm:$0x1]
        %v3663 = vld [vmem:[%s565 + $0xe8] sm:$0x1]
        %v3664 = vld [vmem:[%s565 + $0xf0] sm:$0xfe]
        %v3665 = vld [vmem:[%s565 + $0xf8] sm:$0xfe]
        %v3666 = vld [vmem:[%s565 + $0x110] sm:$0x1]
        %v3667 = vld [vmem:[%s565 + $0x118] sm:$0x1]
        %v3668 = vld [vmem:[%s565 + $0x120] sm:$0xfe]
        %v3669 = vld [vmem:[%s565 + $0x128] sm:$0xfe]
        %v3670 = vld [vmem:[%s565 + $0x140] sm:$0x1]
        %v3671 = vld [vmem:[%s565 + $0x148] sm:$0x1]
        %v3672 = vld [vmem:[%s565 + $0x150] sm:$0xfe]
        %v3673 = vld [vmem:[%s565 + $0x158] sm:$0xfe]
        %v3674 = vld [vmem:[%s565 + $0x170] sm:$0x1]
        %v3675 = vld [vmem:[%s565 + $0x178] sm:$0x1]
        %v3677 = vlaneseq
        %v3678 = vshrl.u32 %v3677, 7
        %v3679 = vsub.s32 0, %v3678
        %v3680 = vrot.slane %v3643, %v3679
        %v3681 = vlaneseq
        %v3682 = vshrl.u32 %v3681, 7
        %v3683 = vsub.s32 1, %v3682
        %v3684 = vrot.slane %v3643, %v3683
        %v3687 = vmul.f32 %v3644, %v3680
        %v3688 = vmul.f32 %v3645, %v3684
        %v3689 = vmul.f32 %v3538, %v3680
        %v3690 = vmul.f32 %v3539, %v3684
        %v3691 = vmul.f32 %v3646, %v3680
        %v3692 = vmul.f32 %v3647, %v3684
        %v3693 = vmul.f32 %v3648, %v3680
        %v3694 = vmul.f32 %v3649, %v3684
        %v3695 = vmul.f32 %v3542, %v3680
        %v3696 = vmul.f32 %v3543, %v3684
        %v3697 = vmul.f32 %v3650, %v3680
        %v3698 = vmul.f32 %v3651, %v3684
        %v3699 = vmul.f32 %v3652, %v3680
        %v3700 = vmul.f32 %v3653, %v3684
        %v3701 = vmul.f32 %v3546, %v3680
        %v3702 = vmul.f32 %v3547, %v3684
        %v3703 = vmul.f32 %v3654, %v3680
        %v3704 = vmul.f32 %v3655, %v3684
        %v3705 = vmul.f32 %v3656, %v3680
        %v3706 = vmul.f32 %v3657, %v3684
        %v3707 = vmul.f32 %v3550, %v3680
        %v3708 = vmul.f32 %v3551, %v3684
        %v3709 = vmul.f32 %v3658, %v3680
        %v3710 = vmul.f32 %v3659, %v3684
        %v3711 = vmul.f32 %v3660, %v3680
        %v3712 = vmul.f32 %v3661, %v3684
        %v3713 = vmul.f32 %v3554, %v3680
        %v3714 = vmul.f32 %v3555, %v3684
        %v3715 = vmul.f32 %v3662, %v3680
        %v3716 = vmul.f32 %v3663, %v3684
        %v3717 = vmul.f32 %v3664, %v3680
        %v3718 = vmul.f32 %v3665, %v3684
        %v3719 = vmul.f32 %v3558, %v3680
        %v3720 = vmul.f32 %v3559, %v3684
        %v3721 = vmul.f32 %v3666, %v3680
        %v3722 = vmul.f32 %v3667, %v3684
        %v3723 = vmul.f32 %v3668, %v3680
        %v3724 = vmul.f32 %v3669, %v3684
        %v3725 = vmul.f32 %v3562, %v3680
        %v3726 = vmul.f32 %v3563, %v3684
        %v3727 = vmul.f32 %v3670, %v3680
        %v3728 = vmul.f32 %v3671, %v3684
        %v3729 = vmul.f32 %v3672, %v3680
        %v3730 = vmul.f32 %v3673, %v3684
        %v3731 = vmul.f32 %v3566, %v3680
        %v3732 = vmul.f32 %v3567, %v3684
        %v3733 = vmul.f32 %v3674, %v3680
        %v3734 = vmul.f32 %v3675, %v3684
        %v3783 = vrot.slane %v3687, 1
        %v3784 = vrot.slane %v3689, 1
        %v3785 = vsel %vm1079, %v3783, %v3784
        %v3786 = vrot.slane %v3688, 1
        %v3787 = vrot.slane %v3690, 1
        %v3788 = vsel %vm1079, %v3786, %v3787
        %v3789 = vrot.slane %v3691, 1
        %v3790 = vsel %vm1079, %v3784, %v3789
        %v3791 = vrot.slane %v3692, 1
        %v3792 = vsel %vm1079, %v3787, %v3791
        %v3793 = vrot.slane %v3693, 1
        %v3794 = vrot.slane %v3695, 1
        %v3795 = vsel %vm1079, %v3793, %v3794
        %v3796 = vrot.slane %v3694, 1
        %v3797 = vrot.slane %v3696, 1
        %v3798 = vsel %vm1079, %v3796, %v3797
        %v3799 = vrot.slane %v3697, 1
        %v3800 = vsel %vm1079, %v3794, %v3799
        %v3801 = vrot.slane %v3698, 1
        %v3802 = vsel %vm1079, %v3797, %v3801
        %v3803 = vrot.slane %v3699, 1
        %v3804 = vrot.slane %v3701, 1
        %v3805 = vsel %vm1079, %v3803, %v3804
        %v3806 = vrot.slane %v3700, 1
        %v3807 = vrot.slane %v3702, 1
        %v3808 = vsel %vm1079, %v3806, %v3807
        %v3809 = vrot.slane %v3703, 1
        %v3810 = vsel %vm1079, %v3804, %v3809
        %v3811 = vrot.slane %v3704, 1
        %v3812 = vsel %vm1079, %v3807, %v3811
        %v3813 = vrot.slane %v3705, 1
        %v3814 = vrot.slane %v3707, 1
        %v3815 = vsel %vm1079, %v3813, %v3814
        %v3816 = vrot.slane %v3706, 1
        %v3817 = vrot.slane %v3708, 1
        %v3818 = vsel %vm1079, %v3816, %v3817
        %v3819 = vrot.slane %v3709, 1
        %v3820 = vsel %vm1079, %v3814, %v3819
        %v3821 = vrot.slane %v3710, 1
        %v3822 = vsel %vm1079, %v3817, %v3821
        %v3823 = vrot.slane %v3711, 1
        %v3824 = vrot.slane %v3713, 1
        %v3825 = vsel %vm1079, %v3823, %v3824
        %v3826 = vrot.slane %v3712, 1
        %v3827 = vrot.slane %v3714, 1
        %v3828 = vsel %vm1079, %v3826, %v3827
        %v3829 = vrot.slane %v3715, 1
        %v3830 = vsel %vm1079, %v3824, %v3829
        %v3831 = vrot.slane %v3716, 1
        %v3832 = vsel %vm1079, %v3827, %v3831
        %v3833 = vrot.slane %v3717, 1
        %v3834 = vrot.slane %v3719, 1
        %v3835 = vsel %vm1079, %v3833, %v3834
        %v3836 = vrot.slane %v3718, 1
        %v3837 = vrot.slane %v3720, 1
        %v3838 = vsel %vm1079, %v3836, %v3837
        %v3839 = vrot.slane %v3721, 1
        %v3840 = vsel %vm1079, %v3834, %v3839
        %v3841 = vrot.slane %v3722, 1
        %v3842 = vsel %vm1079, %v3837, %v3841
        %v3843 = vrot.slane %v3723, 1
        %v3844 = vrot.slane %v3725, 1
        %v3845 = vsel %vm1079, %v3843, %v3844
        %v3846 = vrot.slane %v3724, 1
        %v3847 = vrot.slane %v3726, 1
        %v3848 = vsel %vm1079, %v3846, %v3847
        %v3849 = vrot.slane %v3727, 1
        %v3850 = vsel %vm1079, %v3844, %v3849
        %v3851 = vrot.slane %v3728, 1
        %v3852 = vsel %vm1079, %v3847, %v3851
        %v3853 = vrot.slane %v3729, 1
        %v3854 = vrot.slane %v3731, 1
        %v3855 = vsel %vm1079, %v3853, %v3854
        %v3856 = vrot.slane %v3730, 1
        %v3857 = vrot.slane %v3732, 1
        %v3858 = vsel %vm1079, %v3856, %v3857
        %v3859 = vrot.slane %v3733, 1
        %v3860 = vsel %vm1079, %v3854, %v3859
        %v3861 = vrot.slane %v3734, 1
        %v3862 = vsel %vm1079, %v3857, %v3861
        %v3895 = vadd.f32 %v3611, %v3785
        %v3896 = vadd.f32 %v3612, %v3788
        %v3897 = vadd.f32 %v3613, %v3790
        %v3898 = vadd.f32 %v3614, %v3792
        %v3899 = vadd.f32 %v3615, %v3795
        %v3900 = vadd.f32 %v3616, %v3798
        %v3901 = vadd.f32 %v3617, %v3800
        %v3902 = vadd.f32 %v3618, %v3802
        %v3903 = vadd.f32 %v3619, %v3805
        %v3904 = vadd.f32 %v3620, %v3808
        %v3905 = vadd.f32 %v3621, %v3810
        %v3906 = vadd.f32 %v3622, %v3812
        %v3907 = vadd.f32 %v3623, %v3815
        %v3908 = vadd.f32 %v3624, %v3818
        %v3909 = vadd.f32 %v3625, %v3820
        %v3910 = vadd.f32 %v3626, %v3822
        %v3911 = vadd.f32 %v3627, %v3825
        %v3912 = vadd.f32 %v3628, %v3828
        %v3913 = vadd.f32 %v3629, %v3830
        %v3914 = vadd.f32 %v3630, %v3832
        %v3915 = vadd.f32 %v3631, %v3835
        %v3916 = vadd.f32 %v3632, %v3838
        %v3917 = vadd.f32 %v3633, %v3840
        %v3918 = vadd.f32 %v3634, %v3842
        %v3919 = vadd.f32 %v3635, %v3845
        %v3920 = vadd.f32 %v3636, %v3848
        %v3921 = vadd.f32 %v3637, %v3850
        %v3922 = vadd.f32 %v3638, %v3852
        %v3923 = vadd.f32 %v3639, %v3855
        %v3924 = vadd.f32 %v3640, %v3858
        %v3925 = vadd.f32 %v3641, %v3860
        %v3926 = vadd.f32 %v3642, %v3862
        %v3927 = vld [vmem:[%s1224] ss:$8 sm:$0x3]
        %v3928 = vld [vmem:[%s565] sm:$0xfc]
        %v3929 = vld [vmem:[%s565 + $0x8] sm:$0xfc]
        %v3930 = vld [vmem:[%s565 + $0x20] sm:$0x3]
        %v3931 = vld [vmem:[%s565 + $0x28] sm:$0x3]
        %v3932 = vld [vmem:[%s565 + $0x30] sm:$0xfc]
        %v3933 = vld [vmem:[%s565 + $0x38] sm:$0xfc]
        %v3934 = vld [vmem:[%s565 + $0x50] sm:$0x3]
        %v3935 = vld [vmem:[%s565 + $0x58] sm:$0x3]
        %v3936 = vld [vmem:[%s565 + $0x60] sm:$0xfc]
        %v3937 = vld [vmem:[%s565 + $0x68] sm:$0xfc]
        %v3938 = vld [vmem:[%s565 + $0x80] sm:$0x3]
        %v3939 = vld [vmem:[%s565 + $0x88] sm:$0x3]
        %v3940 = vld [vmem:[%s565 + $0x90] sm:$0xfc]
        %v3941 = vld [vmem:[%s565 + $0x98] sm:$0xfc]
        %v3942 = vld [vmem:[%s565 + $0xb0] sm:$0x3]
        %v3943 = vld [vmem:[%s565 + $0xb8] sm:$0x3]
        %v3944 = vld [vmem:[%s565 + $0xc0] sm:$0xfc]
        %v3945 = vld [vmem:[%s565 + $0xc8] sm:$0xfc]
        %v3946 = vld [vmem:[%s565 + $0xe0] sm:$0x3]
        %v3947 = vld [vmem:[%s565 + $0xe8] sm:$0x3]
        %v3948 = vld [vmem:[%s565 + $0xf0] sm:$0xfc]
        %v3949 = vld [vmem:[%s565 + $0xf8] sm:$0xfc]
        %v3950 = vld [vmem:[%s565 + $0x110] sm:$0x3]
        %v3951 = vld [vmem:[%s565 + $0x118] sm:$0x3]
        %v3952 = vld [vmem:[%s565 + $0x120] sm:$0xfc]
        %v3953 = vld [vmem:[%s565 + $0x128] sm:$0xfc]
        %v3954 = vld [vmem:[%s565 + $0x140] sm:$0x3]
        %v3955 = vld [vmem:[%s565 + $0x148] sm:$0x3]
        %v3956 = vld [vmem:[%s565 + $0x150] sm:$0xfc]
        %v3957 = vld [vmem:[%s565 + $0x158] sm:$0xfc]
        %v3958 = vld [vmem:[%s565 + $0x170] sm:$0x3]
        %v3959 = vld [vmem:[%s565 + $0x178] sm:$0x3]
        %v3961 = vlaneseq
        %v3962 = vshrl.u32 %v3961, 7
        %v3963 = vsub.s32 0, %v3962
        %v3964 = vrot.slane %v3927, %v3963
        %v3965 = vlaneseq
        %v3966 = vshrl.u32 %v3965, 7
        %v3967 = vsub.s32 1, %v3966
        %v3968 = vrot.slane %v3927, %v3967
        %v3971 = vmul.f32 %v3928, %v3964
        %v3972 = vmul.f32 %v3929, %v3968
        %v3973 = vmul.f32 %v3538, %v3964
        %v3974 = vmul.f32 %v3539, %v3968
        %v3975 = vmul.f32 %v3930, %v3964
        %v3976 = vmul.f32 %v3931, %v3968
        %v3977 = vmul.f32 %v3932, %v3964
        %v3978 = vmul.f32 %v3933, %v3968
        %v3979 = vmul.f32 %v3542, %v3964
        %v3980 = vmul.f32 %v3543, %v3968
        %v3981 = vmul.f32 %v3934, %v3964
        %v3982 = vmul.f32 %v3935, %v3968
        %v3983 = vmul.f32 %v3936, %v3964
        %v3984 = vmul.f32 %v3937, %v3968
        %v3985 = vmul.f32 %v3546, %v3964
        %v3986 = vmul.f32 %v3547, %v3968
        %v3987 = vmul.f32 %v3938, %v3964
        %v3988 = vmul.f32 %v3939, %v3968
        %v3989 = vmul.f32 %v3940, %v3964
        %v3990 = vmul.f32 %v3941, %v3968
        %v3991 = vmul.f32 %v3550, %v3964
        %v3992 = vmul.f32 %v3551, %v3968
        %v3993 = vmul.f32 %v3942, %v3964
        %v3994 = vmul.f32 %v3943, %v3968
        %v3995 = vmul.f32 %v3944, %v3964
        %v3996 = vmul.f32 %v3945, %v3968
        %v3997 = vmul.f32 %v3554, %v3964
        %v3998 = vmul.f32 %v3555, %v3968
        %v3999 = vmul.f32 %v3946, %v3964
        %v4000 = vmul.f32 %v3947, %v3968
        %v4001 = vmul.f32 %v3948, %v3964
        %v4002 = vmul.f32 %v3949, %v3968
        %v4003 = vmul.f32 %v3558, %v3964
        %v4004 = vmul.f32 %v3559, %v3968
        %v4005 = vmul.f32 %v3950, %v3964
        %v4006 = vmul.f32 %v3951, %v3968
        %v4007 = vmul.f32 %v3952, %v3964
        %v4008 = vmul.f32 %v3953, %v3968
        %v4009 = vmul.f32 %v3562, %v3964
        %v4010 = vmul.f32 %v3563, %v3968
        %v4011 = vmul.f32 %v3954, %v3964
        %v4012 = vmul.f32 %v3955, %v3968
        %v4013 = vmul.f32 %v3956, %v3964
        %v4014 = vmul.f32 %v3957, %v3968
        %v4015 = vmul.f32 %v3566, %v3964
        %v4016 = vmul.f32 %v3567, %v3968
        %v4017 = vmul.f32 %v3958, %v3964
        %v4018 = vmul.f32 %v3959, %v3968
        %v4067 = vrot.slane %v3971, 2
        %v4068 = vrot.slane %v3973, 2
        %v4069 = vsel %vm1365, %v4067, %v4068
        %v4070 = vrot.slane %v3972, 2
        %v4071 = vrot.slane %v3974, 2
        %v4072 = vsel %vm1365, %v4070, %v4071
        %v4073 = vrot.slane %v3975, 2
        %v4074 = vsel %vm1365, %v4068, %v4073
        %v4075 = vrot.slane %v3976, 2
        %v4076 = vsel %vm1365, %v4071, %v4075
        %v4077 = vrot.slane %v3977, 2
        %v4078 = vrot.slane %v3979, 2
        %v4079 = vsel %vm1365, %v4077, %v4078
        %v4080 = vrot.slane %v3978, 2
        %v4081 = vrot.slane %v3980, 2
        %v4082 = vsel %vm1365, %v4080, %v4081
        %v4083 = vrot.slane %v3981, 2
        %v4084 = vsel %vm1365, %v4078, %v4083
        %v4085 = vrot.slane %v3982, 2
        %v4086 = vsel %vm1365, %v4081, %v4085
        %v4087 = vrot.slane %v3983, 2
        %v4088 = vrot.slane %v3985, 2
        %v4089 = vsel %vm1365, %v4087, %v4088
        %v4090 = vrot.slane %v3984, 2
        %v4091 = vrot.slane %v3986, 2
        %v4092 = vsel %vm1365, %v4090, %v4091
        %v4093 = vrot.slane %v3987, 2
        %v4094 = vsel %vm1365, %v4088, %v4093
        %v4095 = vrot.slane %v3988, 2
        %v4096 = vsel %vm1365, %v4091, %v4095
        %v4097 = vrot.slane %v3989, 2
        %v4098 = vrot.slane %v3991, 2
        %v4099 = vsel %vm1365, %v4097, %v4098
        %v4100 = vrot.slane %v3990, 2
        %v4101 = vrot.slane %v3992, 2
        %v4102 = vsel %vm1365, %v4100, %v4101
        %v4103 = vrot.slane %v3993, 2
        %v4104 = vsel %vm1365, %v4098, %v4103
        %v4105 = vrot.slane %v3994, 2
        %v4106 = vsel %vm1365, %v4101, %v4105
        %v4107 = vrot.slane %v3995, 2
        %v4108 = vrot.slane %v3997, 2
        %v4109 = vsel %vm1365, %v4107, %v4108
        %v4110 = vrot.slane %v3996, 2
        %v4111 = vrot.slane %v3998, 2
        %v4112 = vsel %vm1365, %v4110, %v4111
        %v4113 = vrot.slane %v3999, 2
        %v4114 = vsel %vm1365, %v4108, %v4113
        %v4115 = vrot.slane %v4000, 2
        %v4116 = vsel %vm1365, %v4111, %v4115
        %v4117 = vrot.slane %v4001, 2
        %v4118 = vrot.slane %v4003, 2
        %v4119 = vsel %vm1365, %v4117, %v4118
        %v4120 = vrot.slane %v4002, 2
        %v4121 = vrot.slane %v4004, 2
        %v4122 = vsel %vm1365, %v4120, %v4121
        %v4123 = vrot.slane %v4005, 2
        %v4124 = vsel %vm1365, %v4118, %v4123
        %v4125 = vrot.slane %v4006, 2
        %v4126 = vsel %vm1365, %v4121, %v4125
        %v4127 = vrot.slane %v4007, 2
        %v4128 = vrot.slane %v4009, 2
        %v4129 = vsel %vm1365, %v4127, %v4128
        %v4130 = vrot.slane %v4008, 2
        %v4131 = vrot.slane %v4010, 2
        %v4132 = vsel %vm1365, %v4130, %v4131
        %v4133 = vrot.slane %v4011, 2
        %v4134 = vsel %vm1365, %v4128, %v4133
        %v4135 = vrot.slane %v4012, 2
        %v4136 = vsel %vm1365, %v4131, %v4135
        %v4137 = vrot.slane %v4013, 2
        %v4138 = vrot.slane %v4015, 2
        %v4139 = vsel %vm1365, %v4137, %v4138
        %v4140 = vrot.slane %v4014, 2
        %v4141 = vrot.slane %v4016, 2
        %v4142 = vsel %vm1365, %v4140, %v4141
        %v4143 = vrot.slane %v4017, 2
        %v4144 = vsel %vm1365, %v4138, %v4143
        %v4145 = vrot.slane %v4018, 2
        %v4146 = vsel %vm1365, %v4141, %v4145
        %v4179 = vadd.f32 %v3895, %v4069
        %v4180 = vadd.f32 %v3896, %v4072
        %v4181 = vadd.f32 %v3897, %v4074
        %v4182 = vadd.f32 %v3898, %v4076
        %v4183 = vadd.f32 %v3899, %v4079
        %v4184 = vadd.f32 %v3900, %v4082
        %v4185 = vadd.f32 %v3901, %v4084
        %v4186 = vadd.f32 %v3902, %v4086
        %v4187 = vadd.f32 %v3903, %v4089
        %v4188 = vadd.f32 %v3904, %v4092
        %v4189 = vadd.f32 %v3905, %v4094
        %v4190 = vadd.f32 %v3906, %v4096
        %v4191 = vadd.f32 %v3907, %v4099
        %v4192 = vadd.f32 %v3908, %v4102
        %v4193 = vadd.f32 %v3909, %v4104
        %v4194 = vadd.f32 %v3910, %v4106
        %v4195 = vadd.f32 %v3911, %v4109
        %v4196 = vadd.f32 %v3912, %v4112
        %v4197 = vadd.f32 %v3913, %v4114
        %v4198 = vadd.f32 %v3914, %v4116
        %v4199 = vadd.f32 %v3915, %v4119
        %v4200 = vadd.f32 %v3916, %v4122
        %v4201 = vadd.f32 %v3917, %v4124
        %v4202 = vadd.f32 %v3918, %v4126
        %v4203 = vadd.f32 %v3919, %v4129
        %v4204 = vadd.f32 %v3920, %v4132
        %v4205 = vadd.f32 %v3921, %v4134
        %v4206 = vadd.f32 %v3922, %v4136
        %v4207 = vadd.f32 %v3923, %v4139
        %v4208 = vadd.f32 %v3924, %v4142
        %v4209 = vadd.f32 %v3925, %v4144
        %v4210 = vadd.f32 %v3926, %v4146
        %v4211 = vld [vmem:[%s1510] ss:$8 sm:$0x3]
        %v4212 = vld [vmem:[%s595] sm:$0xff]
        %v4213 = vld [vmem:[%s595 + $0x8] sm:$0xff]
        %v4214 = vld [vmem:[%s595 + $0x10] sm:$0xff]
        %v4215 = vld [vmem:[%s595 + $0x18] sm:$0xff]
        %v4216 = vld [vmem:[%s595 + $0x30] sm:$0xff]
        %v4217 = vld [vmem:[%s595 + $0x38] sm:$0xff]
        %v4218 = vld [vmem:[%s595 + $0x40] sm:$0xff]
        %v4219 = vld [vmem:[%s595 + $0x48] sm:$0xff]
        %v4220 = vld [vmem:[%s595 + $0x60] sm:$0xff]
        %v4221 = vld [vmem:[%s595 + $0x68] sm:$0xff]
        %v4222 = vld [vmem:[%s595 + $0x70] sm:$0xff]
        %v4223 = vld [vmem:[%s595 + $0x78] sm:$0xff]
        %v4224 = vld [vmem:[%s595 + $0x90] sm:$0xff]
        %v4225 = vld [vmem:[%s595 + $0x98] sm:$0xff]
        %v4226 = vld [vmem:[%s595 + $0xa0] sm:$0xff]
        %v4227 = vld [vmem:[%s595 + $0xa8] sm:$0xff]
        %v4228 = vld [vmem:[%s595 + $0xc0] sm:$0xff]
        %v4229 = vld [vmem:[%s595 + $0xc8] sm:$0xff]
        %v4230 = vld [vmem:[%s595 + $0xd0] sm:$0xff]
        %v4231 = vld [vmem:[%s595 + $0xd8] sm:$0xff]
        %v4232 = vld [vmem:[%s595 + $0xf0] sm:$0xff]
        %v4233 = vld [vmem:[%s595 + $0xf8] sm:$0xff]
        %v4234 = vld [vmem:[%s595 + $0x100] sm:$0xff]
        %v4235 = vld [vmem:[%s595 + $0x108] sm:$0xff]
        %v4236 = vld [vmem:[%s595 + $0x120] sm:$0xff]
        %v4237 = vld [vmem:[%s595 + $0x128] sm:$0xff]
        %v4238 = vld [vmem:[%s595 + $0x130] sm:$0xff]
        %v4239 = vld [vmem:[%s595 + $0x138] sm:$0xff]
        %v4240 = vld [vmem:[%s595 + $0x150] sm:$0xff]
        %v4241 = vld [vmem:[%s595 + $0x158] sm:$0xff]
        %v4242 = vld [vmem:[%s595 + $0x160] sm:$0xff]
        %v4243 = vld [vmem:[%s595 + $0x168] sm:$0xff]
        %v4245 = vlaneseq
        %v4246 = vshrl.u32 %v4245, 7
        %v4247 = vsub.s32 0, %v4246
        %v4248 = vrot.slane %v4211, %v4247
        %v4249 = vlaneseq
        %v4250 = vshrl.u32 %v4249, 7
        %v4251 = vsub.s32 1, %v4250
        %v4252 = vrot.slane %v4211, %v4251
        %v4255 = vmul.f32 %v4212, %v4248
        %v4256 = vmul.f32 %v4213, %v4252
        %v4257 = vmul.f32 %v4214, %v4248
        %v4258 = vmul.f32 %v4215, %v4252
        %v4259 = vmul.f32 %v4216, %v4248
        %v4260 = vmul.f32 %v4217, %v4252
        %v4261 = vmul.f32 %v4218, %v4248
        %v4262 = vmul.f32 %v4219, %v4252
        %v4263 = vmul.f32 %v4220, %v4248
        %v4264 = vmul.f32 %v4221, %v4252
        %v4265 = vmul.f32 %v4222, %v4248
        %v4266 = vmul.f32 %v4223, %v4252
        %v4267 = vmul.f32 %v4224, %v4248
        %v4268 = vmul.f32 %v4225, %v4252
        %v4269 = vmul.f32 %v4226, %v4248
        %v4270 = vmul.f32 %v4227, %v4252
        %v4271 = vmul.f32 %v4228, %v4248
        %v4272 = vmul.f32 %v4229, %v4252
        %v4273 = vmul.f32 %v4230, %v4248
        %v4274 = vmul.f32 %v4231, %v4252
        %v4275 = vmul.f32 %v4232, %v4248
        %v4276 = vmul.f32 %v4233, %v4252
        %v4277 = vmul.f32 %v4234, %v4248
        %v4278 = vmul.f32 %v4235, %v4252
        %v4279 = vmul.f32 %v4236, %v4248
        %v4280 = vmul.f32 %v4237, %v4252
        %v4281 = vmul.f32 %v4238, %v4248
        %v4282 = vmul.f32 %v4239, %v4252
        %v4283 = vmul.f32 %v4240, %v4248
        %v4284 = vmul.f32 %v4241, %v4252
        %v4285 = vmul.f32 %v4242, %v4248
        %v4286 = vmul.f32 %v4243, %v4252
        %v4287 = vadd.f32 %v4179, %v4255
        %v4288 = vadd.f32 %v4180, %v4256
        %v4289 = vadd.f32 %v4181, %v4257
        %v4290 = vadd.f32 %v4182, %v4258
        %v4291 = vadd.f32 %v4183, %v4259
        %v4292 = vadd.f32 %v4184, %v4260
        %v4293 = vadd.f32 %v4185, %v4261
        %v4294 = vadd.f32 %v4186, %v4262
        %v4295 = vadd.f32 %v4187, %v4263
        %v4296 = vadd.f32 %v4188, %v4264
        %v4297 = vadd.f32 %v4189, %v4265
        %v4298 = vadd.f32 %v4190, %v4266
        %v4299 = vadd.f32 %v4191, %v4267
        %v4300 = vadd.f32 %v4192, %v4268
        %v4301 = vadd.f32 %v4193, %v4269
        %v4302 = vadd.f32 %v4194, %v4270
        %v4303 = vadd.f32 %v4195, %v4271
        %v4304 = vadd.f32 %v4196, %v4272
        %v4305 = vadd.f32 %v4197, %v4273
        %v4306 = vadd.f32 %v4198, %v4274
        %v4307 = vadd.f32 %v4199, %v4275
        %v4308 = vadd.f32 %v4200, %v4276
        %v4309 = vadd.f32 %v4201, %v4277
        %v4310 = vadd.f32 %v4202, %v4278
        %v4311 = vadd.f32 %v4203, %v4279
        %v4312 = vadd.f32 %v4204, %v4280
        %v4313 = vadd.f32 %v4205, %v4281
        %v4314 = vadd.f32 %v4206, %v4282
        %v4315 = vadd.f32 %v4207, %v4283
        %v4316 = vadd.f32 %v4208, %v4284
        %v4317 = vadd.f32 %v4209, %v4285
        %v4318 = vadd.f32 %v4210, %v4286
        %v4319 = vld [vmem:[%s1619] ss:$8 sm:$0x3]
        %v4320 = vld [vmem:[%s595] sm:$0xfe]
        %v4321 = vld [vmem:[%s595 + $0x8] sm:$0xfe]
        %v4322 = vld [vmem:[%s595 + $0x20] sm:$0x1]
        %v4323 = vld [vmem:[%s595 + $0x28] sm:$0x1]
        %v4324 = vld [vmem:[%s595 + $0x30] sm:$0xfe]
        %v4325 = vld [vmem:[%s595 + $0x38] sm:$0xfe]
        %v4326 = vld [vmem:[%s595 + $0x50] sm:$0x1]
        %v4327 = vld [vmem:[%s595 + $0x58] sm:$0x1]
        %v4328 = vld [vmem:[%s595 + $0x60] sm:$0xfe]
        %v4329 = vld [vmem:[%s595 + $0x68] sm:$0xfe]
        %v4330 = vld [vmem:[%s595 + $0x80] sm:$0x1]
        %v4331 = vld [vmem:[%s595 + $0x88] sm:$0x1]
        %v4332 = vld [vmem:[%s595 + $0x90] sm:$0xfe]
        %v4333 = vld [vmem:[%s595 + $0x98] sm:$0xfe]
        %v4334 = vld [vmem:[%s595 + $0xb0] sm:$0x1]
        %v4335 = vld [vmem:[%s595 + $0xb8] sm:$0x1]
        %v4336 = vld [vmem:[%s595 + $0xc0] sm:$0xfe]
        %v4337 = vld [vmem:[%s595 + $0xc8] sm:$0xfe]
        %v4338 = vld [vmem:[%s595 + $0xe0] sm:$0x1]
        %v4339 = vld [vmem:[%s595 + $0xe8] sm:$0x1]
        %v4340 = vld [vmem:[%s595 + $0xf0] sm:$0xfe]
        %v4341 = vld [vmem:[%s595 + $0xf8] sm:$0xfe]
        %v4342 = vld [vmem:[%s595 + $0x110] sm:$0x1]
        %v4343 = vld [vmem:[%s595 + $0x118] sm:$0x1]
        %v4344 = vld [vmem:[%s595 + $0x120] sm:$0xfe]
        %v4345 = vld [vmem:[%s595 + $0x128] sm:$0xfe]
        %v4346 = vld [vmem:[%s595 + $0x140] sm:$0x1]
        %v4347 = vld [vmem:[%s595 + $0x148] sm:$0x1]
        %v4348 = vld [vmem:[%s595 + $0x150] sm:$0xfe]
        %v4349 = vld [vmem:[%s595 + $0x158] sm:$0xfe]
        %v4350 = vld [vmem:[%s595 + $0x170] sm:$0x1]
        %v4351 = vld [vmem:[%s595 + $0x178] sm:$0x1]
        %v4353 = vlaneseq
        %v4354 = vshrl.u32 %v4353, 7
        %v4355 = vsub.s32 0, %v4354
        %v4356 = vrot.slane %v4319, %v4355
        %v4357 = vlaneseq
        %v4358 = vshrl.u32 %v4357, 7
        %v4359 = vsub.s32 1, %v4358
        %v4360 = vrot.slane %v4319, %v4359
        %v4363 = vmul.f32 %v4320, %v4356
        %v4364 = vmul.f32 %v4321, %v4360
        %v4365 = vmul.f32 %v4214, %v4356
        %v4366 = vmul.f32 %v4215, %v4360
        %v4367 = vmul.f32 %v4322, %v4356
        %v4368 = vmul.f32 %v4323, %v4360
        %v4369 = vmul.f32 %v4324, %v4356
        %v4370 = vmul.f32 %v4325, %v4360
        %v4371 = vmul.f32 %v4218, %v4356
        %v4372 = vmul.f32 %v4219, %v4360
        %v4373 = vmul.f32 %v4326, %v4356
        %v4374 = vmul.f32 %v4327, %v4360
        %v4375 = vmul.f32 %v4328, %v4356
        %v4376 = vmul.f32 %v4329, %v4360
        %v4377 = vmul.f32 %v4222, %v4356
        %v4378 = vmul.f32 %v4223, %v4360
        %v4379 = vmul.f32 %v4330, %v4356
        %v4380 = vmul.f32 %v4331, %v4360
        %v4381 = vmul.f32 %v4332, %v4356
        %v4382 = vmul.f32 %v4333, %v4360
        %v4383 = vmul.f32 %v4226, %v4356
        %v4384 = vmul.f32 %v4227, %v4360
        %v4385 = vmul.f32 %v4334, %v4356
        %v4386 = vmul.f32 %v4335, %v4360
        %v4387 = vmul.f32 %v4336, %v4356
        %v4388 = vmul.f32 %v4337, %v4360
        %v4389 = vmul.f32 %v4230, %v4356
        %v4390 = vmul.f32 %v4231, %v4360
        %v4391 = vmul.f32 %v4338, %v4356
        %v4392 = vmul.f32 %v4339, %v4360
        %v4393 = vmul.f32 %v4340, %v4356
        %v4394 = vmul.f32 %v4341, %v4360
        %v4395 = vmul.f32 %v4234, %v4356
        %v4396 = vmul.f32 %v4235, %v4360
        %v4397 = vmul.f32 %v4342, %v4356
        %v4398 = vmul.f32 %v4343, %v4360
        %v4399 = vmul.f32 %v4344, %v4356
        %v4400 = vmul.f32 %v4345, %v4360
        %v4401 = vmul.f32 %v4238, %v4356
        %v4402 = vmul.f32 %v4239, %v4360
        %v4403 = vmul.f32 %v4346, %v4356
        %v4404 = vmul.f32 %v4347, %v4360
        %v4405 = vmul.f32 %v4348, %v4356
        %v4406 = vmul.f32 %v4349, %v4360
        %v4407 = vmul.f32 %v4242, %v4356
        %v4408 = vmul.f32 %v4243, %v4360
        %v4409 = vmul.f32 %v4350, %v4356
        %v4410 = vmul.f32 %v4351, %v4360
        %v4459 = vrot.slane %v4363, 1
        %v4460 = vrot.slane %v4365, 1
        %v4461 = vsel %vm1079, %v4459, %v4460
        %v4462 = vrot.slane %v4364, 1
        %v4463 = vrot.slane %v4366, 1
        %v4464 = vsel %vm1079, %v4462, %v4463
        %v4465 = vrot.slane %v4367, 1
        %v4466 = vsel %vm1079, %v4460, %v4465
        %v4467 = vrot.slane %v4368, 1
        %v4468 = vsel %vm1079, %v4463, %v4467
        %v4469 = vrot.slane %v4369, 1
        %v4470 = vrot.slane %v4371, 1
        %v4471 = vsel %vm1079, %v4469, %v4470
        %v4472 = vrot.slane %v4370, 1
        %v4473 = vrot.slane %v4372, 1
        %v4474 = vsel %vm1079, %v4472, %v4473
        %v4475 = vrot.slane %v4373, 1
        %v4476 = vsel %vm1079, %v4470, %v4475
        %v4477 = vrot.slane %v4374, 1
        %v4478 = vsel %vm1079, %v4473, %v4477
        %v4479 = vrot.slane %v4375, 1
        %v4480 = vrot.slane %v4377, 1
        %v4481 = vsel %vm1079, %v4479, %v4480
        %v4482 = vrot.slane %v4376, 1
        %v4483 = vrot.slane %v4378, 1
        %v4484 = vsel %vm1079, %v4482, %v4483
        %v4485 = vrot.slane %v4379, 1
        %v4486 = vsel %vm1079, %v4480, %v4485
        %v4487 = vrot.slane %v4380, 1
        %v4488 = vsel %vm1079, %v4483, %v4487
        %v4489 = vrot.slane %v4381, 1
        %v4490 = vrot.slane %v4383, 1
        %v4491 = vsel %vm1079, %v4489, %v4490
        %v4492 = vrot.slane %v4382, 1
        %v4493 = vrot.slane %v4384, 1
        %v4494 = vsel %vm1079, %v4492, %v4493
        %v4495 = vrot.slane %v4385, 1
        %v4496 = vsel %vm1079, %v4490, %v4495
        %v4497 = vrot.slane %v4386, 1
        %v4498 = vsel %vm1079, %v4493, %v4497
        %v4499 = vrot.slane %v4387, 1
        %v4500 = vrot.slane %v4389, 1
        %v4501 = vsel %vm1079, %v4499, %v4500
        %v4502 = vrot.slane %v4388, 1
        %v4503 = vrot.slane %v4390, 1
        %v4504 = vsel %vm1079, %v4502, %v4503
        %v4505 = vrot.slane %v4391, 1
        %v4506 = vsel %vm1079, %v4500, %v4505
        %v4507 = vrot.slane %v4392, 1
        %v4508 = vsel %vm1079, %v4503, %v4507
        %v4509 = vrot.slane %v4393, 1
        %v4510 = vrot.slane %v4395, 1
        %v4511 = vsel %vm1079, %v4509, %v4510
        %v4512 = vrot.slane %v4394, 1
        %v4513 = vrot.slane %v4396, 1
        %v4514 = vsel %vm1079, %v4512, %v4513
        %v4515 = vrot.slane %v4397, 1
        %v4516 = vsel %vm1079, %v4510, %v4515
        %v4517 = vrot.slane %v4398, 1
        %v4518 = vsel %vm1079, %v4513, %v4517
        %v4519 = vrot.slane %v4399, 1
        %v4520 = vrot.slane %v4401, 1
        %v4521 = vsel %vm1079, %v4519, %v4520
        %v4522 = vrot.slane %v4400, 1
        %v4523 = vrot.slane %v4402, 1
        %v4524 = vsel %vm1079, %v4522, %v4523
        %v4525 = vrot.slane %v4403, 1
        %v4526 = vsel %vm1079, %v4520, %v4525
        %v4527 = vrot.slane %v4404, 1
        %v4528 = vsel %vm1079, %v4523, %v4527
        %v4529 = vrot.slane %v4405, 1
        %v4530 = vrot.slane %v4407, 1
        %v4531 = vsel %vm1079, %v4529, %v4530
        %v4532 = vrot.slane %v4406, 1
        %v4533 = vrot.slane %v4408, 1
        %v4534 = vsel %vm1079, %v4532, %v4533
        %v4535 = vrot.slane %v4409, 1
        %v4536 = vsel %vm1079, %v4530, %v4535
        %v4537 = vrot.slane %v4410, 1
        %v4538 = vsel %vm1079, %v4533, %v4537
        %v4571 = vadd.f32 %v4287, %v4461
        %v4572 = vadd.f32 %v4288, %v4464
        %v4573 = vadd.f32 %v4289, %v4466
        %v4574 = vadd.f32 %v4290, %v4468
        %v4575 = vadd.f32 %v4291, %v4471
        %v4576 = vadd.f32 %v4292, %v4474
        %v4577 = vadd.f32 %v4293, %v4476
        %v4578 = vadd.f32 %v4294, %v4478
        %v4579 = vadd.f32 %v4295, %v4481
        %v4580 = vadd.f32 %v4296, %v4484
        %v4581 = vadd.f32 %v4297, %v4486
        %v4582 = vadd.f32 %v4298, %v4488
        %v4583 = vadd.f32 %v4299, %v4491
        %v4584 = vadd.f32 %v4300, %v4494
        %v4585 = vadd.f32 %v4301, %v4496
        %v4586 = vadd.f32 %v4302, %v4498
        %v4587 = vadd.f32 %v4303, %v4501
        %v4588 = vadd.f32 %v4304, %v4504
        %v4589 = vadd.f32 %v4305, %v4506
        %v4590 = vadd.f32 %v4306, %v4508
        %v4591 = vadd.f32 %v4307, %v4511
        %v4592 = vadd.f32 %v4308, %v4514
        %v4593 = vadd.f32 %v4309, %v4516
        %v4594 = vadd.f32 %v4310, %v4518
        %v4595 = vadd.f32 %v4311, %v4521
        %v4596 = vadd.f32 %v4312, %v4524
        %v4597 = vadd.f32 %v4313, %v4526
        %v4598 = vadd.f32 %v4314, %v4528
        %v4599 = vadd.f32 %v4315, %v4531
        %v4600 = vadd.f32 %v4316, %v4534
        %v4601 = vadd.f32 %v4317, %v4536
        %v4602 = vadd.f32 %v4318, %v4538
        %v4603 = vld [vmem:[%s1904] ss:$8 sm:$0x3]
        %v4604 = vld [vmem:[%s595] sm:$0xfc]
        %v4605 = vld [vmem:[%s595 + $0x8] sm:$0xfc]
        %v4606 = vld [vmem:[%s595 + $0x20] sm:$0x3]
        %v4607 = vld [vmem:[%s595 + $0x28] sm:$0x3]
        %v4608 = vld [vmem:[%s595 + $0x30] sm:$0xfc]
        %v4609 = vld [vmem:[%s595 + $0x38] sm:$0xfc]
        %v4610 = vld [vmem:[%s595 + $0x50] sm:$0x3]
        %v4611 = vld [vmem:[%s595 + $0x58] sm:$0x3]
        %v4612 = vld [vmem:[%s595 + $0x60] sm:$0xfc]
        %v4613 = vld [vmem:[%s595 + $0x68] sm:$0xfc]
        %v4614 = vld [vmem:[%s595 + $0x80] sm:$0x3]
        %v4615 = vld [vmem:[%s595 + $0x88] sm:$0x3]
        %v4616 = vld [vmem:[%s595 + $0x90] sm:$0xfc]
        %v4617 = vld [vmem:[%s595 + $0x98] sm:$0xfc]
        %v4618 = vld [vmem:[%s595 + $0xb0] sm:$0x3]
        %v4619 = vld [vmem:[%s595 + $0xb8] sm:$0x3]
        %v4620 = vld [vmem:[%s595 + $0xc0] sm:$0xfc]
        %v4621 = vld [vmem:[%s595 + $0xc8] sm:$0xfc]
        %v4622 = vld [vmem:[%s595 + $0xe0] sm:$0x3]
        %v4623 = vld [vmem:[%s595 + $0xe8] sm:$0x3]
        %v4624 = vld [vmem:[%s595 + $0xf0] sm:$0xfc]
        %v4625 = vld [vmem:[%s595 + $0xf8] sm:$0xfc]
        %v4626 = vld [vmem:[%s595 + $0x110] sm:$0x3]
        %v4627 = vld [vmem:[%s595 + $0x118] sm:$0x3]
        %v4628 = vld [vmem:[%s595 + $0x120] sm:$0xfc]
        %v4629 = vld [vmem:[%s595 + $0x128] sm:$0xfc]
        %v4630 = vld [vmem:[%s595 + $0x140] sm:$0x3]
        %v4631 = vld [vmem:[%s595 + $0x148] sm:$0x3]
        %v4632 = vld [vmem:[%s595 + $0x150] sm:$0xfc]
        %v4633 = vld [vmem:[%s595 + $0x158] sm:$0xfc]
        %v4634 = vld [vmem:[%s595 + $0x170] sm:$0x3]
        %v4635 = vld [vmem:[%s595 + $0x178] sm:$0x3]
        %v4637 = vlaneseq
        %v4638 = vshrl.u32 %v4637, 7
        %v4639 = vsub.s32 0, %v4638
        %v4640 = vrot.slane %v4603, %v4639
        %v4641 = vlaneseq
        %v4642 = vshrl.u32 %v4641, 7
        %v4643 = vsub.s32 1, %v4642
        %v4644 = vrot.slane %v4603, %v4643
        %v4647 = vmul.f32 %v4604, %v4640
        %v4648 = vmul.f32 %v4605, %v4644
        %v4649 = vmul.f32 %v4214, %v4640
        %v4650 = vmul.f32 %v4215, %v4644
        %v4651 = vmul.f32 %v4606, %v4640
        %v4652 = vmul.f32 %v4607, %v4644
        %v4653 = vmul.f32 %v4608, %v4640
        %v4654 = vmul.f32 %v4609, %v4644
        %v4655 = vmul.f32 %v4218, %v4640
        %v4656 = vmul.f32 %v4219, %v4644
        %v4657 = vmul.f32 %v4610, %v4640
        %v4658 = vmul.f32 %v4611, %v4644
        %v4659 = vmul.f32 %v4612, %v4640
        %v4660 = vmul.f32 %v4613, %v4644
        %v4661 = vmul.f32 %v4222, %v4640
        %v4662 = vmul.f32 %v4223, %v4644
        %v4663 = vmul.f32 %v4614, %v4640
        %v4664 = vmul.f32 %v4615, %v4644
        %v4665 = vmul.f32 %v4616, %v4640
        %v4666 = vmul.f32 %v4617, %v4644
        %v4667 = vmul.f32 %v4226, %v4640
        %v4668 = vmul.f32 %v4227, %v4644
        %v4669 = vmul.f32 %v4618, %v4640
        %v4670 = vmul.f32 %v4619, %v4644
        %v4671 = vmul.f32 %v4620, %v4640
        %v4672 = vmul.f32 %v4621, %v4644
        %v4673 = vmul.f32 %v4230, %v4640
        %v4674 = vmul.f32 %v4231, %v4644
        %v4675 = vmul.f32 %v4622, %v4640
        %v4676 = vmul.f32 %v4623, %v4644
        %v4677 = vmul.f32 %v4624, %v4640
        %v4678 = vmul.f32 %v4625, %v4644
        %v4679 = vmul.f32 %v4234, %v4640
        %v4680 = vmul.f32 %v4235, %v4644
        %v4681 = vmul.f32 %v4626, %v4640
        %v4682 = vmul.f32 %v4627, %v4644
        %v4683 = vmul.f32 %v4628, %v4640
        %v4684 = vmul.f32 %v4629, %v4644
        %v4685 = vmul.f32 %v4238, %v4640
        %v4686 = vmul.f32 %v4239, %v4644
        %v4687 = vmul.f32 %v4630, %v4640
        %v4688 = vmul.f32 %v4631, %v4644
        %v4689 = vmul.f32 %v4632, %v4640
        %v4690 = vmul.f32 %v4633, %v4644
        %v4691 = vmul.f32 %v4242, %v4640
        %v4692 = vmul.f32 %v4243, %v4644
        %v4693 = vmul.f32 %v4634, %v4640
        %v4694 = vmul.f32 %v4635, %v4644
        %v4743 = vrot.slane %v4647, 2
        %v4744 = vrot.slane %v4649, 2
        %v4745 = vsel %vm1365, %v4743, %v4744
        %v4746 = vrot.slane %v4648, 2
        %v4747 = vrot.slane %v4650, 2
        %v4748 = vsel %vm1365, %v4746, %v4747
        %v4749 = vrot.slane %v4651, 2
        %v4750 = vsel %vm1365, %v4744, %v4749
        %v4751 = vrot.slane %v4652, 2
        %v4752 = vsel %vm1365, %v4747, %v4751
        %v4753 = vrot.slane %v4653, 2
        %v4754 = vrot.slane %v4655, 2
        %v4755 = vsel %vm1365, %v4753, %v4754
        %v4756 = vrot.slane %v4654, 2
        %v4757 = vrot.slane %v4656, 2
        %v4758 = vsel %vm1365, %v4756, %v4757
        %v4759 = vrot.slane %v4657, 2
        %v4760 = vsel %vm1365, %v4754, %v4759
        %v4761 = vrot.slane %v4658, 2
        %v4762 = vsel %vm1365, %v4757, %v4761
        %v4763 = vrot.slane %v4659, 2
        %v4764 = vrot.slane %v4661, 2
        %v4765 = vsel %vm1365, %v4763, %v4764
        %v4766 = vrot.slane %v4660, 2
        %v4767 = vrot.slane %v4662, 2
        %v4768 = vsel %vm1365, %v4766, %v4767
        %v4769 = vrot.slane %v4663, 2
        %v4770 = vsel %vm1365, %v4764, %v4769
        %v4771 = vrot.slane %v4664, 2
        %v4772 = vsel %vm1365, %v4767, %v4771
        %v4773 = vrot.slane %v4665, 2
        %v4774 = vrot.slane %v4667, 2
        %v4775 = vsel %vm1365, %v4773, %v4774
        %v4776 = vrot.slane %v4666, 2
        %v4777 = vrot.slane %v4668, 2
        %v4778 = vsel %vm1365, %v4776, %v4777
        %v4779 = vrot.slane %v4669, 2
        %v4780 = vsel %vm1365, %v4774, %v4779
        %v4781 = vrot.slane %v4670, 2
        %v4782 = vsel %vm1365, %v4777, %v4781
        %v4783 = vrot.slane %v4671, 2
        %v4784 = vrot.slane %v4673, 2
        %v4785 = vsel %vm1365, %v4783, %v4784
        %v4786 = vrot.slane %v4672, 2
        %v4787 = vrot.slane %v4674, 2
        %v4788 = vsel %vm1365, %v4786, %v4787
        %v4789 = vrot.slane %v4675, 2
        %v4790 = vsel %vm1365, %v4784, %v4789
        %v4791 = vrot.slane %v4676, 2
        %v4792 = vsel %vm1365, %v4787, %v4791
        %v4793 = vrot.slane %v4677, 2
        %v4794 = vrot.slane %v4679, 2
        %v4795 = vsel %vm1365, %v4793, %v4794
        %v4796 = vrot.slane %v4678, 2
        %v4797 = vrot.slane %v4680, 2
        %v4798 = vsel %vm1365, %v4796, %v4797
        %v4799 = vrot.slane %v4681, 2
        %v4800 = vsel %vm1365, %v4794, %v4799
        %v4801 = vrot.slane %v4682, 2
        %v4802 = vsel %vm1365, %v4797, %v4801
        %v4803 = vrot.slane %v4683, 2
        %v4804 = vrot.slane %v4685, 2
        %v4805 = vsel %vm1365, %v4803, %v4804
        %v4806 = vrot.slane %v4684, 2
        %v4807 = vrot.slane %v4686, 2
        %v4808 = vsel %vm1365, %v4806, %v4807
        %v4809 = vrot.slane %v4687, 2
        %v4810 = vsel %vm1365, %v4804, %v4809
        %v4811 = vrot.slane %v4688, 2
        %v4812 = vsel %vm1365, %v4807, %v4811
        %v4813 = vrot.slane %v4689, 2
        %v4814 = vrot.slane %v4691, 2
        %v4815 = vsel %vm1365, %v4813, %v4814
        %v4816 = vrot.slane %v4690, 2
        %v4817 = vrot.slane %v4692, 2
        %v4818 = vsel %vm1365, %v4816, %v4817
        %v4819 = vrot.slane %v4693, 2
        %v4820 = vsel %vm1365, %v4814, %v4819
        %v4821 = vrot.slane %v4694, 2
        %v4822 = vsel %vm1365, %v4817, %v4821
        %v4855 = vadd.f32 %v4571, %v4745
        %v4856 = vadd.f32 %v4572, %v4748
        %v4857 = vadd.f32 %v4573, %v4750
        %v4858 = vadd.f32 %v4574, %v4752
        %v4859 = vadd.f32 %v4575, %v4755
        %v4860 = vadd.f32 %v4576, %v4758
        %v4861 = vadd.f32 %v4577, %v4760
        %v4862 = vadd.f32 %v4578, %v4762
        %v4863 = vadd.f32 %v4579, %v4765
        %v4864 = vadd.f32 %v4580, %v4768
        %v4865 = vadd.f32 %v4581, %v4770
        %v4866 = vadd.f32 %v4582, %v4772
        %v4867 = vadd.f32 %v4583, %v4775
        %v4868 = vadd.f32 %v4584, %v4778
        %v4869 = vadd.f32 %v4585, %v4780
        %v4870 = vadd.f32 %v4586, %v4782
        %v4871 = vadd.f32 %v4587, %v4785
        %v4872 = vadd.f32 %v4588, %v4788
        %v4873 = vadd.f32 %v4589, %v4790
        %v4874 = vadd.f32 %v4590, %v4792
        %v4875 = vadd.f32 %v4591, %v4795
        %v4876 = vadd.f32 %v4592, %v4798
        %v4877 = vadd.f32 %v4593, %v4800
        %v4878 = vadd.f32 %v4594, %v4802
        %v4879 = vadd.f32 %v4595, %v4805
        %v4880 = vadd.f32 %v4596, %v4808
        %v4881 = vadd.f32 %v4597, %v4810
        %v4882 = vadd.f32 %v4598, %v4812
        %v4883 = vadd.f32 %v4599, %v4815
        %v4884 = vadd.f32 %v4600, %v4818
        %v4885 = vadd.f32 %v4601, %v4820
        %v4886 = vadd.f32 %v4602, %v4822
        %v4887 = vld [vmem:[%s2189] ss:$8 sm:$0x3]
        %v4888 = vld [vmem:[%s625] sm:$0xff]
        %v4889 = vld [vmem:[%s625 + $0x8] sm:$0xff]
        %v4890 = vld [vmem:[%s625 + $0x10] sm:$0xff]
        %v4891 = vld [vmem:[%s625 + $0x18] sm:$0xff]
        %v4892 = vld [vmem:[%s625 + $0x30] sm:$0xff]
        %v4893 = vld [vmem:[%s625 + $0x38] sm:$0xff]
        %v4894 = vld [vmem:[%s625 + $0x40] sm:$0xff]
        %v4895 = vld [vmem:[%s625 + $0x48] sm:$0xff]
        %v4896 = vld [vmem:[%s625 + $0x60] sm:$0xff]
        %v4897 = vld [vmem:[%s625 + $0x68] sm:$0xff]
        %v4898 = vld [vmem:[%s625 + $0x70] sm:$0xff]
        %v4899 = vld [vmem:[%s625 + $0x78] sm:$0xff]
        %v4900 = vld [vmem:[%s625 + $0x90] sm:$0xff]
        %v4901 = vld [vmem:[%s625 + $0x98] sm:$0xff]
        %v4902 = vld [vmem:[%s625 + $0xa0] sm:$0xff]
        %v4903 = vld [vmem:[%s625 + $0xa8] sm:$0xff]
        %v4904 = vld [vmem:[%s625 + $0xc0] sm:$0xff]
        %v4905 = vld [vmem:[%s625 + $0xc8] sm:$0xff]
        %v4906 = vld [vmem:[%s625 + $0xd0] sm:$0xff]
        %v4907 = vld [vmem:[%s625 + $0xd8] sm:$0xff]
        %v4908 = vld [vmem:[%s625 + $0xf0] sm:$0xff]
        %v4909 = vld [vmem:[%s625 + $0xf8] sm:$0xff]
        %v4910 = vld [vmem:[%s625 + $0x100] sm:$0xff]
        %v4911 = vld [vmem:[%s625 + $0x108] sm:$0xff]
        %v4912 = vld [vmem:[%s625 + $0x120] sm:$0xff]
        %v4913 = vld [vmem:[%s625 + $0x128] sm:$0xff]
        %v4914 = vld [vmem:[%s625 + $0x130] sm:$0xff]
        %v4915 = vld [vmem:[%s625 + $0x138] sm:$0xff]
        %v4916 = vld [vmem:[%s625 + $0x150] sm:$0xff]
        %v4917 = vld [vmem:[%s625 + $0x158] sm:$0xff]
        %v4918 = vld [vmem:[%s625 + $0x160] sm:$0xff]
        %v4919 = vld [vmem:[%s625 + $0x168] sm:$0xff]
        %v4921 = vlaneseq
        %v4922 = vshrl.u32 %v4921, 7
        %v4923 = vsub.s32 0, %v4922
        %v4924 = vrot.slane %v4887, %v4923
        %v4925 = vlaneseq
        %v4926 = vshrl.u32 %v4925, 7
        %v4927 = vsub.s32 1, %v4926
        %v4928 = vrot.slane %v4887, %v4927
        %v4931 = vmul.f32 %v4888, %v4924
        %v4932 = vmul.f32 %v4889, %v4928
        %v4933 = vmul.f32 %v4890, %v4924
        %v4934 = vmul.f32 %v4891, %v4928
        %v4935 = vmul.f32 %v4892, %v4924
        %v4936 = vmul.f32 %v4893, %v4928
        %v4937 = vmul.f32 %v4894, %v4924
        %v4938 = vmul.f32 %v4895, %v4928
        %v4939 = vmul.f32 %v4896, %v4924
        %v4940 = vmul.f32 %v4897, %v4928
        %v4941 = vmul.f32 %v4898, %v4924
        %v4942 = vmul.f32 %v4899, %v4928
        %v4943 = vmul.f32 %v4900, %v4924
        %v4944 = vmul.f32 %v4901, %v4928
        %v4945 = vmul.f32 %v4902, %v4924
        %v4946 = vmul.f32 %v4903, %v4928
        %v4947 = vmul.f32 %v4904, %v4924
        %v4948 = vmul.f32 %v4905, %v4928
        %v4949 = vmul.f32 %v4906, %v4924
        %v4950 = vmul.f32 %v4907, %v4928
        %v4951 = vmul.f32 %v4908, %v4924
        %v4952 = vmul.f32 %v4909, %v4928
        %v4953 = vmul.f32 %v4910, %v4924
        %v4954 = vmul.f32 %v4911, %v4928
        %v4955 = vmul.f32 %v4912, %v4924
        %v4956 = vmul.f32 %v4913, %v4928
        %v4957 = vmul.f32 %v4914, %v4924
        %v4958 = vmul.f32 %v4915, %v4928
        %v4959 = vmul.f32 %v4916, %v4924
        %v4960 = vmul.f32 %v4917, %v4928
        %v4961 = vmul.f32 %v4918, %v4924
        %v4962 = vmul.f32 %v4919, %v4928
        %v4963 = vadd.f32 %v4855, %v4931
        %v4964 = vadd.f32 %v4856, %v4932
        %v4965 = vadd.f32 %v4857, %v4933
        %v4966 = vadd.f32 %v4858, %v4934
        %v4967 = vadd.f32 %v4859, %v4935
        %v4968 = vadd.f32 %v4860, %v4936
        %v4969 = vadd.f32 %v4861, %v4937
        %v4970 = vadd.f32 %v4862, %v4938
        %v4971 = vadd.f32 %v4863, %v4939
        %v4972 = vadd.f32 %v4864, %v4940
        %v4973 = vadd.f32 %v4865, %v4941
        %v4974 = vadd.f32 %v4866, %v4942
        %v4975 = vadd.f32 %v4867, %v4943
        %v4976 = vadd.f32 %v4868, %v4944
        %v4977 = vadd.f32 %v4869, %v4945
        %v4978 = vadd.f32 %v4870, %v4946
        %v4979 = vadd.f32 %v4871, %v4947
        %v4980 = vadd.f32 %v4872, %v4948
        %v4981 = vadd.f32 %v4873, %v4949
        %v4982 = vadd.f32 %v4874, %v4950
        %v4983 = vadd.f32 %v4875, %v4951
        %v4984 = vadd.f32 %v4876, %v4952
        %v4985 = vadd.f32 %v4877, %v4953
        %v4986 = vadd.f32 %v4878, %v4954
        %v4987 = vadd.f32 %v4879, %v4955
        %v4988 = vadd.f32 %v4880, %v4956
        %v4989 = vadd.f32 %v4881, %v4957
        %v4990 = vadd.f32 %v4882, %v4958
        %v4991 = vadd.f32 %v4883, %v4959
        %v4992 = vadd.f32 %v4884, %v4960
        %v4993 = vadd.f32 %v4885, %v4961
        %v4994 = vadd.f32 %v4886, %v4962
        %v4995 = vld [vmem:[%s2298] ss:$8 sm:$0x3]
        %v4996 = vld [vmem:[%s625] sm:$0xfe]
        %v4997 = vld [vmem:[%s625 + $0x8] sm:$0xfe]
        %v4998 = vld [vmem:[%s625 + $0x20] sm:$0x1]
        %v4999 = vld [vmem:[%s625 + $0x28] sm:$0x1]
        %v5000 = vld [vmem:[%s625 + $0x30] sm:$0xfe]
        %v5001 = vld [vmem:[%s625 + $0x38] sm:$0xfe]
        %v5002 = vld [vmem:[%s625 + $0x50] sm:$0x1]
        %v5003 = vld [vmem:[%s625 + $0x58] sm:$0x1]
        %v5004 = vld [vmem:[%s625 + $0x60] sm:$0xfe]
        %v5005 = vld [vmem:[%s625 + $0x68] sm:$0xfe]
        %v5006 = vld [vmem:[%s625 + $0x80] sm:$0x1]
        %v5007 = vld [vmem:[%s625 + $0x88] sm:$0x1]
        %v5008 = vld [vmem:[%s625 + $0x90] sm:$0xfe]
        %v5009 = vld [vmem:[%s625 + $0x98] sm:$0xfe]
        %v5010 = vld [vmem:[%s625 + $0xb0] sm:$0x1]
        %v5011 = vld [vmem:[%s625 + $0xb8] sm:$0x1]
        %v5012 = vld [vmem:[%s625 + $0xc0] sm:$0xfe]
        %v5013 = vld [vmem:[%s625 + $0xc8] sm:$0xfe]
        %v5014 = vld [vmem:[%s625 + $0xe0] sm:$0x1]
        %v5015 = vld [vmem:[%s625 + $0xe8] sm:$0x1]
        %v5016 = vld [vmem:[%s625 + $0xf0] sm:$0xfe]
        %v5017 = vld [vmem:[%s625 + $0xf8] sm:$0xfe]
        %v5018 = vld [vmem:[%s625 + $0x110] sm:$0x1]
        %v5019 = vld [vmem:[%s625 + $0x118] sm:$0x1]
        %v5020 = vld [vmem:[%s625 + $0x120] sm:$0xfe]
        %v5021 = vld [vmem:[%s625 + $0x128] sm:$0xfe]
        %v5022 = vld [vmem:[%s625 + $0x140] sm:$0x1]
        %v5023 = vld [vmem:[%s625 + $0x148] sm:$0x1]
        %v5024 = vld [vmem:[%s625 + $0x150] sm:$0xfe]
        %v5025 = vld [vmem:[%s625 + $0x158] sm:$0xfe]
        %v5026 = vld [vmem:[%s625 + $0x170] sm:$0x1]
        %v5027 = vld [vmem:[%s625 + $0x178] sm:$0x1]
        %v5029 = vlaneseq
        %v5030 = vshrl.u32 %v5029, 7
        %v5031 = vsub.s32 0, %v5030
        %v5032 = vrot.slane %v4995, %v5031
        %v5033 = vlaneseq
        %v5034 = vshrl.u32 %v5033, 7
        %v5035 = vsub.s32 1, %v5034
        %v5036 = vrot.slane %v4995, %v5035
        %v5039 = vmul.f32 %v4996, %v5032
        %v5040 = vmul.f32 %v4997, %v5036
        %v5041 = vmul.f32 %v4890, %v5032
        %v5042 = vmul.f32 %v4891, %v5036
        %v5043 = vmul.f32 %v4998, %v5032
        %v5044 = vmul.f32 %v4999, %v5036
        %v5045 = vmul.f32 %v5000, %v5032
        %v5046 = vmul.f32 %v5001, %v5036
        %v5047 = vmul.f32 %v4894, %v5032
        %v5048 = vmul.f32 %v4895, %v5036
        %v5049 = vmul.f32 %v5002, %v5032
        %v5050 = vmul.f32 %v5003, %v5036
        %v5051 = vmul.f32 %v5004, %v5032
        %v5052 = vmul.f32 %v5005, %v5036
        %v5053 = vmul.f32 %v4898, %v5032
        %v5054 = vmul.f32 %v4899, %v5036
        %v5055 = vmul.f32 %v5006, %v5032
        %v5056 = vmul.f32 %v5007, %v5036
        %v5057 = vmul.f32 %v5008, %v5032
        %v5058 = vmul.f32 %v5009, %v5036
        %v5059 = vmul.f32 %v4902, %v5032
        %v5060 = vmul.f32 %v4903, %v5036
        %v5061 = vmul.f32 %v5010, %v5032
        %v5062 = vmul.f32 %v5011, %v5036
        %v5063 = vmul.f32 %v5012, %v5032
        %v5064 = vmul.f32 %v5013, %v5036
        %v5065 = vmul.f32 %v4906, %v5032
        %v5066 = vmul.f32 %v4907, %v5036
        %v5067 = vmul.f32 %v5014, %v5032
        %v5068 = vmul.f32 %v5015, %v5036
        %v5069 = vmul.f32 %v5016, %v5032
        %v5070 = vmul.f32 %v5017, %v5036
        %v5071 = vmul.f32 %v4910, %v5032
        %v5072 = vmul.f32 %v4911, %v5036
        %v5073 = vmul.f32 %v5018, %v5032
        %v5074 = vmul.f32 %v5019, %v5036
        %v5075 = vmul.f32 %v5020, %v5032
        %v5076 = vmul.f32 %v5021, %v5036
        %v5077 = vmul.f32 %v4914, %v5032
        %v5078 = vmul.f32 %v4915, %v5036
        %v5079 = vmul.f32 %v5022, %v5032
        %v5080 = vmul.f32 %v5023, %v5036
        %v5081 = vmul.f32 %v5024, %v5032
        %v5082 = vmul.f32 %v5025, %v5036
        %v5083 = vmul.f32 %v4918, %v5032
        %v5084 = vmul.f32 %v4919, %v5036
        %v5085 = vmul.f32 %v5026, %v5032
        %v5086 = vmul.f32 %v5027, %v5036
        %v5135 = vrot.slane %v5039, 1
        %v5136 = vrot.slane %v5041, 1
        %v5137 = vsel %vm1079, %v5135, %v5136
        %v5138 = vrot.slane %v5040, 1
        %v5139 = vrot.slane %v5042, 1
        %v5140 = vsel %vm1079, %v5138, %v5139
        %v5141 = vrot.slane %v5043, 1
        %v5142 = vsel %vm1079, %v5136, %v5141
        %v5143 = vrot.slane %v5044, 1
        %v5144 = vsel %vm1079, %v5139, %v5143
        %v5145 = vrot.slane %v5045, 1
        %v5146 = vrot.slane %v5047, 1
        %v5147 = vsel %vm1079, %v5145, %v5146
        %v5148 = vrot.slane %v5046, 1
        %v5149 = vrot.slane %v5048, 1
        %v5150 = vsel %vm1079, %v5148, %v5149
        %v5151 = vrot.slane %v5049, 1
        %v5152 = vsel %vm1079, %v5146, %v5151
        %v5153 = vrot.slane %v5050, 1
        %v5154 = vsel %vm1079, %v5149, %v5153
        %v5155 = vrot.slane %v5051, 1
        %v5156 = vrot.slane %v5053, 1
        %v5157 = vsel %vm1079, %v5155, %v5156
        %v5158 = vrot.slane %v5052, 1
        %v5159 = vrot.slane %v5054, 1
        %v5160 = vsel %vm1079, %v5158, %v5159
        %v5161 = vrot.slane %v5055, 1
        %v5162 = vsel %vm1079, %v5156, %v5161
        %v5163 = vrot.slane %v5056, 1
        %v5164 = vsel %vm1079, %v5159, %v5163
        %v5165 = vrot.slane %v5057, 1
        %v5166 = vrot.slane %v5059, 1
        %v5167 = vsel %vm1079, %v5165, %v5166
        %v5168 = vrot.slane %v5058, 1
        %v5169 = vrot.slane %v5060, 1
        %v5170 = vsel %vm1079, %v5168, %v5169
        %v5171 = vrot.slane %v5061, 1
        %v5172 = vsel %vm1079, %v5166, %v5171
        %v5173 = vrot.slane %v5062, 1
        %v5174 = vsel %vm1079, %v5169, %v5173
        %v5175 = vrot.slane %v5063, 1
        %v5176 = vrot.slane %v5065, 1
        %v5177 = vsel %vm1079, %v5175, %v5176
        %v5178 = vrot.slane %v5064, 1
        %v5179 = vrot.slane %v5066, 1
        %v5180 = vsel %vm1079, %v5178, %v5179
        %v5181 = vrot.slane %v5067, 1
        %v5182 = vsel %vm1079, %v5176, %v5181
        %v5183 = vrot.slane %v5068, 1
        %v5184 = vsel %vm1079, %v5179, %v5183
        %v5185 = vrot.slane %v5069, 1
        %v5186 = vrot.slane %v5071, 1
        %v5187 = vsel %vm1079, %v5185, %v5186
        %v5188 = vrot.slane %v5070, 1
        %v5189 = vrot.slane %v5072, 1
        %v5190 = vsel %vm1079, %v5188, %v5189
        %v5191 = vrot.slane %v5073, 1
        %v5192 = vsel %vm1079, %v5186, %v5191
        %v5193 = vrot.slane %v5074, 1
        %v5194 = vsel %vm1079, %v5189, %v5193
        %v5195 = vrot.slane %v5075, 1
        %v5196 = vrot.slane %v5077, 1
        %v5197 = vsel %vm1079, %v5195, %v5196
        %v5198 = vrot.slane %v5076, 1
        %v5199 = vrot.slane %v5078, 1
        %v5200 = vsel %vm1079, %v5198, %v5199
        %v5201 = vrot.slane %v5079, 1
        %v5202 = vsel %vm1079, %v5196, %v5201
        %v5203 = vrot.slane %v5080, 1
        %v5204 = vsel %vm1079, %v5199, %v5203
        %v5205 = vrot.slane %v5081, 1
        %v5206 = vrot.slane %v5083, 1
        %v5207 = vsel %vm1079, %v5205, %v5206
        %v5208 = vrot.slane %v5082, 1
        %v5209 = vrot.slane %v5084, 1
        %v5210 = vsel %vm1079, %v5208, %v5209
        %v5211 = vrot.slane %v5085, 1
        %v5212 = vsel %vm1079, %v5206, %v5211
        %v5213 = vrot.slane %v5086, 1
        %v5214 = vsel %vm1079, %v5209, %v5213
        %v5247 = vadd.f32 %v4963, %v5137
        %v5248 = vadd.f32 %v4964, %v5140
        %v5249 = vadd.f32 %v4965, %v5142
        %v5250 = vadd.f32 %v4966, %v5144
        %v5251 = vadd.f32 %v4967, %v5147
        %v5252 = vadd.f32 %v4968, %v5150
        %v5253 = vadd.f32 %v4969, %v5152
        %v5254 = vadd.f32 %v4970, %v5154
        %v5255 = vadd.f32 %v4971, %v5157
        %v5256 = vadd.f32 %v4972, %v5160
        %v5257 = vadd.f32 %v4973, %v5162
        %v5258 = vadd.f32 %v4974, %v5164
        %v5259 = vadd.f32 %v4975, %v5167
        %v5260 = vadd.f32 %v4976, %v5170
        %v5261 = vadd.f32 %v4977, %v5172
        %v5262 = vadd.f32 %v4978, %v5174
        %v5263 = vadd.f32 %v4979, %v5177
        %v5264 = vadd.f32 %v4980, %v5180
        %v5265 = vadd.f32 %v4981, %v5182
        %v5266 = vadd.f32 %v4982, %v5184
        %v5267 = vadd.f32 %v4983, %v5187
        %v5268 = vadd.f32 %v4984, %v5190
        %v5269 = vadd.f32 %v4985, %v5192
        %v5270 = vadd.f32 %v4986, %v5194
        %v5271 = vadd.f32 %v4987, %v5197
        %v5272 = vadd.f32 %v4988, %v5200
        %v5273 = vadd.f32 %v4989, %v5202
        %v5274 = vadd.f32 %v4990, %v5204
        %v5275 = vadd.f32 %v4991, %v5207
        %v5276 = vadd.f32 %v4992, %v5210
        %v5277 = vadd.f32 %v4993, %v5212
        %v5278 = vadd.f32 %v4994, %v5214
        %v5279 = vld [vmem:[%s2583] ss:$8 sm:$0x3]
        %v5280 = vld [vmem:[%s625] sm:$0xfc]
        %v5281 = vld [vmem:[%s625 + $0x8] sm:$0xfc]
        %v5282 = vld [vmem:[%s625 + $0x20] sm:$0x3]
        %v5283 = vld [vmem:[%s625 + $0x28] sm:$0x3]
        %v5284 = vld [vmem:[%s625 + $0x30] sm:$0xfc]
        %v5285 = vld [vmem:[%s625 + $0x38] sm:$0xfc]
        %v5286 = vld [vmem:[%s625 + $0x50] sm:$0x3]
        %v5287 = vld [vmem:[%s625 + $0x58] sm:$0x3]
        %v5288 = vld [vmem:[%s625 + $0x60] sm:$0xfc]
        %v5289 = vld [vmem:[%s625 + $0x68] sm:$0xfc]
        %v5290 = vld [vmem:[%s625 + $0x80] sm:$0x3]
        %v5291 = vld [vmem:[%s625 + $0x88] sm:$0x3]
        %v5292 = vld [vmem:[%s625 + $0x90] sm:$0xfc]
        %v5293 = vld [vmem:[%s625 + $0x98] sm:$0xfc]
        %v5294 = vld [vmem:[%s625 + $0xb0] sm:$0x3]
        %v5295 = vld [vmem:[%s625 + $0xb8] sm:$0x3]
        %v5296 = vld [vmem:[%s625 + $0xc0] sm:$0xfc]
        %v5297 = vld [vmem:[%s625 + $0xc8] sm:$0xfc]
        %v5298 = vld [vmem:[%s625 + $0xe0] sm:$0x3]
        %v5299 = vld [vmem:[%s625 + $0xe8] sm:$0x3]
        %v5300 = vld [vmem:[%s625 + $0xf0] sm:$0xfc]
        %v5301 = vld [vmem:[%s625 + $0xf8] sm:$0xfc]
        %v5302 = vld [vmem:[%s625 + $0x110] sm:$0x3]
        %v5303 = vld [vmem:[%s625 + $0x118] sm:$0x3]
        %v5304 = vld [vmem:[%s625 + $0x120] sm:$0xfc]
        %v5305 = vld [vmem:[%s625 + $0x128] sm:$0xfc]
        %v5306 = vld [vmem:[%s625 + $0x140] sm:$0x3]
        %v5307 = vld [vmem:[%s625 + $0x148] sm:$0x3]
        %v5308 = vld [vmem:[%s625 + $0x150] sm:$0xfc]
        %v5309 = vld [vmem:[%s625 + $0x158] sm:$0xfc]
        %v5310 = vld [vmem:[%s625 + $0x170] sm:$0x3]
        %v5311 = vld [vmem:[%s625 + $0x178] sm:$0x3]
        %v5313 = vlaneseq
        %v5314 = vshrl.u32 %v5313, 7
        %v5315 = vsub.s32 0, %v5314
        %v5316 = vrot.slane %v5279, %v5315
        %v5317 = vlaneseq
        %v5318 = vshrl.u32 %v5317, 7
        %v5319 = vsub.s32 1, %v5318
        %v5320 = vrot.slane %v5279, %v5319
        %v5323 = vmul.f32 %v5280, %v5316
        %v5324 = vmul.f32 %v5281, %v5320
        %v5325 = vmul.f32 %v4890, %v5316
        %v5326 = vmul.f32 %v4891, %v5320
        %v5327 = vmul.f32 %v5282, %v5316
        %v5328 = vmul.f32 %v5283, %v5320
        %v5329 = vmul.f32 %v5284, %v5316
        %v5330 = vmul.f32 %v5285, %v5320
        %v5331 = vmul.f32 %v4894, %v5316
        %v5332 = vmul.f32 %v4895, %v5320
        %v5333 = vmul.f32 %v5286, %v5316
        %v5334 = vmul.f32 %v5287, %v5320
        %v5335 = vmul.f32 %v5288, %v5316
        %v5336 = vmul.f32 %v5289, %v5320
        %v5337 = vmul.f32 %v4898, %v5316
        %v5338 = vmul.f32 %v4899, %v5320
        %v5339 = vmul.f32 %v5290, %v5316
        %v5340 = vmul.f32 %v5291, %v5320
        %v5341 = vmul.f32 %v5292, %v5316
        %v5342 = vmul.f32 %v5293, %v5320
        %v5343 = vmul.f32 %v4902, %v5316
        %v5344 = vmul.f32 %v4903, %v5320
        %v5345 = vmul.f32 %v5294, %v5316
        %v5346 = vmul.f32 %v5295, %v5320
        %v5347 = vmul.f32 %v5296, %v5316
        %v5348 = vmul.f32 %v5297, %v5320
        %v5349 = vmul.f32 %v4906, %v5316
        %v5350 = vmul.f32 %v4907, %v5320
        %v5351 = vmul.f32 %v5298, %v5316
        %v5352 = vmul.f32 %v5299, %v5320
        %v5353 = vmul.f32 %v5300, %v5316
        %v5354 = vmul.f32 %v5301, %v5320
        %v5355 = vmul.f32 %v4910, %v5316
        %v5356 = vmul.f32 %v4911, %v5320
        %v5357 = vmul.f32 %v5302, %v5316
        %v5358 = vmul.f32 %v5303, %v5320
        %v5359 = vmul.f32 %v5304, %v5316
        %v5360 = vmul.f32 %v5305, %v5320
        %v5361 = vmul.f32 %v4914, %v5316
        %v5362 = vmul.f32 %v4915, %v5320
        %v5363 = vmul.f32 %v5306, %v5316
        %v5364 = vmul.f32 %v5307, %v5320
        %v5365 = vmul.f32 %v5308, %v5316
        %v5366 = vmul.f32 %v5309, %v5320
        %v5367 = vmul.f32 %v4918, %v5316
        %v5368 = vmul.f32 %v4919, %v5320
        %v5369 = vmul.f32 %v5310, %v5316
        %v5370 = vmul.f32 %v5311, %v5320
        %v5419 = vrot.slane %v5323, 2
        %v5420 = vrot.slane %v5325, 2
        %v5421 = vsel %vm1365, %v5419, %v5420
        %v5422 = vrot.slane %v5324, 2
        %v5423 = vrot.slane %v5326, 2
        %v5424 = vsel %vm1365, %v5422, %v5423
        %v5425 = vrot.slane %v5327, 2
        %v5426 = vsel %vm1365, %v5420, %v5425
        %v5427 = vrot.slane %v5328, 2
        %v5428 = vsel %vm1365, %v5423, %v5427
        %v5429 = vrot.slane %v5329, 2
        %v5430 = vrot.slane %v5331, 2
        %v5431 = vsel %vm1365, %v5429, %v5430
        %v5432 = vrot.slane %v5330, 2
        %v5433 = vrot.slane %v5332, 2
        %v5434 = vsel %vm1365, %v5432, %v5433
        %v5435 = vrot.slane %v5333, 2
        %v5436 = vsel %vm1365, %v5430, %v5435
        %v5437 = vrot.slane %v5334, 2
        %v5438 = vsel %vm1365, %v5433, %v5437
        %v5439 = vrot.slane %v5335, 2
        %v5440 = vrot.slane %v5337, 2
        %v5441 = vsel %vm1365, %v5439, %v5440
        %v5442 = vrot.slane %v5336, 2
        %v5443 = vrot.slane %v5338, 2
        %v5444 = vsel %vm1365, %v5442, %v5443
        %v5445 = vrot.slane %v5339, 2
        %v5446 = vsel %vm1365, %v5440, %v5445
        %v5447 = vrot.slane %v5340, 2
        %v5448 = vsel %vm1365, %v5443, %v5447
        %v5449 = vrot.slane %v5341, 2
        %v5450 = vrot.slane %v5343, 2
        %v5451 = vsel %vm1365, %v5449, %v5450
        %v5452 = vrot.slane %v5342, 2
        %v5453 = vrot.slane %v5344, 2
        %v5454 = vsel %vm1365, %v5452, %v5453
        %v5455 = vrot.slane %v5345, 2
        %v5456 = vsel %vm1365, %v5450, %v5455
        %v5457 = vrot.slane %v5346, 2
        %v5458 = vsel %vm1365, %v5453, %v5457
        %v5459 = vrot.slane %v5347, 2
        %v5460 = vrot.slane %v5349, 2
        %v5461 = vsel %vm1365, %v5459, %v5460
        %v5462 = vrot.slane %v5348, 2
        %v5463 = vrot.slane %v5350, 2
        %v5464 = vsel %vm1365, %v5462, %v5463
        %v5465 = vrot.slane %v5351, 2
        %v5466 = vsel %vm1365, %v5460, %v5465
        %v5467 = vrot.slane %v5352, 2
        %v5468 = vsel %vm1365, %v5463, %v5467
        %v5469 = vrot.slane %v5353, 2
        %v5470 = vrot.slane %v5355, 2
        %v5471 = vsel %vm1365, %v5469, %v5470
        %v5472 = vrot.slane %v5354, 2
        %v5473 = vrot.slane %v5356, 2
        %v5474 = vsel %vm1365, %v5472, %v5473
        %v5475 = vrot.slane %v5357, 2
        %v5476 = vsel %vm1365, %v5470, %v5475
        %v5477 = vrot.slane %v5358, 2
        %v5478 = vsel %vm1365, %v5473, %v5477
        %v5479 = vrot.slane %v5359, 2
        %v5480 = vrot.slane %v5361, 2
        %v5481 = vsel %vm1365, %v5479, %v5480
        %v5482 = vrot.slane %v5360, 2
        %v5483 = vrot.slane %v5362, 2
        %v5484 = vsel %vm1365, %v5482, %v5483
        %v5485 = vrot.slane %v5363, 2
        %v5486 = vsel %vm1365, %v5480, %v5485
        %v5487 = vrot.slane %v5364, 2
        %v5488 = vsel %vm1365, %v5483, %v5487
        %v5489 = vrot.slane %v5365, 2
        %v5490 = vrot.slane %v5367, 2
        %v5491 = vsel %vm1365, %v5489, %v5490
        %v5492 = vrot.slane %v5366, 2
        %v5493 = vrot.slane %v5368, 2
        %v5494 = vsel %vm1365, %v5492, %v5493
        %v5495 = vrot.slane %v5369, 2
        %v5496 = vsel %vm1365, %v5490, %v5495
        %v5497 = vrot.slane %v5370, 2
        %v5498 = vsel %vm1365, %v5493, %v5497
        %v5531 = vadd.f32 %v5247, %v5421
        %v5532 = vadd.f32 %v5248, %v5424
        %v5533 = vadd.f32 %v5249, %v5426
        %v5534 = vadd.f32 %v5250, %v5428
        %v5535 = vadd.f32 %v5251, %v5431
        %v5536 = vadd.f32 %v5252, %v5434
        %v5537 = vadd.f32 %v5253, %v5436
        %v5538 = vadd.f32 %v5254, %v5438
        %v5539 = vadd.f32 %v5255, %v5441
        %v5540 = vadd.f32 %v5256, %v5444
        %v5541 = vadd.f32 %v5257, %v5446
        %v5542 = vadd.f32 %v5258, %v5448
        %v5543 = vadd.f32 %v5259, %v5451
        %v5544 = vadd.f32 %v5260, %v5454
        %v5545 = vadd.f32 %v5261, %v5456
        %v5546 = vadd.f32 %v5262, %v5458
        %v5547 = vadd.f32 %v5263, %v5461
        %v5548 = vadd.f32 %v5264, %v5464
        %v5549 = vadd.f32 %v5265, %v5466
        %v5550 = vadd.f32 %v5266, %v5468
        %v5551 = vadd.f32 %v5267, %v5471
        %v5552 = vadd.f32 %v5268, %v5474
        %v5553 = vadd.f32 %v5269, %v5476
        %v5554 = vadd.f32 %v5270, %v5478
        %v5555 = vadd.f32 %v5271, %v5481
        %v5556 = vadd.f32 %v5272, %v5484
        %v5557 = vadd.f32 %v5273, %v5486
        %v5558 = vadd.f32 %v5274, %v5488
        %v5559 = vadd.f32 %v5275, %v5491
        %v5560 = vadd.f32 %v5276, %v5494
        %v5561 = vadd.f32 %v5277, %v5496
        %v5562 = vadd.f32 %v5278, %v5498
        %v5563 = vadd.f32 %v5531, %v2872
        %v5564 = vadd.f32 %v5532, %v2876
        %v5565 = vadd.f32 %v5533, %v2872
        %v5566 = vadd.f32 %v5534, %v2876
        %v5567 = vadd.f32 %v5535, %v2872
        %v5568 = vadd.f32 %v5536, %v2876
        %v5569 = vadd.f32 %v5537, %v2872
        %v5570 = vadd.f32 %v5538, %v2876
        %v5571 = vadd.f32 %v5539, %v2872
        %v5572 = vadd.f32 %v5540, %v2876
        %v5573 = vadd.f32 %v5541, %v2872
        %v5574 = vadd.f32 %v5542, %v2876
        %v5575 = vadd.f32 %v5543, %v2872
        %v5576 = vadd.f32 %v5544, %v2876
        %v5577 = vadd.f32 %v5545, %v2872
        %v5578 = vadd.f32 %v5546, %v2876
        %v5579 = vadd.f32 %v5547, %v2872
        %v5580 = vadd.f32 %v5548, %v2876
        %v5581 = vadd.f32 %v5549, %v2872
        %v5582 = vadd.f32 %v5550, %v2876
        %v5583 = vadd.f32 %v5551, %v2872
        %v5584 = vadd.f32 %v5552, %v2876
        %v5585 = vadd.f32 %v5553, %v2872
        %v5586 = vadd.f32 %v5554, %v2876
        %v5587 = vadd.f32 %v5555, %v2872
        %v5588 = vadd.f32 %v5556, %v2876
        %v5589 = vadd.f32 %v5557, %v2872
        %v5590 = vadd.f32 %v5558, %v2876
        %v5591 = vadd.f32 %v5559, %v2872
        %v5592 = vadd.f32 %v5560, %v2876
        %v5593 = vadd.f32 %v5561, %v2872
        %v5594 = vadd.f32 %v5562, %v2876
        %v5595 = vmul.f32 %v5563, 0.70710677
        %v5596 = vmul.f32 %v5565, 0.70710677
        %v5597 = vmul.f32 %v5567, 0.70710677
        %v5598 = vmul.f32 %v5569, 0.70710677
        %v5599 = vmul.f32 %v5571, 0.70710677
        %v5600 = vmul.f32 %v5573, 0.70710677
        %v5601 = vmul.f32 %v5575, 0.70710677
        %v5602 = vmul.f32 %v5577, 0.70710677
        %v5603 = vmul.f32 %v5579, 0.70710677
        %v5604 = vmul.f32 %v5581, 0.70710677
        %v5605 = vmul.f32 %v5583, 0.70710677
        %v5606 = vmul.f32 %v5585, 0.70710677
        %v5607 = vmul.f32 %v5587, 0.70710677
        %v5608 = vmul.f32 %v5589, 0.70710677
        %v5609 = vmul.f32 %v5591, 0.70710677
        %v5610 = vmul.f32 %v5593, 0.70710677
        %v5611 = vand.u32 2147483647, %v5595
        %v5612 = vand.u32 2147483647, %v5596
        %v5613 = vand.u32 2147483647, %v5597
        %v5614 = vand.u32 2147483647, %v5598
        %v5615 = vand.u32 2147483647, %v5599
        %v5616 = vand.u32 2147483647, %v5600
        %v5617 = vand.u32 2147483647, %v5601
        %v5618 = vand.u32 2147483647, %v5602
        %v5619 = vand.u32 2147483647, %v5603
        %v5620 = vand.u32 2147483647, %v5604
        %v5621 = vand.u32 2147483647, %v5605
        %v5622 = vand.u32 2147483647, %v5606
        %v5623 = vand.u32 2147483647, %v5607
        %v5624 = vand.u32 2147483647, %v5608
        %v5625 = vand.u32 2147483647, %v5609
        %v5626 = vand.u32 2147483647, %v5610
        %v5627 = vmul.f32 %v5611, 0.3275911
        %v5628 = vmul.f32 %v5612, 0.3275911
        %v5629 = vmul.f32 %v5613, 0.3275911
        %v5630 = vmul.f32 %v5614, 0.3275911
        %v5631 = vmul.f32 %v5615, 0.3275911
        %v5632 = vmul.f32 %v5616, 0.3275911
        %v5633 = vmul.f32 %v5617, 0.3275911
        %v5634 = vmul.f32 %v5618, 0.3275911
        %v5635 = vmul.f32 %v5619, 0.3275911
        %v5636 = vmul.f32 %v5620, 0.3275911
        %v5637 = vmul.f32 %v5621, 0.3275911
        %v5638 = vmul.f32 %v5622, 0.3275911
        %v5639 = vmul.f32 %v5623, 0.3275911
        %v5640 = vmul.f32 %v5624, 0.3275911
        %v5641 = vmul.f32 %v5625, 0.3275911
        %v5642 = vmul.f32 %v5626, 0.3275911
        %v5643 = vadd.f32 %v5627, 1.0
        %v5644 = vadd.f32 %v5628, 1.0
        %v5645 = vadd.f32 %v5629, 1.0
        %v5646 = vadd.f32 %v5630, 1.0
        %v5647 = vadd.f32 %v5631, 1.0
        %v5648 = vadd.f32 %v5632, 1.0
        %v5649 = vadd.f32 %v5633, 1.0
        %v5650 = vadd.f32 %v5634, 1.0
        %v5651 = vadd.f32 %v5635, 1.0
        %v5652 = vadd.f32 %v5636, 1.0
        %v5653 = vadd.f32 %v5637, 1.0
        %v5654 = vadd.f32 %v5638, 1.0
        %v5655 = vadd.f32 %v5639, 1.0
        %v5656 = vadd.f32 %v5640, 1.0
        %v5657 = vadd.f32 %v5641, 1.0
        %v5658 = vadd.f32 %v5642, 1.0
        %v5659 = vrcp.pop %v5643
        %v5660 = vmul.f32 1.0, %v5659
        %v5661 = vrcp.pop %v5644
        %v5662 = vmul.f32 1.0, %v5661
        %v5663 = vrcp.pop %v5645
        %v5664 = vmul.f32 1.0, %v5663
        %v5665 = vrcp.pop %v5646
        %v5666 = vmul.f32 1.0, %v5665
        %v5667 = vrcp.pop %v5647
        %v5668 = vmul.f32 1.0, %v5667
        %v5669 = vrcp.pop %v5648
        %v5670 = vmul.f32 1.0, %v5669
        %v5671 = vrcp.pop %v5649
        %v5672 = vmul.f32 1.0, %v5671
        %v5673 = vrcp.pop %v5650
        %v5674 = vmul.f32 1.0, %v5673
        %v5675 = vrcp.pop %v5651
        %v5676 = vmul.f32 1.0, %v5675
        %v5677 = vrcp.pop %v5652
        %v5678 = vmul.f32 1.0, %v5677
        %v5679 = vrcp.pop %v5653
        %v5680 = vmul.f32 1.0, %v5679
        %v5681 = vrcp.pop %v5654
        %v5682 = vmul.f32 1.0, %v5681
        %v5683 = vrcp.pop %v5655
        %v5684 = vmul.f32 1.0, %v5683
        %v5685 = vrcp.pop %v5656
        %v5686 = vmul.f32 1.0, %v5685
        %v5687 = vrcp.pop %v5657
        %v5688 = vmul.f32 1.0, %v5687
        %v5689 = vrcp.pop %v5658
        %v5690 = vmul.f32 1.0, %v5689
        %v5691 = vmul.f32 %v5660, 1.0614054
        %v5692 = vmul.f32 %v5662, 1.0614054
        %v5693 = vmul.f32 %v5664, 1.0614054
        %v5694 = vmul.f32 %v5666, 1.0614054
        %v5695 = vmul.f32 %v5668, 1.0614054
        %v5696 = vmul.f32 %v5670, 1.0614054
        %v5697 = vmul.f32 %v5672, 1.0614054
        %v5698 = vmul.f32 %v5674, 1.0614054
        %v5699 = vmul.f32 %v5676, 1.0614054
        %v5700 = vmul.f32 %v5678, 1.0614054
        %v5701 = vmul.f32 %v5680, 1.0614054
        %v5702 = vmul.f32 %v5682, 1.0614054
        %v5703 = vmul.f32 %v5684, 1.0614054
        %v5704 = vmul.f32 %v5686, 1.0614054
        %v5705 = vmul.f32 %v5688, 1.0614054
        %v5706 = vmul.f32 %v5690, 1.0614054
        %v5707 = vadd.f32 %v5691, -1.4531521
        %v5708 = vadd.f32 %v5692, -1.4531521
        %v5709 = vadd.f32 %v5693, -1.4531521
        %v5710 = vadd.f32 %v5694, -1.4531521
        %v5711 = vadd.f32 %v5695, -1.4531521
        %v5712 = vadd.f32 %v5696, -1.4531521
        %v5713 = vadd.f32 %v5697, -1.4531521
        %v5714 = vadd.f32 %v5698, -1.4531521
        %v5715 = vadd.f32 %v5699, -1.4531521
        %v5716 = vadd.f32 %v5700, -1.4531521
        %v5717 = vadd.f32 %v5701, -1.4531521
        %v5718 = vadd.f32 %v5702, -1.4531521
        %v5719 = vadd.f32 %v5703, -1.4531521
        %v5720 = vadd.f32 %v5704, -1.4531521
        %v5721 = vadd.f32 %v5705, -1.4531521
        %v5722 = vadd.f32 %v5706, -1.4531521
        %v5723 = vmul.f32 %v5660, %v5707
        %v5724 = vmul.f32 %v5662, %v5708
        %v5725 = vmul.f32 %v5664, %v5709
        %v5726 = vmul.f32 %v5666, %v5710
        %v5727 = vmul.f32 %v5668, %v5711
        %v5728 = vmul.f32 %v5670, %v5712
        %v5729 = vmul.f32 %v5672, %v5713
        %v5730 = vmul.f32 %v5674, %v5714
        %v5731 = vmul.f32 %v5676, %v5715
        %v5732 = vmul.f32 %v5678, %v5716
        %v5733 = vmul.f32 %v5680, %v5717
        %v5734 = vmul.f32 %v5682, %v5718
        %v5735 = vmul.f32 %v5684, %v5719
        %v5736 = vmul.f32 %v5686, %v5720
        %v5737 = vmul.f32 %v5688, %v5721
        %v5738 = vmul.f32 %v5690, %v5722
        %v5739 = vadd.f32 %v5723, 1.4214138
        %v5740 = vadd.f32 %v5724, 1.4214138
        %v5741 = vadd.f32 %v5725, 1.4214138
        %v5742 = vadd.f32 %v5726, 1.4214138
        %v5743 = vadd.f32 %v5727, 1.4214138
        %v5744 = vadd.f32 %v5728, 1.4214138
        %v5745 = vadd.f32 %v5729, 1.4214138
        %v5746 = vadd.f32 %v5730, 1.4214138
        %v5747 = vadd.f32 %v5731, 1.4214138
        %v5748 = vadd.f32 %v5732, 1.4214138
        %v5749 = vadd.f32 %v5733, 1.4214138
        %v5750 = vadd.f32 %v5734, 1.4214138
        %v5751 = vadd.f32 %v5735, 1.4214138
        %v5752 = vadd.f32 %v5736, 1.4214138
        %v5753 = vadd.f32 %v5737, 1.4214138
        %v5754 = vadd.f32 %v5738, 1.4214138
        %v5755 = vmul.f32 %v5660, %v5739
        %v5756 = vmul.f32 %v5662, %v5740
        %v5757 = vmul.f32 %v5664, %v5741
        %v5758 = vmul.f32 %v5666, %v5742
        %v5759 = vmul.f32 %v5668, %v5743
        %v5760 = vmul.f32 %v5670, %v5744
        %v5761 = vmul.f32 %v5672, %v5745
        %v5762 = vmul.f32 %v5674, %v5746
        %v5763 = vmul.f32 %v5676, %v5747
        %v5764 = vmul.f32 %v5678, %v5748
        %v5765 = vmul.f32 %v5680, %v5749
        %v5766 = vmul.f32 %v5682, %v5750
        %v5767 = vmul.f32 %v5684, %v5751
        %v5768 = vmul.f32 %v5686, %v5752
        %v5769 = vmul.f32 %v5688, %v5753
        %v5770 = vmul.f32 %v5690, %v5754
        %v5771 = vadd.f32 %v5755, -0.28449672
        %v5772 = vadd.f32 %v5756, -0.28449672
        %v5773 = vadd.f32 %v5757, -0.28449672
        %v5774 = vadd.f32 %v5758, -0.28449672
        %v5775 = vadd.f32 %v5759, -0.28449672
        %v5776 = vadd.f32 %v5760, -0.28449672
        %v5777 = vadd.f32 %v5761, -0.28449672
        %v5778 = vadd.f32 %v5762, -0.28449672
        %v5779 = vadd.f32 %v5763, -0.28449672
        %v5780 = vadd.f32 %v5764, -0.28449672
        %v5781 = vadd.f32 %v5765, -0.28449672
        %v5782 = vadd.f32 %v5766, -0.28449672
        %v5783 = vadd.f32 %v5767, -0.28449672
        %v5784 = vadd.f32 %v5768, -0.28449672
        %v5785 = vadd.f32 %v5769, -0.28449672
        %v5786 = vadd.f32 %v5770, -0.28449672
        %v5787 = vmul.f32 %v5660, %v5771
        %v5788 = vmul.f32 %v5662, %v5772
        %v5789 = vmul.f32 %v5664, %v5773
        %v5790 = vmul.f32 %v5666, %v5774
        %v5791 = vmul.f32 %v5668, %v5775
        %v5792 = vmul.f32 %v5670, %v5776
        %v5793 = vmul.f32 %v5672, %v5777
        %v5794 = vmul.f32 %v5674, %v5778
        %v5795 = vmul.f32 %v5676, %v5779
        %v5796 = vmul.f32 %v5678, %v5780
        %v5797 = vmul.f32 %v5680, %v5781
        %v5798 = vmul.f32 %v5682, %v5782
        %v5799 = vmul.f32 %v5684, %v5783
        %v5800 = vmul.f32 %v5686, %v5784
        %v5801 = vmul.f32 %v5688, %v5785
        %v5802 = vmul.f32 %v5690, %v5786
        %v5803 = vadd.f32 %v5787, 0.2548296
        %v5804 = vadd.f32 %v5788, 0.2548296
        %v5805 = vadd.f32 %v5789, 0.2548296
        %v5806 = vadd.f32 %v5790, 0.2548296
        %v5807 = vadd.f32 %v5791, 0.2548296
        %v5808 = vadd.f32 %v5792, 0.2548296
        %v5809 = vadd.f32 %v5793, 0.2548296
        %v5810 = vadd.f32 %v5794, 0.2548296
        %v5811 = vadd.f32 %v5795, 0.2548296
        %v5812 = vadd.f32 %v5796, 0.2548296
        %v5813 = vadd.f32 %v5797, 0.2548296
        %v5814 = vadd.f32 %v5798, 0.2548296
        %v5815 = vadd.f32 %v5799, 0.2548296
        %v5816 = vadd.f32 %v5800, 0.2548296
        %v5817 = vadd.f32 %v5801, 0.2548296
        %v5818 = vadd.f32 %v5802, 0.2548296
        %v5819 = vmul.f32 %v5660, %v5803
        %v5820 = vmul.f32 %v5662, %v5804
        %v5821 = vmul.f32 %v5664, %v5805
        %v5822 = vmul.f32 %v5666, %v5806
        %v5823 = vmul.f32 %v5668, %v5807
        %v5824 = vmul.f32 %v5670, %v5808
        %v5825 = vmul.f32 %v5672, %v5809
        %v5826 = vmul.f32 %v5674, %v5810
        %v5827 = vmul.f32 %v5676, %v5811
        %v5828 = vmul.f32 %v5678, %v5812
        %v5829 = vmul.f32 %v5680, %v5813
        %v5830 = vmul.f32 %v5682, %v5814
        %v5831 = vmul.f32 %v5684, %v5815
        %v5832 = vmul.f32 %v5686, %v5816
        %v5833 = vmul.f32 %v5688, %v5817
        %v5834 = vmul.f32 %v5690, %v5818
        %v5835 = vsub.f32 0.0, %v5611
        %v5836 = vsub.f32 0.0, %v5612
        %v5837 = vsub.f32 0.0, %v5613
        %v5838 = vsub.f32 0.0, %v5614
        %v5839 = vsub.f32 0.0, %v5615
        %v5840 = vsub.f32 0.0, %v5616
        %v5841 = vsub.f32 0.0, %v5617
        %v5842 = vsub.f32 0.0, %v5618
        %v5843 = vsub.f32 0.0, %v5619
        %v5844 = vsub.f32 0.0, %v5620
        %v5845 = vsub.f32 0.0, %v5621
        %v5846 = vsub.f32 0.0, %v5622
        %v5847 = vsub.f32 0.0, %v5623
        %v5848 = vsub.f32 0.0, %v5624
        %v5849 = vsub.f32 0.0, %v5625
        %v5850 = vsub.f32 0.0, %v5626
        %v5851 = vmul.f32 %v5835, %v5611
        %v5852 = vmul.f32 %v5836, %v5612
        %v5853 = vmul.f32 %v5837, %v5613
        %v5854 = vmul.f32 %v5838, %v5614
        %v5855 = vmul.f32 %v5839, %v5615
        %v5856 = vmul.f32 %v5840, %v5616
        %v5857 = vmul.f32 %v5841, %v5617
        %v5858 = vmul.f32 %v5842, %v5618
        %v5859 = vmul.f32 %v5843, %v5619
        %v5860 = vmul.f32 %v5844, %v5620
        %v5861 = vmul.f32 %v5845, %v5621
        %v5862 = vmul.f32 %v5846, %v5622
        %v5863 = vmul.f32 %v5847, %v5623
        %v5864 = vmul.f32 %v5848, %v5624
        %v5865 = vmul.f32 %v5849, %v5625
        %v5866 = vmul.f32 %v5850, %v5626
        %v5867 = vmul.f32 %v5851, 1.442695
        %v5868 = vpow.pop %v5867
        %v5869 = vmul.f32 %v5852, 1.442695
        %v5870 = vpow.pop %v5869
        %v5871 = vmul.f32 %v5853, 1.442695
        %v5872 = vpow.pop %v5871
        %v5873 = vmul.f32 %v5854, 1.442695
        %v5874 = vpow.pop %v5873
        %v5875 = vmul.f32 %v5855, 1.442695
        %v5876 = vpow.pop %v5875
        %v5877 = vmul.f32 %v5856, 1.442695
        %v5878 = vpow.pop %v5877
        %v5879 = vmul.f32 %v5857, 1.442695
        %v5880 = vpow.pop %v5879
        %v5881 = vmul.f32 %v5858, 1.442695
        %v5882 = vpow.pop %v5881
        %v5883 = vmul.f32 %v5859, 1.442695
        %v5884 = vpow.pop %v5883
        %v5885 = vmul.f32 %v5860, 1.442695
        %v5886 = vpow.pop %v5885
        %v5887 = vmul.f32 %v5861, 1.442695
        %v5888 = vpow.pop %v5887
        %v5889 = vmul.f32 %v5862, 1.442695
        %v5890 = vpow.pop %v5889
        %v5891 = vmul.f32 %v5863, 1.442695
        %v5892 = vpow.pop %v5891
        %v5893 = vmul.f32 %v5864, 1.442695
        %v5894 = vpow.pop %v5893
        %v5895 = vmul.f32 %v5865, 1.442695
        %v5896 = vpow.pop %v5895
        %v5897 = vmul.f32 %v5866, 1.442695
        %v5898 = vpow.pop %v5897
        %v5899 = vmul.f32 %v5819, %v5868
        %v5900 = vmul.f32 %v5820, %v5870
        %v5901 = vmul.f32 %v5821, %v5872
        %v5902 = vmul.f32 %v5822, %v5874
        %v5903 = vmul.f32 %v5823, %v5876
        %v5904 = vmul.f32 %v5824, %v5878
        %v5905 = vmul.f32 %v5825, %v5880
        %v5906 = vmul.f32 %v5826, %v5882
        %v5907 = vmul.f32 %v5827, %v5884
        %v5908 = vmul.f32 %v5828, %v5886
        %v5909 = vmul.f32 %v5829, %v5888
        %v5910 = vmul.f32 %v5830, %v5890
        %v5911 = vmul.f32 %v5831, %v5892
        %v5912 = vmul.f32 %v5832, %v5894
        %v5913 = vmul.f32 %v5833, %v5896
        %v5914 = vmul.f32 %v5834, %v5898
        %v5915 = vsub.f32 1.0, %v5899
        %v5916 = vsub.f32 1.0, %v5900
        %v5917 = vsub.f32 1.0, %v5901
        %v5918 = vsub.f32 1.0, %v5902
        %v5919 = vsub.f32 1.0, %v5903
        %v5920 = vsub.f32 1.0, %v5904
        %v5921 = vsub.f32 1.0, %v5905
        %v5922 = vsub.f32 1.0, %v5906
        %v5923 = vsub.f32 1.0, %v5907
        %v5924 = vsub.f32 1.0, %v5908
        %v5925 = vsub.f32 1.0, %v5909
        %v5926 = vsub.f32 1.0, %v5910
        %v5927 = vsub.f32 1.0, %v5911
        %v5928 = vsub.f32 1.0, %v5912
        %v5929 = vsub.f32 1.0, %v5913
        %v5930 = vsub.f32 1.0, %v5914
        %vm5931 = vcmp.lt.f32.partialorder %v5595, 0.0
        %vm5932 = vcmp.lt.f32.partialorder %v5596, 0.0
        %vm5933 = vcmp.lt.f32.partialorder %v5597, 0.0
        %vm5934 = vcmp.lt.f32.partialorder %v5598, 0.0
        %vm5935 = vcmp.lt.f32.partialorder %v5599, 0.0
        %vm5936 = vcmp.lt.f32.partialorder %v5600, 0.0
        %vm5937 = vcmp.lt.f32.partialorder %v5601, 0.0
        %vm5938 = vcmp.lt.f32.partialorder %v5602, 0.0
        %vm5939 = vcmp.lt.f32.partialorder %v5603, 0.0
        %vm5940 = vcmp.lt.f32.partialorder %v5604, 0.0
        %vm5941 = vcmp.lt.f32.partialorder %v5605, 0.0
        %vm5942 = vcmp.lt.f32.partialorder %v5606, 0.0
        %vm5943 = vcmp.lt.f32.partialorder %v5607, 0.0
        %vm5944 = vcmp.lt.f32.partialorder %v5608, 0.0
        %vm5945 = vcmp.lt.f32.partialorder %v5609, 0.0
        %vm5946 = vcmp.lt.f32.partialorder %v5610, 0.0
        %v5947 = vsub.f32 0.0, %v5915
        %v5948 = vsub.f32 0.0, %v5916
        %v5949 = vsub.f32 0.0, %v5917
        %v5950 = vsub.f32 0.0, %v5918
        %v5951 = vsub.f32 0.0, %v5919
        %v5952 = vsub.f32 0.0, %v5920
        %v5953 = vsub.f32 0.0, %v5921
        %v5954 = vsub.f32 0.0, %v5922
        %v5955 = vsub.f32 0.0, %v5923
        %v5956 = vsub.f32 0.0, %v5924
        %v5957 = vsub.f32 0.0, %v5925
        %v5958 = vsub.f32 0.0, %v5926
        %v5959 = vsub.f32 0.0, %v5927
        %v5960 = vsub.f32 0.0, %v5928
        %v5961 = vsub.f32 0.0, %v5929
        %v5962 = vsub.f32 0.0, %v5930
        %v5963 = vsel %vm5931, %v5947, %v5915
        %v5964 = vsel %vm5932, %v5948, %v5916
        %v5965 = vsel %vm5933, %v5949, %v5917
        %v5966 = vsel %vm5934, %v5950, %v5918
        %v5967 = vsel %vm5935, %v5951, %v5919
        %v5968 = vsel %vm5936, %v5952, %v5920
        %v5969 = vsel %vm5937, %v5953, %v5921
        %v5970 = vsel %vm5938, %v5954, %v5922
        %v5971 = vsel %vm5939, %v5955, %v5923
        %v5972 = vsel %vm5940, %v5956, %v5924
        %v5973 = vsel %vm5941, %v5957, %v5925
        %v5974 = vsel %vm5942, %v5958, %v5926
        %v5975 = vsel %vm5943, %v5959, %v5927
        %v5976 = vsel %vm5944, %v5960, %v5928
        %v5977 = vsel %vm5945, %v5961, %v5929
        %v5978 = vsel %vm5946, %v5962, %v5930
        %v5979 = vmul.f32 %v5563, 0.5
        %v5980 = vmul.f32 %v5565, 0.5
        %v5981 = vmul.f32 %v5567, 0.5
        %v5982 = vmul.f32 %v5569, 0.5
        %v5983 = vmul.f32 %v5571, 0.5
        %v5984 = vmul.f32 %v5573, 0.5
        %v5985 = vmul.f32 %v5575, 0.5
        %v5986 = vmul.f32 %v5577, 0.5
        %v5987 = vmul.f32 %v5579, 0.5
        %v5988 = vmul.f32 %v5581, 0.5
        %v5989 = vmul.f32 %v5583, 0.5
        %v5990 = vmul.f32 %v5585, 0.5
        %v5991 = vmul.f32 %v5587, 0.5
        %v5992 = vmul.f32 %v5589, 0.5
        %v5993 = vmul.f32 %v5591, 0.5
        %v5994 = vmul.f32 %v5593, 0.5
        %v5995 = vadd.f32 %v5963, 1.0
        %v5996 = vadd.f32 %v5964, 1.0
        %v5997 = vadd.f32 %v5965, 1.0
        %v5998 = vadd.f32 %v5966, 1.0
        %v5999 = vadd.f32 %v5967, 1.0
        %v6000 = vadd.f32 %v5968, 1.0
        %v6001 = vadd.f32 %v5969, 1.0
        %v6002 = vadd.f32 %v5970, 1.0
        %v6003 = vadd.f32 %v5971, 1.0
        %v6004 = vadd.f32 %v5972, 1.0
        %v6005 = vadd.f32 %v5973, 1.0
        %v6006 = vadd.f32 %v5974, 1.0
        %v6007 = vadd.f32 %v5975, 1.0
        %v6008 = vadd.f32 %v5976, 1.0
        %v6009 = vadd.f32 %v5977, 1.0
        %v6010 = vadd.f32 %v5978, 1.0
        %v6011 = vmul.f32 %v5979, %v5995
        %v6012 = vmul.f32 %v5980, %v5996
        %v6013 = vmul.f32 %v5981, %v5997
        %v6014 = vmul.f32 %v5982, %v5998
        %v6015 = vmul.f32 %v5983, %v5999
        %v6016 = vmul.f32 %v5984, %v6000
        %v6017 = vmul.f32 %v5985, %v6001
        %v6018 = vmul.f32 %v5986, %v6002
        %v6019 = vmul.f32 %v5987, %v6003
        %v6020 = vmul.f32 %v5988, %v6004
        %v6021 = vmul.f32 %v5989, %v6005
        %v6022 = vmul.f32 %v5990, %v6006
        %v6023 = vmul.f32 %v5991, %v6007
        %v6024 = vmul.f32 %v5992, %v6008
        %v6025 = vmul.f32 %v5993, %v6009
        %v6026 = vmul.f32 %v5994, %v6010
        %v6027 = vmul.f32 %v6011, %v5564
        %v6028 = vmul.f32 %v6012, %v5566
        %v6029 = vmul.f32 %v6013, %v5568
        %v6030 = vmul.f32 %v6014, %v5570
        %v6031 = vmul.f32 %v6015, %v5572
        %v6032 = vmul.f32 %v6016, %v5574
        %v6033 = vmul.f32 %v6017, %v5576
        %v6034 = vmul.f32 %v6018, %v5578
        %v6035 = vmul.f32 %v6019, %v5580
        %v6036 = vmul.f32 %v6020, %v5582
        %v6037 = vmul.f32 %v6021, %v5584
        %v6038 = vmul.f32 %v6022, %v5586
        %v6039 = vmul.f32 %v6023, %v5588
        %v6040 = vmul.f32 %v6024, %v5590
        %v6041 = vmul.f32 %v6025, %v5592
        %v6042 = vmul.f32 %v6026, %v5594
        %v6043 = vpack.c.bf16 %v6028, %v6027
        %v6044 = vpack.c.bf16 %v6030, %v6029
        %v6045 = vpack.c.bf16 %v6032, %v6031
        %v6046 = vpack.c.bf16 %v6034, %v6033
        %v6047 = vpack.c.bf16 %v6036, %v6035
        %v6048 = vpack.c.bf16 %v6038, %v6037
        %v6049 = vpack.c.bf16 %v6040, %v6039
        %v6050 = vpack.c.bf16 %v6042, %v6041
        %6051 = vmatprep.subr.bf16.mxu0 0
        %6052 = vmatpush1.bf16.msra.mxu0 %v3412
        %6053 = vmatprep.subr.bf16.mxu0 0
        %6054 = vmatpush1.bf16.msra.mxu0 %v3411
        %6055 = vmatprep.subr.bf16.mxu0 0
        %6056 = vmatpush1.bf16.msra.mxu0 %v3410
        %6057 = vmatprep.subr.bf16.mxu0 0
        %6058 = vmatpush1.bf16.msra.mxu0 %v3409
        %6059 = vmatprep.subr.bf16.mxu0 0
        %6060 = vmatpush1.bf16.msra.mxu0 %v3408
        %6061 = vmatprep.subr.bf16.mxu0 0
        %6062 = vmatpush1.bf16.msra.mxu0 %v3407
        %6063 = vmatprep.subr.bf16.mxu0 0
        %6064 = vmatpush1.bf16.msra.mxu0 %v3406
        %6065 = vmatprep.subr.bf16.mxu0 0
        %6066 = vmatpush1.bf16.msra.mxu0 %v3405
        %6067 = vmatprep.subr.bf16.mxu0 0
        %6068 = vmatpush2.bf16.msra.mxu0 0
        %6069 = vmatprep.subr.bf16.mxu0 0
        %6070 = vmatpush2.bf16.msra.mxu0 0
        %6071 = vmatprep.subr.bf16.mxu0 0
        %6072 = vmatpush2.bf16.msra.mxu0 0
        %6073 = vmatprep.subr.bf16.mxu0 0
        %6074 = vmatpush2.bf16.msra.mxu0 0
        %6075 = vmatprep.subr.bf16.mxu0 0
        %6076 = vmatpush2.bf16.msra.mxu0 0
        %6077 = vmatprep.subr.bf16.mxu0 0
        %6078 = vmatpush2.bf16.msra.mxu0 0
        %6079 = vmatprep.subr.bf16.mxu0 0
        %6080 = vmatpush2.bf16.msra.mxu0 0
        %6081 = vmatprep.subr.bf16.mxu0 0
        %6082 = vmatpush2.bf16.msra.mxu0 0
        %6083 = vmatprep.mubr.bf16.mxu0 0
        %6084 = vmatmul.mubr.bf16.gmra.mxu0 %v6043
        %v6085 = vpop.f32.mrf.mxu0
        %v6086 = vadd.f32 %v3371, %v6085
        %v6087 = vpop.f32.mrf.mxu0
        %v6088 = vpop.f32.mrf.mxu0
        %v6089 = vadd.f32 %v3371, %v6088
        %v6090 = vpop.f32.mrf.mxu0
        %6091 = vmatprep.mubr.bf16.mxu0 0
        %6092 = vmatmul.mubr.bf16.gmra.mxu0 %v6044
        %v6093 = vpop.f32.mrf.mxu0
        %v6094 = vadd.f32 %v3371, %v6093
        %v6095 = vpop.f32.mrf.mxu0
        %v6096 = vpop.f32.mrf.mxu0
        %v6097 = vadd.f32 %v3371, %v6096
        %v6098 = vpop.f32.mrf.mxu0
        %6099 = vmatprep.mubr.bf16.mxu0 0
        %6100 = vmatmul.mubr.bf16.gmra.mxu0 %v6045
        %v6101 = vpop.f32.mrf.mxu0
        %v6102 = vadd.f32 %v3371, %v6101
        %v6103 = vpop.f32.mrf.mxu0
        %v6104 = vpop.f32.mrf.mxu0
        %v6105 = vadd.f32 %v3371, %v6104
        %v6106 = vpop.f32.mrf.mxu0
        %6107 = vmatprep.mubr.bf16.mxu0 0
        %6108 = vmatmul.mubr.bf16.gmra.mxu0 %v6046
        %v6109 = vpop.f32.mrf.mxu0
        %v6110 = vadd.f32 %v3371, %v6109
        %v6111 = vpop.f32.mrf.mxu0
        %v6112 = vpop.f32.mrf.mxu0
        %v6113 = vadd.f32 %v3371, %v6112
        %v6114 = vpop.f32.mrf.mxu0
        %6115 = vmatprep.mubr.bf16.mxu0 0
        %6116 = vmatmul.mubr.bf16.gmra.mxu0 %v6047
        %v6117 = vpop.f32.mrf.mxu0
        %v6118 = vadd.f32 %v3371, %v6117
        %v6119 = vpop.f32.mrf.mxu0
        %v6120 = vpop.f32.mrf.mxu0
        %v6121 = vadd.f32 %v3371, %v6120
        %v6122 = vpop.f32.mrf.mxu0
        %6123 = vmatprep.mubr.bf16.mxu0 0
        %6124 = vmatmul.mubr.bf16.gmra.mxu0 %v6048
        %v6125 = vpop.f32.mrf.mxu0
        %v6126 = vadd.f32 %v3371, %v6125
        %v6127 = vpop.f32.mrf.mxu0
        %v6128 = vpop.f32.mrf.mxu0
        %v6129 = vadd.f32 %v3371, %v6128
        %v6130 = vpop.f32.mrf.mxu0
        %6131 = vmatprep.mubr.bf16.mxu0 0
        %6132 = vmatmul.mubr.bf16.gmra.mxu0 %v6049
        %v6133 = vpop.f32.mrf.mxu0
        %v6134 = vadd.f32 %v3371, %v6133
        %v6135 = vpop.f32.mrf.mxu0
        %v6136 = vpop.f32.mrf.mxu0
        %v6137 = vadd.f32 %v3371, %v6136
        %v6138 = vpop.f32.mrf.mxu0
        %6139 = vmatprep.mubr.bf16.mxu0 0
        %6140 = vmatmul.mubr.bf16.gmra.mxu0 %v6050
        %v6141 = vpop.f32.mrf.mxu0
        %v6142 = vadd.f32 %v3371, %v6141
        %v6143 = vpop.f32.mrf.mxu0
        %v6144 = vpop.f32.mrf.mxu0
        %v6145 = vadd.f32 %v3371, %v6144
        %v6146 = vpop.f32.mrf.mxu0
        %6147 = vdwg.mxu0
        %s6148 = scalar_lea.vmem %s217, 128 [#allocation3]
        %6149 = vst.msk [vmem:[%s6148] sm:$0xff] %vm3518, %v6086
        %6150 = vst.msk [vmem:[%s6148 + $0x8] sm:$0xff] %vm3518, %v6089
        %6151 = vst.msk [vmem:[%s6148 + $0x10] sm:$0xff] %vm3518, %v6094
        %6152 = vst.msk [vmem:[%s6148 + $0x18] sm:$0xff] %vm3518, %v6097
        %6153 = vst.msk [vmem:[%s6148 + $0x20] sm:$0xff] %vm3518, %v6102
        %6154 = vst.msk [vmem:[%s6148 + $0x28] sm:$0xff] %vm3518, %v6105
        %6155 = vst.msk [vmem:[%s6148 + $0x30] sm:$0xff] %vm3518, %v6110
        %6156 = vst.msk [vmem:[%s6148 + $0x38] sm:$0xff] %vm3518, %v6113
        %6157 = vst.msk [vmem:[%s6148 + $0x40] sm:$0xff] %vm3518, %v6118
        %6158 = vst.msk [vmem:[%s6148 + $0x48] sm:$0xff] %vm3518, %v6121
        %6159 = vst.msk [vmem:[%s6148 + $0x50] sm:$0xff] %vm3518, %v6126
        %6160 = vst.msk [vmem:[%s6148 + $0x58] sm:$0xff] %vm3518, %v6129
        %6161 = vst.msk [vmem:[%s6148 + $0x60] sm:$0xff] %vm3518, %v6134
        %6162 = vst.msk [vmem:[%s6148 + $0x68] sm:$0xff] %vm3518, %v6137
        %6163 = vst.msk [vmem:[%s6148 + $0x70] sm:$0xff] %vm3518, %v6142
        %6164 = vst.msk [vmem:[%s6148 + $0x78] sm:$0xff] %vm3518, %v6145
        %s6165 = sand.u32 %s137, 1
        %s6166 = scalar_lea.sflag [#allocation4], %s6165
        %s6167 = sand.u32 %s137, 1
        %s6168 = smul.addr %s6167, 256
        %s6169 = scalar_lea.vmem [#allocation3], %s6168
        // Predicated region
        $region41: #{feed_forward.3} parent=39 // pred_check
          %p6170 = pneg %p147
        $region42: #{feed_forward.3} parent=39 // pred_check_branch
          %6172 = sbr.rel (%p6170) target = $region44
        $region43: #{feed_forward.3} parent=39 // pred_region
          %s6174 = ssub.s32 4096, 4096
          %6175 = vsyncadd %s6166, %s6174
          %s6176 = smul.addr %s19, 32
          %s6177 = smul.addr %s6176, 128
          %s6178 = scalar_lea.hbm %s5, %s6177
          %s6179 = sshll.u32 %s6169, 4
          %s6180 = int_to_ptr.vmem [resolvable:$true] %s6179
          %6185 = dma.vmem_to_hbm [thread:$0]  %s6180, 4096, %s6178, %s6166, 128, 128, 8
        $region44: #{feed_forward.3} parent=39 // pred_fallthru
          _
      $region40: #{feed_forward.3} parent=5 // pred_fallthru
        _
      %p6186 = scmp.le.s32.totalorder 2, %s14
      // Predicated region
      $region45: #{feed_forward.3} parent=5 // pred_check
        %p6187 = pneg %p6186
      $region46: #{feed_forward.3} parent=5 // pred_check_branch
        %6189 = sbr.rel (%p6187) target = $region48
      $region47: #{feed_forward.3} parent=5 // pred_region
        %s6190 = ssub.s32 %s14, 2
        // Predicated region
        $region49: #{feed_forward.3} parent=47 // pred_check
          %p6191 = pneg %p153
        $region50: #{feed_forward.3} parent=47 // pred_check_branch
          %6193 = sbr.rel (%p6191) target = $region52
        $region51: #{feed_forward.3} parent=47 // pred_region
          %s6194 = sand.u32 %s138, 1
          %s6195 = scalar_lea.sflag [#allocation4], %s6194
          %s6196 = sand.u32 %s138, 1
          %s6197 = smul.addr %s6196, 256
          %s6198 = scalar_lea.vmem [#allocation3], %s6197
          %6199 = dma.done %s6195, 4096
        $region52: #{feed_forward.3} parent=47 // pred_fallthru
          _
      $region48: #{feed_forward.3} parent=5 // pred_fallthru
        _
    $region6: #{feed_forward.3} parent=1 // loop_footer
      %s18 = sadd.s32 1, %s14
    $region7: #{feed_forward.3} parent=1 // loop_footer_branch
      %13 = sbr.rel target = $region3
    $region8: #{feed_forward.3} parent=1 // loop_exit
      _
    %6200 = vsyncpa [#allocation4], 1
    %s6201 = scalar_lea.sflag [#allocation4], 1
    %6202 = vsyncpa %s6201, 1

</llo_original>
